<compile_context>
chip_gen: v7x
topology: tpu7x:2x2x1
jax: 0.10.0
libtpu: 0.0.40
codegen_flags: <defaults>
</compile_context>

<pallas_src>
import functools

import jax
import jax.numpy as jnp
from jax.experimental import pallas as pl
from jax.experimental.pallas import tpu as pltpu


LANE = 128                      # channel padding target (lane width)
VMEM_LIMIT_BYTES = 32 * 1024 * 1024


# ---------------------------------------------------------------------------
# Weight / bias packing (done ONCE at init, outside the forward path)
# ---------------------------------------------------------------------------
def _pack_bias(b):
    c = b.shape[0]
    return jnp.pad(b.astype(jnp.float32), (0, LANE - c)).reshape(1, LANE)


def _pack_w_conv0(w):
    """First conv (4x4, stride 2): plain im2col K = kh*kw*cin (<=128) -> (128,128)."""
    cout, cin, kh, kw = w.shape
    k = kh * kw * cin
    assert k <= LANE and cout <= LANE
    wt = jnp.transpose(w, (2, 3, 1, 0)).reshape(k, cout)
    return jnp.pad(wt, ((0, LANE - k), (0, LANE - cout))).astype(jnp.bfloat16)


def _pack_w_4x4_s2(w):
    """4x4 stride-2 conv consumed from the phase-major scratch.
    K order = (di, dj, phase = 2*(ki%2)+(kj%2), cin_pad128), ki=2*di+p, kj=2*dj+q."""
    cout, cin, kh, kw = w.shape
    assert kh == 4 and kw == 4 and cin <= LANE and cout <= LANE
    wt = jnp.transpose(w, (2, 3, 1, 0))                 # (ki, kj, cin, cout)
    wt = wt.reshape(2, 2, 2, 2, cin, cout)              # (di, p, dj, q, cin, cout)
    wt = jnp.transpose(wt, (0, 2, 1, 3, 4, 5))          # (di, dj, p, q, cin, cout)
    wt = jnp.pad(wt, ((0, 0),) * 4 + ((0, LANE - cin), (0, LANE - cout)))
    return wt.reshape(16 * LANE, LANE).astype(jnp.bfloat16)


def _pack_w_3x3(w):
    """3x3 stride-1 conv: K order = (ki, kj, cin_pad128) -> (9*128, 128)."""
    cout, cin, kh, kw = w.shape
    assert kh == 3 and kw == 3 and cin <= LANE and cout <= LANE
    wt = jnp.transpose(w, (2, 3, 1, 0))                 # (3, 3, cin, cout)
    wt = jnp.pad(wt, ((0, 0), (0, 0), (0, LANE - cin), (0, LANE - cout)))
    return wt.reshape(9 * LANE, LANE).astype(jnp.bfloat16)


def _pack_w_1x1(w):
    cout, cin, kh, kw = w.shape
    assert kh == 1 and kw == 1 and cin <= LANE and cout <= LANE
    wt = w.reshape(cout, cin).T
    return jnp.pad(wt, ((0, LANE - cin), (0, LANE - cout))).astype(jnp.bfloat16)


def pack_encoder_params(params, *, stride, n_res_block):
    packed = []
    w, b = params["conv0"]; packed += [_pack_w_conv0(w), _pack_bias(b)]
    if stride == 4:
        w, b = params["conv1"]; packed += [_pack_w_4x4_s2(w), _pack_bias(b)]
        w, b = params["conv2"]; packed += [_pack_w_3x3(w), _pack_bias(b)]
    else:
        w, b = params["conv1"]; packed += [_pack_w_3x3(w), _pack_bias(b)]
    for i in range(n_res_block):
        w, b = params[f"res{i}_conv0"]; packed += [_pack_w_3x3(w), _pack_bias(b)]
        w, b = params[f"res{i}_conv1"]; packed += [_pack_w_1x1(w), _pack_bias(b)]
    return packed


# ---------------------------------------------------------------------------
# XLA-side im2col for the first conv only (input is tiny: 3 channels)
# ---------------------------------------------------------------------------
def _conv0_patch_matrix(x, *, group_by_parity):
    """Patch matrix for conv0 (4x4, stride 2, padding 1).

    x: (N, H, W, Cin) bf16, 16*Cin <= 128.  Returns (N, (H//2)*(W//2), 128) bf16.
    If group_by_parity, rows are ordered by output-pixel parity groups
    (odd,odd),(odd,even),(even,odd),(even,even) -- each raster-ordered -- so the
    kernel can scatter directly into the stride-phase scratch of conv1."""
    n, h, w, cin = x.shape
    ho, wo = h // 2, w // 2
    k = 16 * cin
    assert k <= LANE
    xp = jnp.pad(x, ((0, 0), (1, 1), (1, 1), (0, 0)))
    taps = [xp[:, ki:ki + 2 * ho:2, kj:kj + 2 * wo:2, :]
            for ki in range(4) for kj in range(4)]
    p = jnp.concatenate(taps, axis=-1)                  # (N, ho, wo, 16*cin)
    if group_by_parity:
        p = jnp.stack([p[:, 1::2, 1::2], p[:, 1::2, 0::2],
                       p[:, 0::2, 1::2], p[:, 0::2, 0::2]], axis=1)
    p = p.reshape(n, ho * wo, k)
    return jnp.pad(p, ((0, 0), (0, 0), (0, LANE - k))).astype(jnp.bfloat16)


# ---------------------------------------------------------------------------
# The fused encoder kernel
# ---------------------------------------------------------------------------
def _make_encoder_kernel(*, stride, ho, wo, n_res_block):
    m = ho * wo
    n_stem = 6 if stride == 4 else 4

    def kernel(*refs):
        p0_ref = refs[0]
        stem = refs[1:1 + n_stem]
        res = refs[1 + n_stem:1 + n_stem + 4 * n_res_block]
        o_ref = refs[1 + n_stem + 4 * n_res_block]
        scratch = refs[2 + n_stem + 4 * n_res_block:]

        if stride == 4:
            w0_ref, b0_ref, w1_ref, b1_ref, w2_ref, b2_ref = stem
            s1, s2 = scratch
        else:
            w0_ref, b0_ref, w1_ref, b1_ref = stem
            (s2,) = scratch

        # zero-pad borders of the 3x3 patch scratch (interior overwritten later)
        s2[...] = jnp.zeros_like(s2)

        def conv3x3(x_hw_bf16, w_ref, b_ref):
            # x_hw_bf16: (ho, wo, 128) bf16.  3x3 / stride 1 / pad 1 as ONE matmul.
            s2[pl.ds(1, ho), pl.ds(1, wo), :] = x_hw_bf16
            taps = [s2[pl.ds(di, ho), pl.ds(dj, wo), :].reshape(m, LANE)
                    for di in range(3) for dj in range(3)]
            slab = jnp.concatenate(taps, axis=-1)        # (m, 9*128) bf16
            return jnp.dot(slab, w_ref[...],
                           preferred_element_type=jnp.float32) + b_ref[...]

        # ---- conv0 (4x4 stride 2): one (m0, 128) x (128, 128) matmul ----
        a0 = jnp.dot(p0_ref[...], w0_ref[...], preferred_element_type=jnp.float32)
        a0 = jnp.maximum(a0 + b0_ref[...], 0.0).astype(jnp.bfloat16)

        if stride == 4:
            # Scatter conv0's ReLU'd output into the phase-major, spatially
            # padded scratch (phase p,q at lanes (2p+q)*128, pad row/col = 0).
            s1[...] = jnp.zeros_like(s1)
            g = a0.reshape(4, ho, wo, LANE)
            s1[pl.ds(1, ho), pl.ds(1, wo), pl.ds(0 * LANE, LANE)] = g[0]
            s1[pl.ds(1, ho), pl.ds(0, wo), pl.ds(1 * LANE, LANE)] = g[1]
            s1[pl.ds(0, ho), pl.ds(1, wo), pl.ds(2 * LANE, LANE)] = g[2]
            s1[pl.ds(0, ho), pl.ds(0, wo), pl.ds(3 * LANE, LANE)] = g[3]
            # ---- conv1 (4x4 stride 2): 4 offset slices -> K = 2048 matmul ----
            pieces = [s1[pl.ds(di, ho), pl.ds(dj, wo), :].reshape(m, 4 * LANE)
                      for di in range(2) for dj in range(2)]
            slab = jnp.concatenate(pieces, axis=-1)      # (m, 2048) bf16
            h = jnp.dot(slab, w1_ref[...],
                        preferred_element_type=jnp.float32) + b1_ref[...]
            h = jnp.maximum(h, 0.0)
            # ---- conv2 (3x3 stride 1, no ReLU here) ----
            h = conv3x3(h.astype(jnp.bfloat16).reshape(ho, wo, LANE),
                        w2_ref, b2_ref)
        else:
            # ---- conv1 (3x3 stride 1, no ReLU here) ----
            h = conv3x3(a0.reshape(ho, wo, LANE), w1_ref, b1_ref)

        # ---- ResBlocks: ReLU -> 3x3 -> ReLU -> 1x1 -> + residual (f32) ----
        for i in range(n_res_block):
            wr0, br0, wr1, br1 = res[4 * i:4 * i + 4]
            xr = jnp.maximum(h, 0.0).astype(jnp.bfloat16)
            t = conv3x3(xr.reshape(ho, wo, LANE), wr0, br0)
            t = jnp.maximum(t, 0.0).astype(jnp.bfloat16)
            h = h + jnp.dot(t, wr1[...],
                            preferred_element_type=jnp.float32) + br1[...]

        # trailing encoder ReLU; lane-dense (m, 128) f32 store
        o_ref[...] = jnp.maximum(h, 0.0).astype(o_ref.dtype)

    return kernel


# ---------------------------------------------------------------------------
# Encoder forward (Pallas path) — matches the nn.Sequential order exactly
# ---------------------------------------------------------------------------
def encoder_forward(x_nchw, packed, *, stride, n_res_block, channel,
                    n_res_channel):
    assert stride in (2, 4)
    n, cin, H, W = x_nchw.shape
    assert H % stride == 0 and W % stride == 0
    x = jnp.transpose(x_nchw, (0, 2, 3, 1)).astype(jnp.bfloat16)  # NCHW -> NHWC

    h0, w0sp = H // 2, W // 2                                     # conv0 output
    if stride == 4:
        ho, wo = H // 4, W // 4
        assert h0 % 2 == 0 and w0sp % 2 == 0
        p0 = _conv0_patch_matrix(x, group_by_parity=True)
        scratch = [pltpu.VMEM((ho + 1, wo + 1, 4 * LANE), jnp.bfloat16),
                   pltpu.VMEM((ho + 2, wo + 2, LANE), jnp.bfloat16)]
    else:
        ho, wo = h0, w0sp
        p0 = _conv0_patch_matrix(x, group_by_parity=False)
        scratch = [pltpu.VMEM((ho + 2, wo + 2, LANE), jnp.bfloat16)]

    m0, m = h0 * w0sp, ho * wo
    kernel = _make_encoder_kernel(stride=stride, ho=ho, wo=wo,
                                  n_res_block=n_res_block)

    in_specs = [pl.BlockSpec((None, m0, LANE), lambda i: (i, 0, 0))]
    in_specs += [pl.BlockSpec(t.shape, lambda i: (0, 0)) for t in packed]

    # true (unpadded) FLOPs for the scheduler hint
    c_half = channel // 2
    flops = 2 * m0 * (16 * cin) * c_half
    if stride == 4:
        flops += 2 * m * (16 * c_half) * channel
        flops += 2 * m * (9 * channel) * channel
    else:
        flops += 2 * m * (9 * c_half) * channel
    flops += n_res_block * 2 * m * (9 * channel * n_res_channel
                                    + n_res_channel * channel)
    flops *= n
    bytes_accessed = (p0.size * p0.dtype.itemsize
                      + sum(t.size * t.dtype.itemsize for t in packed)
                      + n * m * LANE * 4)

    out = pl.pallas_call(
        kernel,
        out_shape=jax.ShapeDtypeStruct((n, m, LANE), jnp.float32),
        grid=(n,),
        in_specs=in_specs,
        out_specs=pl.BlockSpec((None, m, LANE), lambda i: (i, 0, 0)),
        scratch_shapes=scratch,
        compiler_params=pltpu.CompilerParams(
            dimension_semantics=("parallel",),
            vmem_limit_bytes=VMEM_LIMIT_BYTES),
        cost_estimate=pl.CostEstimate(flops=flops, transcendentals=0,
                                      bytes_accessed=bytes_accessed),
    )(p0, *packed)

    out = out[..., :channel].reshape(n, ho, wo, channel)           # drop lane pad
    return jnp.transpose(out, (0, 3, 1, 2)).astype(jnp.float32)    # NHWC -> NCHW


# ---------------------------------------------------------------------------
# Parameter init (deterministic, PyTorch default-like uniform bounds)
# ---------------------------------------------------------------------------
def _conv_params(key, cout, cin, kh, kw):
    kw_key, kb_key = jax.random.split(key)
    fan_in = cin * kh * kw
    bound = 1.0 / (fan_in ** 0.5)
    w = jax.random.uniform(kw_key, (cout, cin, kh, kw), jnp.float32, -bound, bound)
    b = jax.random.uniform(kb_key, (cout,), jnp.float32, -bound, bound)
    return w, b


def init_encoder_params(key, in_channel, channel, n_res_block, n_res_channel,
                        stride):
    params = {}
    keys = jax.random.split(key, 3 + 2 * n_res_block)
    if stride == 4:
        params["conv0"] = _conv_params(keys[0], channel // 2, in_channel, 4, 4)
        params["conv1"] = _conv_params(keys[1], channel, channel // 2, 4, 4)
        params["conv2"] = _conv_params(keys[2], channel, channel, 3, 3)
    elif stride == 2:
        params["conv0"] = _conv_params(keys[0], channel // 2, in_channel, 4, 4)
        params["conv1"] = _conv_params(keys[1], channel, channel // 2, 3, 3)
    else:
        raise ValueError("stride must be 2 or 4")
    for i in range(n_res_block):
        params[f"res{i}_conv0"] = _conv_params(keys[3 + 2 * i], n_res_channel,
                                               channel, 3, 3)
        params[f"res{i}_conv1"] = _conv_params(keys[4 + 2 * i], channel,
                                               n_res_channel, 1, 1)
    return params


# ---------------------------------------------------------------------------
# Pure-JAX reference with the same bf16-input / f32-accumulate precision policy
# ---------------------------------------------------------------------------
def _ref_conv(x, w, b, stride, padding):
    y = jax.lax.conv_general_dilated(
        x.astype(jnp.bfloat16),
        jnp.transpose(w, (2, 3, 1, 0)).astype(jnp.bfloat16),
        window_strides=(stride, stride),
        padding=((padding, padding), (padding, padding)),
        dimension_numbers=("NHWC", "HWIO", "NHWC"),
        preferred_element_type=jnp.float32)
    return y + b.astype(jnp.float32).reshape(1, 1, 1, -1)


def encoder_ref(x_nchw, params, *, stride, n_res_block):
    h = jnp.transpose(x_nchw, (0, 2, 3, 1)).astype(jnp.float32)
    h = jnp.maximum(_ref_conv(h, *params["conv0"], 2, 1), 0.0)
    if stride == 4:
        h = jnp.maximum(_ref_conv(h, *params["conv1"], 2, 1), 0.0)
        h = _ref_conv(h, *params["conv2"], 1, 1)
    else:
        h = _ref_conv(h, *params["conv1"], 1, 1)
    for i in range(n_res_block):
        w0, b0 = params[f"res{i}_conv0"]
        w1, b1 = params[f"res{i}_conv1"]
        t = jnp.maximum(_ref_conv(jnp.maximum(h, 0.0), w0, b0, 1, 1), 0.0)
        h = h + _ref_conv(t, w1, b1, 1, 0)
    h = jnp.maximum(h, 0.0)
    return jnp.transpose(h, (0, 3, 1, 2))


# ---------------------------------------------------------------------------
if __name__ == "__main__":
    # batch=2, in_channel=3, channel=32, n_res_block=2, n_res_channel=8, stride=4
    # spatial 32x32 so every layer's output grid is sublane-aligned (8 rows).
    in_channel, channel, n_res_block, n_res_channel, stride = 3, 32, 2, 8, 4

    root = jax.random.PRNGKey(0)
    k_params, k_x = jax.random.split(root)
    params = init_encoder_params(k_params, in_channel, channel,
                                 n_res_block, n_res_channel, stride)
    x = jax.random.normal(k_x, (2, in_channel, 32, 32), jnp.float32)  # NCHW

    # weights packed ONCE, outside the forward path
    packed = pack_encoder_params(params, stride=stride, n_res_block=n_res_block)

    fwd = jax.jit(functools.partial(
        encoder_forward, stride=stride, n_res_block=n_res_block,
        channel=channel, n_res_channel=n_res_channel))
    out = fwd(x, packed)
    jax.block_until_ready(out)

    expected = (2, channel, 32 // stride, 32 // stride)
    assert out.shape == expected, (out.shape, expected)
    assert out.dtype == jnp.float32
    assert bool(jnp.all(out >= 0.0))  # trailing encoder ReLU

    ref = jax.jit(functools.partial(encoder_ref, stride=stride,
                                    n_res_block=n_res_block))(x, params)
    jax.block_until_ready(ref)
    err = float(jnp.max(jnp.abs(out - ref)))
    assert err < 3e-2, f"max abs error vs reference = {err}"

    print("KERNEL_OK")
</pallas_src>

<mosaic_0001>
module attributes {stable_mosaic.version = 11 : i64} {
  func.func @kernel(%arg0: i32, %arg1: memref<1x256x128xbf16, #tpu.memory_space<vmem>>, %arg2: memref<128x128xbf16, #tpu.memory_space<vmem>>, %arg3: memref<1x128xf32, #tpu.memory_space<vmem>>, %arg4: memref<2048x128xbf16, #tpu.memory_space<vmem>>, %arg5: memref<1x128xf32, #tpu.memory_space<vmem>>, %arg6: memref<1152x128xbf16, #tpu.memory_space<vmem>>, %arg7: memref<1x128xf32, #tpu.memory_space<vmem>>, %arg8: memref<1152x128xbf16, #tpu.memory_space<vmem>>, %arg9: memref<1x128xf32, #tpu.memory_space<vmem>>, %arg10: memref<128x128xbf16, #tpu.memory_space<vmem>>, %arg11: memref<1x128xf32, #tpu.memory_space<vmem>>, %arg12: memref<1152x128xbf16, #tpu.memory_space<vmem>>, %arg13: memref<1x128xf32, #tpu.memory_space<vmem>>, %arg14: memref<128x128xbf16, #tpu.memory_space<vmem>>, %arg15: memref<1x128xf32, #tpu.memory_space<vmem>>, %arg16: memref<1x64x128xf32, #tpu.memory_space<vmem>>, %arg17: memref<9x9x512xbf16, #tpu.memory_space<vmem>>, %arg18: memref<10x10x128xbf16, #tpu.memory_space<vmem>>) attributes {dimension_semantics = [#tpu.dimension_semantics<parallel>], iteration_bounds = array<i64: 2>, scalar_prefetch = 0 : i64, scratch_operands = 2 : i64, tpu.core_type = #tpu.core_type<tc>, window_params = [{transform_indices = @transform_0, window_bounds = array<i64: 1, 256, 128>}, {pipeline_mode = #tpu.pipeline_mode<synchronous>, transform_indices = @transform_1, window_bounds = array<i64: 128, 128>}, {pipeline_mode = #tpu.pipeline_mode<synchronous>, transform_indices = @transform_2, window_bounds = array<i64: 1, 128>}, {pipeline_mode = #tpu.pipeline_mode<synchronous>, transform_indices = @transform_3, window_bounds = array<i64: 2048, 128>}, {pipeline_mode = #tpu.pipeline_mode<synchronous>, transform_indices = @transform_4, window_bounds = array<i64: 1, 128>}, {pipeline_mode = #tpu.pipeline_mode<synchronous>, transform_indices = @transform_5, window_bounds = array<i64: 1152, 128>}, {pipeline_mode = #tpu.pipeline_mode<synchronous>, transform_indices = @transform_6, window_bounds = array<i64: 1, 128>}, {pipeline_mode = #tpu.pipeline_mode<synchronous>, transform_indices = @transform_7, window_bounds = array<i64: 1152, 128>}, {pipeline_mode = #tpu.pipeline_mode<synchronous>, transform_indices = @transform_8, window_bounds = array<i64: 1, 128>}, {pipeline_mode = #tpu.pipeline_mode<synchronous>, transform_indices = @transform_9, window_bounds = array<i64: 128, 128>}, {pipeline_mode = #tpu.pipeline_mode<synchronous>, transform_indices = @transform_10, window_bounds = array<i64: 1, 128>}, {pipeline_mode = #tpu.pipeline_mode<synchronous>, transform_indices = @transform_11, window_bounds = array<i64: 1152, 128>}, {pipeline_mode = #tpu.pipeline_mode<synchronous>, transform_indices = @transform_12, window_bounds = array<i64: 1, 128>}, {pipeline_mode = #tpu.pipeline_mode<synchronous>, transform_indices = @transform_13, window_bounds = array<i64: 128, 128>}, {pipeline_mode = #tpu.pipeline_mode<synchronous>, transform_indices = @transform_14, window_bounds = array<i64: 1, 128>}, {transform_indices = @transform_15, window_bounds = array<i64: 1, 64, 128>}]} {
    %cst = arith.constant 0.000000e+00 : bf16
    %0 = vector.broadcast %cst : bf16 to vector<10x10x128xbf16>
    %c0 = arith.constant 0 : index
    %c0_0 = arith.constant 0 : index
    %c0_1 = arith.constant 0 : index
    %1 = vector.load %arg18[%c0, %c0_0, %c0_1] : memref<10x10x128xbf16, #tpu.memory_space<vmem>>, vector<10x10x128xbf16>
    tpu.vector_store %arg18[%c0, %c0_0, %c0_1], %0 {strides = array<i32>} : memref<10x10x128xbf16, #tpu.memory_space<vmem>>, vector<10x10x128xbf16>,
    %c0_2 = arith.constant 0 : index
    %c0_3 = arith.constant 0 : index
    %c0_4 = arith.constant 0 : index
    %2 = vector.load %arg1[%c0_2, %c0_3, %c0_4] : memref<1x256x128xbf16, #tpu.memory_space<vmem>>, vector<1x256x128xbf16>
    %3 = vector.shape_cast %2 : vector<1x256x128xbf16> to vector<256x128xbf16>
    %c0_5 = arith.constant 0 : index
    %c0_6 = arith.constant 0 : index
    %4 = vector.load %arg2[%c0_5, %c0_6] : memref<128x128xbf16, #tpu.memory_space<vmem>>, vector<128x128xbf16>
    %cst_7 = arith.constant dense<0.000000e+00> : vector<256x128xf32>
    %5 = tpu.matmul %3, %4, %cst_7 {dimension_numbers = #tpu.dot_dimension_numbers<[1], [0], [0], [1], [0, 0, 1, 1], [], []>} : vector<256x128xbf16>, vector<128x128xbf16>, vector<256x128xf32> -> vector<256x128xf32>
    %c0_8 = arith.constant 0 : index
    %c0_9 = arith.constant 0 : index
    %6 = vector.load %arg3[%c0_8, %c0_9] : memref<1x128xf32, #tpu.memory_space<vmem>>, vector<1x128xf32>
    %7 = vector.broadcast %6 : vector<1x128xf32> to vector<256x128xf32>
    %8 = arith.addf %5, %7 : vector<256x128xf32>
    %cst_10 = arith.constant 0.000000e+00 : f32
    %9 = vector.broadcast %cst_10 : f32 to vector<256x128xf32>
    %10 = arith.maximumf %8, %9 : vector<256x128xf32>
    %11 = arith.truncf %10 : vector<256x128xf32> to vector<256x128xbf16>
    %cst_11 = arith.constant 0.000000e+00 : bf16
    %12 = vector.broadcast %cst_11 : bf16 to vector<9x9x512xbf16>
    %c0_12 = arith.constant 0 : index
    %c0_13 = arith.constant 0 : index
    %c0_14 = arith.constant 0 : index
    %13 = vector.load %arg17[%c0_12, %c0_13, %c0_14] : memref<9x9x512xbf16, #tpu.memory_space<vmem>>, vector<9x9x512xbf16>
    tpu.vector_store %arg17[%c0_12, %c0_13, %c0_14], %12 {strides = array<i32>} : memref<9x9x512xbf16, #tpu.memory_space<vmem>>, vector<9x9x512xbf16>,
    %14 = vector.shape_cast %11 : vector<256x128xbf16> to vector<4x8x8x128xbf16>
    %15 = vector.extract_strided_slice %14 {offsets = [0, 0, 0, 0], sizes = [1, 8, 8, 128], strides = [1, 1, 1, 1]} : vector<4x8x8x128xbf16> to vector<1x8x8x128xbf16>
    %16 = vector.shape_cast %15 : vector<1x8x8x128xbf16> to vector<8x8x128xbf16>
    %c1 = arith.constant 1 : index
    %c1_15 = arith.constant 1 : index
    %c0_16 = arith.constant 0 : index
    %17 = vector.load %arg17[%c1, %c1_15, %c0_16] : memref<9x9x512xbf16, #tpu.memory_space<vmem>>, vector<8x8x128xbf16>
    tpu.vector_store %arg17[%c1, %c1_15, %c0_16], %16 {strides = array<i32>} : memref<9x9x512xbf16, #tpu.memory_space<vmem>>, vector<8x8x128xbf16>,
    %18 = vector.extract_strided_slice %14 {offsets = [1, 0, 0, 0], sizes = [1, 8, 8, 128], strides = [1, 1, 1, 1]} : vector<4x8x8x128xbf16> to vector<1x8x8x128xbf16>
    %19 = vector.shape_cast %18 : vector<1x8x8x128xbf16> to vector<8x8x128xbf16>
    %c1_17 = arith.constant 1 : index
    %c0_18 = arith.constant 0 : index
    %c128 = arith.constant 128 : index
    %20 = vector.load %arg17[%c1_17, %c0_18, %c128] : memref<9x9x512xbf16, #tpu.memory_space<vmem>>, vector<8x8x128xbf16>
    tpu.vector_store %arg17[%c1_17, %c0_18, %c128], %19 {strides = array<i32>} : memref<9x9x512xbf16, #tpu.memory_space<vmem>>, vector<8x8x128xbf16>,
    %21 = vector.extract_strided_slice %14 {offsets = [2, 0, 0, 0], sizes = [1, 8, 8, 128], strides = [1, 1, 1, 1]} : vector<4x8x8x128xbf16> to vector<1x8x8x128xbf16>
    %22 = vector.shape_cast %21 : vector<1x8x8x128xbf16> to vector<8x8x128xbf16>
    %c0_19 = arith.constant 0 : index
    %c1_20 = arith.constant 1 : index
    %c256 = arith.constant 256 : index
    %23 = vector.load %arg17[%c0_19, %c1_20, %c256] : memref<9x9x512xbf16, #tpu.memory_space<vmem>>, vector<8x8x128xbf16>
    tpu.vector_store %arg17[%c0_19, %c1_20, %c256], %22 {strides = array<i32>} : memref<9x9x512xbf16, #tpu.memory_space<vmem>>, vector<8x8x128xbf16>,
    %24 = vector.extract_strided_slice %14 {offsets = [3, 0, 0, 0], sizes = [1, 8, 8, 128], strides = [1, 1, 1, 1]} : vector<4x8x8x128xbf16> to vector<1x8x8x128xbf16>
    %25 = vector.shape_cast %24 : vector<1x8x8x128xbf16> to vector<8x8x128xbf16>
    %c0_21 = arith.constant 0 : index
    %c0_22 = arith.constant 0 : index
    %c384 = arith.constant 384 : index
    %26 = vector.load %arg17[%c0_21, %c0_22, %c384] : memref<9x9x512xbf16, #tpu.memory_space<vmem>>, vector<8x8x128xbf16>
    tpu.vector_store %arg17[%c0_21, %c0_22, %c384], %25 {strides = array<i32>} : memref<9x9x512xbf16, #tpu.memory_space<vmem>>, vector<8x8x128xbf16>,
    %c0_23 = arith.constant 0 : index
    %c0_24 = arith.constant 0 : index
    %c0_25 = arith.constant 0 : index
    %27 = vector.load %arg17[%c0_23, %c0_24, %c0_25] : memref<9x9x512xbf16, #tpu.memory_space<vmem>>, vector<8x8x512xbf16>
    %28 = vector.shape_cast %27 : vector<8x8x512xbf16> to vector<64x512xbf16>
    %c0_26 = arith.constant 0 : index
    %c1_27 = arith.constant 1 : index
    %c0_28 = arith.constant 0 : index
    %29 = vector.load %arg17[%c0_26, %c1_27, %c0_28] : memref<9x9x512xbf16, #tpu.memory_space<vmem>>, vector<8x8x512xbf16>
    %30 = vector.shape_cast %29 : vector<8x8x512xbf16> to vector<64x512xbf16>
    %c1_29 = arith.constant 1 : index
    %c0_30 = arith.constant 0 : index
    %c0_31 = arith.constant 0 : index
    %31 = vector.load %arg17[%c1_29, %c0_30, %c0_31] : memref<9x9x512xbf16, #tpu.memory_space<vmem>>, vector<8x8x512xbf16>
    %32 = vector.shape_cast %31 : vector<8x8x512xbf16> to vector<64x512xbf16>
    %c1_32 = arith.constant 1 : index
    %c1_33 = arith.constant 1 : index
    %c0_34 = arith.constant 0 : index
    %33 = vector.load %arg17[%c1_32, %c1_33, %c0_34] : memref<9x9x512xbf16, #tpu.memory_space<vmem>>, vector<8x8x512xbf16>
    %34 = vector.shape_cast %33 : vector<8x8x512xbf16> to vector<64x512xbf16>
    %35 = tpu.concatenate %28, %30, %32, %34 in 1 : vector<64x512xbf16>, vector<64x512xbf16>, vector<64x512xbf16>, vector<64x512xbf16> -> vector<64x2048xbf16>
    %c0_35 = arith.constant 0 : index
    %c0_36 = arith.constant 0 : index
    %36 = vector.load %arg4[%c0_35, %c0_36] : memref<2048x128xbf16, #tpu.memory_space<vmem>>, vector<2048x128xbf16>
    %cst_37 = arith.constant dense<0.000000e+00> : vector<64x128xf32>
    %37 = tpu.matmul %35, %36, %cst_37 {dimension_numbers = #tpu.dot_dimension_numbers<[1], [0], [0], [1], [0, 0, 1, 1], [], []>} : vector<64x2048xbf16>, vector<2048x128xbf16>, vector<64x128xf32> -> vector<64x128xf32>
    %c0_38 = arith.constant 0 : index
    %c0_39 = arith.constant 0 : index
    %38 = vector.load %arg5[%c0_38, %c0_39] : memref<1x128xf32, #tpu.memory_space<vmem>>, vector<1x128xf32>
    %39 = vector.broadcast %38 : vector<1x128xf32> to vector<64x128xf32>
    %40 = arith.addf %37, %39 : vector<64x128xf32>
    %cst_40 = arith.constant 0.000000e+00 : f32
    %41 = vector.broadcast %cst_40 : f32 to vector<64x128xf32>
    %42 = arith.maximumf %40, %41 : vector<64x128xf32>
    %43 = arith.truncf %42 : vector<64x128xf32> to vector<64x128xbf16>
    %44 = vector.shape_cast %43 : vector<64x128xbf16> to vector<8x8x128xbf16>
    %c1_41 = arith.constant 1 : index
    %c1_42 = arith.constant 1 : index
    %c0_43 = arith.constant 0 : index
    %45 = vector.load %arg18[%c1_41, %c1_42, %c0_43] : memref<10x10x128xbf16, #tpu.memory_space<vmem>>, vector<8x8x128xbf16>
    tpu.vector_store %arg18[%c1_41, %c1_42, %c0_43], %44 {strides = array<i32>} : memref<10x10x128xbf16, #tpu.memory_space<vmem>>, vector<8x8x128xbf16>,
    %c0_44 = arith.constant 0 : index
    %c0_45 = arith.constant 0 : index
    %c0_46 = arith.constant 0 : index
    %46 = vector.load %arg18[%c0_44, %c0_45, %c0_46] : memref<10x10x128xbf16, #tpu.memory_space<vmem>>, vector<8x8x128xbf16>
    %47 = vector.shape_cast %46 : vector<8x8x128xbf16> to vector<64x128xbf16>
    %c0_47 = arith.constant 0 : index
    %c1_48 = arith.constant 1 : index
    %c0_49 = arith.constant 0 : index
    %48 = vector.load %arg18[%c0_47, %c1_48, %c0_49] : memref<10x10x128xbf16, #tpu.memory_space<vmem>>, vector<8x8x128xbf16>
    %49 = vector.shape_cast %48 : vector<8x8x128xbf16> to vector<64x128xbf16>
    %c0_50 = arith.constant 0 : index
    %c2 = arith.constant 2 : index
    %c0_51 = arith.constant 0 : index
    %50 = vector.load %arg18[%c0_50, %c2, %c0_51] : memref<10x10x128xbf16, #tpu.memory_space<vmem>>, vector<8x8x128xbf16>
    %51 = vector.shape_cast %50 : vector<8x8x128xbf16> to vector<64x128xbf16>
    %c1_52 = arith.constant 1 : index
    %c0_53 = arith.constant 0 : index
    %c0_54 = arith.constant 0 : index
    %52 = vector.load %arg18[%c1_52, %c0_53, %c0_54] : memref<10x10x128xbf16, #tpu.memory_space<vmem>>, vector<8x8x128xbf16>
    %53 = vector.shape_cast %52 : vector<8x8x128xbf16> to vector<64x128xbf16>
    %c1_55 = arith.constant 1 : index
    %c1_56 = arith.constant 1 : index
    %c0_57 = arith.constant 0 : index
    %54 = vector.load %arg18[%c1_55, %c1_56, %c0_57] : memref<10x10x128xbf16, #tpu.memory_space<vmem>>, vector<8x8x128xbf16>
    %55 = vector.shape_cast %54 : vector<8x8x128xbf16> to vector<64x128xbf16>
    %c1_58 = arith.constant 1 : index
    %c2_59 = arith.constant 2 : index
    %c0_60 = arith.constant 0 : index
    %56 = vector.load %arg18[%c1_58, %c2_59, %c0_60] : memref<10x10x128xbf16, #tpu.memory_space<vmem>>, vector<8x8x128xbf16>
    %57 = vector.shape_cast %56 : vector<8x8x128xbf16> to vector<64x128xbf16>
    %c2_61 = arith.constant 2 : index
    %c0_62 = arith.constant 0 : index
    %c0_63 = arith.constant 0 : index
    %58 = vector.load %arg18[%c2_61, %c0_62, %c0_63] : memref<10x10x128xbf16, #tpu.memory_space<vmem>>, vector<8x8x128xbf16>
    %59 = vector.shape_cast %58 : vector<8x8x128xbf16> to vector<64x128xbf16>
    %c2_64 = arith.constant 2 : index
    %c1_65 = arith.constant 1 : index
    %c0_66 = arith.constant 0 : index
    %60 = vector.load %arg18[%c2_64, %c1_65, %c0_66] : memref<10x10x128xbf16, #tpu.memory_space<vmem>>, vector<8x8x128xbf16>
    %61 = vector.shape_cast %60 : vector<8x8x128xbf16> to vector<64x128xbf16>
    %c2_67 = arith.constant 2 : index
    %c2_68 = arith.constant 2 : index
    %c0_69 = arith.constant 0 : index
    %62 = vector.load %arg18[%c2_67, %c2_68, %c0_69] : memref<10x10x128xbf16, #tpu.memory_space<vmem>>, vector<8x8x128xbf16>
    %63 = vector.shape_cast %62 : vector<8x8x128xbf16> to vector<64x128xbf16>
    %64 = tpu.concatenate %47, %49, %51, %53, %55, %57, %59, %61, %63 in 1 : vector<64x128xbf16>, vector<64x128xbf16>, vector<64x128xbf16>, vector<64x128xbf16>, vector<64x128xbf16>, vector<64x128xbf16>, vector<64x128xbf16>, vector<64x128xbf16>, vector<64x128xbf16> -> vector<64x1152xbf16>
    %c0_70 = arith.constant 0 : index
    %c0_71 = arith.constant 0 : index
    %65 = vector.load %arg6[%c0_70, %c0_71] : memref<1152x128xbf16, #tpu.memory_space<vmem>>, vector<1152x128xbf16>
    %cst_72 = arith.constant dense<0.000000e+00> : vector<64x128xf32>
    %66 = tpu.matmul %64, %65, %cst_72 {dimension_numbers = #tpu.dot_dimension_numbers<[1], [0], [0], [1], [0, 0, 1, 1], [], []>} : vector<64x1152xbf16>, vector<1152x128xbf16>, vector<64x128xf32> -> vector<64x128xf32>
    %c0_73 = arith.constant 0 : index
    %c0_74 = arith.constant 0 : index
    %67 = vector.load %arg7[%c0_73, %c0_74] : memref<1x128xf32, #tpu.memory_space<vmem>>, vector<1x128xf32>
    %68 = vector.broadcast %67 : vector<1x128xf32> to vector<64x128xf32>
    %69 = arith.addf %66, %68 : vector<64x128xf32>
    %cst_75 = arith.constant 0.000000e+00 : f32
    %70 = vector.broadcast %cst_75 : f32 to vector<64x128xf32>
    %71 = arith.maximumf %69, %70 : vector<64x128xf32>
    %72 = arith.truncf %71 : vector<64x128xf32> to vector<64x128xbf16>
    %73 = vector.shape_cast %72 : vector<64x128xbf16> to vector<8x8x128xbf16>
    %c1_76 = arith.constant 1 : index
    %c1_77 = arith.constant 1 : index
    %c0_78 = arith.constant 0 : index
    %74 = vector.load %arg18[%c1_76, %c1_77, %c0_78] : memref<10x10x128xbf16, #tpu.memory_space<vmem>>, vector<8x8x128xbf16>
    tpu.vector_store %arg18[%c1_76, %c1_77, %c0_78], %73 {strides = array<i32>} : memref<10x10x128xbf16, #tpu.memory_space<vmem>>, vector<8x8x128xbf16>,
    %c0_79 = arith.constant 0 : index
    %c0_80 = arith.constant 0 : index
    %c0_81 = arith.constant 0 : index
    %75 = vector.load %arg18[%c0_79, %c0_80, %c0_81] : memref<10x10x128xbf16, #tpu.memory_space<vmem>>, vector<8x8x128xbf16>
    %76 = vector.shape_cast %75 : vector<8x8x128xbf16> to vector<64x128xbf16>
    %c0_82 = arith.constant 0 : index
    %c1_83 = arith.constant 1 : index
    %c0_84 = arith.constant 0 : index
    %77 = vector.load %arg18[%c0_82, %c1_83, %c0_84] : memref<10x10x128xbf16, #tpu.memory_space<vmem>>, vector<8x8x128xbf16>
    %78 = vector.shape_cast %77 : vector<8x8x128xbf16> to vector<64x128xbf16>
    %c0_85 = arith.constant 0 : index
    %c2_86 = arith.constant 2 : index
    %c0_87 = arith.constant 0 : index
    %79 = vector.load %arg18[%c0_85, %c2_86, %c0_87] : memref<10x10x128xbf16, #tpu.memory_space<vmem>>, vector<8x8x128xbf16>
    %80 = vector.shape_cast %79 : vector<8x8x128xbf16> to vector<64x128xbf16>
    %c1_88 = arith.constant 1 : index
    %c0_89 = arith.constant 0 : index
    %c0_90 = arith.constant 0 : index
    %81 = vector.load %arg18[%c1_88, %c0_89, %c0_90] : memref<10x10x128xbf16, #tpu.memory_space<vmem>>, vector<8x8x128xbf16>
    %82 = vector.shape_cast %81 : vector<8x8x128xbf16> to vector<64x128xbf16>
    %c1_91 = arith.constant 1 : index
    %c1_92 = arith.constant 1 : index
    %c0_93 = arith.constant 0 : index
    %83 = vector.load %arg18[%c1_91, %c1_92, %c0_93] : memref<10x10x128xbf16, #tpu.memory_space<vmem>>, vector<8x8x128xbf16>
    %84 = vector.shape_cast %83 : vector<8x8x128xbf16> to vector<64x128xbf16>
    %c1_94 = arith.constant 1 : index
    %c2_95 = arith.constant 2 : index
    %c0_96 = arith.constant 0 : index
    %85 = vector.load %arg18[%c1_94, %c2_95, %c0_96] : memref<10x10x128xbf16, #tpu.memory_space<vmem>>, vector<8x8x128xbf16>
    %86 = vector.shape_cast %85 : vector<8x8x128xbf16> to vector<64x128xbf16>
    %c2_97 = arith.constant 2 : index
    %c0_98 = arith.constant 0 : index
    %c0_99 = arith.constant 0 : index
    %87 = vector.load %arg18[%c2_97, %c0_98, %c0_99] : memref<10x10x128xbf16, #tpu.memory_space<vmem>>, vector<8x8x128xbf16>
    %88 = vector.shape_cast %87 : vector<8x8x128xbf16> to vector<64x128xbf16>
    %c2_100 = arith.constant 2 : index
    %c1_101 = arith.constant 1 : index
    %c0_102 = arith.constant 0 : index
    %89 = vector.load %arg18[%c2_100, %c1_101, %c0_102] : memref<10x10x128xbf16, #tpu.memory_space<vmem>>, vector<8x8x128xbf16>
    %90 = vector.shape_cast %89 : vector<8x8x128xbf16> to vector<64x128xbf16>
    %c2_103 = arith.constant 2 : index
    %c2_104 = arith.constant 2 : index
    %c0_105 = arith.constant 0 : index
    %91 = vector.load %arg18[%c2_103, %c2_104, %c0_105] : memref<10x10x128xbf16, #tpu.memory_space<vmem>>, vector<8x8x128xbf16>
    %92 = vector.shape_cast %91 : vector<8x8x128xbf16> to vector<64x128xbf16>
    %93 = tpu.concatenate %76, %78, %80, %82, %84, %86, %88, %90, %92 in 1 : vector<64x128xbf16>, vector<64x128xbf16>, vector<64x128xbf16>, vector<64x128xbf16>, vector<64x128xbf16>, vector<64x128xbf16>, vector<64x128xbf16>, vector<64x128xbf16>, vector<64x128xbf16> -> vector<64x1152xbf16>
    %c0_106 = arith.constant 0 : index
    %c0_107 = arith.constant 0 : index
    %94 = vector.load %arg8[%c0_106, %c0_107] : memref<1152x128xbf16, #tpu.memory_space<vmem>>, vector<1152x128xbf16>
    %cst_108 = arith.constant dense<0.000000e+00> : vector<64x128xf32>
    %95 = tpu.matmul %93, %94, %cst_108 {dimension_numbers = #tpu.dot_dimension_numbers<[1], [0], [0], [1], [0, 0, 1, 1], [], []>} : vector<64x1152xbf16>, vector<1152x128xbf16>, vector<64x128xf32> -> vector<64x128xf32>
    %c0_109 = arith.constant 0 : index
    %c0_110 = arith.constant 0 : index
    %96 = vector.load %arg9[%c0_109, %c0_110] : memref<1x128xf32, #tpu.memory_space<vmem>>, vector<1x128xf32>
    %97 = vector.broadcast %96 : vector<1x128xf32> to vector<64x128xf32>
    %98 = arith.addf %95, %97 : vector<64x128xf32>
    %cst_111 = arith.constant 0.000000e+00 : f32
    %99 = vector.broadcast %cst_111 : f32 to vector<64x128xf32>
    %100 = arith.maximumf %98, %99 : vector<64x128xf32>
    %101 = arith.truncf %100 : vector<64x128xf32> to vector<64x128xbf16>
    %c0_112 = arith.constant 0 : index
    %c0_113 = arith.constant 0 : index
    %102 = vector.load %arg10[%c0_112, %c0_113] : memref<128x128xbf16, #tpu.memory_space<vmem>>, vector<128x128xbf16>
    %cst_114 = arith.constant dense<0.000000e+00> : vector<64x128xf32>
    %103 = tpu.matmul %101, %102, %cst_114 {dimension_numbers = #tpu.dot_dimension_numbers<[1], [0], [0], [1], [0, 0, 1, 1], [], []>} : vector<64x128xbf16>, vector<128x128xbf16>, vector<64x128xf32> -> vector<64x128xf32>
    %104 = arith.addf %69, %103 : vector<64x128xf32>
    %c0_115 = arith.constant 0 : index
    %c0_116 = arith.constant 0 : index
    %105 = vector.load %arg11[%c0_115, %c0_116] : memref<1x128xf32, #tpu.memory_space<vmem>>, vector<1x128xf32>
    %106 = vector.broadcast %105 : vector<1x128xf32> to vector<64x128xf32>
    %107 = arith.addf %104, %106 : vector<64x128xf32>
    %cst_117 = arith.constant 0.000000e+00 : f32
    %108 = vector.broadcast %cst_117 : f32 to vector<64x128xf32>
    %109 = arith.maximumf %107, %108 : vector<64x128xf32>
    %110 = arith.truncf %109 : vector<64x128xf32> to vector<64x128xbf16>
    %111 = vector.shape_cast %110 : vector<64x128xbf16> to vector<8x8x128xbf16>
    %c1_118 = arith.constant 1 : index
    %c1_119 = arith.constant 1 : index
    %c0_120 = arith.constant 0 : index
    %112 = vector.load %arg18[%c1_118, %c1_119, %c0_120] : memref<10x10x128xbf16, #tpu.memory_space<vmem>>, vector<8x8x128xbf16>
    tpu.vector_store %arg18[%c1_118, %c1_119, %c0_120], %111 {strides = array<i32>} : memref<10x10x128xbf16, #tpu.memory_space<vmem>>, vector<8x8x128xbf16>,
    %c0_121 = arith.constant 0 : index
    %c0_122 = arith.constant 0 : index
    %c0_123 = arith.constant 0 : index
    %113 = vector.load %arg18[%c0_121, %c0_122, %c0_123] : memref<10x10x128xbf16, #tpu.memory_space<vmem>>, vector<8x8x128xbf16>
    %114 = vector.shape_cast %113 : vector<8x8x128xbf16> to vector<64x128xbf16>
    %c0_124 = arith.constant 0 : index
    %c1_125 = arith.constant 1 : index
    %c0_126 = arith.constant 0 : index
    %115 = vector.load %arg18[%c0_124, %c1_125, %c0_126] : memref<10x10x128xbf16, #tpu.memory_space<vmem>>, vector<8x8x128xbf16>
    %116 = vector.shape_cast %115 : vector<8x8x128xbf16> to vector<64x128xbf16>
    %c0_127 = arith.constant 0 : index
    %c2_128 = arith.constant 2 : index
    %c0_129 = arith.constant 0 : index
    %117 = vector.load %arg18[%c0_127, %c2_128, %c0_129] : memref<10x10x128xbf16, #tpu.memory_space<vmem>>, vector<8x8x128xbf16>
    %118 = vector.shape_cast %117 : vector<8x8x128xbf16> to vector<64x128xbf16>
    %c1_130 = arith.constant 1 : index
    %c0_131 = arith.constant 0 : index
    %c0_132 = arith.constant 0 : index
    %119 = vector.load %arg18[%c1_130, %c0_131, %c0_132] : memref<10x10x128xbf16, #tpu.memory_space<vmem>>, vector<8x8x128xbf16>
    %120 = vector.shape_cast %119 : vector<8x8x128xbf16> to vector<64x128xbf16>
    %c1_133 = arith.constant 1 : index
    %c1_134 = arith.constant 1 : index
    %c0_135 = arith.constant 0 : index
    %121 = vector.load %arg18[%c1_133, %c1_134, %c0_135] : memref<10x10x128xbf16, #tpu.memory_space<vmem>>, vector<8x8x128xbf16>
    %122 = vector.shape_cast %121 : vector<8x8x128xbf16> to vector<64x128xbf16>
    %c1_136 = arith.constant 1 : index
    %c2_137 = arith.constant 2 : index
    %c0_138 = arith.constant 0 : index
    %123 = vector.load %arg18[%c1_136, %c2_137, %c0_138] : memref<10x10x128xbf16, #tpu.memory_space<vmem>>, vector<8x8x128xbf16>
    %124 = vector.shape_cast %123 : vector<8x8x128xbf16> to vector<64x128xbf16>
    %c2_139 = arith.constant 2 : index
    %c0_140 = arith.constant 0 : index
    %c0_141 = arith.constant 0 : index
    %125 = vector.load %arg18[%c2_139, %c0_140, %c0_141] : memref<10x10x128xbf16, #tpu.memory_space<vmem>>, vector<8x8x128xbf16>
    %126 = vector.shape_cast %125 : vector<8x8x128xbf16> to vector<64x128xbf16>
    %c2_142 = arith.constant 2 : index
    %c1_143 = arith.constant 1 : index
    %c0_144 = arith.constant 0 : index
    %127 = vector.load %arg18[%c2_142, %c1_143, %c0_144] : memref<10x10x128xbf16, #tpu.memory_space<vmem>>, vector<8x8x128xbf16>
    %128 = vector.shape_cast %127 : vector<8x8x128xbf16> to vector<64x128xbf16>
    %c2_145 = arith.constant 2 : index
    %c2_146 = arith.constant 2 : index
    %c0_147 = arith.constant 0 : index
    %129 = vector.load %arg18[%c2_145, %c2_146, %c0_147] : memref<10x10x128xbf16, #tpu.memory_space<vmem>>, vector<8x8x128xbf16>
    %130 = vector.shape_cast %129 : vector<8x8x128xbf16> to vector<64x128xbf16>
    %131 = tpu.concatenate %114, %116, %118, %120, %122, %124, %126, %128, %130 in 1 : vector<64x128xbf16>, vector<64x128xbf16>, vector<64x128xbf16>, vector<64x128xbf16>, vector<64x128xbf16>, vector<64x128xbf16>, vector<64x128xbf16>, vector<64x128xbf16>, vector<64x128xbf16> -> vector<64x1152xbf16>
    %c0_148 = arith.constant 0 : index
    %c0_149 = arith.constant 0 : index
    %132 = vector.load %arg12[%c0_148, %c0_149] : memref<1152x128xbf16, #tpu.memory_space<vmem>>, vector<1152x128xbf16>
    %cst_150 = arith.constant dense<0.000000e+00> : vector<64x128xf32>
    %133 = tpu.matmul %131, %132, %cst_150 {dimension_numbers = #tpu.dot_dimension_numbers<[1], [0], [0], [1], [0, 0, 1, 1], [], []>} : vector<64x1152xbf16>, vector<1152x128xbf16>, vector<64x128xf32> -> vector<64x128xf32>
    %c0_151 = arith.constant 0 : index
    %c0_152 = arith.constant 0 : index
    %134 = vector.load %arg13[%c0_151, %c0_152] : memref<1x128xf32, #tpu.memory_space<vmem>>, vector<1x128xf32>
    %135 = vector.broadcast %134 : vector<1x128xf32> to vector<64x128xf32>
    %136 = arith.addf %133, %135 : vector<64x128xf32>
    %cst_153 = arith.constant 0.000000e+00 : f32
    %137 = vector.broadcast %cst_153 : f32 to vector<64x128xf32>
    %138 = arith.maximumf %136, %137 : vector<64x128xf32>
    %139 = arith.truncf %138 : vector<64x128xf32> to vector<64x128xbf16>
    %c0_154 = arith.constant 0 : index
    %c0_155 = arith.constant 0 : index
    %140 = vector.load %arg14[%c0_154, %c0_155] : memref<128x128xbf16, #tpu.memory_space<vmem>>, vector<128x128xbf16>
    %cst_156 = arith.constant dense<0.000000e+00> : vector<64x128xf32>
    %141 = tpu.matmul %139, %140, %cst_156 {dimension_numbers = #tpu.dot_dimension_numbers<[1], [0], [0], [1], [0, 0, 1, 1], [], []>} : vector<64x128xbf16>, vector<128x128xbf16>, vector<64x128xf32> -> vector<64x128xf32>
    %142 = arith.addf %107, %141 : vector<64x128xf32>
    %c0_157 = arith.constant 0 : index
    %c0_158 = arith.constant 0 : index
    %143 = vector.load %arg15[%c0_157, %c0_158] : memref<1x128xf32, #tpu.memory_space<vmem>>, vector<1x128xf32>
    %144 = vector.broadcast %143 : vector<1x128xf32> to vector<64x128xf32>
    %145 = arith.addf %142, %144 : vector<64x128xf32>
    %cst_159 = arith.constant 0.000000e+00 : f32
    %146 = vector.broadcast %cst_159 : f32 to vector<64x128xf32>
    %147 = arith.maximumf %145, %146 : vector<64x128xf32>
    %c0_160 = arith.constant 0 : index
    %c0_161 = arith.constant 0 : index
    %c0_162 = arith.constant 0 : index
    %148 = vector.load %arg16[%c0_160, %c0_161, %c0_162] : memref<1x64x128xf32, #tpu.memory_space<vmem>>, vector<1x64x128xf32>
    %149 = vector.shape_cast %148 : vector<1x64x128xf32> to vector<64x128xf32>
    %150 = vector.shape_cast %147 : vector<64x128xf32> to vector<1x64x128xf32>
    tpu.vector_store %arg16[%c0_160, %c0_161, %c0_162], %150 {strides = array<i32>} : memref<1x64x128xf32, #tpu.memory_space<vmem>>, vector<1x64x128xf32>,
    return
  }
  func.func @transform_0(%arg0: i32) -> (i32, i32, i32) {
    %c0_i32 = arith.constant 0 : i32
    %c0_i32_0 = arith.constant 0 : i32
    %c0_i32_1 = arith.constant 0 : i32
    return %arg0, %c0_i32, %c0_i32_0 : i32, i32, i32
  }
  func.func @transform_1(%arg0: i32) -> (i32, i32) {
    %c0_i32 = arith.constant 0 : i32
    %c0_i32_0 = arith.constant 0 : i32
    %c0_i32_1 = arith.constant 0 : i32
    return %c0_i32, %c0_i32_0 : i32, i32
  }
  func.func @transform_2(%arg0: i32) -> (i32, i32) {
    %c0_i32 = arith.constant 0 : i32
    %c0_i32_0 = arith.constant 0 : i32
    %c0_i32_1 = arith.constant 0 : i32
    return %c0_i32, %c0_i32_0 : i32, i32
  }
  func.func @transform_3(%arg0: i32) -> (i32, i32) {
    %c0_i32 = arith.constant 0 : i32
    %c0_i32_0 = arith.constant 0 : i32
    %c0_i32_1 = arith.constant 0 : i32
    return %c0_i32, %c0_i32_0 : i32, i32
  }
  func.func @transform_4(%arg0: i32) -> (i32, i32) {
    %c0_i32 = arith.constant 0 : i32
    %c0_i32_0 = arith.constant 0 : i32
    %c0_i32_1 = arith.constant 0 : i32
    return %c0_i32, %c0_i32_0 : i32, i32
  }
  func.func @transform_5(%arg0: i32) -> (i32, i32) {
    %c0_i32 = arith.constant 0 : i32
    %c0_i32_0 = arith.constant 0 : i32
    %c0_i32_1 = arith.constant 0 : i32
    return %c0_i32, %c0_i32_0 : i32, i32
  }
  func.func @transform_6(%arg0: i32) -> (i32, i32) {
    %c0_i32 = arith.constant 0 : i32
    %c0_i32_0 = arith.constant 0 : i32
    %c0_i32_1 = arith.constant 0 : i32
    return %c0_i32, %c0_i32_0 : i32, i32
  }
  func.func @transform_7(%arg0: i32) -> (i32, i32) {
    %c0_i32 = arith.constant 0 : i32
    %c0_i32_0 = arith.constant 0 : i32
    %c0_i32_1 = arith.constant 0 : i32
    return %c0_i32, %c0_i32_0 : i32, i32
  }
  func.func @transform_8(%arg0: i32) -> (i32, i32) {
    %c0_i32 = arith.constant 0 : i32
    %c0_i32_0 = arith.constant 0 : i32
    %c0_i32_1 = arith.constant 0 : i32
    return %c0_i32, %c0_i32_0 : i32, i32
  }
  func.func @transform_9(%arg0: i32) -> (i32, i32) {
    %c0_i32 = arith.constant 0 : i32
    %c0_i32_0 = arith.constant 0 : i32
    %c0_i32_1 = arith.constant 0 : i32
    return %c0_i32, %c0_i32_0 : i32, i32
  }
  func.func @transform_10(%arg0: i32) -> (i32, i32) {
    %c0_i32 = arith.constant 0 : i32
    %c0_i32_0 = arith.constant 0 : i32
    %c0_i32_1 = arith.constant 0 : i32
    return %c0_i32, %c0_i32_0 : i32, i32
  }
  func.func @transform_11(%arg0: i32) -> (i32, i32) {
    %c0_i32 = arith.constant 0 : i32
    %c0_i32_0 = arith.constant 0 : i32
    %c0_i32_1 = arith.constant 0 : i32
    return %c0_i32, %c0_i32_0 : i32, i32
  }
  func.func @transform_12(%arg0: i32) -> (i32, i32) {
    %c0_i32 = arith.constant 0 : i32
    %c0_i32_0 = arith.constant 0 : i32
    %c0_i32_1 = arith.constant 0 : i32
    return %c0_i32, %c0_i32_0 : i32, i32
  }
  func.func @transform_13(%arg0: i32) -> (i32, i32) {
    %c0_i32 = arith.constant 0 : i32
    %c0_i32_0 = arith.constant 0 : i32
    %c0_i32_1 = arith.constant 0 : i32
    return %c0_i32, %c0_i32_0 : i32, i32
  }
  func.func @transform_14(%arg0: i32) -> (i32, i32) {
    %c0_i32 = arith.constant 0 : i32
    %c0_i32_0 = arith.constant 0 : i32
    %c0_i32_1 = arith.constant 0 : i32
    return %c0_i32, %c0_i32_0 : i32, i32
  }
  func.func @transform_15(%arg0: i32) -> (i32, i32, i32) {
    %c0_i32 = arith.constant 0 : i32
    %c0_i32_0 = arith.constant 0 : i32
    %c0_i32_1 = arith.constant 0 : i32
    return %arg0, %c0_i32, %c0_i32_0 : i32, i32, i32
  }
}

</mosaic_0001>

<llo_original>
// kernel: encoder_forward.1
$region0: #{encoder_forward.1}
  #allocation0 [shape = 'u32[]', space=smem, size = 0x4, offset = 0x4, fixed_abs, tag = 'smem constant byte address 0x4 - core index']
  #allocation1 [shape = 'u32[144,128]{1,0:T(1,128)}', space=vmem, size = 0x12000, scoped, tag = 'internal scratch']
  #allocation2 [shape = 'bf16[9,9,512]{2,1,0:T(8,128)(2,1)}', space=vmem, size = 0x24000, scoped, tag = 'scratch operand']
  #allocation3 [shape = 'bf16[10,10,128]{2,1,0:T(8,128)(2,1)}', space=vmem, size = 0xa000, scoped, tag = 'scratch operand']
  %s0 = inlined_call_operand.vmem [shape: bf16[2,256,128], index: 0, kind: input, shape index: {}]
  %s1 = inlined_call_operand.vmem [shape: bf16[128,128], index: 1, kind: input, shape index: {}]
  %s2 = inlined_call_operand.vmem [shape: f32[1,128], index: 2, kind: input, shape index: {}]
  %s3 = inlined_call_operand.vmem [shape: bf16[2048,128], index: 3, kind: input, shape index: {}]
  %s4 = inlined_call_operand.vmem [shape: f32[1,128], index: 4, kind: input, shape index: {}]
  %s5 = inlined_call_operand.vmem [shape: bf16[1152,128], index: 5, kind: input, shape index: {}]
  %s6 = inlined_call_operand.vmem [shape: f32[1,128], index: 6, kind: input, shape index: {}]
  %s7 = inlined_call_operand.vmem [shape: bf16[1152,128], index: 7, kind: input, shape index: {}]
  %s8 = inlined_call_operand.vmem [shape: f32[1,128], index: 8, kind: input, shape index: {}]
  %s9 = inlined_call_operand.vmem [shape: bf16[128,128], index: 9, kind: input, shape index: {}]
  %s10 = inlined_call_operand.vmem [shape: f32[1,128], index: 10, kind: input, shape index: {}]
  %s11 = inlined_call_operand.vmem [shape: bf16[1152,128], index: 11, kind: input, shape index: {}]
  %s12 = inlined_call_operand.vmem [shape: f32[1,128], index: 12, kind: input, shape index: {}]
  %s13 = inlined_call_operand.vmem [shape: bf16[128,128], index: 13, kind: input, shape index: {}]
  %s14 = inlined_call_operand.vmem [shape: f32[1,128], index: 14, kind: input, shape index: {}]
  %s15 = inlined_call_operand.vmem [shape: f32[2,64,128], index: 15, kind: output, shape index: {}]
  %s16 = sld [smem:[#allocation0]]
  $region93: #{encoder_forward.1} parent=0
    _
  %s18 = ssub.s32 1, %s16
  %s19 = scalar_select 0, %s18, %s16
  loop: start=0, step=1, limit=4
  $region2: #{encoder_forward.1} parent=0 // loop_pre_header
    _
  $region3: #{encoder_forward.1} parent=0 // loop_header
    %s21 = sphi 0, %s25
    %p22 = scmp.ge.s32.totalorder %s21, 4
    %s31 = sphi 0, %s33
    %s34 = sphi 0, %s31
    %s35 = sphi 0, %s34
    %s51 = sphi 0, %s35
    %s55 = sphi 0, %s55
    %s57 = sphi 0, %s55
    %s58 = sphi 0, %s57
    %s72 = sphi 0, %s58
    %s76 = sphi 0, %s76
    %s78 = sphi 0, %s76
    %s79 = sphi 0, %s78
    %s93 = sphi 0, %s79
    %s97 = sphi 0, %s97
    %s99 = sphi 0, %s97
    %s100 = sphi 0, %s99
    %s114 = sphi 0, %s100
    %s118 = sphi 0, %s118
    %s120 = sphi 0, %s118
    %s121 = sphi 0, %s120
    %s135 = sphi 0, %s121
    %s139 = sphi 0, %s139
    %s141 = sphi 0, %s139
    %s142 = sphi 0, %s141
    %s156 = sphi 0, %s142
    %s160 = sphi 0, %s160
    %s162 = sphi 0, %s160
    %s163 = sphi 0, %s162
    %s177 = sphi 0, %s163
    %s181 = sphi 0, %s181
    %s183 = sphi 0, %s181
    %s184 = sphi 0, %s183
    %s198 = sphi 0, %s184
    %s202 = sphi 0, %s202
    %s204 = sphi 0, %s202
    %s205 = sphi 0, %s204
    %s219 = sphi 0, %s205
    %s223 = sphi 0, %s223
    %s225 = sphi 0, %s223
    %s226 = sphi 0, %s225
    %s240 = sphi 0, %s226
    %s244 = sphi 0, %s244
    %s246 = sphi 0, %s244
    %s247 = sphi 0, %s246
    %s261 = sphi 0, %s247
    %s265 = sphi 0, %s265
    %s267 = sphi 0, %s265
    %s268 = sphi 0, %s267
    %s282 = sphi 0, %s268
    %s286 = sphi 0, %s286
    %s288 = sphi 0, %s286
    %s289 = sphi 0, %s288
    %s303 = sphi 0, %s289
    %s307 = sphi 0, %s307
    %s309 = sphi 0, %s307
    %s310 = sphi 0, %s309
    %s324 = sphi 0, %s310
    %s328 = sphi 0, %s328
    %s330 = sphi 0, %s328
    %s331 = sphi 0, %s330
    %s345 = sphi 0, %s331
    %s351 = sphi 0, %s353
    %s354 = sphi 0, %s351
    %s355 = sphi 0, %s354
    %s371 = sphi 0, %s355
  $region4: #{encoder_forward.1} parent=0 // loop_header_branch
    %24 = sbr.rel (%p22) target = $region8
  $region5: #{encoder_forward.1} parent=0 // loop_body
    %s26 = ssub.s32 %s21, 1
    %s27 = ssub.s32 %s21, 2
    %s28 = sadd.s32 %s21, 1
    %s29 = ssub.s32 %s21, %s28
    %p30 = scmp.eq.s32.totalorder %s29, 0
    %s32 = sadd.s32 %s31, 1
    %s33 = scalar_select %p30, %s31, %s32
    %p36 = pneg %p30
    %p37 = scmp.eq.s32.totalorder %s21, 1
    %p38 = por %p36, %p37
    %p39 = scmp.ne.s32.totalorder %s31, %s34
    %p40 = scmp.eq.s32.totalorder %s21, 0
    %p41 = por %p39, %p40
    %p42 = scmp.ne.s32.totalorder %s31, %s34
    %p43 = scmp.eq.s32.totalorder %s26, 1
    %p44 = por %p42, %p43
    %p45 = scmp.ne.s32.totalorder %s34, %s35
    %p46 = scmp.eq.s32.totalorder %s26, 0
    %p47 = por %p45, %p46
    %p48 = scmp.ne.s32.totalorder %s34, %s35
    %p49 = scmp.eq.s32.totalorder %s27, 1
    %p50 = por %p48, %p49
    %p52 = scmp.ne.s32.totalorder %s35, %s51
    %p53 = scmp.eq.s32.totalorder %s27, 0
    %p54 = por %p52, %p53
    %s56 = sadd.s32 %s55, 1
    %p59 = scmp.eq.s32.totalorder %s21, 1
    %p60 = scmp.ne.s32.totalorder %s55, %s57
    %p61 = scmp.eq.s32.totalorder %s21, 0
    %p62 = por %p60, %p61
    %p63 = scmp.ne.s32.totalorder %s55, %s57
    %p64 = scmp.eq.s32.totalorder %s26, 1
    %p65 = por %p63, %p64
    %p66 = scmp.ne.s32.totalorder %s57, %s58
    %p67 = scmp.eq.s32.totalorder %s26, 0
    %p68 = por %p66, %p67
    %p69 = scmp.ne.s32.totalorder %s57, %s58
    %p70 = scmp.eq.s32.totalorder %s27, 1
    %p71 = por %p69, %p70
    %p73 = scmp.ne.s32.totalorder %s58, %s72
    %p74 = scmp.eq.s32.totalorder %s27, 0
    %p75 = por %p73, %p74
    %s77 = sadd.s32 %s76, 1
    %p80 = scmp.eq.s32.totalorder %s21, 1
    %p81 = scmp.ne.s32.totalorder %s76, %s78
    %p82 = scmp.eq.s32.totalorder %s21, 0
    %p83 = por %p81, %p82
    %p84 = scmp.ne.s32.totalorder %s76, %s78
    %p85 = scmp.eq.s32.totalorder %s26, 1
    %p86 = por %p84, %p85
    %p87 = scmp.ne.s32.totalorder %s78, %s79
    %p88 = scmp.eq.s32.totalorder %s26, 0
    %p89 = por %p87, %p88
    %p90 = scmp.ne.s32.totalorder %s78, %s79
    %p91 = scmp.eq.s32.totalorder %s27, 1
    %p92 = por %p90, %p91
    %p94 = scmp.ne.s32.totalorder %s79, %s93
    %p95 = scmp.eq.s32.totalorder %s27, 0
    %p96 = por %p94, %p95
    %s98 = sadd.s32 %s97, 1
    %p101 = scmp.eq.s32.totalorder %s21, 1
    %p102 = scmp.ne.s32.totalorder %s97, %s99
    %p103 = scmp.eq.s32.totalorder %s21, 0
    %p104 = por %p102, %p103
    %p105 = scmp.ne.s32.totalorder %s97, %s99
    %p106 = scmp.eq.s32.totalorder %s26, 1
    %p107 = por %p105, %p106
    %p108 = scmp.ne.s32.totalorder %s99, %s100
    %p109 = scmp.eq.s32.totalorder %s26, 0
    %p110 = por %p108, %p109
    %p111 = scmp.ne.s32.totalorder %s99, %s100
    %p112 = scmp.eq.s32.totalorder %s27, 1
    %p113 = por %p111, %p112
    %p115 = scmp.ne.s32.totalorder %s100, %s114
    %p116 = scmp.eq.s32.totalorder %s27, 0
    %p117 = por %p115, %p116
    %s119 = sadd.s32 %s118, 1
    %p122 = scmp.eq.s32.totalorder %s21, 1
    %p123 = scmp.ne.s32.totalorder %s118, %s120
    %p124 = scmp.eq.s32.totalorder %s21, 0
    %p125 = por %p123, %p124
    %p126 = scmp.ne.s32.totalorder %s118, %s120
    %p127 = scmp.eq.s32.totalorder %s26, 1
    %p128 = por %p126, %p127
    %p129 = scmp.ne.s32.totalorder %s120, %s121
    %p130 = scmp.eq.s32.totalorder %s26, 0
    %p131 = por %p129, %p130
    %p132 = scmp.ne.s32.totalorder %s120, %s121
    %p133 = scmp.eq.s32.totalorder %s27, 1
    %p134 = por %p132, %p133
    %p136 = scmp.ne.s32.totalorder %s121, %s135
    %p137 = scmp.eq.s32.totalorder %s27, 0
    %p138 = por %p136, %p137
    %s140 = sadd.s32 %s139, 1
    %p143 = scmp.eq.s32.totalorder %s21, 1
    %p144 = scmp.ne.s32.totalorder %s139, %s141
    %p145 = scmp.eq.s32.totalorder %s21, 0
    %p146 = por %p144, %p145
    %p147 = scmp.ne.s32.totalorder %s139, %s141
    %p148 = scmp.eq.s32.totalorder %s26, 1
    %p149 = por %p147, %p148
    %p150 = scmp.ne.s32.totalorder %s141, %s142
    %p151 = scmp.eq.s32.totalorder %s26, 0
    %p152 = por %p150, %p151
    %p153 = scmp.ne.s32.totalorder %s141, %s142
    %p154 = scmp.eq.s32.totalorder %s27, 1
    %p155 = por %p153, %p154
    %p157 = scmp.ne.s32.totalorder %s142, %s156
    %p158 = scmp.eq.s32.totalorder %s27, 0
    %p159 = por %p157, %p158
    %s161 = sadd.s32 %s160, 1
    %p164 = scmp.eq.s32.totalorder %s21, 1
    %p165 = scmp.ne.s32.totalorder %s160, %s162
    %p166 = scmp.eq.s32.totalorder %s21, 0
    %p167 = por %p165, %p166
    %p168 = scmp.ne.s32.totalorder %s160, %s162
    %p169 = scmp.eq.s32.totalorder %s26, 1
    %p170 = por %p168, %p169
    %p171 = scmp.ne.s32.totalorder %s162, %s163
    %p172 = scmp.eq.s32.totalorder %s26, 0
    %p173 = por %p171, %p172
    %p174 = scmp.ne.s32.totalorder %s162, %s163
    %p175 = scmp.eq.s32.totalorder %s27, 1
    %p176 = por %p174, %p175
    %p178 = scmp.ne.s32.totalorder %s163, %s177
    %p179 = scmp.eq.s32.totalorder %s27, 0
    %p180 = por %p178, %p179
    %s182 = sadd.s32 %s181, 1
    %p185 = scmp.eq.s32.totalorder %s21, 1
    %p186 = scmp.ne.s32.totalorder %s181, %s183
    %p187 = scmp.eq.s32.totalorder %s21, 0
    %p188 = por %p186, %p187
    %p189 = scmp.ne.s32.totalorder %s181, %s183
    %p190 = scmp.eq.s32.totalorder %s26, 1
    %p191 = por %p189, %p190
    %p192 = scmp.ne.s32.totalorder %s183, %s184
    %p193 = scmp.eq.s32.totalorder %s26, 0
    %p194 = por %p192, %p193
    %p195 = scmp.ne.s32.totalorder %s183, %s184
    %p196 = scmp.eq.s32.totalorder %s27, 1
    %p197 = por %p195, %p196
    %p199 = scmp.ne.s32.totalorder %s184, %s198
    %p200 = scmp.eq.s32.totalorder %s27, 0
    %p201 = por %p199, %p200
    %s203 = sadd.s32 %s202, 1
    %p206 = scmp.eq.s32.totalorder %s21, 1
    %p207 = scmp.ne.s32.totalorder %s202, %s204
    %p208 = scmp.eq.s32.totalorder %s21, 0
    %p209 = por %p207, %p208
    %p210 = scmp.ne.s32.totalorder %s202, %s204
    %p211 = scmp.eq.s32.totalorder %s26, 1
    %p212 = por %p210, %p211
    %p213 = scmp.ne.s32.totalorder %s204, %s205
    %p214 = scmp.eq.s32.totalorder %s26, 0
    %p215 = por %p213, %p214
    %p216 = scmp.ne.s32.totalorder %s204, %s205
    %p217 = scmp.eq.s32.totalorder %s27, 1
    %p218 = por %p216, %p217
    %p220 = scmp.ne.s32.totalorder %s205, %s219
    %p221 = scmp.eq.s32.totalorder %s27, 0
    %p222 = por %p220, %p221
    %s224 = sadd.s32 %s223, 1
    %p227 = scmp.eq.s32.totalorder %s21, 1
    %p228 = scmp.ne.s32.totalorder %s223, %s225
    %p229 = scmp.eq.s32.totalorder %s21, 0
    %p230 = por %p228, %p229
    %p231 = scmp.ne.s32.totalorder %s223, %s225
    %p232 = scmp.eq.s32.totalorder %s26, 1
    %p233 = por %p231, %p232
    %p234 = scmp.ne.s32.totalorder %s225, %s226
    %p235 = scmp.eq.s32.totalorder %s26, 0
    %p236 = por %p234, %p235
    %p237 = scmp.ne.s32.totalorder %s225, %s226
    %p238 = scmp.eq.s32.totalorder %s27, 1
    %p239 = por %p237, %p238
    %p241 = scmp.ne.s32.totalorder %s226, %s240
    %p242 = scmp.eq.s32.totalorder %s27, 0
    %p243 = por %p241, %p242
    %s245 = sadd.s32 %s244, 1
    %p248 = scmp.eq.s32.totalorder %s21, 1
    %p249 = scmp.ne.s32.totalorder %s244, %s246
    %p250 = scmp.eq.s32.totalorder %s21, 0
    %p251 = por %p249, %p250
    %p252 = scmp.ne.s32.totalorder %s244, %s246
    %p253 = scmp.eq.s32.totalorder %s26, 1
    %p254 = por %p252, %p253
    %p255 = scmp.ne.s32.totalorder %s246, %s247
    %p256 = scmp.eq.s32.totalorder %s26, 0
    %p257 = por %p255, %p256
    %p258 = scmp.ne.s32.totalorder %s246, %s247
    %p259 = scmp.eq.s32.totalorder %s27, 1
    %p260 = por %p258, %p259
    %p262 = scmp.ne.s32.totalorder %s247, %s261
    %p263 = scmp.eq.s32.totalorder %s27, 0
    %p264 = por %p262, %p263
    %s266 = sadd.s32 %s265, 1
    %p269 = scmp.eq.s32.totalorder %s21, 1
    %p270 = scmp.ne.s32.totalorder %s265, %s267
    %p271 = scmp.eq.s32.totalorder %s21, 0
    %p272 = por %p270, %p271
    %p273 = scmp.ne.s32.totalorder %s265, %s267
    %p274 = scmp.eq.s32.totalorder %s26, 1
    %p275 = por %p273, %p274
    %p276 = scmp.ne.s32.totalorder %s267, %s268
    %p277 = scmp.eq.s32.totalorder %s26, 0
    %p278 = por %p276, %p277
    %p279 = scmp.ne.s32.totalorder %s267, %s268
    %p280 = scmp.eq.s32.totalorder %s27, 1
    %p281 = por %p279, %p280
    %p283 = scmp.ne.s32.totalorder %s268, %s282
    %p284 = scmp.eq.s32.totalorder %s27, 0
    %p285 = por %p283, %p284
    %s287 = sadd.s32 %s286, 1
    %p290 = scmp.eq.s32.totalorder %s21, 1
    %p291 = scmp.ne.s32.totalorder %s286, %s288
    %p292 = scmp.eq.s32.totalorder %s21, 0
    %p293 = por %p291, %p292
    %p294 = scmp.ne.s32.totalorder %s286, %s288
    %p295 = scmp.eq.s32.totalorder %s26, 1
    %p296 = por %p294, %p295
    %p297 = scmp.ne.s32.totalorder %s288, %s289
    %p298 = scmp.eq.s32.totalorder %s26, 0
    %p299 = por %p297, %p298
    %p300 = scmp.ne.s32.totalorder %s288, %s289
    %p301 = scmp.eq.s32.totalorder %s27, 1
    %p302 = por %p300, %p301
    %p304 = scmp.ne.s32.totalorder %s289, %s303
    %p305 = scmp.eq.s32.totalorder %s27, 0
    %p306 = por %p304, %p305
    %s308 = sadd.s32 %s307, 1
    %p311 = scmp.eq.s32.totalorder %s21, 1
    %p312 = scmp.ne.s32.totalorder %s307, %s309
    %p313 = scmp.eq.s32.totalorder %s21, 0
    %p314 = por %p312, %p313
    %p315 = scmp.ne.s32.totalorder %s307, %s309
    %p316 = scmp.eq.s32.totalorder %s26, 1
    %p317 = por %p315, %p316
    %p318 = scmp.ne.s32.totalorder %s309, %s310
    %p319 = scmp.eq.s32.totalorder %s26, 0
    %p320 = por %p318, %p319
    %p321 = scmp.ne.s32.totalorder %s309, %s310
    %p322 = scmp.eq.s32.totalorder %s27, 1
    %p323 = por %p321, %p322
    %p325 = scmp.ne.s32.totalorder %s310, %s324
    %p326 = scmp.eq.s32.totalorder %s27, 0
    %p327 = por %p325, %p326
    %s329 = sadd.s32 %s328, 1
    %p332 = scmp.eq.s32.totalorder %s21, 1
    %p333 = scmp.ne.s32.totalorder %s328, %s330
    %p334 = scmp.eq.s32.totalorder %s21, 0
    %p335 = por %p333, %p334
    %p336 = scmp.ne.s32.totalorder %s328, %s330
    %p337 = scmp.eq.s32.totalorder %s26, 1
    %p338 = por %p336, %p337
    %p339 = scmp.ne.s32.totalorder %s330, %s331
    %p340 = scmp.eq.s32.totalorder %s26, 0
    %p341 = por %p339, %p340
    %p342 = scmp.ne.s32.totalorder %s330, %s331
    %p343 = scmp.eq.s32.totalorder %s27, 1
    %p344 = por %p342, %p343
    %p346 = scmp.ne.s32.totalorder %s331, %s345
    %p347 = scmp.eq.s32.totalorder %s27, 0
    %p348 = por %p346, %p347
    %s349 = ssub.s32 %s21, %s28
    %p350 = scmp.eq.s32.totalorder %s349, 0
    %s352 = sadd.s32 %s351, 1
    %s353 = scalar_select %p350, %s351, %s352
    %p356 = pneg %p350
    %p357 = scmp.eq.s32.totalorder %s21, 1
    %p358 = por %p356, %p357
    %p359 = scmp.ne.s32.totalorder %s351, %s354
    %p360 = scmp.eq.s32.totalorder %s21, 0
    %p361 = por %p359, %p360
    %p362 = scmp.ne.s32.totalorder %s351, %s354
    %p363 = scmp.eq.s32.totalorder %s26, 1
    %p364 = por %p362, %p363
    %p365 = scmp.ne.s32.totalorder %s354, %s355
    %p366 = scmp.eq.s32.totalorder %s26, 0
    %p367 = por %p365, %p366
    %p368 = scmp.ne.s32.totalorder %s354, %s355
    %p369 = scmp.eq.s32.totalorder %s27, 1
    %p370 = por %p368, %p369
    %p372 = scmp.ne.s32.totalorder %s355, %s371
    %p373 = scmp.eq.s32.totalorder %s27, 0
    %p374 = por %p372, %p373
    %p375 = scmp.le.s32.totalorder 1, %s21
    %p376 = scmp.lt.s32.totalorder %s21, 3
    %p377 = pnand %p375, %p376
    %p378 = pneg %p377
    // Predicated region
    $region9: #{encoder_forward.1} parent=5 // pred_check
      _
    $region10: #{encoder_forward.1} parent=5 // pred_check_branch
      %380 = sbr.rel (%p377) target = $region12
    $region11: #{encoder_forward.1} parent=5 // pred_region
      %s381 = ssub.s32 %s21, 1
      // Predicated region
      $region13: #{encoder_forward.1} parent=11 // pred_check
        %p382 = pneg %p68
      $region14: #{encoder_forward.1} parent=11 // pred_check_branch
        %384 = sbr.rel (%p382) target = $region16
      $region15: #{encoder_forward.1} parent=11 // pred_region
        _
      $region16: #{encoder_forward.1} parent=11 // pred_fallthru
        _
      // Predicated region
      $region17: #{encoder_forward.1} parent=11 // pred_check
        %p385 = pneg %p89
      $region18: #{encoder_forward.1} parent=11 // pred_check_branch
        %387 = sbr.rel (%p385) target = $region20
      $region19: #{encoder_forward.1} parent=11 // pred_region
        _
      $region20: #{encoder_forward.1} parent=11 // pred_fallthru
        _
      // Predicated region
      $region21: #{encoder_forward.1} parent=11 // pred_check
        %p388 = pneg %p110
      $region22: #{encoder_forward.1} parent=11 // pred_check_branch
        %390 = sbr.rel (%p388) target = $region24
      $region23: #{encoder_forward.1} parent=11 // pred_region
        _
      $region24: #{encoder_forward.1} parent=11 // pred_fallthru
        _
      // Predicated region
      $region25: #{encoder_forward.1} parent=11 // pred_check
        %p391 = pneg %p131
      $region26: #{encoder_forward.1} parent=11 // pred_check_branch
        %393 = sbr.rel (%p391) target = $region28
      $region27: #{encoder_forward.1} parent=11 // pred_region
        _
      $region28: #{encoder_forward.1} parent=11 // pred_fallthru
        _
      // Predicated region
      $region29: #{encoder_forward.1} parent=11 // pred_check
        %p394 = pneg %p152
      $region30: #{encoder_forward.1} parent=11 // pred_check_branch
        %396 = sbr.rel (%p394) target = $region32
      $region31: #{encoder_forward.1} parent=11 // pred_region
        _
      $region32: #{encoder_forward.1} parent=11 // pred_fallthru
        _
      // Predicated region
      $region33: #{encoder_forward.1} parent=11 // pred_check
        %p397 = pneg %p173
      $region34: #{encoder_forward.1} parent=11 // pred_check_branch
        %399 = sbr.rel (%p397) target = $region36
      $region35: #{encoder_forward.1} parent=11 // pred_region
        _
      $region36: #{encoder_forward.1} parent=11 // pred_fallthru
        _
      // Predicated region
      $region37: #{encoder_forward.1} parent=11 // pred_check
        %p400 = pneg %p194
      $region38: #{encoder_forward.1} parent=11 // pred_check_branch
        %402 = sbr.rel (%p400) target = $region40
      $region39: #{encoder_forward.1} parent=11 // pred_region
        _
      $region40: #{encoder_forward.1} parent=11 // pred_fallthru
        _
      // Predicated region
      $region41: #{encoder_forward.1} parent=11 // pred_check
        %p403 = pneg %p215
      $region42: #{encoder_forward.1} parent=11 // pred_check_branch
        %405 = sbr.rel (%p403) target = $region44
      $region43: #{encoder_forward.1} parent=11 // pred_region
        _
      $region44: #{encoder_forward.1} parent=11 // pred_fallthru
        _
      // Predicated region
      $region45: #{encoder_forward.1} parent=11 // pred_check
        %p406 = pneg %p236
      $region46: #{encoder_forward.1} parent=11 // pred_check_branch
        %408 = sbr.rel (%p406) target = $region48
      $region47: #{encoder_forward.1} parent=11 // pred_region
        _
      $region48: #{encoder_forward.1} parent=11 // pred_fallthru
        _
      // Predicated region
      $region49: #{encoder_forward.1} parent=11 // pred_check
        %p409 = pneg %p257
      $region50: #{encoder_forward.1} parent=11 // pred_check_branch
        %411 = sbr.rel (%p409) target = $region52
      $region51: #{encoder_forward.1} parent=11 // pred_region
        _
      $region52: #{encoder_forward.1} parent=11 // pred_fallthru
        _
      // Predicated region
      $region53: #{encoder_forward.1} parent=11 // pred_check
        %p412 = pneg %p278
      $region54: #{encoder_forward.1} parent=11 // pred_check_branch
        %414 = sbr.rel (%p412) target = $region56
      $region55: #{encoder_forward.1} parent=11 // pred_region
        _
      $region56: #{encoder_forward.1} parent=11 // pred_fallthru
        _
      // Predicated region
      $region57: #{encoder_forward.1} parent=11 // pred_check
        %p415 = pneg %p299
      $region58: #{encoder_forward.1} parent=11 // pred_check_branch
        %417 = sbr.rel (%p415) target = $region60
      $region59: #{encoder_forward.1} parent=11 // pred_region
        _
      $region60: #{encoder_forward.1} parent=11 // pred_fallthru
        _
      // Predicated region
      $region61: #{encoder_forward.1} parent=11 // pred_check
        %p418 = pneg %p320
      $region62: #{encoder_forward.1} parent=11 // pred_check_branch
        %420 = sbr.rel (%p418) target = $region64
      $region63: #{encoder_forward.1} parent=11 // pred_region
        _
      $region64: #{encoder_forward.1} parent=11 // pred_fallthru
        _
      // Predicated region
      $region65: #{encoder_forward.1} parent=11 // pred_check
        %p421 = pneg %p341
      $region66: #{encoder_forward.1} parent=11 // pred_check_branch
        %423 = sbr.rel (%p421) target = $region68
      $region67: #{encoder_forward.1} parent=11 // pred_region
        _
      $region68: #{encoder_forward.1} parent=11 // pred_fallthru
        _
    $region12: #{encoder_forward.1} parent=5 // pred_fallthru
      _
    %p424 = scmp.lt.s32.totalorder %s21, 2
    // Predicated region
    $region69: #{encoder_forward.1} parent=5 // pred_check
      %p425 = pneg %p424
    $region70: #{encoder_forward.1} parent=5 // pred_check_branch
      %427 = sbr.rel (%p425) target = $region72
    $region71: #{encoder_forward.1} parent=5 // pred_region
      // Predicated region
      $region73: #{encoder_forward.1} parent=71 // pred_check
        %p428 = pneg %p41
      $region74: #{encoder_forward.1} parent=71 // pred_check_branch
        %430 = sbr.rel (%p428) target = $region76
      $region75: #{encoder_forward.1} parent=71 // pred_region
        %p431 = scmp.lt.s32.totalorder %s21, 1
        %s432 = scalar_select %p431, %s21, 1
        %s433 = smul.addr %s432, 32
        %s434 = smul.addr %s433, 4
        %s435 = scalar_lea.vmem %s0, %s434
      $region76: #{encoder_forward.1} parent=71 // pred_fallthru
        _
    $region72: #{encoder_forward.1} parent=5 // pred_fallthru
      _
    %p436 = scmp.le.s32.totalorder 1, %s21
    %p437 = scmp.lt.s32.totalorder %s21, 3
    %p438 = pnand %p436, %p437
    %p439 = pneg %p438
    // Predicated region
    $region77: #{encoder_forward.1} parent=5 // pred_check
      _
    $region78: #{encoder_forward.1} parent=5 // pred_check_branch
      %441 = sbr.rel (%p438) target = $region80
    $region79: #{encoder_forward.1} parent=5 // pred_region
      %s442 = ssub.s32 %s21, 1
      %p443 = scmp.lt.s32.totalorder %s26, 1
      %s444 = scalar_select %p443, %s26, 1
      %s445 = smul.addr %s444, 32
      %s446 = smul.addr %s445, 4
      %s447 = scalar_lea.vmem %s0, %s446
      %p448 = pneg %p47
      %p449 = pneg %p44
      %p450 = pneg %p68
      %p451 = pneg %p65
      %p452 = pneg %p89
      %p453 = pneg %p86
      %p454 = pneg %p110
      %p455 = pneg %p107
      %p456 = pneg %p131
      %p457 = pneg %p128
      %p458 = pneg %p152
      %p459 = pneg %p149
      %p460 = pneg %p173
      %p461 = pneg %p170
      %p462 = pneg %p194
      %p463 = pneg %p191
      %p464 = pneg %p215
      %p465 = pneg %p212
      %p466 = pneg %p236
      %p467 = pneg %p233
      %p468 = pneg %p257
      %p469 = pneg %p254
      %p470 = pneg %p278
      %p471 = pneg %p275
      %p472 = pneg %p299
      %p473 = pneg %p296
      %p474 = pneg %p320
      %p475 = pneg %p317
      %p476 = pneg %p341
      %p477 = pneg %p338
      %p478 = pneg %p367
      %p479 = pneg %p364
      %p480 = scmp.lt.s32.totalorder %s26, 1
      %s481 = scalar_select %p480, %s26, 1
      %s482 = smul.addr %s481, 8
      %s483 = smul.addr %s482, 8
      %s484 = scalar_lea.vmem %s15, %s483
      %p485 = scmp.lt.s32.totalorder %s26, 1
      %s486 = scalar_select %p485, %s26, 1
      %s487 = smul.addr %s486, 32
      %s488 = smul.addr %s487, 4
      %s489 = scalar_lea.vmem %s0, %s488
      %p490 = scmp.lt.s32.totalorder %s26, 1
      %s491 = scalar_select %p490, %s26, 1
      %s492 = smul.addr %s491, 8
      %s493 = smul.addr %s492, 8
      %s494 = scalar_lea.vmem %s15, %s493
      %496 = vst [vmem:[#allocation3] sm:$0xf] 0
      %497 = vst [vmem:[#allocation3 + $0x4] sm:$0x1] 0
      %498 = vst [vmem:[#allocation3 + $0x8] sm:$0xf] 0
      %499 = vst [vmem:[#allocation3 + $0xc] sm:$0x1] 0
      %500 = vst [vmem:[#allocation3 + $0x10] sm:$0xf] 0
      %501 = vst [vmem:[#allocation3 + $0x14] sm:$0x1] 0
      %502 = vst [vmem:[#allocation3 + $0x18] sm:$0xf] 0
      %503 = vst [vmem:[#allocation3 + $0x1c] sm:$0x1] 0
      %504 = vst [vmem:[#allocation3 + $0x20] sm:$0xf] 0
      %505 = vst [vmem:[#allocation3 + $0x24] sm:$0x1] 0
      %506 = vst [vmem:[#allocation3 + $0x28] sm:$0xf] 0
      %507 = vst [vmem:[#allocation3 + $0x2c] sm:$0x1] 0
      %508 = vst [vmem:[#allocation3 + $0x30] sm:$0xf] 0
      %509 = vst [vmem:[#allocation3 + $0x34] sm:$0x1] 0
      %510 = vst [vmem:[#allocation3 + $0x38] sm:$0xf] 0
      %511 = vst [vmem:[#allocation3 + $0x3c] sm:$0x1] 0
      %512 = vst [vmem:[#allocation3 + $0x40] sm:$0xf] 0
      %513 = vst [vmem:[#allocation3 + $0x44] sm:$0x1] 0
      %514 = vst [vmem:[#allocation3 + $0x48] sm:$0xf] 0
      %515 = vst [vmem:[#allocation3 + $0x4c] sm:$0x1] 0
      %v516 = vld [vmem:[%s489] sm:$0xf]
      %v517 = vld [vmem:[%s489 + $0x4] sm:$0xf]
      %v518 = vld [vmem:[%s489 + $0x8] sm:$0xf]
      %v519 = vld [vmem:[%s489 + $0xc] sm:$0xf]
      %v520 = vld [vmem:[%s489 + $0x10] sm:$0xf]
      %v521 = vld [vmem:[%s489 + $0x14] sm:$0xf]
      %v522 = vld [vmem:[%s489 + $0x18] sm:$0xf]
      %v523 = vld [vmem:[%s489 + $0x1c] sm:$0xf]
      %v524 = vld [vmem:[%s489 + $0x20] sm:$0xf]
      %v525 = vld [vmem:[%s489 + $0x24] sm:$0xf]
      %v526 = vld [vmem:[%s489 + $0x28] sm:$0xf]
      %v527 = vld [vmem:[%s489 + $0x2c] sm:$0xf]
      %v528 = vld [vmem:[%s489 + $0x30] sm:$0xf]
      %v529 = vld [vmem:[%s489 + $0x34] sm:$0xf]
      %v530 = vld [vmem:[%s489 + $0x38] sm:$0xf]
      %v531 = vld [vmem:[%s489 + $0x3c] sm:$0xf]
      %v532 = vld [vmem:[%s489 + $0x40] sm:$0xf]
      %v533 = vld [vmem:[%s489 + $0x44] sm:$0xf]
      %v534 = vld [vmem:[%s489 + $0x48] sm:$0xf]
      %v535 = vld [vmem:[%s489 + $0x4c] sm:$0xf]
      %v536 = vld [vmem:[%s489 + $0x50] sm:$0xf]
      %v537 = vld [vmem:[%s489 + $0x54] sm:$0xf]
      %v538 = vld [vmem:[%s489 + $0x58] sm:$0xf]
      %v539 = vld [vmem:[%s489 + $0x5c] sm:$0xf]
      %v540 = vld [vmem:[%s489 + $0x60] sm:$0xf]
      %v541 = vld [vmem:[%s489 + $0x64] sm:$0xf]
      %v542 = vld [vmem:[%s489 + $0x68] sm:$0xf]
      %v543 = vld [vmem:[%s489 + $0x6c] sm:$0xf]
      %v544 = vld [vmem:[%s489 + $0x70] sm:$0xf]
      %v545 = vld [vmem:[%s489 + $0x74] sm:$0xf]
      %v546 = vld [vmem:[%s489 + $0x78] sm:$0xf]
      %v547 = vld [vmem:[%s489 + $0x7c] sm:$0xf]
      %v548 = vld [vmem:[%s1] sm:$0xf]
      %v549 = vld [vmem:[%s1 + $0x4] sm:$0xf]
      %v550 = vld [vmem:[%s1 + $0x8] sm:$0xf]
      %v551 = vld [vmem:[%s1 + $0xc] sm:$0xf]
      %v552 = vld [vmem:[%s1 + $0x10] sm:$0xf]
      %v553 = vld [vmem:[%s1 + $0x14] sm:$0xf]
      %v554 = vld [vmem:[%s1 + $0x18] sm:$0xf]
      %v555 = vld [vmem:[%s1 + $0x1c] sm:$0xf]
      %v556 = vld [vmem:[%s1 + $0x20] sm:$0xf]
      %v557 = vld [vmem:[%s1 + $0x24] sm:$0xf]
      %v558 = vld [vmem:[%s1 + $0x28] sm:$0xf]
      %v559 = vld [vmem:[%s1 + $0x2c] sm:$0xf]
      %v560 = vld [vmem:[%s1 + $0x30] sm:$0xf]
      %v561 = vld [vmem:[%s1 + $0x34] sm:$0xf]
      %v562 = vld [vmem:[%s1 + $0x38] sm:$0xf]
      %v563 = vld [vmem:[%s1 + $0x3c] sm:$0xf]
      %v564 = vld [vmem:[%s2] sm:$0x1]
      %v566 = vlaneseq
      %v567 = vshrl.u32 %v566, 7
      %v568 = vsub.s32 0, %v567
      %v569 = vrot.slane %v564, %v568
      %v603 = vunpack.c.l.b16 %v516
      %v604 = vunpack.c.l.b16 %v517
      %v605 = vunpack.c.l.b16 %v518
      %v606 = vunpack.c.l.b16 %v519
      %v607 = vunpack.c.l.b16 %v520
      %v608 = vunpack.c.l.b16 %v521
      %v609 = vunpack.c.l.b16 %v522
      %v610 = vunpack.c.l.b16 %v523
      %v611 = vunpack.c.l.b16 %v524
      %v612 = vunpack.c.l.b16 %v525
      %v613 = vunpack.c.l.b16 %v526
      %v614 = vunpack.c.l.b16 %v527
      %v615 = vunpack.c.l.b16 %v528
      %v616 = vunpack.c.l.b16 %v529
      %v617 = vunpack.c.l.b16 %v530
      %v618 = vunpack.c.l.b16 %v531
      %v619 = vunpack.c.l.b16 %v532
      %v620 = vunpack.c.l.b16 %v533
      %v621 = vunpack.c.l.b16 %v534
      %v622 = vunpack.c.l.b16 %v535
      %v623 = vunpack.c.l.b16 %v536
      %v624 = vunpack.c.l.b16 %v537
      %v625 = vunpack.c.l.b16 %v538
      %v626 = vunpack.c.l.b16 %v539
      %v627 = vunpack.c.l.b16 %v540
      %v628 = vunpack.c.l.b16 %v541
      %v629 = vunpack.c.l.b16 %v542
      %v630 = vunpack.c.l.b16 %v543
      %v631 = vunpack.c.l.b16 %v544
      %v632 = vunpack.c.l.b16 %v545
      %v633 = vunpack.c.l.b16 %v546
      %v634 = vunpack.c.l.b16 %v547
      %v635 = vpack.c.b16 %v604, %v603
      %v636 = vpack.c.b16 %v606, %v605
      %v637 = vpack.c.b16 %v608, %v607
      %v638 = vpack.c.b16 %v610, %v609
      %v639 = vpack.c.b16 %v612, %v611
      %v640 = vpack.c.b16 %v614, %v613
      %v641 = vpack.c.b16 %v616, %v615
      %v642 = vpack.c.b16 %v618, %v617
      %v643 = vpack.c.b16 %v620, %v619
      %v644 = vpack.c.b16 %v622, %v621
      %v645 = vpack.c.b16 %v624, %v623
      %v646 = vpack.c.b16 %v626, %v625
      %v647 = vpack.c.b16 %v628, %v627
      %v648 = vpack.c.b16 %v630, %v629
      %v649 = vpack.c.b16 %v632, %v631
      %v650 = vpack.c.b16 %v634, %v633
      %v683 = vunpack.c.l.b16 %v548
      %v684 = vunpack.c.l.b16 %v549
      %v685 = vunpack.c.l.b16 %v550
      %v686 = vunpack.c.l.b16 %v551
      %v687 = vunpack.c.l.b16 %v552
      %v688 = vunpack.c.l.b16 %v553
      %v689 = vunpack.c.l.b16 %v554
      %v690 = vunpack.c.l.b16 %v555
      %v691 = vunpack.c.l.b16 %v556
      %v692 = vunpack.c.l.b16 %v557
      %v693 = vunpack.c.l.b16 %v558
      %v694 = vunpack.c.l.b16 %v559
      %v695 = vunpack.c.l.b16 %v560
      %v696 = vunpack.c.l.b16 %v561
      %v697 = vunpack.c.l.b16 %v562
      %v698 = vunpack.c.l.b16 %v563
      %v699 = vpack.c.b16 %v684, %v683
      %v700 = vpack.c.b16 %v686, %v685
      %v701 = vpack.c.b16 %v688, %v687
      %v702 = vpack.c.b16 %v690, %v689
      %v703 = vpack.c.b16 %v692, %v691
      %v704 = vpack.c.b16 %v694, %v693
      %v705 = vpack.c.b16 %v696, %v695
      %v706 = vpack.c.b16 %v698, %v697
      %715 = vmatprep.subr.bf16.mxu0 0
      %716 = vmatpush1.bf16.msra.mxu0 %v699
      %717 = vmatprep.subr.bf16.mxu0 0
      %718 = vmatpush1.bf16.msra.mxu0 %v700
      %719 = vmatprep.subr.bf16.mxu0 0
      %720 = vmatpush1.bf16.msra.mxu0 %v701
      %721 = vmatprep.subr.bf16.mxu0 0
      %722 = vmatpush1.bf16.msra.mxu0 %v702
      %723 = vmatprep.subr.bf16.mxu0 0
      %724 = vmatpush1.bf16.msra.mxu0 %v703
      %725 = vmatprep.subr.bf16.mxu0 0
      %726 = vmatpush1.bf16.msra.mxu0 %v704
      %727 = vmatprep.subr.bf16.mxu0 0
      %728 = vmatpush1.bf16.msra.mxu0 %v705
      %729 = vmatprep.subr.bf16.mxu0 0
      %730 = vmatpush1.bf16.msra.mxu0 %v706
      %731 = vmatprep.subr.bf16.mxu0 0
      %732 = vmatpush1.bf16.msra.mxu0 0
      %733 = vmatprep.subr.bf16.mxu0 0
      %734 = vmatpush1.bf16.msra.mxu0 0
      %735 = vmatprep.subr.bf16.mxu0 0
      %736 = vmatpush1.bf16.msra.mxu0 0
      %737 = vmatprep.subr.bf16.mxu0 0
      %738 = vmatpush1.bf16.msra.mxu0 0
      %739 = vmatprep.subr.bf16.mxu0 0
      %740 = vmatpush1.bf16.msra.mxu0 0
      %741 = vmatprep.subr.bf16.mxu0 0
      %742 = vmatpush1.bf16.msra.mxu0 0
      %743 = vmatprep.subr.bf16.mxu0 0
      %744 = vmatpush1.bf16.msra.mxu0 0
      %745 = vmatprep.subr.bf16.mxu0 0
      %746 = vmatpush1.bf16.msra.mxu0 0
      %747 = vmatprep.mubr.bf16.mxu0 0
      %748 = vmatmul.mubr.bf16.gmra.mrb[0].mxu0 %v635
      %v749 = vpop.f32.mrb[0].mxu0
      %v750 = vadd.f32 %v569, %v749
      %v751 = vpop.f32.mrb[0].mxu0
      %v752 = vpop.f32.mrb[0].mxu0
      %v753 = vadd.f32 %v569, %v752
      %v754 = vpop.f32.mrb[0].mxu0
      %755 = vmatprep.mubr.bf16.mxu0 0
      %756 = vmatmul.mubr.bf16.gmra.mrb[0].mxu0 %v636
      %v757 = vpop.f32.mrb[0].mxu0
      %v758 = vadd.f32 %v569, %v757
      %v759 = vpop.f32.mrb[0].mxu0
      %v760 = vpop.f32.mrb[0].mxu0
      %v761 = vadd.f32 %v569, %v760
      %v762 = vpop.f32.mrb[0].mxu0
      %763 = vmatprep.mubr.bf16.mxu0 0
      %764 = vmatmul.mubr.bf16.gmra.mrb[0].mxu0 %v637
      %v765 = vpop.f32.mrb[0].mxu0
      %v766 = vadd.f32 %v569, %v765
      %v767 = vpop.f32.mrb[0].mxu0
      %v768 = vpop.f32.mrb[0].mxu0
      %v769 = vadd.f32 %v569, %v768
      %v770 = vpop.f32.mrb[0].mxu0
      %771 = vmatprep.mubr.bf16.mxu0 0
      %772 = vmatmul.mubr.bf16.gmra.mrb[0].mxu0 %v638
      %v773 = vpop.f32.mrb[0].mxu0
      %v774 = vadd.f32 %v569, %v773
      %v775 = vpop.f32.mrb[0].mxu0
      %v776 = vpop.f32.mrb[0].mxu0
      %v777 = vadd.f32 %v569, %v776
      %v778 = vpop.f32.mrb[0].mxu0
      %779 = vmatprep.mubr.bf16.mxu0 0
      %780 = vmatmul.mubr.bf16.gmra.mrb[0].mxu0 %v639
      %v781 = vpop.f32.mrb[0].mxu0
      %v782 = vadd.f32 %v569, %v781
      %v783 = vpop.f32.mrb[0].mxu0
      %v784 = vpop.f32.mrb[0].mxu0
      %v785 = vadd.f32 %v569, %v784
      %v786 = vpop.f32.mrb[0].mxu0
      %787 = vmatprep.mubr.bf16.mxu0 0
      %788 = vmatmul.mubr.bf16.gmra.mrb[0].mxu0 %v640
      %v789 = vpop.f32.mrb[0].mxu0
      %v790 = vadd.f32 %v569, %v789
      %v791 = vpop.f32.mrb[0].mxu0
      %v792 = vpop.f32.mrb[0].mxu0
      %v793 = vadd.f32 %v569, %v792
      %v794 = vpop.f32.mrb[0].mxu0
      %795 = vmatprep.mubr.bf16.mxu0 0
      %796 = vmatmul.mubr.bf16.gmra.mrb[0].mxu0 %v641
      %v797 = vpop.f32.mrb[0].mxu0
      %v798 = vadd.f32 %v569, %v797
      %v799 = vpop.f32.mrb[0].mxu0
      %v800 = vpop.f32.mrb[0].mxu0
      %v801 = vadd.f32 %v569, %v800
      %v802 = vpop.f32.mrb[0].mxu0
      %803 = vmatprep.mubr.bf16.mxu0 0
      %804 = vmatmul.mubr.bf16.gmra.mrb[0].mxu0 %v642
      %v805 = vpop.f32.mrb[0].mxu0
      %v806 = vadd.f32 %v569, %v805
      %v807 = vpop.f32.mrb[0].mxu0
      %v808 = vpop.f32.mrb[0].mxu0
      %v809 = vadd.f32 %v569, %v808
      %v810 = vpop.f32.mrb[0].mxu0
      %811 = vmatprep.mubr.bf16.mxu0 0
      %812 = vmatmul.mubr.bf16.gmra.mrb[0].mxu0 %v643
      %v813 = vpop.f32.mrb[0].mxu0
      %v814 = vadd.f32 %v569, %v813
      %v815 = vpop.f32.mrb[0].mxu0
      %v816 = vpop.f32.mrb[0].mxu0
      %v817 = vadd.f32 %v569, %v816
      %v818 = vpop.f32.mrb[0].mxu0
      %819 = vmatprep.mubr.bf16.mxu0 0
      %820 = vmatmul.mubr.bf16.gmra.mrb[0].mxu0 %v644
      %v821 = vpop.f32.mrb[0].mxu0
      %v822 = vadd.f32 %v569, %v821
      %v823 = vpop.f32.mrb[0].mxu0
      %v824 = vpop.f32.mrb[0].mxu0
      %v825 = vadd.f32 %v569, %v824
      %v826 = vpop.f32.mrb[0].mxu0
      %827 = vmatprep.mubr.bf16.mxu0 0
      %828 = vmatmul.mubr.bf16.gmra.mrb[0].mxu0 %v645
      %v829 = vpop.f32.mrb[0].mxu0
      %v830 = vadd.f32 %v569, %v829
      %v831 = vpop.f32.mrb[0].mxu0
      %v832 = vpop.f32.mrb[0].mxu0
      %v833 = vadd.f32 %v569, %v832
      %v834 = vpop.f32.mrb[0].mxu0
      %835 = vmatprep.mubr.bf16.mxu0 0
      %836 = vmatmul.mubr.bf16.gmra.mrb[0].mxu0 %v646
      %v837 = vpop.f32.mrb[0].mxu0
      %v838 = vadd.f32 %v569, %v837
      %v839 = vpop.f32.mrb[0].mxu0
      %v840 = vpop.f32.mrb[0].mxu0
      %v841 = vadd.f32 %v569, %v840
      %v842 = vpop.f32.mrb[0].mxu0
      %843 = vmatprep.mubr.bf16.mxu0 0
      %844 = vmatmul.mubr.bf16.gmra.mrb[0].mxu0 %v647
      %v845 = vpop.f32.mrb[0].mxu0
      %v846 = vadd.f32 %v569, %v845
      %v847 = vpop.f32.mrb[0].mxu0
      %v848 = vpop.f32.mrb[0].mxu0
      %v849 = vadd.f32 %v569, %v848
      %v850 = vpop.f32.mrb[0].mxu0
      %851 = vmatprep.mubr.bf16.mxu0 0
      %852 = vmatmul.mubr.bf16.gmra.mrb[0].mxu0 %v648
      %v853 = vpop.f32.mrb[0].mxu0
      %v854 = vadd.f32 %v569, %v853
      %v855 = vpop.f32.mrb[0].mxu0
      %v856 = vpop.f32.mrb[0].mxu0
      %v857 = vadd.f32 %v569, %v856
      %v858 = vpop.f32.mrb[0].mxu0
      %859 = vmatprep.mubr.bf16.mxu0 0
      %860 = vmatmul.mubr.bf16.gmra.mrb[0].mxu0 %v649
      %v861 = vpop.f32.mrb[0].mxu0
      %v862 = vadd.f32 %v569, %v861
      %v863 = vpop.f32.mrb[0].mxu0
      %v864 = vpop.f32.mrb[0].mxu0
      %v865 = vadd.f32 %v569, %v864
      %v866 = vpop.f32.mrb[0].mxu0
      %867 = vmatprep.mubr.bf16.mxu0 0
      %868 = vmatmul.mubr.bf16.gmra.mrb[0].mxu0 %v650
      %v869 = vpop.f32.mrb[0].mxu0
      %v870 = vadd.f32 %v569, %v869
      %v871 = vpop.f32.mrb[0].mxu0
      %v872 = vpop.f32.mrb[0].mxu0
      %v873 = vadd.f32 %v569, %v872
      %v874 = vpop.f32.mrb[0].mxu0
      %875 = vdwg.mxu0
      %v876 = vmax.f32 %v750, 0.0
      %v877 = vmax.f32 %v753, 0.0
      %v878 = vmax.f32 %v758, 0.0
      %v879 = vmax.f32 %v761, 0.0
      %v880 = vmax.f32 %v766, 0.0
      %v881 = vmax.f32 %v769, 0.0
      %v882 = vmax.f32 %v774, 0.0
      %v883 = vmax.f32 %v777, 0.0
      %v884 = vmax.f32 %v782, 0.0
      %v885 = vmax.f32 %v785, 0.0
      %v886 = vmax.f32 %v790, 0.0
      %v887 = vmax.f32 %v793, 0.0
      %v888 = vmax.f32 %v798, 0.0
      %v889 = vmax.f32 %v801, 0.0
      %v890 = vmax.f32 %v806, 0.0
      %v891 = vmax.f32 %v809, 0.0
      %v892 = vmax.f32 %v814, 0.0
      %v893 = vmax.f32 %v817, 0.0
      %v894 = vmax.f32 %v822, 0.0
      %v895 = vmax.f32 %v825, 0.0
      %v896 = vmax.f32 %v830, 0.0
      %v897 = vmax.f32 %v833, 0.0
      %v898 = vmax.f32 %v838, 0.0
      %v899 = vmax.f32 %v841, 0.0
      %v900 = vmax.f32 %v846, 0.0
      %v901 = vmax.f32 %v849, 0.0
      %v902 = vmax.f32 %v854, 0.0
      %v903 = vmax.f32 %v857, 0.0
      %v904 = vmax.f32 %v862, 0.0
      %v905 = vmax.f32 %v865, 0.0
      %v906 = vmax.f32 %v870, 0.0
      %v907 = vmax.f32 %v873, 0.0
      %v908 = vpack.c.bf16 %v877, %v876
      %v909 = vpack.c.bf16 %v879, %v878
      %v910 = vpack.c.bf16 %v881, %v880
      %v911 = vpack.c.bf16 %v883, %v882
      %v912 = vpack.c.bf16 %v885, %v884
      %v913 = vpack.c.bf16 %v887, %v886
      %v914 = vpack.c.bf16 %v889, %v888
      %v915 = vpack.c.bf16 %v891, %v890
      %v916 = vpack.c.bf16 %v893, %v892
      %v917 = vpack.c.bf16 %v895, %v894
      %v918 = vpack.c.bf16 %v897, %v896
      %v919 = vpack.c.bf16 %v899, %v898
      %v920 = vpack.c.bf16 %v901, %v900
      %v921 = vpack.c.bf16 %v903, %v902
      %v922 = vpack.c.bf16 %v905, %v904
      %v923 = vpack.c.bf16 %v907, %v906
      %924 = vst [vmem:[#allocation2] sm:$0xff] 0
      %925 = vst [vmem:[#allocation2 + $0x8] sm:$0xff] 0
      %vm926 = vcmask 1040384
      %vm927 = vsmask.f32 256
      %vm928 = vmand %vm926, %vm927
      %vm929 = vcmask 1044484
      %vm930 = vsmask.f32 4352
      %vm931 = vmand %vm929, %vm930
      %vm932 = vmor %vm931, %vm928
      %v933 = vld [vmem:[#allocation2 + $0x10] sm:$0x11]
      %v934 = vsel %vm932, 0, %v933
      %935 = vst [vmem:[#allocation2 + $0x10] sm:$0x11] %v934
      %v936 = vld [vmem:[#allocation2 + $0x18] sm:$0x11]
      %v937 = vsel %vm932, 0, %v936
      %938 = vst [vmem:[#allocation2 + $0x18] sm:$0x11] %v937
      %939 = vst [vmem:[#allocation2 + $0x20] sm:$0xff] 0
      %940 = vst [vmem:[#allocation2 + $0x28] sm:$0xff] 0
      %v941 = vld [vmem:[#allocation2 + $0x30] sm:$0x11]
      %v942 = vsel %vm932, 0, %v941
      %943 = vst [vmem:[#allocation2 + $0x30] sm:$0x11] %v942
      %v944 = vld [vmem:[#allocation2 + $0x38] sm:$0x11]
      %v945 = vsel %vm932, 0, %v944
      %946 = vst [vmem:[#allocation2 + $0x38] sm:$0x11] %v945
      %947 = vst [vmem:[#allocation2 + $0x40] sm:$0xff] 0
      %948 = vst [vmem:[#allocation2 + $0x48] sm:$0xff] 0
      %v949 = vld [vmem:[#allocation2 + $0x50] sm:$0x11]
      %v950 = vsel %vm932, 0, %v949
      %951 = vst [vmem:[#allocation2 + $0x50] sm:$0x11] %v950
      %v952 = vld [vmem:[#allocation2 + $0x58] sm:$0x11]
      %v953 = vsel %vm932, 0, %v952
      %954 = vst [vmem:[#allocation2 + $0x58] sm:$0x11] %v953
      %955 = vst [vmem:[#allocation2 + $0x60] sm:$0xff] 0
      %956 = vst [vmem:[#allocation2 + $0x68] sm:$0xff] 0
      %v957 = vld [vmem:[#allocation2 + $0x70] sm:$0x11]
      %v958 = vsel %vm932, 0, %v957
      %959 = vst [vmem:[#allocation2 + $0x70] sm:$0x11] %v958
      %v960 = vld [vmem:[#allocation2 + $0x78] sm:$0x11]
      %v961 = vsel %vm932, 0, %v960
      %962 = vst [vmem:[#allocation2 + $0x78] sm:$0x11] %v961
      %963 = vst [vmem:[#allocation2 + $0x80] sm:$0xff] 0
      %964 = vst [vmem:[#allocation2 + $0x88] sm:$0xff] 0
      %v965 = vld [vmem:[#allocation2 + $0x90] sm:$0x11]
      %v966 = vsel %vm932, 0, %v965
      %967 = vst [vmem:[#allocation2 + $0x90] sm:$0x11] %v966
      %v968 = vld [vmem:[#allocation2 + $0x98] sm:$0x11]
      %v969 = vsel %vm932, 0, %v968
      %970 = vst [vmem:[#allocation2 + $0x98] sm:$0x11] %v969
      %971 = vst [vmem:[#allocation2 + $0xa0] sm:$0xff] 0
      %972 = vst [vmem:[#allocation2 + $0xa8] sm:$0xff] 0
      %v973 = vld [vmem:[#allocation2 + $0xb0] sm:$0x11]
      %v974 = vsel %vm932, 0, %v973
      %975 = vst [vmem:[#allocation2 + $0xb0] sm:$0x11] %v974
      %v976 = vld [vmem:[#allocation2 + $0xb8] sm:$0x11]
      %v977 = vsel %vm932, 0, %v976
      %978 = vst [vmem:[#allocation2 + $0xb8] sm:$0x11] %v977
      %979 = vst [vmem:[#allocation2 + $0xc0] sm:$0xff] 0
      %980 = vst [vmem:[#allocation2 + $0xc8] sm:$0xff] 0
      %v981 = vld [vmem:[#allocation2 + $0xd0] sm:$0x11]
      %v982 = vsel %vm932, 0, %v981
      %983 = vst [vmem:[#allocation2 + $0xd0] sm:$0x11] %v982
      %v984 = vld [vmem:[#allocation2 + $0xd8] sm:$0x11]
      %v985 = vsel %vm932, 0, %v984
      %986 = vst [vmem:[#allocation2 + $0xd8] sm:$0x11] %v985
      %987 = vst [vmem:[#allocation2 + $0xe0] sm:$0xff] 0
      %988 = vst [vmem:[#allocation2 + $0xe8] sm:$0xff] 0
      %v989 = vld [vmem:[#allocation2 + $0xf0] sm:$0x11]
      %v990 = vsel %vm932, 0, %v989
      %991 = vst [vmem:[#allocation2 + $0xf0] sm:$0x11] %v990
      %v992 = vld [vmem:[#allocation2 + $0xf8] sm:$0x11]
      %v993 = vsel %vm932, 0, %v992
      %994 = vst [vmem:[#allocation2 + $0xf8] sm:$0x11] %v993
      %995 = vst [vmem:[#allocation2 + $0x100] sm:$0xff] 0
      %996 = vst [vmem:[#allocation2 + $0x108] sm:$0xff] 0
      %v997 = vld [vmem:[#allocation2 + $0x110] sm:$0x11]
      %v998 = vsel %vm932, 0, %v997
      %999 = vst [vmem:[#allocation2 + $0x110] sm:$0x11] %v998
      %v1000 = vld [vmem:[#allocation2 + $0x118] sm:$0x11]
      %v1001 = vsel %vm932, 0, %v1000
      %1002 = vst [vmem:[#allocation2 + $0x118] sm:$0x11] %v1001
      %v1019 = vunpack.c.l.b16 %v908
      %v1020 = vunpack.c.h.b16 %v908
      %v1021 = vunpack.c.l.b16 %v909
      %v1022 = vunpack.c.h.b16 %v909
      %v1023 = vunpack.c.l.b16 %v910
      %v1024 = vunpack.c.h.b16 %v910
      %v1025 = vunpack.c.l.b16 %v911
      %v1026 = vunpack.c.h.b16 %v911
      %v1027 = vunpack.c.l.b16 %v912
      %v1028 = vunpack.c.h.b16 %v912
      %v1029 = vunpack.c.l.b16 %v913
      %v1030 = vunpack.c.h.b16 %v913
      %v1031 = vunpack.c.l.b16 %v914
      %v1032 = vunpack.c.h.b16 %v914
      %v1033 = vunpack.c.l.b16 %v915
      %v1034 = vunpack.c.h.b16 %v915
      %v1035 = vunpack.c.l.b16 %v916
      %v1036 = vunpack.c.h.b16 %v916
      %v1037 = vunpack.c.l.b16 %v917
      %v1038 = vunpack.c.h.b16 %v917
      %v1039 = vunpack.c.l.b16 %v918
      %v1040 = vunpack.c.h.b16 %v918
      %v1041 = vunpack.c.l.b16 %v919
      %v1042 = vunpack.c.h.b16 %v919
      %v1043 = vunpack.c.l.b16 %v920
      %v1044 = vunpack.c.h.b16 %v920
      %v1045 = vunpack.c.l.b16 %v921
      %v1046 = vunpack.c.h.b16 %v921
      %v1047 = vunpack.c.l.b16 %v922
      %v1048 = vunpack.c.h.b16 %v922
      %v1049 = vunpack.c.l.b16 %v923
      %v1050 = vunpack.c.h.b16 %v923
      %v1051 = vpack.c.b16 %v1019, %v1019
      %v1052 = vpack.c.b16 %v1020, %v1020
      %v1053 = vpack.c.b16 %v1021, %v1021
      %v1054 = vpack.c.b16 %v1022, %v1022
      %v1055 = vpack.c.b16 %v1023, %v1023
      %v1056 = vpack.c.b16 %v1024, %v1024
      %v1057 = vpack.c.b16 %v1025, %v1025
      %v1058 = vpack.c.b16 %v1026, %v1026
      %v1059 = vpack.c.b16 %v1027, %v1027
      %v1060 = vpack.c.b16 %v1028, %v1028
      %v1061 = vpack.c.b16 %v1029, %v1029
      %v1062 = vpack.c.b16 %v1030, %v1030
      %v1063 = vpack.c.b16 %v1031, %v1031
      %v1064 = vpack.c.b16 %v1032, %v1032
      %v1065 = vpack.c.b16 %v1033, %v1033
      %v1066 = vpack.c.b16 %v1034, %v1034
      %v1067 = vpack.c.b16 %v1035, %v1035
      %v1068 = vpack.c.b16 %v1036, %v1036
      %v1069 = vpack.c.b16 %v1037, %v1037
      %v1070 = vpack.c.b16 %v1038, %v1038
      %v1071 = vpack.c.b16 %v1039, %v1039
      %v1072 = vpack.c.b16 %v1040, %v1040
      %v1073 = vpack.c.b16 %v1041, %v1041
      %v1074 = vpack.c.b16 %v1042, %v1042
      %v1075 = vpack.c.b16 %v1043, %v1043
      %v1076 = vpack.c.b16 %v1044, %v1044
      %v1077 = vpack.c.b16 %v1045, %v1045
      %v1078 = vpack.c.b16 %v1046, %v1046
      %v1079 = vpack.c.b16 %v1047, %v1047
      %v1080 = vpack.c.b16 %v1048, %v1048
      %v1081 = vpack.c.b16 %v1049, %v1049
      %v1082 = vpack.c.b16 %v1050, %v1050
      %v1100 = vshrl.u32 %v1051, 16
      %v1102 = vrot.slane %v1100, 7
      %v1103 = vshll.u32 %v1051, 16
      %v1105 = vor.u32 %v1102, %v1103
      %v1106 = vrot.slane %v1102, 4
      %v1108 = vshrl.u32 %v1052, 16
      %v1110 = vrot.slane %v1108, 7
      %v1111 = vshll.u32 %v1052, 16
      %v1113 = vor.u32 %v1110, %v1111
      %v1114 = vrot.slane %v1110, 4
      %v1116 = vshrl.u32 %v1053, 16
      %v1118 = vrot.slane %v1116, 7
      %v1119 = vshll.u32 %v1053, 16
      %v1121 = vor.u32 %v1118, %v1119
      %v1122 = vrot.slane %v1118, 4
      %v1124 = vshrl.u32 %v1054, 16
      %v1126 = vrot.slane %v1124, 7
      %v1127 = vshll.u32 %v1054, 16
      %v1129 = vor.u32 %v1126, %v1127
      %v1130 = vrot.slane %v1126, 4
      %v1132 = vshrl.u32 %v1055, 16
      %v1134 = vrot.slane %v1132, 7
      %v1135 = vshll.u32 %v1055, 16
      %v1137 = vor.u32 %v1134, %v1135
      %v1138 = vrot.slane %v1134, 4
      %v1140 = vshrl.u32 %v1056, 16
      %v1142 = vrot.slane %v1140, 7
      %v1143 = vshll.u32 %v1056, 16
      %v1145 = vor.u32 %v1142, %v1143
      %v1146 = vrot.slane %v1142, 4
      %v1148 = vshrl.u32 %v1057, 16
      %v1150 = vrot.slane %v1148, 7
      %v1151 = vshll.u32 %v1057, 16
      %v1153 = vor.u32 %v1150, %v1151
      %v1154 = vrot.slane %v1150, 4
      %v1156 = vshrl.u32 %v1058, 16
      %v1158 = vrot.slane %v1156, 7
      %v1159 = vshll.u32 %v1058, 16
      %v1161 = vor.u32 %v1158, %v1159
      %v1162 = vrot.slane %v1158, 4
      %s1179 = scalar_lea.vmem [#allocation2], 32
      %vm1180 = vcmask 1043456
      %vm1181 = vsmask.f32 7938
      %vm1182 = vmand %vm1180, %vm1181
      %v1183 = vld [vmem:[%s1179] sm:$0xf]
      %v1184 = vsel %vm1182, %v1105, %v1183
      %1185 = vst [vmem:[%s1179] sm:$0xf] %v1184
      %v1186 = vld [vmem:[%s1179 + $0x10] sm:$0x1]
      %v1187 = vsel %vm928, %v1106, %v1186
      %1188 = vst [vmem:[%s1179 + $0x10] sm:$0x1] %v1187
      %v1189 = vld [vmem:[%s1179 + $0x20] sm:$0xf]
      %v1190 = vsel %vm1182, %v1113, %v1189
      %1191 = vst [vmem:[%s1179 + $0x20] sm:$0xf] %v1190
      %v1192 = vld [vmem:[%s1179 + $0x30] sm:$0x1]
      %v1193 = vsel %vm928, %v1114, %v1192
      %1194 = vst [vmem:[%s1179 + $0x30] sm:$0x1] %v1193
      %v1195 = vld [vmem:[%s1179 + $0x40] sm:$0xf]
      %v1196 = vsel %vm1182, %v1121, %v1195
      %1197 = vst [vmem:[%s1179 + $0x40] sm:$0xf] %v1196
      %v1198 = vld [vmem:[%s1179 + $0x50] sm:$0x1]
      %v1199 = vsel %vm928, %v1122, %v1198
      %1200 = vst [vmem:[%s1179 + $0x50] sm:$0x1] %v1199
      %v1201 = vld [vmem:[%s1179 + $0x60] sm:$0xf]
      %v1202 = vsel %vm1182, %v1129, %v1201
      %1203 = vst [vmem:[%s1179 + $0x60] sm:$0xf] %v1202
      %v1204 = vld [vmem:[%s1179 + $0x70] sm:$0x1]
      %v1205 = vsel %vm928, %v1130, %v1204
      %1206 = vst [vmem:[%s1179 + $0x70] sm:$0x1] %v1205
      %v1207 = vld [vmem:[%s1179 + $0x80] sm:$0xf]
      %v1208 = vsel %vm1182, %v1137, %v1207
      %1209 = vst [vmem:[%s1179 + $0x80] sm:$0xf] %v1208
      %v1210 = vld [vmem:[%s1179 + $0x90] sm:$0x1]
      %v1211 = vsel %vm928, %v1138, %v1210
      %1212 = vst [vmem:[%s1179 + $0x90] sm:$0x1] %v1211
      %v1213 = vld [vmem:[%s1179 + $0xa0] sm:$0xf]
      %v1214 = vsel %vm1182, %v1145, %v1213
      %1215 = vst [vmem:[%s1179 + $0xa0] sm:$0xf] %v1214
      %v1216 = vld [vmem:[%s1179 + $0xb0] sm:$0x1]
      %v1217 = vsel %vm928, %v1146, %v1216
      %1218 = vst [vmem:[%s1179 + $0xb0] sm:$0x1] %v1217
      %v1219 = vld [vmem:[%s1179 + $0xc0] sm:$0xf]
      %v1220 = vsel %vm1182, %v1153, %v1219
      %1221 = vst [vmem:[%s1179 + $0xc0] sm:$0xf] %v1220
      %v1222 = vld [vmem:[%s1179 + $0xd0] sm:$0x1]
      %v1223 = vsel %vm928, %v1154, %v1222
      %1224 = vst [vmem:[%s1179 + $0xd0] sm:$0x1] %v1223
      %v1225 = vld [vmem:[%s1179 + $0xe0] sm:$0xf]
      %v1226 = vsel %vm1182, %v1161, %v1225
      %1227 = vst [vmem:[%s1179 + $0xe0] sm:$0xf] %v1226
      %v1228 = vld [vmem:[%s1179 + $0xf0] sm:$0x1]
      %v1229 = vsel %vm928, %v1162, %v1228
      %1230 = vst [vmem:[%s1179 + $0xf0] sm:$0x1] %v1229
      %1231 = vst [vmem:[%s1179 + $0x4] sm:$0xf] %v1059
      %1232 = vst [vmem:[%s1179 + $0x24] sm:$0xf] %v1060
      %1233 = vst [vmem:[%s1179 + $0x44] sm:$0xf] %v1061
      %1234 = vst [vmem:[%s1179 + $0x64] sm:$0xf] %v1062
      %1235 = vst [vmem:[%s1179 + $0x84] sm:$0xf] %v1063
      %1236 = vst [vmem:[%s1179 + $0xa4] sm:$0xf] %v1064
      %1237 = vst [vmem:[%s1179 + $0xc4] sm:$0xf] %v1065
      %1238 = vst [vmem:[%s1179 + $0xe4] sm:$0xf] %v1066
      %v1240 = vshrl.u32 %v1067, 16
      %v1242 = vrot.slane %v1240, 7
      %v1243 = vshll.u32 %v1067, 16
      %v1245 = vor.u32 %v1242, %v1243
      %v1246 = vrot.slane %v1242, 4
      %v1248 = vshrl.u32 %v1068, 16
      %v1250 = vrot.slane %v1248, 7
      %v1251 = vshll.u32 %v1068, 16
      %v1253 = vor.u32 %v1250, %v1251
      %v1254 = vrot.slane %v1250, 4
      %v1256 = vshrl.u32 %v1069, 16
      %v1258 = vrot.slane %v1256, 7
      %v1259 = vshll.u32 %v1069, 16
      %v1261 = vor.u32 %v1258, %v1259
      %v1262 = vrot.slane %v1258, 4
      %v1264 = vshrl.u32 %v1070, 16
      %v1266 = vrot.slane %v1264, 7
      %v1267 = vshll.u32 %v1070, 16
      %v1269 = vor.u32 %v1266, %v1267
      %v1270 = vrot.slane %v1266, 4
      %v1272 = vshrl.u32 %v1071, 16
      %v1274 = vrot.slane %v1272, 7
      %v1275 = vshll.u32 %v1071, 16
      %v1277 = vor.u32 %v1274, %v1275
      %v1278 = vrot.slane %v1274, 4
      %v1280 = vshrl.u32 %v1072, 16
      %v1282 = vrot.slane %v1280, 7
      %v1283 = vshll.u32 %v1072, 16
      %v1285 = vor.u32 %v1282, %v1283
      %v1286 = vrot.slane %v1282, 4
      %v1288 = vshrl.u32 %v1073, 16
      %v1290 = vrot.slane %v1288, 7
      %v1291 = vshll.u32 %v1073, 16
      %v1293 = vor.u32 %v1290, %v1291
      %v1294 = vrot.slane %v1290, 4
      %v1296 = vshrl.u32 %v1074, 16
      %v1298 = vrot.slane %v1296, 7
      %v1299 = vshll.u32 %v1074, 16
      %v1301 = vor.u32 %v1298, %v1299
      %v1302 = vrot.slane %v1298, 4
      %v1319 = vld [vmem:[#allocation2 + $0x8] sm:$0xf]
      %v1320 = vsel %vm1182, %v1245, %v1319
      %1321 = vst [vmem:[#allocation2 + $0x8] sm:$0xf] %v1320
      %v1322 = vld [vmem:[#allocation2 + $0x18] sm:$0x1]
      %v1323 = vsel %vm928, %v1246, %v1322
      %1324 = vst [vmem:[#allocation2 + $0x18] sm:$0x1] %v1323
      %v1325 = vld [vmem:[#allocation2 + $0x28] sm:$0xf]
      %v1326 = vsel %vm1182, %v1253, %v1325
      %1327 = vst [vmem:[#allocation2 + $0x28] sm:$0xf] %v1326
      %v1328 = vld [vmem:[#allocation2 + $0x38] sm:$0x1]
      %v1329 = vsel %vm928, %v1254, %v1328
      %1330 = vst [vmem:[#allocation2 + $0x38] sm:$0x1] %v1329
      %v1331 = vld [vmem:[#allocation2 + $0x48] sm:$0xf]
      %v1332 = vsel %vm1182, %v1261, %v1331
      %1333 = vst [vmem:[#allocation2 + $0x48] sm:$0xf] %v1332
      %v1334 = vld [vmem:[#allocation2 + $0x58] sm:$0x1]
      %v1335 = vsel %vm928, %v1262, %v1334
      %1336 = vst [vmem:[#allocation2 + $0x58] sm:$0x1] %v1335
      %v1337 = vld [vmem:[#allocation2 + $0x68] sm:$0xf]
      %v1338 = vsel %vm1182, %v1269, %v1337
      %1339 = vst [vmem:[#allocation2 + $0x68] sm:$0xf] %v1338
      %v1340 = vld [vmem:[#allocation2 + $0x78] sm:$0x1]
      %v1341 = vsel %vm928, %v1270, %v1340
      %1342 = vst [vmem:[#allocation2 + $0x78] sm:$0x1] %v1341
      %v1343 = vld [vmem:[#allocation2 + $0x88] sm:$0xf]
      %v1344 = vsel %vm1182, %v1277, %v1343
      %1345 = vst [vmem:[#allocation2 + $0x88] sm:$0xf] %v1344
      %v1346 = vld [vmem:[#allocation2 + $0x98] sm:$0x1]
      %v1347 = vsel %vm928, %v1278, %v1346
      %1348 = vst [vmem:[#allocation2 + $0x98] sm:$0x1] %v1347
      %v1349 = vld [vmem:[#allocation2 + $0xa8] sm:$0xf]
      %v1350 = vsel %vm1182, %v1285, %v1349
      %1351 = vst [vmem:[#allocation2 + $0xa8] sm:$0xf] %v1350
      %v1352 = vld [vmem:[#allocation2 + $0xb8] sm:$0x1]
      %v1353 = vsel %vm928, %v1286, %v1352
      %1354 = vst [vmem:[#allocation2 + $0xb8] sm:$0x1] %v1353
      %v1355 = vld [vmem:[#allocation2 + $0xc8] sm:$0xf]
      %v1356 = vsel %vm1182, %v1293, %v1355
      %1357 = vst [vmem:[#allocation2 + $0xc8] sm:$0xf] %v1356
      %v1358 = vld [vmem:[#allocation2 + $0xd8] sm:$0x1]
      %v1359 = vsel %vm928, %v1294, %v1358
      %1360 = vst [vmem:[#allocation2 + $0xd8] sm:$0x1] %v1359
      %v1361 = vld [vmem:[#allocation2 + $0xe8] sm:$0xf]
      %v1362 = vsel %vm1182, %v1301, %v1361
      %1363 = vst [vmem:[#allocation2 + $0xe8] sm:$0xf] %v1362
      %v1364 = vld [vmem:[#allocation2 + $0xf8] sm:$0x1]
      %v1365 = vsel %vm928, %v1302, %v1364
      %1366 = vst [vmem:[#allocation2 + $0xf8] sm:$0x1] %v1365
      %1367 = vst [vmem:[#allocation2 + $0xc] sm:$0xf] %v1075
      %1368 = vst [vmem:[#allocation2 + $0x2c] sm:$0xf] %v1076
      %1369 = vst [vmem:[#allocation2 + $0x4c] sm:$0xf] %v1077
      %1370 = vst [vmem:[#allocation2 + $0x6c] sm:$0xf] %v1078
      %1371 = vst [vmem:[#allocation2 + $0x8c] sm:$0xf] %v1079
      %1372 = vst [vmem:[#allocation2 + $0xac] sm:$0xf] %v1080
      %1373 = vst [vmem:[#allocation2 + $0xcc] sm:$0xf] %v1081
      %1374 = vst [vmem:[#allocation2 + $0xec] sm:$0xf] %v1082
      %v1375 = vld [vmem:[#allocation2] sm:$0xff]
      %v1376 = vld [vmem:[#allocation2 + $0x8] sm:$0xff]
      %v1377 = vld [vmem:[#allocation2 + $0x20] sm:$0xff]
      %v1378 = vld [vmem:[#allocation2 + $0x28] sm:$0xff]
      %v1379 = vld [vmem:[#allocation2 + $0x40] sm:$0xff]
      %v1380 = vld [vmem:[#allocation2 + $0x48] sm:$0xff]
      %v1381 = vld [vmem:[#allocation2 + $0x60] sm:$0xff]
      %v1382 = vld [vmem:[#allocation2 + $0x68] sm:$0xff]
      %v1383 = vld [vmem:[#allocation2 + $0x80] sm:$0xff]
      %v1384 = vld [vmem:[#allocation2 + $0x88] sm:$0xff]
      %v1385 = vld [vmem:[#allocation2 + $0xa0] sm:$0xff]
      %v1386 = vld [vmem:[#allocation2 + $0xa8] sm:$0xff]
      %v1387 = vld [vmem:[#allocation2 + $0xc0] sm:$0xff]
      %v1388 = vld [vmem:[#allocation2 + $0xc8] sm:$0xff]
      %v1389 = vld [vmem:[#allocation2 + $0xe0] sm:$0xff]
      %v1390 = vld [vmem:[#allocation2 + $0xe8] sm:$0xff]
      %v1391 = vld [vmem:[#allocation2 + $0x10] sm:$0x11]
      %v1392 = vld [vmem:[#allocation2 + $0x18] sm:$0x11]
      %v1393 = vld [vmem:[#allocation2 + $0x30] sm:$0x11]
      %v1394 = vld [vmem:[#allocation2 + $0x38] sm:$0x11]
      %v1395 = vld [vmem:[#allocation2 + $0x50] sm:$0x11]
      %v1396 = vld [vmem:[#allocation2 + $0x58] sm:$0x11]
      %v1397 = vld [vmem:[#allocation2 + $0x70] sm:$0x11]
      %v1398 = vld [vmem:[#allocation2 + $0x78] sm:$0x11]
      %v1399 = vld [vmem:[#allocation2 + $0x90] sm:$0x11]
      %v1400 = vld [vmem:[#allocation2 + $0x98] sm:$0x11]
      %v1401 = vld [vmem:[#allocation2 + $0xb0] sm:$0x11]
      %v1402 = vld [vmem:[#allocation2 + $0xb8] sm:$0x11]
      %v1403 = vld [vmem:[#allocation2 + $0xd0] sm:$0x11]
      %v1404 = vld [vmem:[#allocation2 + $0xd8] sm:$0x11]
      %v1405 = vld [vmem:[#allocation2 + $0xf0] sm:$0x11]
      %v1406 = vld [vmem:[#allocation2 + $0xf8] sm:$0x11]
      %vm1407 = vsmask.f32 3328
      %vm1408 = vsmask.f32 7440
      %vm1409 = vmor %vm1407, %vm1408
      %v1411 = vshrl.u32 %v1375, 16
      %v1413 = vrot.slane %v1411, 4
      %v1414 = vshll.u32 %v1375, 16
      %v1416 = vrot.slane %v1414, 5
      %v1417 = vor.u32 %v1413, %v1416
      %v1418 = vrot.slane %v1417, 4
      %v1420 = vshll.u32 %v1391, 16
      %v1422 = vrot.slane %v1420, 5
      %v1423 = vsel %vm1409, %v1418, %v1422
      %v1425 = vshrl.u32 %v1376, 16
      %v1427 = vrot.slane %v1425, 4
      %v1428 = vshll.u32 %v1376, 16
      %v1430 = vrot.slane %v1428, 5
      %v1431 = vor.u32 %v1427, %v1430
      %v1432 = vrot.slane %v1431, 4
      %v1434 = vshll.u32 %v1392, 16
      %v1436 = vrot.slane %v1434, 5
      %v1437 = vsel %vm1409, %v1432, %v1436
      %v1439 = vshrl.u32 %v1377, 16
      %v1441 = vrot.slane %v1439, 4
      %v1442 = vshll.u32 %v1377, 16
      %v1444 = vrot.slane %v1442, 5
      %v1445 = vor.u32 %v1441, %v1444
      %v1446 = vrot.slane %v1445, 4
      %v1448 = vshll.u32 %v1393, 16
      %v1450 = vrot.slane %v1448, 5
      %v1451 = vsel %vm1409, %v1446, %v1450
      %v1453 = vshrl.u32 %v1378, 16
      %v1455 = vrot.slane %v1453, 4
      %v1456 = vshll.u32 %v1378, 16
      %v1458 = vrot.slane %v1456, 5
      %v1459 = vor.u32 %v1455, %v1458
      %v1460 = vrot.slane %v1459, 4
      %v1462 = vshll.u32 %v1394, 16
      %v1464 = vrot.slane %v1462, 5
      %v1465 = vsel %vm1409, %v1460, %v1464
      %v1467 = vshrl.u32 %v1379, 16
      %v1469 = vrot.slane %v1467, 4
      %v1470 = vshll.u32 %v1379, 16
      %v1472 = vrot.slane %v1470, 5
      %v1473 = vor.u32 %v1469, %v1472
      %v1474 = vrot.slane %v1473, 4
      %v1476 = vshll.u32 %v1395, 16
      %v1478 = vrot.slane %v1476, 5
      %v1479 = vsel %vm1409, %v1474, %v1478
      %v1481 = vshrl.u32 %v1380, 16
      %v1483 = vrot.slane %v1481, 4
      %v1484 = vshll.u32 %v1380, 16
      %v1486 = vrot.slane %v1484, 5
      %v1487 = vor.u32 %v1483, %v1486
      %v1488 = vrot.slane %v1487, 4
      %v1490 = vshll.u32 %v1396, 16
      %v1492 = vrot.slane %v1490, 5
      %v1493 = vsel %vm1409, %v1488, %v1492
      %v1495 = vshrl.u32 %v1381, 16
      %v1497 = vrot.slane %v1495, 4
      %v1498 = vshll.u32 %v1381, 16
      %v1500 = vrot.slane %v1498, 5
      %v1501 = vor.u32 %v1497, %v1500
      %v1502 = vrot.slane %v1501, 4
      %v1504 = vshll.u32 %v1397, 16
      %v1506 = vrot.slane %v1504, 5
      %v1507 = vsel %vm1409, %v1502, %v1506
      %v1509 = vshrl.u32 %v1382, 16
      %v1511 = vrot.slane %v1509, 4
      %v1512 = vshll.u32 %v1382, 16
      %v1514 = vrot.slane %v1512, 5
      %v1515 = vor.u32 %v1511, %v1514
      %v1516 = vrot.slane %v1515, 4
      %v1518 = vshll.u32 %v1398, 16
      %v1520 = vrot.slane %v1518, 5
      %v1521 = vsel %vm1409, %v1516, %v1520
      %v1523 = vshrl.u32 %v1383, 16
      %v1525 = vrot.slane %v1523, 4
      %v1526 = vshll.u32 %v1383, 16
      %v1528 = vrot.slane %v1526, 5
      %v1529 = vor.u32 %v1525, %v1528
      %v1530 = vrot.slane %v1529, 4
      %v1532 = vshll.u32 %v1399, 16
      %v1534 = vrot.slane %v1532, 5
      %v1535 = vsel %vm1409, %v1530, %v1534
      %v1537 = vshrl.u32 %v1384, 16
      %v1539 = vrot.slane %v1537, 4
      %v1540 = vshll.u32 %v1384, 16
      %v1542 = vrot.slane %v1540, 5
      %v1543 = vor.u32 %v1539, %v1542
      %v1544 = vrot.slane %v1543, 4
      %v1546 = vshll.u32 %v1400, 16
      %v1548 = vrot.slane %v1546, 5
      %v1549 = vsel %vm1409, %v1544, %v1548
      %v1551 = vshrl.u32 %v1385, 16
      %v1553 = vrot.slane %v1551, 4
      %v1554 = vshll.u32 %v1385, 16
      %v1556 = vrot.slane %v1554, 5
      %v1557 = vor.u32 %v1553, %v1556
      %v1558 = vrot.slane %v1557, 4
      %v1560 = vshll.u32 %v1401, 16
      %v1562 = vrot.slane %v1560, 5
      %v1563 = vsel %vm1409, %v1558, %v1562
      %v1565 = vshrl.u32 %v1386, 16
      %v1567 = vrot.slane %v1565, 4
      %v1568 = vshll.u32 %v1386, 16
      %v1570 = vrot.slane %v1568, 5
      %v1571 = vor.u32 %v1567, %v1570
      %v1572 = vrot.slane %v1571, 4
      %v1574 = vshll.u32 %v1402, 16
      %v1576 = vrot.slane %v1574, 5
      %v1577 = vsel %vm1409, %v1572, %v1576
      %v1579 = vshrl.u32 %v1387, 16
      %v1581 = vrot.slane %v1579, 4
      %v1582 = vshll.u32 %v1387, 16
      %v1584 = vrot.slane %v1582, 5
      %v1585 = vor.u32 %v1581, %v1584
      %v1586 = vrot.slane %v1585, 4
      %v1588 = vshll.u32 %v1403, 16
      %v1590 = vrot.slane %v1588, 5
      %v1591 = vsel %vm1409, %v1586, %v1590
      %v1593 = vshrl.u32 %v1388, 16
      %v1595 = vrot.slane %v1593, 4
      %v1596 = vshll.u32 %v1388, 16
      %v1598 = vrot.slane %v1596, 5
      %v1599 = vor.u32 %v1595, %v1598
      %v1600 = vrot.slane %v1599, 4
      %v1602 = vshll.u32 %v1404, 16
      %v1604 = vrot.slane %v1602, 5
      %v1605 = vsel %vm1409, %v1600, %v1604
      %v1607 = vshrl.u32 %v1389, 16
      %v1609 = vrot.slane %v1607, 4
      %v1610 = vshll.u32 %v1389, 16
      %v1612 = vrot.slane %v1610, 5
      %v1613 = vor.u32 %v1609, %v1612
      %v1614 = vrot.slane %v1613, 4
      %v1616 = vshll.u32 %v1405, 16
      %v1618 = vrot.slane %v1616, 5
      %v1619 = vsel %vm1409, %v1614, %v1618
      %v1621 = vshrl.u32 %v1390, 16
      %v1623 = vrot.slane %v1621, 4
      %v1624 = vshll.u32 %v1390, 16
      %v1626 = vrot.slane %v1624, 5
      %v1627 = vor.u32 %v1623, %v1626
      %v1628 = vrot.slane %v1627, 4
      %v1630 = vshll.u32 %v1406, 16
      %v1632 = vrot.slane %v1630, 5
      %v1633 = vsel %vm1409, %v1628, %v1632
      %v1634 = vld [vmem:[%s1179] sm:$0xff]
      %v1635 = vld [vmem:[%s1179 + $0x8] sm:$0xff]
      %v1636 = vld [vmem:[%s1179 + $0x20] sm:$0xff]
      %v1637 = vld [vmem:[%s1179 + $0x28] sm:$0xff]
      %v1638 = vld [vmem:[%s1179 + $0x40] sm:$0xff]
      %v1639 = vld [vmem:[%s1179 + $0x48] sm:$0xff]
      %v1640 = vld [vmem:[%s1179 + $0x60] sm:$0xff]
      %v1641 = vld [vmem:[%s1179 + $0x68] sm:$0xff]
      %v1642 = vld [vmem:[%s1179 + $0x80] sm:$0xff]
      %v1643 = vld [vmem:[%s1179 + $0x88] sm:$0xff]
      %v1644 = vld [vmem:[%s1179 + $0xa0] sm:$0xff]
      %v1645 = vld [vmem:[%s1179 + $0xa8] sm:$0xff]
      %v1646 = vld [vmem:[%s1179 + $0xc0] sm:$0xff]
      %v1647 = vld [vmem:[%s1179 + $0xc8] sm:$0xff]
      %v1648 = vld [vmem:[%s1179 + $0xe0] sm:$0xff]
      %v1649 = vld [vmem:[%s1179 + $0xe8] sm:$0xff]
      %v1650 = vld [vmem:[%s1179 + $0x10] sm:$0x11]
      %v1651 = vld [vmem:[%s1179 + $0x18] sm:$0x11]
      %v1652 = vld [vmem:[%s1179 + $0x30] sm:$0x11]
      %v1653 = vld [vmem:[%s1179 + $0x38] sm:$0x11]
      %v1654 = vld [vmem:[%s1179 + $0x50] sm:$0x11]
      %v1655 = vld [vmem:[%s1179 + $0x58] sm:$0x11]
      %v1656 = vld [vmem:[%s1179 + $0x70] sm:$0x11]
      %v1657 = vld [vmem:[%s1179 + $0x78] sm:$0x11]
      %v1658 = vld [vmem:[%s1179 + $0x90] sm:$0x11]
      %v1659 = vld [vmem:[%s1179 + $0x98] sm:$0x11]
      %v1660 = vld [vmem:[%s1179 + $0xb0] sm:$0x11]
      %v1661 = vld [vmem:[%s1179 + $0xb8] sm:$0x11]
      %v1662 = vld [vmem:[%s1179 + $0xd0] sm:$0x11]
      %v1663 = vld [vmem:[%s1179 + $0xd8] sm:$0x11]
      %v1664 = vld [vmem:[%s1179 + $0xf0] sm:$0x11]
      %v1665 = vld [vmem:[%s1179 + $0xf8] sm:$0x11]
      %v1667 = vshrl.u32 %v1634, 16
      %v1669 = vrot.slane %v1667, 4
      %v1670 = vshll.u32 %v1634, 16
      %v1672 = vrot.slane %v1670, 5
      %v1673 = vor.u32 %v1669, %v1672
      %v1674 = vrot.slane %v1673, 4
      %v1676 = vshll.u32 %v1650, 16
      %v1678 = vrot.slane %v1676, 5
      %v1679 = vsel %vm1409, %v1674, %v1678
      %v1681 = vshrl.u32 %v1635, 16
      %v1683 = vrot.slane %v1681, 4
      %v1684 = vshll.u32 %v1635, 16
      %v1686 = vrot.slane %v1684, 5
      %v1687 = vor.u32 %v1683, %v1686
      %v1688 = vrot.slane %v1687, 4
      %v1690 = vshll.u32 %v1651, 16
      %v1692 = vrot.slane %v1690, 5
      %v1693 = vsel %vm1409, %v1688, %v1692
      %v1695 = vshrl.u32 %v1636, 16
      %v1697 = vrot.slane %v1695, 4
      %v1698 = vshll.u32 %v1636, 16
      %v1700 = vrot.slane %v1698, 5
      %v1701 = vor.u32 %v1697, %v1700
      %v1702 = vrot.slane %v1701, 4
      %v1704 = vshll.u32 %v1652, 16
      %v1706 = vrot.slane %v1704, 5
      %v1707 = vsel %vm1409, %v1702, %v1706
      %v1709 = vshrl.u32 %v1637, 16
      %v1711 = vrot.slane %v1709, 4
      %v1712 = vshll.u32 %v1637, 16
      %v1714 = vrot.slane %v1712, 5
      %v1715 = vor.u32 %v1711, %v1714
      %v1716 = vrot.slane %v1715, 4
      %v1718 = vshll.u32 %v1653, 16
      %v1720 = vrot.slane %v1718, 5
      %v1721 = vsel %vm1409, %v1716, %v1720
      %v1723 = vshrl.u32 %v1638, 16
      %v1725 = vrot.slane %v1723, 4
      %v1726 = vshll.u32 %v1638, 16
      %v1728 = vrot.slane %v1726, 5
      %v1729 = vor.u32 %v1725, %v1728
      %v1730 = vrot.slane %v1729, 4
      %v1732 = vshll.u32 %v1654, 16
      %v1734 = vrot.slane %v1732, 5
      %v1735 = vsel %vm1409, %v1730, %v1734
      %v1737 = vshrl.u32 %v1639, 16
      %v1739 = vrot.slane %v1737, 4
      %v1740 = vshll.u32 %v1639, 16
      %v1742 = vrot.slane %v1740, 5
      %v1743 = vor.u32 %v1739, %v1742
      %v1744 = vrot.slane %v1743, 4
      %v1746 = vshll.u32 %v1655, 16
      %v1748 = vrot.slane %v1746, 5
      %v1749 = vsel %vm1409, %v1744, %v1748
      %v1751 = vshrl.u32 %v1640, 16
      %v1753 = vrot.slane %v1751, 4
      %v1754 = vshll.u32 %v1640, 16
      %v1756 = vrot.slane %v1754, 5
      %v1757 = vor.u32 %v1753, %v1756
      %v1758 = vrot.slane %v1757, 4
      %v1760 = vshll.u32 %v1656, 16
      %v1762 = vrot.slane %v1760, 5
      %v1763 = vsel %vm1409, %v1758, %v1762
      %v1765 = vshrl.u32 %v1641, 16
      %v1767 = vrot.slane %v1765, 4
      %v1768 = vshll.u32 %v1641, 16
      %v1770 = vrot.slane %v1768, 5
      %v1771 = vor.u32 %v1767, %v1770
      %v1772 = vrot.slane %v1771, 4
      %v1774 = vshll.u32 %v1657, 16
      %v1776 = vrot.slane %v1774, 5
      %v1777 = vsel %vm1409, %v1772, %v1776
      %v1779 = vshrl.u32 %v1642, 16
      %v1781 = vrot.slane %v1779, 4
      %v1782 = vshll.u32 %v1642, 16
      %v1784 = vrot.slane %v1782, 5
      %v1785 = vor.u32 %v1781, %v1784
      %v1786 = vrot.slane %v1785, 4
      %v1788 = vshll.u32 %v1658, 16
      %v1790 = vrot.slane %v1788, 5
      %v1791 = vsel %vm1409, %v1786, %v1790
      %v1793 = vshrl.u32 %v1643, 16
      %v1795 = vrot.slane %v1793, 4
      %v1796 = vshll.u32 %v1643, 16
      %v1798 = vrot.slane %v1796, 5
      %v1799 = vor.u32 %v1795, %v1798
      %v1800 = vrot.slane %v1799, 4
      %v1802 = vshll.u32 %v1659, 16
      %v1804 = vrot.slane %v1802, 5
      %v1805 = vsel %vm1409, %v1800, %v1804
      %v1807 = vshrl.u32 %v1644, 16
      %v1809 = vrot.slane %v1807, 4
      %v1810 = vshll.u32 %v1644, 16
      %v1812 = vrot.slane %v1810, 5
      %v1813 = vor.u32 %v1809, %v1812
      %v1814 = vrot.slane %v1813, 4
      %v1816 = vshll.u32 %v1660, 16
      %v1818 = vrot.slane %v1816, 5
      %v1819 = vsel %vm1409, %v1814, %v1818
      %v1821 = vshrl.u32 %v1645, 16
      %v1823 = vrot.slane %v1821, 4
      %v1824 = vshll.u32 %v1645, 16
      %v1826 = vrot.slane %v1824, 5
      %v1827 = vor.u32 %v1823, %v1826
      %v1828 = vrot.slane %v1827, 4
      %v1830 = vshll.u32 %v1661, 16
      %v1832 = vrot.slane %v1830, 5
      %v1833 = vsel %vm1409, %v1828, %v1832
      %v1835 = vshrl.u32 %v1646, 16
      %v1837 = vrot.slane %v1835, 4
      %v1838 = vshll.u32 %v1646, 16
      %v1840 = vrot.slane %v1838, 5
      %v1841 = vor.u32 %v1837, %v1840
      %v1842 = vrot.slane %v1841, 4
      %v1844 = vshll.u32 %v1662, 16
      %v1846 = vrot.slane %v1844, 5
      %v1847 = vsel %vm1409, %v1842, %v1846
      %v1849 = vshrl.u32 %v1647, 16
      %v1851 = vrot.slane %v1849, 4
      %v1852 = vshll.u32 %v1647, 16
      %v1854 = vrot.slane %v1852, 5
      %v1855 = vor.u32 %v1851, %v1854
      %v1856 = vrot.slane %v1855, 4
      %v1858 = vshll.u32 %v1663, 16
      %v1860 = vrot.slane %v1858, 5
      %v1861 = vsel %vm1409, %v1856, %v1860
      %v1863 = vshrl.u32 %v1648, 16
      %v1865 = vrot.slane %v1863, 4
      %v1866 = vshll.u32 %v1648, 16
      %v1868 = vrot.slane %v1866, 5
      %v1869 = vor.u32 %v1865, %v1868
      %v1870 = vrot.slane %v1869, 4
      %v1872 = vshll.u32 %v1664, 16
      %v1874 = vrot.slane %v1872, 5
      %v1875 = vsel %vm1409, %v1870, %v1874
      %v1877 = vshrl.u32 %v1649, 16
      %v1879 = vrot.slane %v1877, 4
      %v1880 = vshll.u32 %v1649, 16
      %v1882 = vrot.slane %v1880, 5
      %v1883 = vor.u32 %v1879, %v1882
      %v1884 = vrot.slane %v1883, 4
      %v1886 = vshll.u32 %v1665, 16
      %v1888 = vrot.slane %v1886, 5
      %v1889 = vsel %vm1409, %v1884, %v1888
      %v1906 = vunpack.c.l.b16 %v1375
      %v1907 = vunpack.c.h.b16 %v1375
      %v1908 = vunpack.c.l.b16 %v1376
      %v1909 = vunpack.c.h.b16 %v1376
      %v1910 = vunpack.c.l.b16 %v1377
      %v1911 = vunpack.c.h.b16 %v1377
      %v1912 = vunpack.c.l.b16 %v1378
      %v1913 = vunpack.c.h.b16 %v1378
      %v1914 = vunpack.c.l.b16 %v1379
      %v1915 = vunpack.c.h.b16 %v1379
      %v1916 = vunpack.c.l.b16 %v1380
      %v1917 = vunpack.c.h.b16 %v1380
      %v1918 = vunpack.c.l.b16 %v1381
      %v1919 = vunpack.c.h.b16 %v1381
      %v1920 = vunpack.c.l.b16 %v1382
      %v1921 = vunpack.c.h.b16 %v1382
      %v1922 = vunpack.c.l.b16 %v1383
      %v1923 = vunpack.c.h.b16 %v1383
      %v1924 = vunpack.c.l.b16 %v1384
      %v1925 = vunpack.c.h.b16 %v1384
      %v1926 = vunpack.c.l.b16 %v1385
      %v1927 = vunpack.c.h.b16 %v1385
      %v1928 = vunpack.c.l.b16 %v1386
      %v1929 = vunpack.c.h.b16 %v1386
      %v1930 = vunpack.c.l.b16 %v1387
      %v1931 = vunpack.c.h.b16 %v1387
      %v1932 = vunpack.c.l.b16 %v1388
      %v1933 = vunpack.c.h.b16 %v1388
      %v1934 = vunpack.c.l.b16 %v1389
      %v1935 = vunpack.c.h.b16 %v1389
      %v1936 = vunpack.c.l.b16 %v1390
      %v1937 = vunpack.c.h.b16 %v1390
      %v1938 = vpack.c.b16 %v1910, %v1906
      %v1939 = vpack.c.b16 %v1911, %v1907
      %v1940 = vpack.c.b16 %v1912, %v1908
      %v1941 = vpack.c.b16 %v1913, %v1909
      %v1942 = vpack.c.b16 %v1918, %v1914
      %v1943 = vpack.c.b16 %v1919, %v1915
      %v1944 = vpack.c.b16 %v1920, %v1916
      %v1945 = vpack.c.b16 %v1921, %v1917
      %v1946 = vpack.c.b16 %v1926, %v1922
      %v1947 = vpack.c.b16 %v1927, %v1923
      %v1948 = vpack.c.b16 %v1928, %v1924
      %v1949 = vpack.c.b16 %v1929, %v1925
      %v1950 = vpack.c.b16 %v1934, %v1930
      %v1951 = vpack.c.b16 %v1935, %v1931
      %v1952 = vpack.c.b16 %v1936, %v1932
      %v1953 = vpack.c.b16 %v1937, %v1933
      %v1970 = vunpack.c.l.b16 %v1423
      %v1971 = vunpack.c.h.b16 %v1423
      %v1972 = vunpack.c.l.b16 %v1437
      %v1973 = vunpack.c.h.b16 %v1437
      %v1974 = vunpack.c.l.b16 %v1451
      %v1975 = vunpack.c.h.b16 %v1451
      %v1976 = vunpack.c.l.b16 %v1465
      %v1977 = vunpack.c.h.b16 %v1465
      %v1978 = vunpack.c.l.b16 %v1479
      %v1979 = vunpack.c.h.b16 %v1479
      %v1980 = vunpack.c.l.b16 %v1493
      %v1981 = vunpack.c.h.b16 %v1493
      %v1982 = vunpack.c.l.b16 %v1507
      %v1983 = vunpack.c.h.b16 %v1507
      %v1984 = vunpack.c.l.b16 %v1521
      %v1985 = vunpack.c.h.b16 %v1521
      %v1986 = vunpack.c.l.b16 %v1535
      %v1987 = vunpack.c.h.b16 %v1535
      %v1988 = vunpack.c.l.b16 %v1549
      %v1989 = vunpack.c.h.b16 %v1549
      %v1990 = vunpack.c.l.b16 %v1563
      %v1991 = vunpack.c.h.b16 %v1563
      %v1992 = vunpack.c.l.b16 %v1577
      %v1993 = vunpack.c.h.b16 %v1577
      %v1994 = vunpack.c.l.b16 %v1591
      %v1995 = vunpack.c.h.b16 %v1591
      %v1996 = vunpack.c.l.b16 %v1605
      %v1997 = vunpack.c.h.b16 %v1605
      %v1998 = vunpack.c.l.b16 %v1619
      %v1999 = vunpack.c.h.b16 %v1619
      %v2000 = vunpack.c.l.b16 %v1633
      %v2001 = vunpack.c.h.b16 %v1633
      %v2002 = vpack.c.b16 %v1974, %v1970
      %v2003 = vpack.c.b16 %v1975, %v1971
      %v2004 = vpack.c.b16 %v1976, %v1972
      %v2005 = vpack.c.b16 %v1977, %v1973
      %v2006 = vpack.c.b16 %v1982, %v1978
      %v2007 = vpack.c.b16 %v1983, %v1979
      %v2008 = vpack.c.b16 %v1984, %v1980
      %v2009 = vpack.c.b16 %v1985, %v1981
      %v2010 = vpack.c.b16 %v1990, %v1986
      %v2011 = vpack.c.b16 %v1991, %v1987
      %v2012 = vpack.c.b16 %v1992, %v1988
      %v2013 = vpack.c.b16 %v1993, %v1989
      %v2014 = vpack.c.b16 %v1998, %v1994
      %v2015 = vpack.c.b16 %v1999, %v1995
      %v2016 = vpack.c.b16 %v2000, %v1996
      %v2017 = vpack.c.b16 %v2001, %v1997
      %v2050 = vunpack.c.l.b16 %v1634
      %v2051 = vunpack.c.h.b16 %v1634
      %v2052 = vunpack.c.l.b16 %v1635
      %v2053 = vunpack.c.h.b16 %v1635
      %v2054 = vunpack.c.l.b16 %v1636
      %v2055 = vunpack.c.h.b16 %v1636
      %v2056 = vunpack.c.l.b16 %v1637
      %v2057 = vunpack.c.h.b16 %v1637
      %v2058 = vunpack.c.l.b16 %v1638
      %v2059 = vunpack.c.h.b16 %v1638
      %v2060 = vunpack.c.l.b16 %v1639
      %v2061 = vunpack.c.h.b16 %v1639
      %v2062 = vunpack.c.l.b16 %v1640
      %v2063 = vunpack.c.h.b16 %v1640
      %v2064 = vunpack.c.l.b16 %v1641
      %v2065 = vunpack.c.h.b16 %v1641
      %v2066 = vunpack.c.l.b16 %v1642
      %v2067 = vunpack.c.h.b16 %v1642
      %v2068 = vunpack.c.l.b16 %v1643
      %v2069 = vunpack.c.h.b16 %v1643
      %v2070 = vunpack.c.l.b16 %v1644
      %v2071 = vunpack.c.h.b16 %v1644
      %v2072 = vunpack.c.l.b16 %v1645
      %v2073 = vunpack.c.h.b16 %v1645
      %v2074 = vunpack.c.l.b16 %v1646
      %v2075 = vunpack.c.h.b16 %v1646
      %v2076 = vunpack.c.l.b16 %v1647
      %v2077 = vunpack.c.h.b16 %v1647
      %v2078 = vunpack.c.l.b16 %v1648
      %v2079 = vunpack.c.h.b16 %v1648
      %v2080 = vunpack.c.l.b16 %v1649
      %v2081 = vunpack.c.h.b16 %v1649
      %v2082 = vpack.c.b16 %v2054, %v2050
      %v2083 = vpack.c.b16 %v2055, %v2051
      %v2084 = vpack.c.b16 %v2056, %v2052
      %v2085 = vpack.c.b16 %v2057, %v2053
      %v2086 = vpack.c.b16 %v2062, %v2058
      %v2087 = vpack.c.b16 %v2063, %v2059
      %v2088 = vpack.c.b16 %v2064, %v2060
      %v2089 = vpack.c.b16 %v2065, %v2061
      %v2090 = vpack.c.b16 %v2070, %v2066
      %v2091 = vpack.c.b16 %v2071, %v2067
      %v2092 = vpack.c.b16 %v2072, %v2068
      %v2093 = vpack.c.b16 %v2073, %v2069
      %v2094 = vpack.c.b16 %v2078, %v2074
      %v2095 = vpack.c.b16 %v2079, %v2075
      %v2096 = vpack.c.b16 %v2080, %v2076
      %v2097 = vpack.c.b16 %v2081, %v2077
      %v2114 = vunpack.c.l.b16 %v1679
      %v2115 = vunpack.c.h.b16 %v1679
      %v2116 = vunpack.c.l.b16 %v1693
      %v2117 = vunpack.c.h.b16 %v1693
      %v2118 = vunpack.c.l.b16 %v1707
      %v2119 = vunpack.c.h.b16 %v1707
      %v2120 = vunpack.c.l.b16 %v1721
      %v2121 = vunpack.c.h.b16 %v1721
      %v2122 = vunpack.c.l.b16 %v1735
      %v2123 = vunpack.c.h.b16 %v1735
      %v2124 = vunpack.c.l.b16 %v1749
      %v2125 = vunpack.c.h.b16 %v1749
      %v2126 = vunpack.c.l.b16 %v1763
      %v2127 = vunpack.c.h.b16 %v1763
      %v2128 = vunpack.c.l.b16 %v1777
      %v2129 = vunpack.c.h.b16 %v1777
      %v2130 = vunpack.c.l.b16 %v1791
      %v2131 = vunpack.c.h.b16 %v1791
      %v2132 = vunpack.c.l.b16 %v1805
      %v2133 = vunpack.c.h.b16 %v1805
      %v2134 = vunpack.c.l.b16 %v1819
      %v2135 = vunpack.c.h.b16 %v1819
      %v2136 = vunpack.c.l.b16 %v1833
      %v2137 = vunpack.c.h.b16 %v1833
      %v2138 = vunpack.c.l.b16 %v1847
      %v2139 = vunpack.c.h.b16 %v1847
      %v2140 = vunpack.c.l.b16 %v1861
      %v2141 = vunpack.c.h.b16 %v1861
      %v2142 = vunpack.c.l.b16 %v1875
      %v2143 = vunpack.c.h.b16 %v1875
      %v2144 = vunpack.c.l.b16 %v1889
      %v2145 = vunpack.c.h.b16 %v1889
      %v2146 = vpack.c.b16 %v2118, %v2114
      %v2147 = vpack.c.b16 %v2119, %v2115
      %v2148 = vpack.c.b16 %v2120, %v2116
      %v2149 = vpack.c.b16 %v2121, %v2117
      %v2150 = vpack.c.b16 %v2126, %v2122
      %v2151 = vpack.c.b16 %v2127, %v2123
      %v2152 = vpack.c.b16 %v2128, %v2124
      %v2153 = vpack.c.b16 %v2129, %v2125
      %v2154 = vpack.c.b16 %v2134, %v2130
      %v2155 = vpack.c.b16 %v2135, %v2131
      %v2156 = vpack.c.b16 %v2136, %v2132
      %v2157 = vpack.c.b16 %v2137, %v2133
      %v2158 = vpack.c.b16 %v2142, %v2138
      %v2159 = vpack.c.b16 %v2143, %v2139
      %v2160 = vpack.c.b16 %v2144, %v2140
      %v2161 = vpack.c.b16 %v2145, %v2141
      %v2178 = vld [vmem:[%s3] sm:$0xf]
      %v2179 = vld [vmem:[%s3 + $0x4] sm:$0xf]
      %v2180 = vld [vmem:[%s3 + $0x8] sm:$0xf]
      %v2181 = vld [vmem:[%s3 + $0xc] sm:$0xf]
      %v2182 = vld [vmem:[%s3 + $0x10] sm:$0xf]
      %v2183 = vld [vmem:[%s3 + $0x14] sm:$0xf]
      %v2184 = vld [vmem:[%s3 + $0x18] sm:$0xf]
      %v2185 = vld [vmem:[%s3 + $0x1c] sm:$0xf]
      %v2186 = vld [vmem:[%s3 + $0x20] sm:$0xf]
      %v2187 = vld [vmem:[%s3 + $0x24] sm:$0xf]
      %v2188 = vld [vmem:[%s3 + $0x28] sm:$0xf]
      %v2189 = vld [vmem:[%s3 + $0x2c] sm:$0xf]
      %v2190 = vld [vmem:[%s3 + $0x30] sm:$0xf]
      %v2191 = vld [vmem:[%s3 + $0x34] sm:$0xf]
      %v2192 = vld [vmem:[%s3 + $0x38] sm:$0xf]
      %v2193 = vld [vmem:[%s3 + $0x3c] sm:$0xf]
      %v2194 = vld [vmem:[%s3 + $0x40] sm:$0xf]
      %v2195 = vld [vmem:[%s3 + $0x44] sm:$0xf]
      %v2196 = vld [vmem:[%s3 + $0x48] sm:$0xf]
      %v2197 = vld [vmem:[%s3 + $0x4c] sm:$0xf]
      %v2198 = vld [vmem:[%s3 + $0x50] sm:$0xf]
      %v2199 = vld [vmem:[%s3 + $0x54] sm:$0xf]
      %v2200 = vld [vmem:[%s3 + $0x58] sm:$0xf]
      %v2201 = vld [vmem:[%s3 + $0x5c] sm:$0xf]
      %v2202 = vld [vmem:[%s3 + $0x60] sm:$0xf]
      %v2203 = vld [vmem:[%s3 + $0x64] sm:$0xf]
      %v2204 = vld [vmem:[%s3 + $0x68] sm:$0xf]
      %v2205 = vld [vmem:[%s3 + $0x6c] sm:$0xf]
      %v2206 = vld [vmem:[%s3 + $0x70] sm:$0xf]
      %v2207 = vld [vmem:[%s3 + $0x74] sm:$0xf]
      %v2208 = vld [vmem:[%s3 + $0x78] sm:$0xf]
      %v2209 = vld [vmem:[%s3 + $0x7c] sm:$0xf]
      %v2210 = vld [vmem:[%s3 + $0x80] sm:$0xf]
      %v2211 = vld [vmem:[%s3 + $0x84] sm:$0xf]
      %v2212 = vld [vmem:[%s3 + $0x88] sm:$0xf]
      %v2213 = vld [vmem:[%s3 + $0x8c] sm:$0xf]
      %v2214 = vld [vmem:[%s3 + $0x90] sm:$0xf]
      %v2215 = vld [vmem:[%s3 + $0x94] sm:$0xf]
      %v2216 = vld [vmem:[%s3 + $0x98] sm:$0xf]
      %v2217 = vld [vmem:[%s3 + $0x9c] sm:$0xf]
      %v2218 = vld [vmem:[%s3 + $0xa0] sm:$0xf]
      %v2219 = vld [vmem:[%s3 + $0xa4] sm:$0xf]
      %v2220 = vld [vmem:[%s3 + $0xa8] sm:$0xf]
      %v2221 = vld [vmem:[%s3 + $0xac] sm:$0xf]
      %v2222 = vld [vmem:[%s3 + $0xb0] sm:$0xf]
      %v2223 = vld [vmem:[%s3 + $0xb4] sm:$0xf]
      %v2224 = vld [vmem:[%s3 + $0xb8] sm:$0xf]
      %v2225 = vld [vmem:[%s3 + $0xbc] sm:$0xf]
      %v2226 = vld [vmem:[%s3 + $0xc0] sm:$0xf]
      %v2227 = vld [vmem:[%s3 + $0xc4] sm:$0xf]
      %v2228 = vld [vmem:[%s3 + $0xc8] sm:$0xf]
      %v2229 = vld [vmem:[%s3 + $0xcc] sm:$0xf]
      %v2230 = vld [vmem:[%s3 + $0xd0] sm:$0xf]
      %v2231 = vld [vmem:[%s3 + $0xd4] sm:$0xf]
      %v2232 = vld [vmem:[%s3 + $0xd8] sm:$0xf]
      %v2233 = vld [vmem:[%s3 + $0xdc] sm:$0xf]
      %v2234 = vld [vmem:[%s3 + $0xe0] sm:$0xf]
      %v2235 = vld [vmem:[%s3 + $0xe4] sm:$0xf]
      %v2236 = vld [vmem:[%s3 + $0xe8] sm:$0xf]
      %v2237 = vld [vmem:[%s3 + $0xec] sm:$0xf]
      %v2238 = vld [vmem:[%s3 + $0xf0] sm:$0xf]
      %v2239 = vld [vmem:[%s3 + $0xf4] sm:$0xf]
      %v2240 = vld [vmem:[%s3 + $0xf8] sm:$0xf]
      %v2241 = vld [vmem:[%s3 + $0xfc] sm:$0xf]
      %v2242 = vld [vmem:[%s3 + $0x100] sm:$0xf]
      %v2243 = vld [vmem:[%s3 + $0x104] sm:$0xf]
      %v2244 = vld [vmem:[%s3 + $0x108] sm:$0xf]
      %v2245 = vld [vmem:[%s3 + $0x10c] sm:$0xf]
      %v2246 = vld [vmem:[%s3 + $0x110] sm:$0xf]
      %v2247 = vld [vmem:[%s3 + $0x114] sm:$0xf]
      %v2248 = vld [vmem:[%s3 + $0x118] sm:$0xf]
      %v2249 = vld [vmem:[%s3 + $0x11c] sm:$0xf]
      %v2250 = vld [vmem:[%s3 + $0x120] sm:$0xf]
      %v2251 = vld [vmem:[%s3 + $0x124] sm:$0xf]
      %v2252 = vld [vmem:[%s3 + $0x128] sm:$0xf]
      %v2253 = vld [vmem:[%s3 + $0x12c] sm:$0xf]
      %v2254 = vld [vmem:[%s3 + $0x130] sm:$0xf]
      %v2255 = vld [vmem:[%s3 + $0x134] sm:$0xf]
      %v2256 = vld [vmem:[%s3 + $0x138] sm:$0xf]
      %v2257 = vld [vmem:[%s3 + $0x13c] sm:$0xf]
      %v2258 = vld [vmem:[%s3 + $0x140] sm:$0xf]
      %v2259 = vld [vmem:[%s3 + $0x144] sm:$0xf]
      %v2260 = vld [vmem:[%s3 + $0x148] sm:$0xf]
      %v2261 = vld [vmem:[%s3 + $0x14c] sm:$0xf]
      %v2262 = vld [vmem:[%s3 + $0x150] sm:$0xf]
      %v2263 = vld [vmem:[%s3 + $0x154] sm:$0xf]
      %v2264 = vld [vmem:[%s3 + $0x158] sm:$0xf]
      %v2265 = vld [vmem:[%s3 + $0x15c] sm:$0xf]
      %v2266 = vld [vmem:[%s3 + $0x160] sm:$0xf]
      %v2267 = vld [vmem:[%s3 + $0x164] sm:$0xf]
      %v2268 = vld [vmem:[%s3 + $0x168] sm:$0xf]
      %v2269 = vld [vmem:[%s3 + $0x16c] sm:$0xf]
      %v2270 = vld [vmem:[%s3 + $0x170] sm:$0xf]
      %v2271 = vld [vmem:[%s3 + $0x174] sm:$0xf]
      %v2272 = vld [vmem:[%s3 + $0x178] sm:$0xf]
      %v2273 = vld [vmem:[%s3 + $0x17c] sm:$0xf]
      %v2274 = vld [vmem:[%s3 + $0x180] sm:$0xf]
      %v2275 = vld [vmem:[%s3 + $0x184] sm:$0xf]
      %v2276 = vld [vmem:[%s3 + $0x188] sm:$0xf]
      %v2277 = vld [vmem:[%s3 + $0x18c] sm:$0xf]
      %v2278 = vld [vmem:[%s3 + $0x190] sm:$0xf]
      %v2279 = vld [vmem:[%s3 + $0x194] sm:$0xf]
      %v2280 = vld [vmem:[%s3 + $0x198] sm:$0xf]
      %v2281 = vld [vmem:[%s3 + $0x19c] sm:$0xf]
      %v2282 = vld [vmem:[%s3 + $0x1a0] sm:$0xf]
      %v2283 = vld [vmem:[%s3 + $0x1a4] sm:$0xf]
      %v2284 = vld [vmem:[%s3 + $0x1a8] sm:$0xf]
      %v2285 = vld [vmem:[%s3 + $0x1ac] sm:$0xf]
      %v2286 = vld [vmem:[%s3 + $0x1b0] sm:$0xf]
      %v2287 = vld [vmem:[%s3 + $0x1b4] sm:$0xf]
      %v2288 = vld [vmem:[%s3 + $0x1b8] sm:$0xf]
      %v2289 = vld [vmem:[%s3 + $0x1bc] sm:$0xf]
      %v2290 = vld [vmem:[%s3 + $0x1c0] sm:$0xf]
      %v2291 = vld [vmem:[%s3 + $0x1c4] sm:$0xf]
      %v2292 = vld [vmem:[%s3 + $0x1c8] sm:$0xf]
      %v2293 = vld [vmem:[%s3 + $0x1cc] sm:$0xf]
      %v2294 = vld [vmem:[%s3 + $0x1d0] sm:$0xf]
      %v2295 = vld [vmem:[%s3 + $0x1d4] sm:$0xf]
      %v2296 = vld [vmem:[%s3 + $0x1d8] sm:$0xf]
      %v2297 = vld [vmem:[%s3 + $0x1dc] sm:$0xf]
      %v2298 = vld [vmem:[%s3 + $0x1e0] sm:$0xf]
      %v2299 = vld [vmem:[%s3 + $0x1e4] sm:$0xf]
      %v2300 = vld [vmem:[%s3 + $0x1e8] sm:$0xf]
      %v2301 = vld [vmem:[%s3 + $0x1ec] sm:$0xf]
      %v2302 = vld [vmem:[%s3 + $0x1f0] sm:$0xf]
      %v2303 = vld [vmem:[%s3 + $0x1f4] sm:$0xf]
      %v2304 = vld [vmem:[%s3 + $0x1f8] sm:$0xf]
      %v2305 = vld [vmem:[%s3 + $0x1fc] sm:$0xf]
      %v2306 = vld [vmem:[%s3 + $0x200] sm:$0xf]
      %v2307 = vld [vmem:[%s3 + $0x204] sm:$0xf]
      %v2308 = vld [vmem:[%s3 + $0x208] sm:$0xf]
      %v2309 = vld [vmem:[%s3 + $0x20c] sm:$0xf]
      %v2310 = vld [vmem:[%s3 + $0x210] sm:$0xf]
      %v2311 = vld [vmem:[%s3 + $0x214] sm:$0xf]
      %v2312 = vld [vmem:[%s3 + $0x218] sm:$0xf]
      %v2313 = vld [vmem:[%s3 + $0x21c] sm:$0xf]
      %v2314 = vld [vmem:[%s3 + $0x220] sm:$0xf]
      %v2315 = vld [vmem:[%s3 + $0x224] sm:$0xf]
      %v2316 = vld [vmem:[%s3 + $0x228] sm:$0xf]
      %v2317 = vld [vmem:[%s3 + $0x22c] sm:$0xf]
      %v2318 = vld [vmem:[%s3 + $0x230] sm:$0xf]
      %v2319 = vld [vmem:[%s3 + $0x234] sm:$0xf]
      %v2320 = vld [vmem:[%s3 + $0x238] sm:$0xf]
      %v2321 = vld [vmem:[%s3 + $0x23c] sm:$0xf]
      %v2322 = vld [vmem:[%s3 + $0x240] sm:$0xf]
      %v2323 = vld [vmem:[%s3 + $0x244] sm:$0xf]
      %v2324 = vld [vmem:[%s3 + $0x248] sm:$0xf]
      %v2325 = vld [vmem:[%s3 + $0x24c] sm:$0xf]
      %v2326 = vld [vmem:[%s3 + $0x250] sm:$0xf]
      %v2327 = vld [vmem:[%s3 + $0x254] sm:$0xf]
      %v2328 = vld [vmem:[%s3 + $0x258] sm:$0xf]
      %v2329 = vld [vmem:[%s3 + $0x25c] sm:$0xf]
      %v2330 = vld [vmem:[%s3 + $0x260] sm:$0xf]
      %v2331 = vld [vmem:[%s3 + $0x264] sm:$0xf]
      %v2332 = vld [vmem:[%s3 + $0x268] sm:$0xf]
      %v2333 = vld [vmem:[%s3 + $0x26c] sm:$0xf]
      %v2334 = vld [vmem:[%s3 + $0x270] sm:$0xf]
      %v2335 = vld [vmem:[%s3 + $0x274] sm:$0xf]
      %v2336 = vld [vmem:[%s3 + $0x278] sm:$0xf]
      %v2337 = vld [vmem:[%s3 + $0x27c] sm:$0xf]
      %v2338 = vld [vmem:[%s3 + $0x280] sm:$0xf]
      %v2339 = vld [vmem:[%s3 + $0x284] sm:$0xf]
      %v2340 = vld [vmem:[%s3 + $0x288] sm:$0xf]
      %v2341 = vld [vmem:[%s3 + $0x28c] sm:$0xf]
      %v2342 = vld [vmem:[%s3 + $0x290] sm:$0xf]
      %v2343 = vld [vmem:[%s3 + $0x294] sm:$0xf]
      %v2344 = vld [vmem:[%s3 + $0x298] sm:$0xf]
      %v2345 = vld [vmem:[%s3 + $0x29c] sm:$0xf]
      %v2346 = vld [vmem:[%s3 + $0x2a0] sm:$0xf]
      %v2347 = vld [vmem:[%s3 + $0x2a4] sm:$0xf]
      %v2348 = vld [vmem:[%s3 + $0x2a8] sm:$0xf]
      %v2349 = vld [vmem:[%s3 + $0x2ac] sm:$0xf]
      %v2350 = vld [vmem:[%s3 + $0x2b0] sm:$0xf]
      %v2351 = vld [vmem:[%s3 + $0x2b4] sm:$0xf]
      %v2352 = vld [vmem:[%s3 + $0x2b8] sm:$0xf]
      %v2353 = vld [vmem:[%s3 + $0x2bc] sm:$0xf]
      %v2354 = vld [vmem:[%s3 + $0x2c0] sm:$0xf]
      %v2355 = vld [vmem:[%s3 + $0x2c4] sm:$0xf]
      %v2356 = vld [vmem:[%s3 + $0x2c8] sm:$0xf]
      %v2357 = vld [vmem:[%s3 + $0x2cc] sm:$0xf]
      %v2358 = vld [vmem:[%s3 + $0x2d0] sm:$0xf]
      %v2359 = vld [vmem:[%s3 + $0x2d4] sm:$0xf]
      %v2360 = vld [vmem:[%s3 + $0x2d8] sm:$0xf]
      %v2361 = vld [vmem:[%s3 + $0x2dc] sm:$0xf]
      %v2362 = vld [vmem:[%s3 + $0x2e0] sm:$0xf]
      %v2363 = vld [vmem:[%s3 + $0x2e4] sm:$0xf]
      %v2364 = vld [vmem:[%s3 + $0x2e8] sm:$0xf]
      %v2365 = vld [vmem:[%s3 + $0x2ec] sm:$0xf]
      %v2366 = vld [vmem:[%s3 + $0x2f0] sm:$0xf]
      %v2367 = vld [vmem:[%s3 + $0x2f4] sm:$0xf]
      %v2368 = vld [vmem:[%s3 + $0x2f8] sm:$0xf]
      %v2369 = vld [vmem:[%s3 + $0x2fc] sm:$0xf]
      %v2370 = vld [vmem:[%s3 + $0x300] sm:$0xf]
      %v2371 = vld [vmem:[%s3 + $0x304] sm:$0xf]
      %v2372 = vld [vmem:[%s3 + $0x308] sm:$0xf]
      %v2373 = vld [vmem:[%s3 + $0x30c] sm:$0xf]
      %v2374 = vld [vmem:[%s3 + $0x310] sm:$0xf]
      %v2375 = vld [vmem:[%s3 + $0x314] sm:$0xf]
      %v2376 = vld [vmem:[%s3 + $0x318] sm:$0xf]
      %v2377 = vld [vmem:[%s3 + $0x31c] sm:$0xf]
      %v2378 = vld [vmem:[%s3 + $0x320] sm:$0xf]
      %v2379 = vld [vmem:[%s3 + $0x324] sm:$0xf]
      %v2380 = vld [vmem:[%s3 + $0x328] sm:$0xf]
      %v2381 = vld [vmem:[%s3 + $0x32c] sm:$0xf]
      %v2382 = vld [vmem:[%s3 + $0x330] sm:$0xf]
      %v2383 = vld [vmem:[%s3 + $0x334] sm:$0xf]
      %v2384 = vld [vmem:[%s3 + $0x338] sm:$0xf]
      %v2385 = vld [vmem:[%s3 + $0x33c] sm:$0xf]
      %v2386 = vld [vmem:[%s3 + $0x340] sm:$0xf]
      %v2387 = vld [vmem:[%s3 + $0x344] sm:$0xf]
      %v2388 = vld [vmem:[%s3 + $0x348] sm:$0xf]
      %v2389 = vld [vmem:[%s3 + $0x34c] sm:$0xf]
      %v2390 = vld [vmem:[%s3 + $0x350] sm:$0xf]
      %v2391 = vld [vmem:[%s3 + $0x354] sm:$0xf]
      %v2392 = vld [vmem:[%s3 + $0x358] sm:$0xf]
      %v2393 = vld [vmem:[%s3 + $0x35c] sm:$0xf]
      %v2394 = vld [vmem:[%s3 + $0x360] sm:$0xf]
      %v2395 = vld [vmem:[%s3 + $0x364] sm:$0xf]
      %v2396 = vld [vmem:[%s3 + $0x368] sm:$0xf]
      %v2397 = vld [vmem:[%s3 + $0x36c] sm:$0xf]
      %v2398 = vld [vmem:[%s3 + $0x370] sm:$0xf]
      %v2399 = vld [vmem:[%s3 + $0x374] sm:$0xf]
      %v2400 = vld [vmem:[%s3 + $0x378] sm:$0xf]
      %v2401 = vld [vmem:[%s3 + $0x37c] sm:$0xf]
      %v2402 = vld [vmem:[%s3 + $0x380] sm:$0xf]
      %v2403 = vld [vmem:[%s3 + $0x384] sm:$0xf]
      %v2404 = vld [vmem:[%s3 + $0x388] sm:$0xf]
      %v2405 = vld [vmem:[%s3 + $0x38c] sm:$0xf]
      %v2406 = vld [vmem:[%s3 + $0x390] sm:$0xf]
      %v2407 = vld [vmem:[%s3 + $0x394] sm:$0xf]
      %v2408 = vld [vmem:[%s3 + $0x398] sm:$0xf]
      %v2409 = vld [vmem:[%s3 + $0x39c] sm:$0xf]
      %v2410 = vld [vmem:[%s3 + $0x3a0] sm:$0xf]
      %v2411 = vld [vmem:[%s3 + $0x3a4] sm:$0xf]
      %v2412 = vld [vmem:[%s3 + $0x3a8] sm:$0xf]
      %v2413 = vld [vmem:[%s3 + $0x3ac] sm:$0xf]
      %v2414 = vld [vmem:[%s3 + $0x3b0] sm:$0xf]
      %v2415 = vld [vmem:[%s3 + $0x3b4] sm:$0xf]
      %v2416 = vld [vmem:[%s3 + $0x3b8] sm:$0xf]
      %v2417 = vld [vmem:[%s3 + $0x3bc] sm:$0xf]
      %v2418 = vld [vmem:[%s3 + $0x3c0] sm:$0xf]
      %v2419 = vld [vmem:[%s3 + $0x3c4] sm:$0xf]
      %v2420 = vld [vmem:[%s3 + $0x3c8] sm:$0xf]
      %v2421 = vld [vmem:[%s3 + $0x3cc] sm:$0xf]
      %v2422 = vld [vmem:[%s3 + $0x3d0] sm:$0xf]
      %v2423 = vld [vmem:[%s3 + $0x3d4] sm:$0xf]
      %v2424 = vld [vmem:[%s3 + $0x3d8] sm:$0xf]
      %v2425 = vld [vmem:[%s3 + $0x3dc] sm:$0xf]
      %v2426 = vld [vmem:[%s3 + $0x3e0] sm:$0xf]
      %v2427 = vld [vmem:[%s3 + $0x3e4] sm:$0xf]
      %v2428 = vld [vmem:[%s3 + $0x3e8] sm:$0xf]
      %v2429 = vld [vmem:[%s3 + $0x3ec] sm:$0xf]
      %v2430 = vld [vmem:[%s3 + $0x3f0] sm:$0xf]
      %v2431 = vld [vmem:[%s3 + $0x3f4] sm:$0xf]
      %v2432 = vld [vmem:[%s3 + $0x3f8] sm:$0xf]
      %v2433 = vld [vmem:[%s3 + $0x3fc] sm:$0xf]
      %v2434 = vld [vmem:[%s4] sm:$0x1]
      %v2436 = vlaneseq
      %v2437 = vshrl.u32 %v2436, 7
      %v2438 = vsub.s32 0, %v2437
      %v2439 = vrot.slane %v2434, %v2438
      %v2697 = vunpack.c.l.b16 %v2178
      %v2698 = vunpack.c.l.b16 %v2179
      %v2699 = vunpack.c.l.b16 %v2180
      %v2700 = vunpack.c.l.b16 %v2181
      %v2701 = vunpack.c.l.b16 %v2182
      %v2702 = vunpack.c.l.b16 %v2183
      %v2703 = vunpack.c.l.b16 %v2184
      %v2704 = vunpack.c.l.b16 %v2185
      %v2705 = vunpack.c.l.b16 %v2186
      %v2706 = vunpack.c.l.b16 %v2187
      %v2707 = vunpack.c.l.b16 %v2188
      %v2708 = vunpack.c.l.b16 %v2189
      %v2709 = vunpack.c.l.b16 %v2190
      %v2710 = vunpack.c.l.b16 %v2191
      %v2711 = vunpack.c.l.b16 %v2192
      %v2712 = vunpack.c.l.b16 %v2193
      %v2713 = vunpack.c.l.b16 %v2194
      %v2714 = vunpack.c.l.b16 %v2195
      %v2715 = vunpack.c.l.b16 %v2196
      %v2716 = vunpack.c.l.b16 %v2197
      %v2717 = vunpack.c.l.b16 %v2198
      %v2718 = vunpack.c.l.b16 %v2199
      %v2719 = vunpack.c.l.b16 %v2200
      %v2720 = vunpack.c.l.b16 %v2201
      %v2721 = vunpack.c.l.b16 %v2202
      %v2722 = vunpack.c.l.b16 %v2203
      %v2723 = vunpack.c.l.b16 %v2204
      %v2724 = vunpack.c.l.b16 %v2205
      %v2725 = vunpack.c.l.b16 %v2206
      %v2726 = vunpack.c.l.b16 %v2207
      %v2727 = vunpack.c.l.b16 %v2208
      %v2728 = vunpack.c.l.b16 %v2209
      %v2729 = vunpack.c.l.b16 %v2210
      %v2730 = vunpack.c.l.b16 %v2211
      %v2731 = vunpack.c.l.b16 %v2212
      %v2732 = vunpack.c.l.b16 %v2213
      %v2733 = vunpack.c.l.b16 %v2214
      %v2734 = vunpack.c.l.b16 %v2215
      %v2735 = vunpack.c.l.b16 %v2216
      %v2736 = vunpack.c.l.b16 %v2217
      %v2737 = vunpack.c.l.b16 %v2218
      %v2738 = vunpack.c.l.b16 %v2219
      %v2739 = vunpack.c.l.b16 %v2220
      %v2740 = vunpack.c.l.b16 %v2221
      %v2741 = vunpack.c.l.b16 %v2222
      %v2742 = vunpack.c.l.b16 %v2223
      %v2743 = vunpack.c.l.b16 %v2224
      %v2744 = vunpack.c.l.b16 %v2225
      %v2745 = vunpack.c.l.b16 %v2226
      %v2746 = vunpack.c.l.b16 %v2227
      %v2747 = vunpack.c.l.b16 %v2228
      %v2748 = vunpack.c.l.b16 %v2229
      %v2749 = vunpack.c.l.b16 %v2230
      %v2750 = vunpack.c.l.b16 %v2231
      %v2751 = vunpack.c.l.b16 %v2232
      %v2752 = vunpack.c.l.b16 %v2233
      %v2753 = vunpack.c.l.b16 %v2234
      %v2754 = vunpack.c.l.b16 %v2235
      %v2755 = vunpack.c.l.b16 %v2236
      %v2756 = vunpack.c.l.b16 %v2237
      %v2757 = vunpack.c.l.b16 %v2238
      %v2758 = vunpack.c.l.b16 %v2239
      %v2759 = vunpack.c.l.b16 %v2240
      %v2760 = vunpack.c.l.b16 %v2241
      %v2761 = vunpack.c.l.b16 %v2242
      %v2762 = vunpack.c.l.b16 %v2243
      %v2763 = vunpack.c.l.b16 %v2244
      %v2764 = vunpack.c.l.b16 %v2245
      %v2765 = vunpack.c.l.b16 %v2246
      %v2766 = vunpack.c.l.b16 %v2247
      %v2767 = vunpack.c.l.b16 %v2248
      %v2768 = vunpack.c.l.b16 %v2249
      %v2769 = vunpack.c.l.b16 %v2250
      %v2770 = vunpack.c.l.b16 %v2251
      %v2771 = vunpack.c.l.b16 %v2252
      %v2772 = vunpack.c.l.b16 %v2253
      %v2773 = vunpack.c.l.b16 %v2254
      %v2774 = vunpack.c.l.b16 %v2255
      %v2775 = vunpack.c.l.b16 %v2256
      %v2776 = vunpack.c.l.b16 %v2257
      %v2777 = vunpack.c.l.b16 %v2258
      %v2778 = vunpack.c.l.b16 %v2259
      %v2779 = vunpack.c.l.b16 %v2260
      %v2780 = vunpack.c.l.b16 %v2261
      %v2781 = vunpack.c.l.b16 %v2262
      %v2782 = vunpack.c.l.b16 %v2263
      %v2783 = vunpack.c.l.b16 %v2264
      %v2784 = vunpack.c.l.b16 %v2265
      %v2785 = vunpack.c.l.b16 %v2266
      %v2786 = vunpack.c.l.b16 %v2267
      %v2787 = vunpack.c.l.b16 %v2268
      %v2788 = vunpack.c.l.b16 %v2269
      %v2789 = vunpack.c.l.b16 %v2270
      %v2790 = vunpack.c.l.b16 %v2271
      %v2791 = vunpack.c.l.b16 %v2272
      %v2792 = vunpack.c.l.b16 %v2273
      %v2793 = vunpack.c.l.b16 %v2274
      %v2794 = vunpack.c.l.b16 %v2275
      %v2795 = vunpack.c.l.b16 %v2276
      %v2796 = vunpack.c.l.b16 %v2277
      %v2797 = vunpack.c.l.b16 %v2278
      %v2798 = vunpack.c.l.b16 %v2279
      %v2799 = vunpack.c.l.b16 %v2280
      %v2800 = vunpack.c.l.b16 %v2281
      %v2801 = vunpack.c.l.b16 %v2282
      %v2802 = vunpack.c.l.b16 %v2283
      %v2803 = vunpack.c.l.b16 %v2284
      %v2804 = vunpack.c.l.b16 %v2285
      %v2805 = vunpack.c.l.b16 %v2286
      %v2806 = vunpack.c.l.b16 %v2287
      %v2807 = vunpack.c.l.b16 %v2288
      %v2808 = vunpack.c.l.b16 %v2289
      %v2809 = vunpack.c.l.b16 %v2290
      %v2810 = vunpack.c.l.b16 %v2291
      %v2811 = vunpack.c.l.b16 %v2292
      %v2812 = vunpack.c.l.b16 %v2293
      %v2813 = vunpack.c.l.b16 %v2294
      %v2814 = vunpack.c.l.b16 %v2295
      %v2815 = vunpack.c.l.b16 %v2296
      %v2816 = vunpack.c.l.b16 %v2297
      %v2817 = vunpack.c.l.b16 %v2298
      %v2818 = vunpack.c.l.b16 %v2299
      %v2819 = vunpack.c.l.b16 %v2300
      %v2820 = vunpack.c.l.b16 %v2301
      %v2821 = vunpack.c.l.b16 %v2302
      %v2822 = vunpack.c.l.b16 %v2303
      %v2823 = vunpack.c.l.b16 %v2304
      %v2824 = vunpack.c.l.b16 %v2305
      %v2825 = vunpack.c.l.b16 %v2306
      %v2826 = vunpack.c.l.b16 %v2307
      %v2827 = vunpack.c.l.b16 %v2308
      %v2828 = vunpack.c.l.b16 %v2309
      %v2829 = vunpack.c.l.b16 %v2310
      %v2830 = vunpack.c.l.b16 %v2311
      %v2831 = vunpack.c.l.b16 %v2312
      %v2832 = vunpack.c.l.b16 %v2313
      %v2833 = vunpack.c.l.b16 %v2314
      %v2834 = vunpack.c.l.b16 %v2315
      %v2835 = vunpack.c.l.b16 %v2316
      %v2836 = vunpack.c.l.b16 %v2317
      %v2837 = vunpack.c.l.b16 %v2318
      %v2838 = vunpack.c.l.b16 %v2319
      %v2839 = vunpack.c.l.b16 %v2320
      %v2840 = vunpack.c.l.b16 %v2321
      %v2841 = vunpack.c.l.b16 %v2322
      %v2842 = vunpack.c.l.b16 %v2323
      %v2843 = vunpack.c.l.b16 %v2324
      %v2844 = vunpack.c.l.b16 %v2325
      %v2845 = vunpack.c.l.b16 %v2326
      %v2846 = vunpack.c.l.b16 %v2327
      %v2847 = vunpack.c.l.b16 %v2328
      %v2848 = vunpack.c.l.b16 %v2329
      %v2849 = vunpack.c.l.b16 %v2330
      %v2850 = vunpack.c.l.b16 %v2331
      %v2851 = vunpack.c.l.b16 %v2332
      %v2852 = vunpack.c.l.b16 %v2333
      %v2853 = vunpack.c.l.b16 %v2334
      %v2854 = vunpack.c.l.b16 %v2335
      %v2855 = vunpack.c.l.b16 %v2336
      %v2856 = vunpack.c.l.b16 %v2337
      %v2857 = vunpack.c.l.b16 %v2338
      %v2858 = vunpack.c.l.b16 %v2339
      %v2859 = vunpack.c.l.b16 %v2340
      %v2860 = vunpack.c.l.b16 %v2341
      %v2861 = vunpack.c.l.b16 %v2342
      %v2862 = vunpack.c.l.b16 %v2343
      %v2863 = vunpack.c.l.b16 %v2344
      %v2864 = vunpack.c.l.b16 %v2345
      %v2865 = vunpack.c.l.b16 %v2346
      %v2866 = vunpack.c.l.b16 %v2347
      %v2867 = vunpack.c.l.b16 %v2348
      %v2868 = vunpack.c.l.b16 %v2349
      %v2869 = vunpack.c.l.b16 %v2350
      %v2870 = vunpack.c.l.b16 %v2351
      %v2871 = vunpack.c.l.b16 %v2352
      %v2872 = vunpack.c.l.b16 %v2353
      %v2873 = vunpack.c.l.b16 %v2354
      %v2874 = vunpack.c.l.b16 %v2355
      %v2875 = vunpack.c.l.b16 %v2356
      %v2876 = vunpack.c.l.b16 %v2357
      %v2877 = vunpack.c.l.b16 %v2358
      %v2878 = vunpack.c.l.b16 %v2359
      %v2879 = vunpack.c.l.b16 %v2360
      %v2880 = vunpack.c.l.b16 %v2361
      %v2881 = vunpack.c.l.b16 %v2362
      %v2882 = vunpack.c.l.b16 %v2363
      %v2883 = vunpack.c.l.b16 %v2364
      %v2884 = vunpack.c.l.b16 %v2365
      %v2885 = vunpack.c.l.b16 %v2366
      %v2886 = vunpack.c.l.b16 %v2367
      %v2887 = vunpack.c.l.b16 %v2368
      %v2888 = vunpack.c.l.b16 %v2369
      %v2889 = vunpack.c.l.b16 %v2370
      %v2890 = vunpack.c.l.b16 %v2371
      %v2891 = vunpack.c.l.b16 %v2372
      %v2892 = vunpack.c.l.b16 %v2373
      %v2893 = vunpack.c.l.b16 %v2374
      %v2894 = vunpack.c.l.b16 %v2375
      %v2895 = vunpack.c.l.b16 %v2376
      %v2896 = vunpack.c.l.b16 %v2377
      %v2897 = vunpack.c.l.b16 %v2378
      %v2898 = vunpack.c.l.b16 %v2379
      %v2899 = vunpack.c.l.b16 %v2380
      %v2900 = vunpack.c.l.b16 %v2381
      %v2901 = vunpack.c.l.b16 %v2382
      %v2902 = vunpack.c.l.b16 %v2383
      %v2903 = vunpack.c.l.b16 %v2384
      %v2904 = vunpack.c.l.b16 %v2385
      %v2905 = vunpack.c.l.b16 %v2386
      %v2906 = vunpack.c.l.b16 %v2387
      %v2907 = vunpack.c.l.b16 %v2388
      %v2908 = vunpack.c.l.b16 %v2389
      %v2909 = vunpack.c.l.b16 %v2390
      %v2910 = vunpack.c.l.b16 %v2391
      %v2911 = vunpack.c.l.b16 %v2392
      %v2912 = vunpack.c.l.b16 %v2393
      %v2913 = vunpack.c.l.b16 %v2394
      %v2914 = vunpack.c.l.b16 %v2395
      %v2915 = vunpack.c.l.b16 %v2396
      %v2916 = vunpack.c.l.b16 %v2397
      %v2917 = vunpack.c.l.b16 %v2398
      %v2918 = vunpack.c.l.b16 %v2399
      %v2919 = vunpack.c.l.b16 %v2400
      %v2920 = vunpack.c.l.b16 %v2401
      %v2921 = vunpack.c.l.b16 %v2402
      %v2922 = vunpack.c.l.b16 %v2403
      %v2923 = vunpack.c.l.b16 %v2404
      %v2924 = vunpack.c.l.b16 %v2405
      %v2925 = vunpack.c.l.b16 %v2406
      %v2926 = vunpack.c.l.b16 %v2407
      %v2927 = vunpack.c.l.b16 %v2408
      %v2928 = vunpack.c.l.b16 %v2409
      %v2929 = vunpack.c.l.b16 %v2410
      %v2930 = vunpack.c.l.b16 %v2411
      %v2931 = vunpack.c.l.b16 %v2412
      %v2932 = vunpack.c.l.b16 %v2413
      %v2933 = vunpack.c.l.b16 %v2414
      %v2934 = vunpack.c.l.b16 %v2415
      %v2935 = vunpack.c.l.b16 %v2416
      %v2936 = vunpack.c.l.b16 %v2417
      %v2937 = vunpack.c.l.b16 %v2418
      %v2938 = vunpack.c.l.b16 %v2419
      %v2939 = vunpack.c.l.b16 %v2420
      %v2940 = vunpack.c.l.b16 %v2421
      %v2941 = vunpack.c.l.b16 %v2422
      %v2942 = vunpack.c.l.b16 %v2423
      %v2943 = vunpack.c.l.b16 %v2424
      %v2944 = vunpack.c.l.b16 %v2425
      %v2945 = vunpack.c.l.b16 %v2426
      %v2946 = vunpack.c.l.b16 %v2427
      %v2947 = vunpack.c.l.b16 %v2428
      %v2948 = vunpack.c.l.b16 %v2429
      %v2949 = vunpack.c.l.b16 %v2430
      %v2950 = vunpack.c.l.b16 %v2431
      %v2951 = vunpack.c.l.b16 %v2432
      %v2952 = vunpack.c.l.b16 %v2433
      %v2953 = vpack.c.b16 %v2698, %v2697
      %v2954 = vpack.c.b16 %v2700, %v2699
      %v2955 = vpack.c.b16 %v2702, %v2701
      %v2956 = vpack.c.b16 %v2704, %v2703
      %v2957 = vpack.c.b16 %v2706, %v2705
      %v2958 = vpack.c.b16 %v2708, %v2707
      %v2959 = vpack.c.b16 %v2710, %v2709
      %v2960 = vpack.c.b16 %v2712, %v2711
      %v2961 = vpack.c.b16 %v2714, %v2713
      %v2962 = vpack.c.b16 %v2716, %v2715
      %v2963 = vpack.c.b16 %v2718, %v2717
      %v2964 = vpack.c.b16 %v2720, %v2719
      %v2965 = vpack.c.b16 %v2722, %v2721
      %v2966 = vpack.c.b16 %v2724, %v2723
      %v2967 = vpack.c.b16 %v2726, %v2725
      %v2968 = vpack.c.b16 %v2728, %v2727
      %v2969 = vpack.c.b16 %v2730, %v2729
      %v2970 = vpack.c.b16 %v2732, %v2731
      %v2971 = vpack.c.b16 %v2734, %v2733
      %v2972 = vpack.c.b16 %v2736, %v2735
      %v2973 = vpack.c.b16 %v2738, %v2737
      %v2974 = vpack.c.b16 %v2740, %v2739
      %v2975 = vpack.c.b16 %v2742, %v2741
      %v2976 = vpack.c.b16 %v2744, %v2743
      %v2977 = vpack.c.b16 %v2746, %v2745
      %v2978 = vpack.c.b16 %v2748, %v2747
      %v2979 = vpack.c.b16 %v2750, %v2749
      %v2980 = vpack.c.b16 %v2752, %v2751
      %v2981 = vpack.c.b16 %v2754, %v2753
      %v2982 = vpack.c.b16 %v2756, %v2755
      %v2983 = vpack.c.b16 %v2758, %v2757
      %v2984 = vpack.c.b16 %v2760, %v2759
      %v2985 = vpack.c.b16 %v2762, %v2761
      %v2986 = vpack.c.b16 %v2764, %v2763
      %v2987 = vpack.c.b16 %v2766, %v2765
      %v2988 = vpack.c.b16 %v2768, %v2767
      %v2989 = vpack.c.b16 %v2770, %v2769
      %v2990 = vpack.c.b16 %v2772, %v2771
      %v2991 = vpack.c.b16 %v2774, %v2773
      %v2992 = vpack.c.b16 %v2776, %v2775
      %v2993 = vpack.c.b16 %v2778, %v2777
      %v2994 = vpack.c.b16 %v2780, %v2779
      %v2995 = vpack.c.b16 %v2782, %v2781
      %v2996 = vpack.c.b16 %v2784, %v2783
      %v2997 = vpack.c.b16 %v2786, %v2785
      %v2998 = vpack.c.b16 %v2788, %v2787
      %v2999 = vpack.c.b16 %v2790, %v2789
      %v3000 = vpack.c.b16 %v2792, %v2791
      %v3001 = vpack.c.b16 %v2794, %v2793
      %v3002 = vpack.c.b16 %v2796, %v2795
      %v3003 = vpack.c.b16 %v2798, %v2797
      %v3004 = vpack.c.b16 %v2800, %v2799
      %v3005 = vpack.c.b16 %v2802, %v2801
      %v3006 = vpack.c.b16 %v2804, %v2803
      %v3007 = vpack.c.b16 %v2806, %v2805
      %v3008 = vpack.c.b16 %v2808, %v2807
      %v3009 = vpack.c.b16 %v2810, %v2809
      %v3010 = vpack.c.b16 %v2812, %v2811
      %v3011 = vpack.c.b16 %v2814, %v2813
      %v3012 = vpack.c.b16 %v2816, %v2815
      %v3013 = vpack.c.b16 %v2818, %v2817
      %v3014 = vpack.c.b16 %v2820, %v2819
      %v3015 = vpack.c.b16 %v2822, %v2821
      %v3016 = vpack.c.b16 %v2824, %v2823
      %v3017 = vpack.c.b16 %v2826, %v2825
      %v3018 = vpack.c.b16 %v2828, %v2827
      %v3019 = vpack.c.b16 %v2830, %v2829
      %v3020 = vpack.c.b16 %v2832, %v2831
      %v3021 = vpack.c.b16 %v2834, %v2833
      %v3022 = vpack.c.b16 %v2836, %v2835
      %v3023 = vpack.c.b16 %v2838, %v2837
      %v3024 = vpack.c.b16 %v2840, %v2839
      %v3025 = vpack.c.b16 %v2842, %v2841
      %v3026 = vpack.c.b16 %v2844, %v2843
      %v3027 = vpack.c.b16 %v2846, %v2845
      %v3028 = vpack.c.b16 %v2848, %v2847
      %v3029 = vpack.c.b16 %v2850, %v2849
      %v3030 = vpack.c.b16 %v2852, %v2851
      %v3031 = vpack.c.b16 %v2854, %v2853
      %v3032 = vpack.c.b16 %v2856, %v2855
      %v3033 = vpack.c.b16 %v2858, %v2857
      %v3034 = vpack.c.b16 %v2860, %v2859
      %v3035 = vpack.c.b16 %v2862, %v2861
      %v3036 = vpack.c.b16 %v2864, %v2863
      %v3037 = vpack.c.b16 %v2866, %v2865
      %v3038 = vpack.c.b16 %v2868, %v2867
      %v3039 = vpack.c.b16 %v2870, %v2869
      %v3040 = vpack.c.b16 %v2872, %v2871
      %v3041 = vpack.c.b16 %v2874, %v2873
      %v3042 = vpack.c.b16 %v2876, %v2875
      %v3043 = vpack.c.b16 %v2878, %v2877
      %v3044 = vpack.c.b16 %v2880, %v2879
      %v3045 = vpack.c.b16 %v2882, %v2881
      %v3046 = vpack.c.b16 %v2884, %v2883
      %v3047 = vpack.c.b16 %v2886, %v2885
      %v3048 = vpack.c.b16 %v2888, %v2887
      %v3049 = vpack.c.b16 %v2890, %v2889
      %v3050 = vpack.c.b16 %v2892, %v2891
      %v3051 = vpack.c.b16 %v2894, %v2893
      %v3052 = vpack.c.b16 %v2896, %v2895
      %v3053 = vpack.c.b16 %v2898, %v2897
      %v3054 = vpack.c.b16 %v2900, %v2899
      %v3055 = vpack.c.b16 %v2902, %v2901
      %v3056 = vpack.c.b16 %v2904, %v2903
      %v3057 = vpack.c.b16 %v2906, %v2905
      %v3058 = vpack.c.b16 %v2908, %v2907
      %v3059 = vpack.c.b16 %v2910, %v2909
      %v3060 = vpack.c.b16 %v2912, %v2911
      %v3061 = vpack.c.b16 %v2914, %v2913
      %v3062 = vpack.c.b16 %v2916, %v2915
      %v3063 = vpack.c.b16 %v2918, %v2917
      %v3064 = vpack.c.b16 %v2920, %v2919
      %v3065 = vpack.c.b16 %v2922, %v2921
      %v3066 = vpack.c.b16 %v2924, %v2923
      %v3067 = vpack.c.b16 %v2926, %v2925
      %v3068 = vpack.c.b16 %v2928, %v2927
      %v3069 = vpack.c.b16 %v2930, %v2929
      %v3070 = vpack.c.b16 %v2932, %v2931
      %v3071 = vpack.c.b16 %v2934, %v2933
      %v3072 = vpack.c.b16 %v2936, %v2935
      %v3073 = vpack.c.b16 %v2938, %v2937
      %v3074 = vpack.c.b16 %v2940, %v2939
      %v3075 = vpack.c.b16 %v2942, %v2941
      %v3076 = vpack.c.b16 %v2944, %v2943
      %v3077 = vpack.c.b16 %v2946, %v2945
      %v3078 = vpack.c.b16 %v2948, %v2947
      %v3079 = vpack.c.b16 %v2950, %v2949
      %v3080 = vpack.c.b16 %v2952, %v2951
      %3209 = vmatprep.subr.bf16.mxu0 0
      %3210 = vmatpush1.bf16.msra.mxu0 %v2953
      %3211 = vmatprep.subr.bf16.mxu0 0
      %3212 = vmatpush1.bf16.msra.mxu0 %v2954
      %3213 = vmatprep.subr.bf16.mxu0 0
      %3214 = vmatpush1.bf16.msra.mxu0 %v2955
      %3215 = vmatprep.subr.bf16.mxu0 0
      %3216 = vmatpush1.bf16.msra.mxu0 %v2956
      %3217 = vmatprep.subr.bf16.mxu0 0
      %3218 = vmatpush1.bf16.msra.mxu0 %v2957
      %3219 = vmatprep.subr.bf16.mxu0 0
      %3220 = vmatpush1.bf16.msra.mxu0 %v2958
      %3221 = vmatprep.subr.bf16.mxu0 0
      %3222 = vmatpush1.bf16.msra.mxu0 %v2959
      %3223 = vmatprep.subr.bf16.mxu0 0
      %3224 = vmatpush1.bf16.msra.mxu0 %v2960
      %3225 = vmatprep.subr.bf16.mxu0 0
      %3226 = vmatpush1.bf16.msra.mxu0 %v2961
      %3227 = vmatprep.subr.bf16.mxu0 0
      %3228 = vmatpush1.bf16.msra.mxu0 %v2962
      %3229 = vmatprep.subr.bf16.mxu0 0
      %3230 = vmatpush1.bf16.msra.mxu0 %v2963
      %3231 = vmatprep.subr.bf16.mxu0 0
      %3232 = vmatpush1.bf16.msra.mxu0 %v2964
      %3233 = vmatprep.subr.bf16.mxu0 0
      %3234 = vmatpush1.bf16.msra.mxu0 %v2965
      %3235 = vmatprep.subr.bf16.mxu0 0
      %3236 = vmatpush1.bf16.msra.mxu0 %v2966
      %3237 = vmatprep.subr.bf16.mxu0 0
      %3238 = vmatpush1.bf16.msra.mxu0 %v2967
      %3239 = vmatprep.subr.bf16.mxu0 0
      %3240 = vmatpush1.bf16.msra.mxu0 %v2968
      %3241 = vmatprep.mubr.bf16.mxu0 %v1939
      %3242 = vmatmul.mubr.bf16.gmra.mrb[0].mxu0 %v1938
      %v3243 = vpop.f32.mrb[0].mxu0
      %v3244 = vadd.f32 %v2439, %v3243
      %v3245 = vpop.f32.mrb[0].mxu0
      %v3246 = vpop.f32.mrb[0].mxu0
      %v3247 = vadd.f32 %v2439, %v3246
      %v3248 = vpop.f32.mrb[0].mxu0
      %3249 = vmatprep.mubr.bf16.mxu0 %v1943
      %3250 = vmatmul.mubr.bf16.gmra.mrb[0].mxu0 %v1942
      %v3251 = vpop.f32.mrb[0].mxu0
      %v3252 = vadd.f32 %v2439, %v3251
      %v3253 = vpop.f32.mrb[0].mxu0
      %v3254 = vpop.f32.mrb[0].mxu0
      %v3255 = vadd.f32 %v2439, %v3254
      %v3256 = vpop.f32.mrb[0].mxu0
      %3257 = vmatprep.mubr.bf16.mxu0 %v1947
      %3258 = vmatmul.mubr.bf16.gmra.mrb[0].mxu0 %v1946
      %v3259 = vpop.f32.mrb[0].mxu0
      %v3260 = vadd.f32 %v2439, %v3259
      %v3261 = vpop.f32.mrb[0].mxu0
      %v3262 = vpop.f32.mrb[0].mxu0
      %v3263 = vadd.f32 %v2439, %v3262
      %v3264 = vpop.f32.mrb[0].mxu0
      %3265 = vmatprep.mubr.bf16.mxu0 %v1951
      %3266 = vmatmul.mubr.bf16.gmra.mrb[0].mxu0 %v1950
      %v3267 = vpop.f32.mrb[0].mxu0
      %v3268 = vadd.f32 %v2439, %v3267
      %v3269 = vpop.f32.mrb[0].mxu0
      %v3270 = vpop.f32.mrb[0].mxu0
      %v3271 = vadd.f32 %v2439, %v3270
      %v3272 = vpop.f32.mrb[0].mxu0
      %3273 = vdwg.mxu0
      %3274 = vmatprep.subr.bf16.mxu0 0
      %3275 = vmatpush1.bf16.msra.mxu0 %v2969
      %3276 = vmatprep.subr.bf16.mxu0 0
      %3277 = vmatpush1.bf16.msra.mxu0 %v2970
      %3278 = vmatprep.subr.bf16.mxu0 0
      %3279 = vmatpush1.bf16.msra.mxu0 %v2971
      %3280 = vmatprep.subr.bf16.mxu0 0
      %3281 = vmatpush1.bf16.msra.mxu0 %v2972
      %3282 = vmatprep.subr.bf16.mxu0 0
      %3283 = vmatpush1.bf16.msra.mxu0 %v2973
      %3284 = vmatprep.subr.bf16.mxu0 0
      %3285 = vmatpush1.bf16.msra.mxu0 %v2974
      %3286 = vmatprep.subr.bf16.mxu0 0
      %3287 = vmatpush1.bf16.msra.mxu0 %v2975
      %3288 = vmatprep.subr.bf16.mxu0 0
      %3289 = vmatpush1.bf16.msra.mxu0 %v2976
      %3290 = vmatprep.subr.bf16.mxu0 0
      %3291 = vmatpush1.bf16.msra.mxu0 %v2977
      %3292 = vmatprep.subr.bf16.mxu0 0
      %3293 = vmatpush1.bf16.msra.mxu0 %v2978
      %3294 = vmatprep.subr.bf16.mxu0 0
      %3295 = vmatpush1.bf16.msra.mxu0 %v2979
      %3296 = vmatprep.subr.bf16.mxu0 0
      %3297 = vmatpush1.bf16.msra.mxu0 %v2980
      %3298 = vmatprep.subr.bf16.mxu0 0
      %3299 = vmatpush1.bf16.msra.mxu0 %v2981
      %3300 = vmatprep.subr.bf16.mxu0 0
      %3301 = vmatpush1.bf16.msra.mxu0 %v2982
      %3302 = vmatprep.subr.bf16.mxu0 0
      %3303 = vmatpush1.bf16.msra.mxu0 %v2983
      %3304 = vmatprep.subr.bf16.mxu0 0
      %3305 = vmatpush1.bf16.msra.mxu0 %v2984
      %3306 = vmatprep.mubr.bf16.mxu0 %v1941
      %3307 = vmatmul.mubr.bf16.gmra.mrb[0].mxu0 %v1940
      %v3308 = vpop.f32.mrb[0].mxu0
      %v3309 = vadd.f32 %v3244, %v3308
      %v3310 = vpop.f32.mrb[0].mxu0
      %v3311 = vpop.f32.mrb[0].mxu0
      %v3312 = vadd.f32 %v3247, %v3311
      %v3313 = vpop.f32.mrb[0].mxu0
      %3314 = vmatprep.mubr.bf16.mxu0 %v1945
      %3315 = vmatmul.mubr.bf16.gmra.mrb[0].mxu0 %v1944
      %v3316 = vpop.f32.mrb[0].mxu0
      %v3317 = vadd.f32 %v3252, %v3316
      %v3318 = vpop.f32.mrb[0].mxu0
      %v3319 = vpop.f32.mrb[0].mxu0
      %v3320 = vadd.f32 %v3255, %v3319
      %v3321 = vpop.f32.mrb[0].mxu0
      %3322 = vmatprep.mubr.bf16.mxu0 %v1949
      %3323 = vmatmul.mubr.bf16.gmra.mrb[0].mxu0 %v1948
      %v3324 = vpop.f32.mrb[0].mxu0
      %v3325 = vadd.f32 %v3260, %v3324
      %v3326 = vpop.f32.mrb[0].mxu0
      %v3327 = vpop.f32.mrb[0].mxu0
      %v3328 = vadd.f32 %v3263, %v3327
      %v3329 = vpop.f32.mrb[0].mxu0
      %3330 = vmatprep.mubr.bf16.mxu0 %v1953
      %3331 = vmatmul.mubr.bf16.gmra.mrb[0].mxu0 %v1952
      %v3332 = vpop.f32.mrb[0].mxu0
      %v3333 = vadd.f32 %v3268, %v3332
      %v3334 = vpop.f32.mrb[0].mxu0
      %v3335 = vpop.f32.mrb[0].mxu0
      %v3336 = vadd.f32 %v3271, %v3335
      %v3337 = vpop.f32.mrb[0].mxu0
      %3338 = vdwg.mxu0
      %3339 = vmatprep.subr.bf16.mxu0 0
      %3340 = vmatpush1.bf16.msra.mxu0 %v2985
      %3341 = vmatprep.subr.bf16.mxu0 0
      %3342 = vmatpush1.bf16.msra.mxu0 %v2986
      %3343 = vmatprep.subr.bf16.mxu0 0
      %3344 = vmatpush1.bf16.msra.mxu0 %v2987
      %3345 = vmatprep.subr.bf16.mxu0 0
      %3346 = vmatpush1.bf16.msra.mxu0 %v2988
      %3347 = vmatprep.subr.bf16.mxu0 0
      %3348 = vmatpush1.bf16.msra.mxu0 %v2989
      %3349 = vmatprep.subr.bf16.mxu0 0
      %3350 = vmatpush1.bf16.msra.mxu0 %v2990
      %3351 = vmatprep.subr.bf16.mxu0 0
      %3352 = vmatpush1.bf16.msra.mxu0 %v2991
      %3353 = vmatprep.subr.bf16.mxu0 0
      %3354 = vmatpush1.bf16.msra.mxu0 %v2992
      %3355 = vmatprep.subr.bf16.mxu0 0
      %3356 = vmatpush1.bf16.msra.mxu0 %v2993
      %3357 = vmatprep.subr.bf16.mxu0 0
      %3358 = vmatpush1.bf16.msra.mxu0 %v2994
      %3359 = vmatprep.subr.bf16.mxu0 0
      %3360 = vmatpush1.bf16.msra.mxu0 %v2995
      %3361 = vmatprep.subr.bf16.mxu0 0
      %3362 = vmatpush1.bf16.msra.mxu0 %v2996
      %3363 = vmatprep.subr.bf16.mxu0 0
      %3364 = vmatpush1.bf16.msra.mxu0 %v2997
      %3365 = vmatprep.subr.bf16.mxu0 0
      %3366 = vmatpush1.bf16.msra.mxu0 %v2998
      %3367 = vmatprep.subr.bf16.mxu0 0
      %3368 = vmatpush1.bf16.msra.mxu0 %v2999
      %3369 = vmatprep.subr.bf16.mxu0 0
      %3370 = vmatpush1.bf16.msra.mxu0 %v3000
      %3371 = vmatprep.mubr.bf16.mxu0 %v2003
      %3372 = vmatmul.mubr.bf16.gmra.mrb[0].mxu0 %v2002
      %v3373 = vpop.f32.mrb[0].mxu0
      %v3374 = vadd.f32 %v3309, %v3373
      %v3375 = vpop.f32.mrb[0].mxu0
      %v3376 = vpop.f32.mrb[0].mxu0
      %v3377 = vadd.f32 %v3312, %v3376
      %v3378 = vpop.f32.mrb[0].mxu0
      %3379 = vmatprep.mubr.bf16.mxu0 %v2007
      %3380 = vmatmul.mubr.bf16.gmra.mrb[0].mxu0 %v2006
      %v3381 = vpop.f32.mrb[0].mxu0
      %v3382 = vadd.f32 %v3317, %v3381
      %v3383 = vpop.f32.mrb[0].mxu0
      %v3384 = vpop.f32.mrb[0].mxu0
      %v3385 = vadd.f32 %v3320, %v3384
      %v3386 = vpop.f32.mrb[0].mxu0
      %3387 = vmatprep.mubr.bf16.mxu0 %v2011
      %3388 = vmatmul.mubr.bf16.gmra.mrb[0].mxu0 %v2010
      %v3389 = vpop.f32.mrb[0].mxu0
      %v3390 = vadd.f32 %v3325, %v3389
      %v3391 = vpop.f32.mrb[0].mxu0
      %v3392 = vpop.f32.mrb[0].mxu0
      %v3393 = vadd.f32 %v3328, %v3392
      %v3394 = vpop.f32.mrb[0].mxu0
      %3395 = vmatprep.mubr.bf16.mxu0 %v2015
      %3396 = vmatmul.mubr.bf16.gmra.mrb[0].mxu0 %v2014
      %v3397 = vpop.f32.mrb[0].mxu0
      %v3398 = vadd.f32 %v3333, %v3397
      %v3399 = vpop.f32.mrb[0].mxu0
      %v3400 = vpop.f32.mrb[0].mxu0
      %v3401 = vadd.f32 %v3336, %v3400
      %v3402 = vpop.f32.mrb[0].mxu0
      %3403 = vdwg.mxu0
      %3404 = vmatprep.subr.bf16.mxu0 0
      %3405 = vmatpush1.bf16.msra.mxu0 %v3001
      %3406 = vmatprep.subr.bf16.mxu0 0
      %3407 = vmatpush1.bf16.msra.mxu0 %v3002
      %3408 = vmatprep.subr.bf16.mxu0 0
      %3409 = vmatpush1.bf16.msra.mxu0 %v3003
      %3410 = vmatprep.subr.bf16.mxu0 0
      %3411 = vmatpush1.bf16.msra.mxu0 %v3004
      %3412 = vmatprep.subr.bf16.mxu0 0
      %3413 = vmatpush1.bf16.msra.mxu0 %v3005
      %3414 = vmatprep.subr.bf16.mxu0 0
      %3415 = vmatpush1.bf16.msra.mxu0 %v3006
      %3416 = vmatprep.subr.bf16.mxu0 0
      %3417 = vmatpush1.bf16.msra.mxu0 %v3007
      %3418 = vmatprep.subr.bf16.mxu0 0
      %3419 = vmatpush1.bf16.msra.mxu0 %v3008
      %3420 = vmatprep.subr.bf16.mxu0 0
      %3421 = vmatpush1.bf16.msra.mxu0 %v3009
      %3422 = vmatprep.subr.bf16.mxu0 0
      %3423 = vmatpush1.bf16.msra.mxu0 %v3010
      %3424 = vmatprep.subr.bf16.mxu0 0
      %3425 = vmatpush1.bf16.msra.mxu0 %v3011
      %3426 = vmatprep.subr.bf16.mxu0 0
      %3427 = vmatpush1.bf16.msra.mxu0 %v3012
      %3428 = vmatprep.subr.bf16.mxu0 0
      %3429 = vmatpush1.bf16.msra.mxu0 %v3013
      %3430 = vmatprep.subr.bf16.mxu0 0
      %3431 = vmatpush1.bf16.msra.mxu0 %v3014
      %3432 = vmatprep.subr.bf16.mxu0 0
      %3433 = vmatpush1.bf16.msra.mxu0 %v3015
      %3434 = vmatprep.subr.bf16.mxu0 0
      %3435 = vmatpush1.bf16.msra.mxu0 %v3016
      %3436 = vmatprep.mubr.bf16.mxu0 %v2005
      %3437 = vmatmul.mubr.bf16.gmra.mrb[0].mxu0 %v2004
      %v3438 = vpop.f32.mrb[0].mxu0
      %v3439 = vadd.f32 %v3374, %v3438
      %v3440 = vpop.f32.mrb[0].mxu0
      %v3441 = vpop.f32.mrb[0].mxu0
      %v3442 = vadd.f32 %v3377, %v3441
      %v3443 = vpop.f32.mrb[0].mxu0
      %3444 = vmatprep.mubr.bf16.mxu0 %v2009
      %3445 = vmatmul.mubr.bf16.gmra.mrb[0].mxu0 %v2008
      %v3446 = vpop.f32.mrb[0].mxu0
      %v3447 = vadd.f32 %v3382, %v3446
      %v3448 = vpop.f32.mrb[0].mxu0
      %v3449 = vpop.f32.mrb[0].mxu0
      %v3450 = vadd.f32 %v3385, %v3449
      %v3451 = vpop.f32.mrb[0].mxu0
      %3452 = vmatprep.mubr.bf16.mxu0 %v2013
      %3453 = vmatmul.mubr.bf16.gmra.mrb[0].mxu0 %v2012
      %v3454 = vpop.f32.mrb[0].mxu0
      %v3455 = vadd.f32 %v3390, %v3454
      %v3456 = vpop.f32.mrb[0].mxu0
      %v3457 = vpop.f32.mrb[0].mxu0
      %v3458 = vadd.f32 %v3393, %v3457
      %v3459 = vpop.f32.mrb[0].mxu0
      %3460 = vmatprep.mubr.bf16.mxu0 %v2017
      %3461 = vmatmul.mubr.bf16.gmra.mrb[0].mxu0 %v2016
      %v3462 = vpop.f32.mrb[0].mxu0
      %v3463 = vadd.f32 %v3398, %v3462
      %v3464 = vpop.f32.mrb[0].mxu0
      %v3465 = vpop.f32.mrb[0].mxu0
      %v3466 = vadd.f32 %v3401, %v3465
      %v3467 = vpop.f32.mrb[0].mxu0
      %3468 = vdwg.mxu0
      %3469 = vmatprep.subr.bf16.mxu0 0
      %3470 = vmatpush1.bf16.msra.mxu0 %v3017
      %3471 = vmatprep.subr.bf16.mxu0 0
      %3472 = vmatpush1.bf16.msra.mxu0 %v3018
      %3473 = vmatprep.subr.bf16.mxu0 0
      %3474 = vmatpush1.bf16.msra.mxu0 %v3019
      %3475 = vmatprep.subr.bf16.mxu0 0
      %3476 = vmatpush1.bf16.msra.mxu0 %v3020
      %3477 = vmatprep.subr.bf16.mxu0 0
      %3478 = vmatpush1.bf16.msra.mxu0 %v3021
      %3479 = vmatprep.subr.bf16.mxu0 0
      %3480 = vmatpush1.bf16.msra.mxu0 %v3022
      %3481 = vmatprep.subr.bf16.mxu0 0
      %3482 = vmatpush1.bf16.msra.mxu0 %v3023
      %3483 = vmatprep.subr.bf16.mxu0 0
      %3484 = vmatpush1.bf16.msra.mxu0 %v3024
      %3485 = vmatprep.subr.bf16.mxu0 0
      %3486 = vmatpush1.bf16.msra.mxu0 %v3025
      %3487 = vmatprep.subr.bf16.mxu0 0
      %3488 = vmatpush1.bf16.msra.mxu0 %v3026
      %3489 = vmatprep.subr.bf16.mxu0 0
      %3490 = vmatpush1.bf16.msra.mxu0 %v3027
      %3491 = vmatprep.subr.bf16.mxu0 0
      %3492 = vmatpush1.bf16.msra.mxu0 %v3028
      %3493 = vmatprep.subr.bf16.mxu0 0
      %3494 = vmatpush1.bf16.msra.mxu0 %v3029
      %3495 = vmatprep.subr.bf16.mxu0 0
      %3496 = vmatpush1.bf16.msra.mxu0 %v3030
      %3497 = vmatprep.subr.bf16.mxu0 0
      %3498 = vmatpush1.bf16.msra.mxu0 %v3031
      %3499 = vmatprep.subr.bf16.mxu0 0
      %3500 = vmatpush1.bf16.msra.mxu0 %v3032
      %3501 = vmatprep.mubr.bf16.mxu0 %v2083
      %3502 = vmatmul.mubr.bf16.gmra.mrb[0].mxu0 %v2082
      %v3503 = vpop.f32.mrb[0].mxu0
      %v3504 = vadd.f32 %v3439, %v3503
      %v3505 = vpop.f32.mrb[0].mxu0
      %v3506 = vpop.f32.mrb[0].mxu0
      %v3507 = vadd.f32 %v3442, %v3506
      %v3508 = vpop.f32.mrb[0].mxu0
      %3509 = vmatprep.mubr.bf16.mxu0 %v2087
      %3510 = vmatmul.mubr.bf16.gmra.mrb[0].mxu0 %v2086
      %v3511 = vpop.f32.mrb[0].mxu0
      %v3512 = vadd.f32 %v3447, %v3511
      %v3513 = vpop.f32.mrb[0].mxu0
      %v3514 = vpop.f32.mrb[0].mxu0
      %v3515 = vadd.f32 %v3450, %v3514
      %v3516 = vpop.f32.mrb[0].mxu0
      %3517 = vmatprep.mubr.bf16.mxu0 %v2091
      %3518 = vmatmul.mubr.bf16.gmra.mrb[0].mxu0 %v2090
      %v3519 = vpop.f32.mrb[0].mxu0
      %v3520 = vadd.f32 %v3455, %v3519
      %v3521 = vpop.f32.mrb[0].mxu0
      %v3522 = vpop.f32.mrb[0].mxu0
      %v3523 = vadd.f32 %v3458, %v3522
      %v3524 = vpop.f32.mrb[0].mxu0
      %3525 = vmatprep.mubr.bf16.mxu0 %v2095
      %3526 = vmatmul.mubr.bf16.gmra.mrb[0].mxu0 %v2094
      %v3527 = vpop.f32.mrb[0].mxu0
      %v3528 = vadd.f32 %v3463, %v3527
      %v3529 = vpop.f32.mrb[0].mxu0
      %v3530 = vpop.f32.mrb[0].mxu0
      %v3531 = vadd.f32 %v3466, %v3530
      %v3532 = vpop.f32.mrb[0].mxu0
      %3533 = vdwg.mxu0
      %3534 = vmatprep.subr.bf16.mxu0 0
      %3535 = vmatpush1.bf16.msra.mxu0 %v3033
      %3536 = vmatprep.subr.bf16.mxu0 0
      %3537 = vmatpush1.bf16.msra.mxu0 %v3034
      %3538 = vmatprep.subr.bf16.mxu0 0
      %3539 = vmatpush1.bf16.msra.mxu0 %v3035
      %3540 = vmatprep.subr.bf16.mxu0 0
      %3541 = vmatpush1.bf16.msra.mxu0 %v3036
      %3542 = vmatprep.subr.bf16.mxu0 0
      %3543 = vmatpush1.bf16.msra.mxu0 %v3037
      %3544 = vmatprep.subr.bf16.mxu0 0
      %3545 = vmatpush1.bf16.msra.mxu0 %v3038
      %3546 = vmatprep.subr.bf16.mxu0 0
      %3547 = vmatpush1.bf16.msra.mxu0 %v3039
      %3548 = vmatprep.subr.bf16.mxu0 0
      %3549 = vmatpush1.bf16.msra.mxu0 %v3040
      %3550 = vmatprep.subr.bf16.mxu0 0
      %3551 = vmatpush1.bf16.msra.mxu0 %v3041
      %3552 = vmatprep.subr.bf16.mxu0 0
      %3553 = vmatpush1.bf16.msra.mxu0 %v3042
      %3554 = vmatprep.subr.bf16.mxu0 0
      %3555 = vmatpush1.bf16.msra.mxu0 %v3043
      %3556 = vmatprep.subr.bf16.mxu0 0
      %3557 = vmatpush1.bf16.msra.mxu0 %v3044
      %3558 = vmatprep.subr.bf16.mxu0 0
      %3559 = vmatpush1.bf16.msra.mxu0 %v3045
      %3560 = vmatprep.subr.bf16.mxu0 0
      %3561 = vmatpush1.bf16.msra.mxu0 %v3046
      %3562 = vmatprep.subr.bf16.mxu0 0
      %3563 = vmatpush1.bf16.msra.mxu0 %v3047
      %3564 = vmatprep.subr.bf16.mxu0 0
      %3565 = vmatpush1.bf16.msra.mxu0 %v3048
      %3566 = vmatprep.mubr.bf16.mxu0 %v2085
      %3567 = vmatmul.mubr.bf16.gmra.mrb[0].mxu0 %v2084
      %v3568 = vpop.f32.mrb[0].mxu0
      %v3569 = vadd.f32 %v3504, %v3568
      %v3570 = vpop.f32.mrb[0].mxu0
      %v3571 = vpop.f32.mrb[0].mxu0
      %v3572 = vadd.f32 %v3507, %v3571
      %v3573 = vpop.f32.mrb[0].mxu0
      %3574 = vmatprep.mubr.bf16.mxu0 %v2089
      %3575 = vmatmul.mubr.bf16.gmra.mrb[0].mxu0 %v2088
      %v3576 = vpop.f32.mrb[0].mxu0
      %v3577 = vadd.f32 %v3512, %v3576
      %v3578 = vpop.f32.mrb[0].mxu0
      %v3579 = vpop.f32.mrb[0].mxu0
      %v3580 = vadd.f32 %v3515, %v3579
      %v3581 = vpop.f32.mrb[0].mxu0
      %3582 = vmatprep.mubr.bf16.mxu0 %v2093
      %3583 = vmatmul.mubr.bf16.gmra.mrb[0].mxu0 %v2092
      %v3584 = vpop.f32.mrb[0].mxu0
      %v3585 = vadd.f32 %v3520, %v3584
      %v3586 = vpop.f32.mrb[0].mxu0
      %v3587 = vpop.f32.mrb[0].mxu0
      %v3588 = vadd.f32 %v3523, %v3587
      %v3589 = vpop.f32.mrb[0].mxu0
      %3590 = vmatprep.mubr.bf16.mxu0 %v2097
      %3591 = vmatmul.mubr.bf16.gmra.mrb[0].mxu0 %v2096
      %v3592 = vpop.f32.mrb[0].mxu0
      %v3593 = vadd.f32 %v3528, %v3592
      %v3594 = vpop.f32.mrb[0].mxu0
      %v3595 = vpop.f32.mrb[0].mxu0
      %v3596 = vadd.f32 %v3531, %v3595
      %v3597 = vpop.f32.mrb[0].mxu0
      %3598 = vdwg.mxu0
      %3599 = vmatprep.subr.bf16.mxu0 0
      %3600 = vmatpush1.bf16.msra.mxu0 %v3049
      %3601 = vmatprep.subr.bf16.mxu0 0
      %3602 = vmatpush1.bf16.msra.mxu0 %v3050
      %3603 = vmatprep.subr.bf16.mxu0 0
      %3604 = vmatpush1.bf16.msra.mxu0 %v3051
      %3605 = vmatprep.subr.bf16.mxu0 0
      %3606 = vmatpush1.bf16.msra.mxu0 %v3052
      %3607 = vmatprep.subr.bf16.mxu0 0
      %3608 = vmatpush1.bf16.msra.mxu0 %v3053
      %3609 = vmatprep.subr.bf16.mxu0 0
      %3610 = vmatpush1.bf16.msra.mxu0 %v3054
      %3611 = vmatprep.subr.bf16.mxu0 0
      %3612 = vmatpush1.bf16.msra.mxu0 %v3055
      %3613 = vmatprep.subr.bf16.mxu0 0
      %3614 = vmatpush1.bf16.msra.mxu0 %v3056
      %3615 = vmatprep.subr.bf16.mxu0 0
      %3616 = vmatpush1.bf16.msra.mxu0 %v3057
      %3617 = vmatprep.subr.bf16.mxu0 0
      %3618 = vmatpush1.bf16.msra.mxu0 %v3058
      %3619 = vmatprep.subr.bf16.mxu0 0
      %3620 = vmatpush1.bf16.msra.mxu0 %v3059
      %3621 = vmatprep.subr.bf16.mxu0 0
      %3622 = vmatpush1.bf16.msra.mxu0 %v3060
      %3623 = vmatprep.subr.bf16.mxu0 0
      %3624 = vmatpush1.bf16.msra.mxu0 %v3061
      %3625 = vmatprep.subr.bf16.mxu0 0
      %3626 = vmatpush1.bf16.msra.mxu0 %v3062
      %3627 = vmatprep.subr.bf16.mxu0 0
      %3628 = vmatpush1.bf16.msra.mxu0 %v3063
      %3629 = vmatprep.subr.bf16.mxu0 0
      %3630 = vmatpush1.bf16.msra.mxu0 %v3064
      %3631 = vmatprep.mubr.bf16.mxu0 %v2147
      %3632 = vmatmul.mubr.bf16.gmra.mrb[0].mxu0 %v2146
      %v3633 = vpop.f32.mrb[0].mxu0
      %v3634 = vadd.f32 %v3569, %v3633
      %v3635 = vpop.f32.mrb[0].mxu0
      %v3636 = vpop.f32.mrb[0].mxu0
      %v3637 = vadd.f32 %v3572, %v3636
      %v3638 = vpop.f32.mrb[0].mxu0
      %3639 = vmatprep.mubr.bf16.mxu0 %v2151
      %3640 = vmatmul.mubr.bf16.gmra.mrb[0].mxu0 %v2150
      %v3641 = vpop.f32.mrb[0].mxu0
      %v3642 = vadd.f32 %v3577, %v3641
      %v3643 = vpop.f32.mrb[0].mxu0
      %v3644 = vpop.f32.mrb[0].mxu0
      %v3645 = vadd.f32 %v3580, %v3644
      %v3646 = vpop.f32.mrb[0].mxu0
      %3647 = vmatprep.mubr.bf16.mxu0 %v2155
      %3648 = vmatmul.mubr.bf16.gmra.mrb[0].mxu0 %v2154
      %v3649 = vpop.f32.mrb[0].mxu0
      %v3650 = vadd.f32 %v3585, %v3649
      %v3651 = vpop.f32.mrb[0].mxu0
      %v3652 = vpop.f32.mrb[0].mxu0
      %v3653 = vadd.f32 %v3588, %v3652
      %v3654 = vpop.f32.mrb[0].mxu0
      %3655 = vmatprep.mubr.bf16.mxu0 %v2159
      %3656 = vmatmul.mubr.bf16.gmra.mrb[0].mxu0 %v2158
      %v3657 = vpop.f32.mrb[0].mxu0
      %v3658 = vadd.f32 %v3593, %v3657
      %v3659 = vpop.f32.mrb[0].mxu0
      %v3660 = vpop.f32.mrb[0].mxu0
      %v3661 = vadd.f32 %v3596, %v3660
      %v3662 = vpop.f32.mrb[0].mxu0
      %3663 = vdwg.mxu0
      %3664 = vmatprep.subr.bf16.mxu0 0
      %3665 = vmatpush1.bf16.msra.mxu0 %v3065
      %3666 = vmatprep.subr.bf16.mxu0 0
      %3667 = vmatpush1.bf16.msra.mxu0 %v3066
      %3668 = vmatprep.subr.bf16.mxu0 0
      %3669 = vmatpush1.bf16.msra.mxu0 %v3067
      %3670 = vmatprep.subr.bf16.mxu0 0
      %3671 = vmatpush1.bf16.msra.mxu0 %v3068
      %3672 = vmatprep.subr.bf16.mxu0 0
      %3673 = vmatpush1.bf16.msra.mxu0 %v3069
      %3674 = vmatprep.subr.bf16.mxu0 0
      %3675 = vmatpush1.bf16.msra.mxu0 %v3070
      %3676 = vmatprep.subr.bf16.mxu0 0
      %3677 = vmatpush1.bf16.msra.mxu0 %v3071
      %3678 = vmatprep.subr.bf16.mxu0 0
      %3679 = vmatpush1.bf16.msra.mxu0 %v3072
      %3680 = vmatprep.subr.bf16.mxu0 0
      %3681 = vmatpush1.bf16.msra.mxu0 %v3073
      %3682 = vmatprep.subr.bf16.mxu0 0
      %3683 = vmatpush1.bf16.msra.mxu0 %v3074
      %3684 = vmatprep.subr.bf16.mxu0 0
      %3685 = vmatpush1.bf16.msra.mxu0 %v3075
      %3686 = vmatprep.subr.bf16.mxu0 0
      %3687 = vmatpush1.bf16.msra.mxu0 %v3076
      %3688 = vmatprep.subr.bf16.mxu0 0
      %3689 = vmatpush1.bf16.msra.mxu0 %v3077
      %3690 = vmatprep.subr.bf16.mxu0 0
      %3691 = vmatpush1.bf16.msra.mxu0 %v3078
      %3692 = vmatprep.subr.bf16.mxu0 0
      %3693 = vmatpush1.bf16.msra.mxu0 %v3079
      %3694 = vmatprep.subr.bf16.mxu0 0
      %3695 = vmatpush1.bf16.msra.mxu0 %v3080
      %3696 = vmatprep.mubr.bf16.mxu0 %v2149
      %3697 = vmatmul.mubr.bf16.gmra.mrb[0].mxu0 %v2148
      %v3698 = vpop.f32.mrb[0].mxu0
      %v3699 = vadd.f32 %v3634, %v3698
      %v3700 = vpop.f32.mrb[0].mxu0
      %v3701 = vpop.f32.mrb[0].mxu0
      %v3702 = vadd.f32 %v3637, %v3701
      %v3703 = vpop.f32.mrb[0].mxu0
      %3704 = vmatprep.mubr.bf16.mxu0 %v2153
      %3705 = vmatmul.mubr.bf16.gmra.mrb[0].mxu0 %v2152
      %v3706 = vpop.f32.mrb[0].mxu0
      %v3707 = vadd.f32 %v3642, %v3706
      %v3708 = vpop.f32.mrb[0].mxu0
      %v3709 = vpop.f32.mrb[0].mxu0
      %v3710 = vadd.f32 %v3645, %v3709
      %v3711 = vpop.f32.mrb[0].mxu0
      %3712 = vmatprep.mubr.bf16.mxu0 %v2157
      %3713 = vmatmul.mubr.bf16.gmra.mrb[0].mxu0 %v2156
      %v3714 = vpop.f32.mrb[0].mxu0
      %v3715 = vadd.f32 %v3650, %v3714
      %v3716 = vpop.f32.mrb[0].mxu0
      %v3717 = vpop.f32.mrb[0].mxu0
      %v3718 = vadd.f32 %v3653, %v3717
      %v3719 = vpop.f32.mrb[0].mxu0
      %3720 = vmatprep.mubr.bf16.mxu0 %v2161
      %3721 = vmatmul.mubr.bf16.gmra.mrb[0].mxu0 %v2160
      %v3722 = vpop.f32.mrb[0].mxu0
      %v3723 = vadd.f32 %v3658, %v3722
      %v3724 = vpop.f32.mrb[0].mxu0
      %v3725 = vpop.f32.mrb[0].mxu0
      %v3726 = vadd.f32 %v3661, %v3725
      %v3727 = vpop.f32.mrb[0].mxu0
      %3728 = vdwg.mxu0
      %v3729 = vmax.f32 %v3699, 0.0
      %v3730 = vmax.f32 %v3702, 0.0
      %v3731 = vmax.f32 %v3707, 0.0
      %v3732 = vmax.f32 %v3710, 0.0
      %v3733 = vmax.f32 %v3715, 0.0
      %v3734 = vmax.f32 %v3718, 0.0
      %v3735 = vmax.f32 %v3723, 0.0
      %v3736 = vmax.f32 %v3726, 0.0
      %v3737 = vpack.c.bf16 %v3730, %v3729
      %v3738 = vpack.c.bf16 %v3732, %v3731
      %v3739 = vpack.c.bf16 %v3734, %v3733
      %v3740 = vpack.c.bf16 %v3736, %v3735
      %v3745 = vunpack.c.l.b16 %v3737
      %v3746 = vunpack.c.h.b16 %v3737
      %v3747 = vunpack.c.l.b16 %v3738
      %v3748 = vunpack.c.h.b16 %v3738
      %v3749 = vunpack.c.l.b16 %v3739
      %v3750 = vunpack.c.h.b16 %v3739
      %v3751 = vunpack.c.l.b16 %v3740
      %v3752 = vunpack.c.h.b16 %v3740
      %v3753 = vpack.c.b16 %v3745, %v3745
      %v3754 = vpack.c.b16 %v3746, %v3746
      %v3755 = vpack.c.b16 %v3747, %v3747
      %v3756 = vpack.c.b16 %v3748, %v3748
      %v3757 = vpack.c.b16 %v3749, %v3749
      %v3758 = vpack.c.b16 %v3750, %v3750
      %v3759 = vpack.c.b16 %v3751, %v3751
      %v3760 = vpack.c.b16 %v3752, %v3752
      %v3762 = vshrl.u32 %v3753, 16
      %v3764 = vrot.slane %v3762, 7
      %v3765 = vshll.u32 %v3753, 16
      %v3767 = vor.u32 %v3764, %v3765
      %v3768 = vrot.slane %v3764, 4
      %v3770 = vshrl.u32 %v3754, 16
      %v3772 = vrot.slane %v3770, 7
      %v3773 = vshll.u32 %v3754, 16
      %v3775 = vor.u32 %v3772, %v3773
      %v3776 = vrot.slane %v3772, 4
      %v3778 = vshrl.u32 %v3755, 16
      %v3780 = vrot.slane %v3778, 7
      %v3781 = vshll.u32 %v3755, 16
      %v3783 = vor.u32 %v3780, %v3781
      %v3784 = vrot.slane %v3780, 4
      %v3786 = vshrl.u32 %v3756, 16
      %v3788 = vrot.slane %v3786, 7
      %v3789 = vshll.u32 %v3756, 16
      %v3791 = vor.u32 %v3788, %v3789
      %v3792 = vrot.slane %v3788, 4
      %v3794 = vshrl.u32 %v3757, 16
      %v3796 = vrot.slane %v3794, 7
      %v3797 = vshll.u32 %v3757, 16
      %v3799 = vor.u32 %v3796, %v3797
      %v3800 = vrot.slane %v3796, 4
      %v3802 = vshrl.u32 %v3758, 16
      %v3804 = vrot.slane %v3802, 7
      %v3805 = vshll.u32 %v3758, 16
      %v3807 = vor.u32 %v3804, %v3805
      %v3808 = vrot.slane %v3804, 4
      %v3810 = vshrl.u32 %v3759, 16
      %v3812 = vrot.slane %v3810, 7
      %v3813 = vshll.u32 %v3759, 16
      %v3815 = vor.u32 %v3812, %v3813
      %v3816 = vrot.slane %v3812, 4
      %v3818 = vshrl.u32 %v3760, 16
      %v3820 = vrot.slane %v3818, 7
      %v3821 = vshll.u32 %v3760, 16
      %v3823 = vor.u32 %v3820, %v3821
      %v3824 = vrot.slane %v3820, 4
      %s3841 = scalar_lea.vmem [#allocation3], 8
      %v3842 = vld [vmem:[%s3841] sm:$0xf]
      %v3843 = vsel %vm1182, %v3767, %v3842
      %3844 = vst [vmem:[%s3841] sm:$0xf] %v3843
      %v3845 = vld [vmem:[%s3841 + $0x4] sm:$0x1]
      %v3846 = vsel %vm928, %v3768, %v3845
      %3847 = vst [vmem:[%s3841 + $0x4] sm:$0x1] %v3846
      %v3848 = vld [vmem:[%s3841 + $0x8] sm:$0xf]
      %v3849 = vsel %vm1182, %v3775, %v3848
      %3850 = vst [vmem:[%s3841 + $0x8] sm:$0xf] %v3849
      %v3851 = vld [vmem:[%s3841 + $0xc] sm:$0x1]
      %v3852 = vsel %vm928, %v3776, %v3851
      %3853 = vst [vmem:[%s3841 + $0xc] sm:$0x1] %v3852
      %v3854 = vld [vmem:[%s3841 + $0x10] sm:$0xf]
      %v3855 = vsel %vm1182, %v3783, %v3854
      %3856 = vst [vmem:[%s3841 + $0x10] sm:$0xf] %v3855
      %v3857 = vld [vmem:[%s3841 + $0x14] sm:$0x1]
      %v3858 = vsel %vm928, %v3784, %v3857
      %3859 = vst [vmem:[%s3841 + $0x14] sm:$0x1] %v3858
      %v3860 = vld [vmem:[%s3841 + $0x18] sm:$0xf]
      %v3861 = vsel %vm1182, %v3791, %v3860
      %3862 = vst [vmem:[%s3841 + $0x18] sm:$0xf] %v3861
      %v3863 = vld [vmem:[%s3841 + $0x1c] sm:$0x1]
      %v3864 = vsel %vm928, %v3792, %v3863
      %3865 = vst [vmem:[%s3841 + $0x1c] sm:$0x1] %v3864
      %v3866 = vld [vmem:[%s3841 + $0x20] sm:$0xf]
      %v3867 = vsel %vm1182, %v3799, %v3866
      %3868 = vst [vmem:[%s3841 + $0x20] sm:$0xf] %v3867
      %v3869 = vld [vmem:[%s3841 + $0x24] sm:$0x1]
      %v3870 = vsel %vm928, %v3800, %v3869
      %3871 = vst [vmem:[%s3841 + $0x24] sm:$0x1] %v3870
      %v3872 = vld [vmem:[%s3841 + $0x28] sm:$0xf]
      %v3873 = vsel %vm1182, %v3807, %v3872
      %3874 = vst [vmem:[%s3841 + $0x28] sm:$0xf] %v3873
      %v3875 = vld [vmem:[%s3841 + $0x2c] sm:$0x1]
      %v3876 = vsel %vm928, %v3808, %v3875
      %3877 = vst [vmem:[%s3841 + $0x2c] sm:$0x1] %v3876
      %v3878 = vld [vmem:[%s3841 + $0x30] sm:$0xf]
      %v3879 = vsel %vm1182, %v3815, %v3878
      %3880 = vst [vmem:[%s3841 + $0x30] sm:$0xf] %v3879
      %v3881 = vld [vmem:[%s3841 + $0x34] sm:$0x1]
      %v3882 = vsel %vm928, %v3816, %v3881
      %3883 = vst [vmem:[%s3841 + $0x34] sm:$0x1] %v3882
      %v3884 = vld [vmem:[%s3841 + $0x38] sm:$0xf]
      %v3885 = vsel %vm1182, %v3823, %v3884
      %3886 = vst [vmem:[%s3841 + $0x38] sm:$0xf] %v3885
      %v3887 = vld [vmem:[%s3841 + $0x3c] sm:$0x1]
      %v3888 = vsel %vm928, %v3824, %v3887
      %3889 = vst [vmem:[%s3841 + $0x3c] sm:$0x1] %v3888
      %v3890 = vld [vmem:[#allocation3] sm:$0xf]
      %v3891 = vld [vmem:[#allocation3 + $0x8] sm:$0xf]
      %v3892 = vld [vmem:[#allocation3 + $0x10] sm:$0xf]
      %v3893 = vld [vmem:[#allocation3 + $0x18] sm:$0xf]
      %v3894 = vld [vmem:[#allocation3 + $0x20] sm:$0xf]
      %v3895 = vld [vmem:[#allocation3 + $0x28] sm:$0xf]
      %v3896 = vld [vmem:[#allocation3 + $0x30] sm:$0xf]
      %v3897 = vld [vmem:[#allocation3 + $0x38] sm:$0xf]
      %v3898 = vld [vmem:[#allocation3 + $0x4] sm:$0x1]
      %v3899 = vld [vmem:[#allocation3 + $0xc] sm:$0x1]
      %v3900 = vld [vmem:[#allocation3 + $0x14] sm:$0x1]
      %v3901 = vld [vmem:[#allocation3 + $0x1c] sm:$0x1]
      %v3902 = vld [vmem:[#allocation3 + $0x24] sm:$0x1]
      %v3903 = vld [vmem:[#allocation3 + $0x2c] sm:$0x1]
      %v3904 = vld [vmem:[#allocation3 + $0x34] sm:$0x1]
      %v3905 = vld [vmem:[#allocation3 + $0x3c] sm:$0x1]
      %v3907 = vshrl.u32 %v3890, 16
      %v3909 = vrot.slane %v3907, 4
      %v3910 = vshll.u32 %v3890, 16
      %v3912 = vrot.slane %v3910, 5
      %v3913 = vor.u32 %v3909, %v3912
      %v3914 = vrot.slane %v3913, 4
      %v3916 = vshll.u32 %v3898, 16
      %v3918 = vrot.slane %v3916, 5
      %v3919 = vsel %vm1409, %v3914, %v3918
      %v3921 = vshrl.u32 %v3891, 16
      %v3923 = vrot.slane %v3921, 4
      %v3924 = vshll.u32 %v3891, 16
      %v3926 = vrot.slane %v3924, 5
      %v3927 = vor.u32 %v3923, %v3926
      %v3928 = vrot.slane %v3927, 4
      %v3930 = vshll.u32 %v3899, 16
      %v3932 = vrot.slane %v3930, 5
      %v3933 = vsel %vm1409, %v3928, %v3932
      %v3935 = vshrl.u32 %v3892, 16
      %v3937 = vrot.slane %v3935, 4
      %v3938 = vshll.u32 %v3892, 16
      %v3940 = vrot.slane %v3938, 5
      %v3941 = vor.u32 %v3937, %v3940
      %v3942 = vrot.slane %v3941, 4
      %v3944 = vshll.u32 %v3900, 16
      %v3946 = vrot.slane %v3944, 5
      %v3947 = vsel %vm1409, %v3942, %v3946
      %v3949 = vshrl.u32 %v3893, 16
      %v3951 = vrot.slane %v3949, 4
      %v3952 = vshll.u32 %v3893, 16
      %v3954 = vrot.slane %v3952, 5
      %v3955 = vor.u32 %v3951, %v3954
      %v3956 = vrot.slane %v3955, 4
      %v3958 = vshll.u32 %v3901, 16
      %v3960 = vrot.slane %v3958, 5
      %v3961 = vsel %vm1409, %v3956, %v3960
      %v3963 = vshrl.u32 %v3894, 16
      %v3965 = vrot.slane %v3963, 4
      %v3966 = vshll.u32 %v3894, 16
      %v3968 = vrot.slane %v3966, 5
      %v3969 = vor.u32 %v3965, %v3968
      %v3970 = vrot.slane %v3969, 4
      %v3972 = vshll.u32 %v3902, 16
      %v3974 = vrot.slane %v3972, 5
      %v3975 = vsel %vm1409, %v3970, %v3974
      %v3977 = vshrl.u32 %v3895, 16
      %v3979 = vrot.slane %v3977, 4
      %v3980 = vshll.u32 %v3895, 16
      %v3982 = vrot.slane %v3980, 5
      %v3983 = vor.u32 %v3979, %v3982
      %v3984 = vrot.slane %v3983, 4
      %v3986 = vshll.u32 %v3903, 16
      %v3988 = vrot.slane %v3986, 5
      %v3989 = vsel %vm1409, %v3984, %v3988
      %v3991 = vshrl.u32 %v3896, 16
      %v3993 = vrot.slane %v3991, 4
      %v3994 = vshll.u32 %v3896, 16
      %v3996 = vrot.slane %v3994, 5
      %v3997 = vor.u32 %v3993, %v3996
      %v3998 = vrot.slane %v3997, 4
      %v4000 = vshll.u32 %v3904, 16
      %v4002 = vrot.slane %v4000, 5
      %v4003 = vsel %vm1409, %v3998, %v4002
      %v4005 = vshrl.u32 %v3897, 16
      %v4007 = vrot.slane %v4005, 4
      %v4008 = vshll.u32 %v3897, 16
      %v4010 = vrot.slane %v4008, 5
      %v4011 = vor.u32 %v4007, %v4010
      %v4012 = vrot.slane %v4011, 4
      %v4014 = vshll.u32 %v3905, 16
      %v4016 = vrot.slane %v4014, 5
      %v4017 = vsel %vm1409, %v4012, %v4016
      %v4018 = vld [vmem:[#allocation3] sm:$0xe]
      %v4019 = vld [vmem:[#allocation3 + $0x8] sm:$0xe]
      %v4020 = vld [vmem:[#allocation3 + $0x10] sm:$0xe]
      %v4021 = vld [vmem:[#allocation3 + $0x18] sm:$0xe]
      %v4022 = vld [vmem:[#allocation3 + $0x20] sm:$0xe]
      %v4023 = vld [vmem:[#allocation3 + $0x28] sm:$0xe]
      %v4024 = vld [vmem:[#allocation3 + $0x30] sm:$0xe]
      %v4025 = vld [vmem:[#allocation3 + $0x38] sm:$0xe]
      %vm4042 = vcmask 1042432
      %vm4043 = vcmask 1046532
      %vm4044 = vmor %vm4042, %vm4043
      %v4045 = vrot.slane %v4018, 5
      %v4046 = vrot.slane %v4045, 4
      %v4047 = vrot.slane %v3898, 5
      %v4048 = vsel %vm4044, %v4046, %v4047
      %v4049 = vrot.slane %v4019, 5
      %v4050 = vrot.slane %v4049, 4
      %v4051 = vrot.slane %v3899, 5
      %v4052 = vsel %vm4044, %v4050, %v4051
      %v4053 = vrot.slane %v4020, 5
      %v4054 = vrot.slane %v4053, 4
      %v4055 = vrot.slane %v3900, 5
      %v4056 = vsel %vm4044, %v4054, %v4055
      %v4057 = vrot.slane %v4021, 5
      %v4058 = vrot.slane %v4057, 4
      %v4059 = vrot.slane %v3901, 5
      %v4060 = vsel %vm4044, %v4058, %v4059
      %v4061 = vrot.slane %v4022, 5
      %v4062 = vrot.slane %v4061, 4
      %v4063 = vrot.slane %v3902, 5
      %v4064 = vsel %vm4044, %v4062, %v4063
      %v4065 = vrot.slane %v4023, 5
      %v4066 = vrot.slane %v4065, 4
      %v4067 = vrot.slane %v3903, 5
      %v4068 = vsel %vm4044, %v4066, %v4067
      %v4069 = vrot.slane %v4024, 5
      %v4070 = vrot.slane %v4069, 4
      %v4071 = vrot.slane %v3904, 5
      %v4072 = vsel %vm4044, %v4070, %v4071
      %v4073 = vrot.slane %v4025, 5
      %v4074 = vrot.slane %v4073, 4
      %v4075 = vrot.slane %v3905, 5
      %v4076 = vsel %vm4044, %v4074, %v4075
      %v4077 = vld [vmem:[%s3841] sm:$0xf]
      %v4078 = vld [vmem:[%s3841 + $0x8] sm:$0xf]
      %v4079 = vld [vmem:[%s3841 + $0x10] sm:$0xf]
      %v4080 = vld [vmem:[%s3841 + $0x18] sm:$0xf]
      %v4081 = vld [vmem:[%s3841 + $0x20] sm:$0xf]
      %v4082 = vld [vmem:[%s3841 + $0x28] sm:$0xf]
      %v4083 = vld [vmem:[%s3841 + $0x30] sm:$0xf]
      %v4084 = vld [vmem:[%s3841 + $0x38] sm:$0xf]
      %v4085 = vld [vmem:[%s3841 + $0x4] sm:$0x1]
      %v4086 = vld [vmem:[%s3841 + $0xc] sm:$0x1]
      %v4087 = vld [vmem:[%s3841 + $0x14] sm:$0x1]
      %v4088 = vld [vmem:[%s3841 + $0x1c] sm:$0x1]
      %v4089 = vld [vmem:[%s3841 + $0x24] sm:$0x1]
      %v4090 = vld [vmem:[%s3841 + $0x2c] sm:$0x1]
      %v4091 = vld [vmem:[%s3841 + $0x34] sm:$0x1]
      %v4092 = vld [vmem:[%s3841 + $0x3c] sm:$0x1]
      %v4094 = vshrl.u32 %v4077, 16
      %v4096 = vrot.slane %v4094, 4
      %v4097 = vshll.u32 %v4077, 16
      %v4099 = vrot.slane %v4097, 5
      %v4100 = vor.u32 %v4096, %v4099
      %v4101 = vrot.slane %v4100, 4
      %v4103 = vshll.u32 %v4085, 16
      %v4105 = vrot.slane %v4103, 5
      %v4106 = vsel %vm1409, %v4101, %v4105
      %v4108 = vshrl.u32 %v4078, 16
      %v4110 = vrot.slane %v4108, 4
      %v4111 = vshll.u32 %v4078, 16
      %v4113 = vrot.slane %v4111, 5
      %v4114 = vor.u32 %v4110, %v4113
      %v4115 = vrot.slane %v4114, 4
      %v4117 = vshll.u32 %v4086, 16
      %v4119 = vrot.slane %v4117, 5
      %v4120 = vsel %vm1409, %v4115, %v4119
      %v4122 = vshrl.u32 %v4079, 16
      %v4124 = vrot.slane %v4122, 4
      %v4125 = vshll.u32 %v4079, 16
      %v4127 = vrot.slane %v4125, 5
      %v4128 = vor.u32 %v4124, %v4127
      %v4129 = vrot.slane %v4128, 4
      %v4131 = vshll.u32 %v4087, 16
      %v4133 = vrot.slane %v4131, 5
      %v4134 = vsel %vm1409, %v4129, %v4133
      %v4136 = vshrl.u32 %v4080, 16
      %v4138 = vrot.slane %v4136, 4
      %v4139 = vshll.u32 %v4080, 16
      %v4141 = vrot.slane %v4139, 5
      %v4142 = vor.u32 %v4138, %v4141
      %v4143 = vrot.slane %v4142, 4
      %v4145 = vshll.u32 %v4088, 16
      %v4147 = vrot.slane %v4145, 5
      %v4148 = vsel %vm1409, %v4143, %v4147
      %v4150 = vshrl.u32 %v4081, 16
      %v4152 = vrot.slane %v4150, 4
      %v4153 = vshll.u32 %v4081, 16
      %v4155 = vrot.slane %v4153, 5
      %v4156 = vor.u32 %v4152, %v4155
      %v4157 = vrot.slane %v4156, 4
      %v4159 = vshll.u32 %v4089, 16
      %v4161 = vrot.slane %v4159, 5
      %v4162 = vsel %vm1409, %v4157, %v4161
      %v4164 = vshrl.u32 %v4082, 16
      %v4166 = vrot.slane %v4164, 4
      %v4167 = vshll.u32 %v4082, 16
      %v4169 = vrot.slane %v4167, 5
      %v4170 = vor.u32 %v4166, %v4169
      %v4171 = vrot.slane %v4170, 4
      %v4173 = vshll.u32 %v4090, 16
      %v4175 = vrot.slane %v4173, 5
      %v4176 = vsel %vm1409, %v4171, %v4175
      %v4178 = vshrl.u32 %v4083, 16
      %v4180 = vrot.slane %v4178, 4
      %v4181 = vshll.u32 %v4083, 16
      %v4183 = vrot.slane %v4181, 5
      %v4184 = vor.u32 %v4180, %v4183
      %v4185 = vrot.slane %v4184, 4
      %v4187 = vshll.u32 %v4091, 16
      %v4189 = vrot.slane %v4187, 5
      %v4190 = vsel %vm1409, %v4185, %v4189
      %v4192 = vshrl.u32 %v4084, 16
      %v4194 = vrot.slane %v4192, 4
      %v4195 = vshll.u32 %v4084, 16
      %v4197 = vrot.slane %v4195, 5
      %v4198 = vor.u32 %v4194, %v4197
      %v4199 = vrot.slane %v4198, 4
      %v4201 = vshll.u32 %v4092, 16
      %v4203 = vrot.slane %v4201, 5
      %v4204 = vsel %vm1409, %v4199, %v4203
      %v4205 = vld [vmem:[%s3841] sm:$0xe]
      %v4206 = vld [vmem:[%s3841 + $0x8] sm:$0xe]
      %v4207 = vld [vmem:[%s3841 + $0x10] sm:$0xe]
      %v4208 = vld [vmem:[%s3841 + $0x18] sm:$0xe]
      %v4209 = vld [vmem:[%s3841 + $0x20] sm:$0xe]
      %v4210 = vld [vmem:[%s3841 + $0x28] sm:$0xe]
      %v4211 = vld [vmem:[%s3841 + $0x30] sm:$0xe]
      %v4212 = vld [vmem:[%s3841 + $0x38] sm:$0xe]
      %v4229 = vrot.slane %v4205, 5
      %v4230 = vrot.slane %v4229, 4
      %v4231 = vrot.slane %v4085, 5
      %v4232 = vsel %vm4044, %v4230, %v4231
      %v4233 = vrot.slane %v4206, 5
      %v4234 = vrot.slane %v4233, 4
      %v4235 = vrot.slane %v4086, 5
      %v4236 = vsel %vm4044, %v4234, %v4235
      %v4237 = vrot.slane %v4207, 5
      %v4238 = vrot.slane %v4237, 4
      %v4239 = vrot.slane %v4087, 5
      %v4240 = vsel %vm4044, %v4238, %v4239
      %v4241 = vrot.slane %v4208, 5
      %v4242 = vrot.slane %v4241, 4
      %v4243 = vrot.slane %v4088, 5
      %v4244 = vsel %vm4044, %v4242, %v4243
      %v4245 = vrot.slane %v4209, 5
      %v4246 = vrot.slane %v4245, 4
      %v4247 = vrot.slane %v4089, 5
      %v4248 = vsel %vm4044, %v4246, %v4247
      %v4249 = vrot.slane %v4210, 5
      %v4250 = vrot.slane %v4249, 4
      %v4251 = vrot.slane %v4090, 5
      %v4252 = vsel %vm4044, %v4250, %v4251
      %v4253 = vrot.slane %v4211, 5
      %v4254 = vrot.slane %v4253, 4
      %v4255 = vrot.slane %v4091, 5
      %v4256 = vsel %vm4044, %v4254, %v4255
      %v4257 = vrot.slane %v4212, 5
      %v4258 = vrot.slane %v4257, 4
      %v4259 = vrot.slane %v4092, 5
      %v4260 = vsel %vm4044, %v4258, %v4259
      %s4261 = scalar_lea.vmem [#allocation3], 16
      %v4262 = vld [vmem:[%s4261] sm:$0xf]
      %v4263 = vld [vmem:[%s4261 + $0x8] sm:$0xf]
      %v4264 = vld [vmem:[%s4261 + $0x10] sm:$0xf]
      %v4265 = vld [vmem:[%s4261 + $0x18] sm:$0xf]
      %v4266 = vld [vmem:[%s4261 + $0x20] sm:$0xf]
      %v4267 = vld [vmem:[%s4261 + $0x28] sm:$0xf]
      %v4268 = vld [vmem:[%s4261 + $0x30] sm:$0xf]
      %v4269 = vld [vmem:[%s4261 + $0x38] sm:$0xf]
      %v4270 = vld [vmem:[%s4261 + $0x4] sm:$0x1]
      %v4271 = vld [vmem:[%s4261 + $0xc] sm:$0x1]
      %v4272 = vld [vmem:[%s4261 + $0x14] sm:$0x1]
      %v4273 = vld [vmem:[%s4261 + $0x1c] sm:$0x1]
      %v4274 = vld [vmem:[%s4261 + $0x24] sm:$0x1]
      %v4275 = vld [vmem:[%s4261 + $0x2c] sm:$0x1]
      %v4276 = vld [vmem:[%s4261 + $0x34] sm:$0x1]
      %v4277 = vld [vmem:[%s4261 + $0x3c] sm:$0x1]
      %v4279 = vshrl.u32 %v4262, 16
      %v4281 = vrot.slane %v4279, 4
      %v4282 = vshll.u32 %v4262, 16
      %v4284 = vrot.slane %v4282, 5
      %v4285 = vor.u32 %v4281, %v4284
      %v4286 = vrot.slane %v4285, 4
      %v4288 = vshll.u32 %v4270, 16
      %v4290 = vrot.slane %v4288, 5
      %v4291 = vsel %vm1409, %v4286, %v4290
      %v4293 = vshrl.u32 %v4263, 16
      %v4295 = vrot.slane %v4293, 4
      %v4296 = vshll.u32 %v4263, 16
      %v4298 = vrot.slane %v4296, 5
      %v4299 = vor.u32 %v4295, %v4298
      %v4300 = vrot.slane %v4299, 4
      %v4302 = vshll.u32 %v4271, 16
      %v4304 = vrot.slane %v4302, 5
      %v4305 = vsel %vm1409, %v4300, %v4304
      %v4307 = vshrl.u32 %v4264, 16
      %v4309 = vrot.slane %v4307, 4
      %v4310 = vshll.u32 %v4264, 16
      %v4312 = vrot.slane %v4310, 5
      %v4313 = vor.u32 %v4309, %v4312
      %v4314 = vrot.slane %v4313, 4
      %v4316 = vshll.u32 %v4272, 16
      %v4318 = vrot.slane %v4316, 5
      %v4319 = vsel %vm1409, %v4314, %v4318
      %v4321 = vshrl.u32 %v4265, 16
      %v4323 = vrot.slane %v4321, 4
      %v4324 = vshll.u32 %v4265, 16
      %v4326 = vrot.slane %v4324, 5
      %v4327 = vor.u32 %v4323, %v4326
      %v4328 = vrot.slane %v4327, 4
      %v4330 = vshll.u32 %v4273, 16
      %v4332 = vrot.slane %v4330, 5
      %v4333 = vsel %vm1409, %v4328, %v4332
      %v4335 = vshrl.u32 %v4266, 16
      %v4337 = vrot.slane %v4335, 4
      %v4338 = vshll.u32 %v4266, 16
      %v4340 = vrot.slane %v4338, 5
      %v4341 = vor.u32 %v4337, %v4340
      %v4342 = vrot.slane %v4341, 4
      %v4344 = vshll.u32 %v4274, 16
      %v4346 = vrot.slane %v4344, 5
      %v4347 = vsel %vm1409, %v4342, %v4346
      %v4349 = vshrl.u32 %v4267, 16
      %v4351 = vrot.slane %v4349, 4
      %v4352 = vshll.u32 %v4267, 16
      %v4354 = vrot.slane %v4352, 5
      %v4355 = vor.u32 %v4351, %v4354
      %v4356 = vrot.slane %v4355, 4
      %v4358 = vshll.u32 %v4275, 16
      %v4360 = vrot.slane %v4358, 5
      %v4361 = vsel %vm1409, %v4356, %v4360
      %v4363 = vshrl.u32 %v4268, 16
      %v4365 = vrot.slane %v4363, 4
      %v4366 = vshll.u32 %v4268, 16
      %v4368 = vrot.slane %v4366, 5
      %v4369 = vor.u32 %v4365, %v4368
      %v4370 = vrot.slane %v4369, 4
      %v4372 = vshll.u32 %v4276, 16
      %v4374 = vrot.slane %v4372, 5
      %v4375 = vsel %vm1409, %v4370, %v4374
      %v4377 = vshrl.u32 %v4269, 16
      %v4379 = vrot.slane %v4377, 4
      %v4380 = vshll.u32 %v4269, 16
      %v4382 = vrot.slane %v4380, 5
      %v4383 = vor.u32 %v4379, %v4382
      %v4384 = vrot.slane %v4383, 4
      %v4386 = vshll.u32 %v4277, 16
      %v4388 = vrot.slane %v4386, 5
      %v4389 = vsel %vm1409, %v4384, %v4388
      %v4390 = vld [vmem:[%s4261] sm:$0xe]
      %v4391 = vld [vmem:[%s4261 + $0x8] sm:$0xe]
      %v4392 = vld [vmem:[%s4261 + $0x10] sm:$0xe]
      %v4393 = vld [vmem:[%s4261 + $0x18] sm:$0xe]
      %v4394 = vld [vmem:[%s4261 + $0x20] sm:$0xe]
      %v4395 = vld [vmem:[%s4261 + $0x28] sm:$0xe]
      %v4396 = vld [vmem:[%s4261 + $0x30] sm:$0xe]
      %v4397 = vld [vmem:[%s4261 + $0x38] sm:$0xe]
      %v4414 = vrot.slane %v4390, 5
      %v4415 = vrot.slane %v4414, 4
      %v4416 = vrot.slane %v4270, 5
      %v4417 = vsel %vm4044, %v4415, %v4416
      %v4418 = vrot.slane %v4391, 5
      %v4419 = vrot.slane %v4418, 4
      %v4420 = vrot.slane %v4271, 5
      %v4421 = vsel %vm4044, %v4419, %v4420
      %v4422 = vrot.slane %v4392, 5
      %v4423 = vrot.slane %v4422, 4
      %v4424 = vrot.slane %v4272, 5
      %v4425 = vsel %vm4044, %v4423, %v4424
      %v4426 = vrot.slane %v4393, 5
      %v4427 = vrot.slane %v4426, 4
      %v4428 = vrot.slane %v4273, 5
      %v4429 = vsel %vm4044, %v4427, %v4428
      %v4430 = vrot.slane %v4394, 5
      %v4431 = vrot.slane %v4430, 4
      %v4432 = vrot.slane %v4274, 5
      %v4433 = vsel %vm4044, %v4431, %v4432
      %v4434 = vrot.slane %v4395, 5
      %v4435 = vrot.slane %v4434, 4
      %v4436 = vrot.slane %v4275, 5
      %v4437 = vsel %vm4044, %v4435, %v4436
      %v4438 = vrot.slane %v4396, 5
      %v4439 = vrot.slane %v4438, 4
      %v4440 = vrot.slane %v4276, 5
      %v4441 = vsel %vm4044, %v4439, %v4440
      %v4442 = vrot.slane %v4397, 5
      %v4443 = vrot.slane %v4442, 4
      %v4444 = vrot.slane %v4277, 5
      %v4445 = vsel %vm4044, %v4443, %v4444
      %v4454 = vunpack.c.l.b16 %v3890
      %v4455 = vunpack.c.l.b16 %v3891
      %v4456 = vunpack.c.l.b16 %v3892
      %v4457 = vunpack.c.l.b16 %v3893
      %v4458 = vunpack.c.l.b16 %v3894
      %v4459 = vunpack.c.l.b16 %v3895
      %v4460 = vunpack.c.l.b16 %v3896
      %v4461 = vunpack.c.l.b16 %v3897
      %v4462 = vpack.c.b16 %v4455, %v4454
      %v4463 = vpack.c.b16 %v4457, %v4456
      %v4464 = vpack.c.b16 %v4459, %v4458
      %v4465 = vpack.c.b16 %v4461, %v4460
      %v4470 = vunpack.c.l.b16 %v3919
      %v4471 = vunpack.c.l.b16 %v3933
      %v4472 = vunpack.c.l.b16 %v3947
      %v4473 = vunpack.c.l.b16 %v3961
      %v4474 = vunpack.c.l.b16 %v3975
      %v4475 = vunpack.c.l.b16 %v3989
      %v4476 = vunpack.c.l.b16 %v4003
      %v4477 = vunpack.c.l.b16 %v4017
      %v4478 = vpack.c.b16 %v4471, %v4470
      %v4479 = vpack.c.b16 %v4473, %v4472
      %v4480 = vpack.c.b16 %v4475, %v4474
      %v4481 = vpack.c.b16 %v4477, %v4476
      %v4486 = vunpack.c.l.b16 %v4048
      %v4487 = vunpack.c.l.b16 %v4052
      %v4488 = vunpack.c.l.b16 %v4056
      %v4489 = vunpack.c.l.b16 %v4060
      %v4490 = vunpack.c.l.b16 %v4064
      %v4491 = vunpack.c.l.b16 %v4068
      %v4492 = vunpack.c.l.b16 %v4072
      %v4493 = vunpack.c.l.b16 %v4076
      %v4494 = vpack.c.b16 %v4487, %v4486
      %v4495 = vpack.c.b16 %v4489, %v4488
      %v4496 = vpack.c.b16 %v4491, %v4490
      %v4497 = vpack.c.b16 %v4493, %v4492
      %v4510 = vunpack.c.l.b16 %v4077
      %v4511 = vunpack.c.l.b16 %v4078
      %v4512 = vunpack.c.l.b16 %v4079
      %v4513 = vunpack.c.l.b16 %v4080
      %v4514 = vunpack.c.l.b16 %v4081
      %v4515 = vunpack.c.l.b16 %v4082
      %v4516 = vunpack.c.l.b16 %v4083
      %v4517 = vunpack.c.l.b16 %v4084
      %v4518 = vpack.c.b16 %v4511, %v4510
      %v4519 = vpack.c.b16 %v4513, %v4512
      %v4520 = vpack.c.b16 %v4515, %v4514
      %v4521 = vpack.c.b16 %v4517, %v4516
      %v4526 = vunpack.c.l.b16 %v4106
      %v4527 = vunpack.c.l.b16 %v4120
      %v4528 = vunpack.c.l.b16 %v4134
      %v4529 = vunpack.c.l.b16 %v4148
      %v4530 = vunpack.c.l.b16 %v4162
      %v4531 = vunpack.c.l.b16 %v4176
      %v4532 = vunpack.c.l.b16 %v4190
      %v4533 = vunpack.c.l.b16 %v4204
      %v4534 = vpack.c.b16 %v4527, %v4526
      %v4535 = vpack.c.b16 %v4529, %v4528
      %v4536 = vpack.c.b16 %v4531, %v4530
      %v4537 = vpack.c.b16 %v4533, %v4532
      %v4542 = vunpack.c.l.b16 %v4232
      %v4543 = vunpack.c.l.b16 %v4236
      %v4544 = vunpack.c.l.b16 %v4240
      %v4545 = vunpack.c.l.b16 %v4244
      %v4546 = vunpack.c.l.b16 %v4248
      %v4547 = vunpack.c.l.b16 %v4252
      %v4548 = vunpack.c.l.b16 %v4256
      %v4549 = vunpack.c.l.b16 %v4260
      %v4550 = vpack.c.b16 %v4543, %v4542
      %v4551 = vpack.c.b16 %v4545, %v4544
      %v4552 = vpack.c.b16 %v4547, %v4546
      %v4553 = vpack.c.b16 %v4549, %v4548
      %v4566 = vunpack.c.l.b16 %v4262
      %v4567 = vunpack.c.l.b16 %v4263
      %v4568 = vunpack.c.l.b16 %v4264
      %v4569 = vunpack.c.l.b16 %v4265
      %v4570 = vunpack.c.l.b16 %v4266
      %v4571 = vunpack.c.l.b16 %v4267
      %v4572 = vunpack.c.l.b16 %v4268
      %v4573 = vunpack.c.l.b16 %v4269
      %v4574 = vpack.c.b16 %v4567, %v4566
      %v4575 = vpack.c.b16 %v4569, %v4568
      %v4576 = vpack.c.b16 %v4571, %v4570
      %v4577 = vpack.c.b16 %v4573, %v4572
      %v4582 = vunpack.c.l.b16 %v4291
      %v4583 = vunpack.c.l.b16 %v4305
      %v4584 = vunpack.c.l.b16 %v4319
      %v4585 = vunpack.c.l.b16 %v4333
      %v4586 = vunpack.c.l.b16 %v4347
      %v4587 = vunpack.c.l.b16 %v4361
      %v4588 = vunpack.c.l.b16 %v4375
      %v4589 = vunpack.c.l.b16 %v4389
      %v4590 = vpack.c.b16 %v4583, %v4582
      %v4591 = vpack.c.b16 %v4585, %v4584
      %v4592 = vpack.c.b16 %v4587, %v4586
      %v4593 = vpack.c.b16 %v4589, %v4588
      %v4598 = vunpack.c.l.b16 %v4417
      %v4599 = vunpack.c.l.b16 %v4421
      %v4600 = vunpack.c.l.b16 %v4425
      %v4601 = vunpack.c.l.b16 %v4429
      %v4602 = vunpack.c.l.b16 %v4433
      %v4603 = vunpack.c.l.b16 %v4437
      %v4604 = vunpack.c.l.b16 %v4441
      %v4605 = vunpack.c.l.b16 %v4445
      %v4606 = vpack.c.b16 %v4599, %v4598
      %v4607 = vpack.c.b16 %v4601, %v4600
      %v4608 = vpack.c.b16 %v4603, %v4602
      %v4609 = vpack.c.b16 %v4605, %v4604
      %v4614 = vld [vmem:[%s5] sm:$0xf]
      %v4615 = vld [vmem:[%s5 + $0x4] sm:$0xf]
      %v4616 = vld [vmem:[%s5 + $0x8] sm:$0xf]
      %v4617 = vld [vmem:[%s5 + $0xc] sm:$0xf]
      %v4618 = vld [vmem:[%s5 + $0x10] sm:$0xf]
      %v4619 = vld [vmem:[%s5 + $0x14] sm:$0xf]
      %v4620 = vld [vmem:[%s5 + $0x18] sm:$0xf]
      %v4621 = vld [vmem:[%s5 + $0x1c] sm:$0xf]
      %v4622 = vld [vmem:[%s5 + $0x20] sm:$0xf]
      %v4623 = vld [vmem:[%s5 + $0x24] sm:$0xf]
      %v4624 = vld [vmem:[%s5 + $0x28] sm:$0xf]
      %v4625 = vld [vmem:[%s5 + $0x2c] sm:$0xf]
      %v4626 = vld [vmem:[%s5 + $0x30] sm:$0xf]
      %v4627 = vld [vmem:[%s5 + $0x34] sm:$0xf]
      %v4628 = vld [vmem:[%s5 + $0x38] sm:$0xf]
      %v4629 = vld [vmem:[%s5 + $0x3c] sm:$0xf]
      %v4630 = vld [vmem:[%s5 + $0x40] sm:$0xf]
      %v4631 = vld [vmem:[%s5 + $0x44] sm:$0xf]
      %v4632 = vld [vmem:[%s5 + $0x48] sm:$0xf]
      %v4633 = vld [vmem:[%s5 + $0x4c] sm:$0xf]
      %v4634 = vld [vmem:[%s5 + $0x50] sm:$0xf]
      %v4635 = vld [vmem:[%s5 + $0x54] sm:$0xf]
      %v4636 = vld [vmem:[%s5 + $0x58] sm:$0xf]
      %v4637 = vld [vmem:[%s5 + $0x5c] sm:$0xf]
      %v4638 = vld [vmem:[%s5 + $0x60] sm:$0xf]
      %v4639 = vld [vmem:[%s5 + $0x64] sm:$0xf]
      %v4640 = vld [vmem:[%s5 + $0x68] sm:$0xf]
      %v4641 = vld [vmem:[%s5 + $0x6c] sm:$0xf]
      %v4642 = vld [vmem:[%s5 + $0x70] sm:$0xf]
      %v4643 = vld [vmem:[%s5 + $0x74] sm:$0xf]
      %v4644 = vld [vmem:[%s5 + $0x78] sm:$0xf]
      %v4645 = vld [vmem:[%s5 + $0x7c] sm:$0xf]
      %v4646 = vld [vmem:[%s5 + $0x80] sm:$0xf]
      %v4647 = vld [vmem:[%s5 + $0x84] sm:$0xf]
      %v4648 = vld [vmem:[%s5 + $0x88] sm:$0xf]
      %v4649 = vld [vmem:[%s5 + $0x8c] sm:$0xf]
      %v4650 = vld [vmem:[%s5 + $0x90] sm:$0xf]
      %v4651 = vld [vmem:[%s5 + $0x94] sm:$0xf]
      %v4652 = vld [vmem:[%s5 + $0x98] sm:$0xf]
      %v4653 = vld [vmem:[%s5 + $0x9c] sm:$0xf]
      %v4654 = vld [vmem:[%s5 + $0xa0] sm:$0xf]
      %v4655 = vld [vmem:[%s5 + $0xa4] sm:$0xf]
      %v4656 = vld [vmem:[%s5 + $0xa8] sm:$0xf]
      %v4657 = vld [vmem:[%s5 + $0xac] sm:$0xf]
      %v4658 = vld [vmem:[%s5 + $0xb0] sm:$0xf]
      %v4659 = vld [vmem:[%s5 + $0xb4] sm:$0xf]
      %v4660 = vld [vmem:[%s5 + $0xb8] sm:$0xf]
      %v4661 = vld [vmem:[%s5 + $0xbc] sm:$0xf]
      %v4662 = vld [vmem:[%s5 + $0xc0] sm:$0xf]
      %v4663 = vld [vmem:[%s5 + $0xc4] sm:$0xf]
      %v4664 = vld [vmem:[%s5 + $0xc8] sm:$0xf]
      %v4665 = vld [vmem:[%s5 + $0xcc] sm:$0xf]
      %v4666 = vld [vmem:[%s5 + $0xd0] sm:$0xf]
      %v4667 = vld [vmem:[%s5 + $0xd4] sm:$0xf]
      %v4668 = vld [vmem:[%s5 + $0xd8] sm:$0xf]
      %v4669 = vld [vmem:[%s5 + $0xdc] sm:$0xf]
      %v4670 = vld [vmem:[%s5 + $0xe0] sm:$0xf]
      %v4671 = vld [vmem:[%s5 + $0xe4] sm:$0xf]
      %v4672 = vld [vmem:[%s5 + $0xe8] sm:$0xf]
      %v4673 = vld [vmem:[%s5 + $0xec] sm:$0xf]
      %v4674 = vld [vmem:[%s5 + $0xf0] sm:$0xf]
      %v4675 = vld [vmem:[%s5 + $0xf4] sm:$0xf]
      %v4676 = vld [vmem:[%s5 + $0xf8] sm:$0xf]
      %v4677 = vld [vmem:[%s5 + $0xfc] sm:$0xf]
      %v4678 = vld [vmem:[%s5 + $0x100] sm:$0xf]
      %v4679 = vld [vmem:[%s5 + $0x104] sm:$0xf]
      %v4680 = vld [vmem:[%s5 + $0x108] sm:$0xf]
      %v4681 = vld [vmem:[%s5 + $0x10c] sm:$0xf]
      %v4682 = vld [vmem:[%s5 + $0x110] sm:$0xf]
      %v4683 = vld [vmem:[%s5 + $0x114] sm:$0xf]
      %v4684 = vld [vmem:[%s5 + $0x118] sm:$0xf]
      %v4685 = vld [vmem:[%s5 + $0x11c] sm:$0xf]
      %v4686 = vld [vmem:[%s5 + $0x120] sm:$0xf]
      %v4687 = vld [vmem:[%s5 + $0x124] sm:$0xf]
      %v4688 = vld [vmem:[%s5 + $0x128] sm:$0xf]
      %v4689 = vld [vmem:[%s5 + $0x12c] sm:$0xf]
      %v4690 = vld [vmem:[%s5 + $0x130] sm:$0xf]
      %v4691 = vld [vmem:[%s5 + $0x134] sm:$0xf]
      %v4692 = vld [vmem:[%s5 + $0x138] sm:$0xf]
      %v4693 = vld [vmem:[%s5 + $0x13c] sm:$0xf]
      %v4694 = vld [vmem:[%s5 + $0x140] sm:$0xf]
      %v4695 = vld [vmem:[%s5 + $0x144] sm:$0xf]
      %v4696 = vld [vmem:[%s5 + $0x148] sm:$0xf]
      %v4697 = vld [vmem:[%s5 + $0x14c] sm:$0xf]
      %v4698 = vld [vmem:[%s5 + $0x150] sm:$0xf]
      %v4699 = vld [vmem:[%s5 + $0x154] sm:$0xf]
      %v4700 = vld [vmem:[%s5 + $0x158] sm:$0xf]
      %v4701 = vld [vmem:[%s5 + $0x15c] sm:$0xf]
      %v4702 = vld [vmem:[%s5 + $0x160] sm:$0xf]
      %v4703 = vld [vmem:[%s5 + $0x164] sm:$0xf]
      %v4704 = vld [vmem:[%s5 + $0x168] sm:$0xf]
      %v4705 = vld [vmem:[%s5 + $0x16c] sm:$0xf]
      %v4706 = vld [vmem:[%s5 + $0x170] sm:$0xf]
      %v4707 = vld [vmem:[%s5 + $0x174] sm:$0xf]
      %v4708 = vld [vmem:[%s5 + $0x178] sm:$0xf]
      %v4709 = vld [vmem:[%s5 + $0x17c] sm:$0xf]
      %v4710 = vld [vmem:[%s5 + $0x180] sm:$0xf]
      %v4711 = vld [vmem:[%s5 + $0x184] sm:$0xf]
      %v4712 = vld [vmem:[%s5 + $0x188] sm:$0xf]
      %v4713 = vld [vmem:[%s5 + $0x18c] sm:$0xf]
      %v4714 = vld [vmem:[%s5 + $0x190] sm:$0xf]
      %v4715 = vld [vmem:[%s5 + $0x194] sm:$0xf]
      %v4716 = vld [vmem:[%s5 + $0x198] sm:$0xf]
      %v4717 = vld [vmem:[%s5 + $0x19c] sm:$0xf]
      %v4718 = vld [vmem:[%s5 + $0x1a0] sm:$0xf]
      %v4719 = vld [vmem:[%s5 + $0x1a4] sm:$0xf]
      %v4720 = vld [vmem:[%s5 + $0x1a8] sm:$0xf]
      %v4721 = vld [vmem:[%s5 + $0x1ac] sm:$0xf]
      %v4722 = vld [vmem:[%s5 + $0x1b0] sm:$0xf]
      %v4723 = vld [vmem:[%s5 + $0x1b4] sm:$0xf]
      %v4724 = vld [vmem:[%s5 + $0x1b8] sm:$0xf]
      %v4725 = vld [vmem:[%s5 + $0x1bc] sm:$0xf]
      %v4726 = vld [vmem:[%s5 + $0x1c0] sm:$0xf]
      %v4727 = vld [vmem:[%s5 + $0x1c4] sm:$0xf]
      %v4728 = vld [vmem:[%s5 + $0x1c8] sm:$0xf]
      %v4729 = vld [vmem:[%s5 + $0x1cc] sm:$0xf]
      %v4730 = vld [vmem:[%s5 + $0x1d0] sm:$0xf]
      %v4731 = vld [vmem:[%s5 + $0x1d4] sm:$0xf]
      %v4732 = vld [vmem:[%s5 + $0x1d8] sm:$0xf]
      %v4733 = vld [vmem:[%s5 + $0x1dc] sm:$0xf]
      %v4734 = vld [vmem:[%s5 + $0x1e0] sm:$0xf]
      %v4735 = vld [vmem:[%s5 + $0x1e4] sm:$0xf]
      %v4736 = vld [vmem:[%s5 + $0x1e8] sm:$0xf]
      %v4737 = vld [vmem:[%s5 + $0x1ec] sm:$0xf]
      %v4738 = vld [vmem:[%s5 + $0x1f0] sm:$0xf]
      %v4739 = vld [vmem:[%s5 + $0x1f4] sm:$0xf]
      %v4740 = vld [vmem:[%s5 + $0x1f8] sm:$0xf]
      %v4741 = vld [vmem:[%s5 + $0x1fc] sm:$0xf]
      %v4742 = vld [vmem:[%s5 + $0x200] sm:$0xf]
      %v4743 = vld [vmem:[%s5 + $0x204] sm:$0xf]
      %v4744 = vld [vmem:[%s5 + $0x208] sm:$0xf]
      %v4745 = vld [vmem:[%s5 + $0x20c] sm:$0xf]
      %v4746 = vld [vmem:[%s5 + $0x210] sm:$0xf]
      %v4747 = vld [vmem:[%s5 + $0x214] sm:$0xf]
      %v4748 = vld [vmem:[%s5 + $0x218] sm:$0xf]
      %v4749 = vld [vmem:[%s5 + $0x21c] sm:$0xf]
      %v4750 = vld [vmem:[%s5 + $0x220] sm:$0xf]
      %v4751 = vld [vmem:[%s5 + $0x224] sm:$0xf]
      %v4752 = vld [vmem:[%s5 + $0x228] sm:$0xf]
      %v4753 = vld [vmem:[%s5 + $0x22c] sm:$0xf]
      %v4754 = vld [vmem:[%s5 + $0x230] sm:$0xf]
      %v4755 = vld [vmem:[%s5 + $0x234] sm:$0xf]
      %v4756 = vld [vmem:[%s5 + $0x238] sm:$0xf]
      %v4757 = vld [vmem:[%s5 + $0x23c] sm:$0xf]
      %v4758 = vld [vmem:[%s6] sm:$0x1]
      %v4760 = vlaneseq
      %v4761 = vshrl.u32 %v4760, 7
      %v4762 = vsub.s32 0, %v4761
      %v4763 = vrot.slane %v4758, %v4762
      %v4909 = vunpack.c.l.b16 %v4614
      %v4910 = vunpack.c.l.b16 %v4615
      %v4911 = vunpack.c.l.b16 %v4616
      %v4912 = vunpack.c.l.b16 %v4617
      %v4913 = vunpack.c.l.b16 %v4618
      %v4914 = vunpack.c.l.b16 %v4619
      %v4915 = vunpack.c.l.b16 %v4620
      %v4916 = vunpack.c.l.b16 %v4621
      %v4917 = vunpack.c.l.b16 %v4622
      %v4918 = vunpack.c.l.b16 %v4623
      %v4919 = vunpack.c.l.b16 %v4624
      %v4920 = vunpack.c.l.b16 %v4625
      %v4921 = vunpack.c.l.b16 %v4626
      %v4922 = vunpack.c.l.b16 %v4627
      %v4923 = vunpack.c.l.b16 %v4628
      %v4924 = vunpack.c.l.b16 %v4629
      %v4925 = vunpack.c.l.b16 %v4630
      %v4926 = vunpack.c.l.b16 %v4631
      %v4927 = vunpack.c.l.b16 %v4632
      %v4928 = vunpack.c.l.b16 %v4633
      %v4929 = vunpack.c.l.b16 %v4634
      %v4930 = vunpack.c.l.b16 %v4635
      %v4931 = vunpack.c.l.b16 %v4636
      %v4932 = vunpack.c.l.b16 %v4637
      %v4933 = vunpack.c.l.b16 %v4638
      %v4934 = vunpack.c.l.b16 %v4639
      %v4935 = vunpack.c.l.b16 %v4640
      %v4936 = vunpack.c.l.b16 %v4641
      %v4937 = vunpack.c.l.b16 %v4642
      %v4938 = vunpack.c.l.b16 %v4643
      %v4939 = vunpack.c.l.b16 %v4644
      %v4940 = vunpack.c.l.b16 %v4645
      %v4941 = vunpack.c.l.b16 %v4646
      %v4942 = vunpack.c.l.b16 %v4647
      %v4943 = vunpack.c.l.b16 %v4648
      %v4944 = vunpack.c.l.b16 %v4649
      %v4945 = vunpack.c.l.b16 %v4650
      %v4946 = vunpack.c.l.b16 %v4651
      %v4947 = vunpack.c.l.b16 %v4652
      %v4948 = vunpack.c.l.b16 %v4653
      %v4949 = vunpack.c.l.b16 %v4654
      %v4950 = vunpack.c.l.b16 %v4655
      %v4951 = vunpack.c.l.b16 %v4656
      %v4952 = vunpack.c.l.b16 %v4657
      %v4953 = vunpack.c.l.b16 %v4658
      %v4954 = vunpack.c.l.b16 %v4659
      %v4955 = vunpack.c.l.b16 %v4660
      %v4956 = vunpack.c.l.b16 %v4661
      %v4957 = vunpack.c.l.b16 %v4662
      %v4958 = vunpack.c.l.b16 %v4663
      %v4959 = vunpack.c.l.b16 %v4664
      %v4960 = vunpack.c.l.b16 %v4665
      %v4961 = vunpack.c.l.b16 %v4666
      %v4962 = vunpack.c.l.b16 %v4667
      %v4963 = vunpack.c.l.b16 %v4668
      %v4964 = vunpack.c.l.b16 %v4669
      %v4965 = vunpack.c.l.b16 %v4670
      %v4966 = vunpack.c.l.b16 %v4671
      %v4967 = vunpack.c.l.b16 %v4672
      %v4968 = vunpack.c.l.b16 %v4673
      %v4969 = vunpack.c.l.b16 %v4674
      %v4970 = vunpack.c.l.b16 %v4675
      %v4971 = vunpack.c.l.b16 %v4676
      %v4972 = vunpack.c.l.b16 %v4677
      %v4973 = vunpack.c.l.b16 %v4678
      %v4974 = vunpack.c.l.b16 %v4679
      %v4975 = vunpack.c.l.b16 %v4680
      %v4976 = vunpack.c.l.b16 %v4681
      %v4977 = vunpack.c.l.b16 %v4682
      %v4978 = vunpack.c.l.b16 %v4683
      %v4979 = vunpack.c.l.b16 %v4684
      %v4980 = vunpack.c.l.b16 %v4685
      %v4981 = vunpack.c.l.b16 %v4686
      %v4982 = vunpack.c.l.b16 %v4687
      %v4983 = vunpack.c.l.b16 %v4688
      %v4984 = vunpack.c.l.b16 %v4689
      %v4985 = vunpack.c.l.b16 %v4690
      %v4986 = vunpack.c.l.b16 %v4691
      %v4987 = vunpack.c.l.b16 %v4692
      %v4988 = vunpack.c.l.b16 %v4693
      %v4989 = vunpack.c.l.b16 %v4694
      %v4990 = vunpack.c.l.b16 %v4695
      %v4991 = vunpack.c.l.b16 %v4696
      %v4992 = vunpack.c.l.b16 %v4697
      %v4993 = vunpack.c.l.b16 %v4698
      %v4994 = vunpack.c.l.b16 %v4699
      %v4995 = vunpack.c.l.b16 %v4700
      %v4996 = vunpack.c.l.b16 %v4701
      %v4997 = vunpack.c.l.b16 %v4702
      %v4998 = vunpack.c.l.b16 %v4703
      %v4999 = vunpack.c.l.b16 %v4704
      %v5000 = vunpack.c.l.b16 %v4705
      %v5001 = vunpack.c.l.b16 %v4706
      %v5002 = vunpack.c.l.b16 %v4707
      %v5003 = vunpack.c.l.b16 %v4708
      %v5004 = vunpack.c.l.b16 %v4709
      %v5005 = vunpack.c.l.b16 %v4710
      %v5006 = vunpack.c.l.b16 %v4711
      %v5007 = vunpack.c.l.b16 %v4712
      %v5008 = vunpack.c.l.b16 %v4713
      %v5009 = vunpack.c.l.b16 %v4714
      %v5010 = vunpack.c.l.b16 %v4715
      %v5011 = vunpack.c.l.b16 %v4716
      %v5012 = vunpack.c.l.b16 %v4717
      %v5013 = vunpack.c.l.b16 %v4718
      %v5014 = vunpack.c.l.b16 %v4719
      %v5015 = vunpack.c.l.b16 %v4720
      %v5016 = vunpack.c.l.b16 %v4721
      %v5017 = vunpack.c.l.b16 %v4722
      %v5018 = vunpack.c.l.b16 %v4723
      %v5019 = vunpack.c.l.b16 %v4724
      %v5020 = vunpack.c.l.b16 %v4725
      %v5021 = vunpack.c.l.b16 %v4726
      %v5022 = vunpack.c.l.b16 %v4727
      %v5023 = vunpack.c.l.b16 %v4728
      %v5024 = vunpack.c.l.b16 %v4729
      %v5025 = vunpack.c.l.b16 %v4730
      %v5026 = vunpack.c.l.b16 %v4731
      %v5027 = vunpack.c.l.b16 %v4732
      %v5028 = vunpack.c.l.b16 %v4733
      %v5029 = vunpack.c.l.b16 %v4734
      %v5030 = vunpack.c.l.b16 %v4735
      %v5031 = vunpack.c.l.b16 %v4736
      %v5032 = vunpack.c.l.b16 %v4737
      %v5033 = vunpack.c.l.b16 %v4738
      %v5034 = vunpack.c.l.b16 %v4739
      %v5035 = vunpack.c.l.b16 %v4740
      %v5036 = vunpack.c.l.b16 %v4741
      %v5037 = vunpack.c.l.b16 %v4742
      %v5038 = vunpack.c.l.b16 %v4743
      %v5039 = vunpack.c.l.b16 %v4744
      %v5040 = vunpack.c.l.b16 %v4745
      %v5041 = vunpack.c.l.b16 %v4746
      %v5042 = vunpack.c.l.b16 %v4747
      %v5043 = vunpack.c.l.b16 %v4748
      %v5044 = vunpack.c.l.b16 %v4749
      %v5045 = vunpack.c.l.b16 %v4750
      %v5046 = vunpack.c.l.b16 %v4751
      %v5047 = vunpack.c.l.b16 %v4752
      %v5048 = vunpack.c.l.b16 %v4753
      %v5049 = vunpack.c.l.b16 %v4754
      %v5050 = vunpack.c.l.b16 %v4755
      %v5051 = vunpack.c.l.b16 %v4756
      %v5052 = vunpack.c.l.b16 %v4757
      %v5053 = vpack.c.b16 %v4910, %v4909
      %v5054 = vpack.c.b16 %v4912, %v4911
      %v5055 = vpack.c.b16 %v4914, %v4913
      %v5056 = vpack.c.b16 %v4916, %v4915
      %v5057 = vpack.c.b16 %v4918, %v4917
      %v5058 = vpack.c.b16 %v4920, %v4919
      %v5059 = vpack.c.b16 %v4922, %v4921
      %v5060 = vpack.c.b16 %v4924, %v4923
      %v5061 = vpack.c.b16 %v4926, %v4925
      %v5062 = vpack.c.b16 %v4928, %v4927
      %v5063 = vpack.c.b16 %v4930, %v4929
      %v5064 = vpack.c.b16 %v4932, %v4931
      %v5065 = vpack.c.b16 %v4934, %v4933
      %v5066 = vpack.c.b16 %v4936, %v4935
      %v5067 = vpack.c.b16 %v4938, %v4937
      %v5068 = vpack.c.b16 %v4940, %v4939
      %v5069 = vpack.c.b16 %v4942, %v4941
      %v5070 = vpack.c.b16 %v4944, %v4943
      %v5071 = vpack.c.b16 %v4946, %v4945
      %v5072 = vpack.c.b16 %v4948, %v4947
      %v5073 = vpack.c.b16 %v4950, %v4949
      %v5074 = vpack.c.b16 %v4952, %v4951
      %v5075 = vpack.c.b16 %v4954, %v4953
      %v5076 = vpack.c.b16 %v4956, %v4955
      %v5077 = vpack.c.b16 %v4958, %v4957
      %v5078 = vpack.c.b16 %v4960, %v4959
      %v5079 = vpack.c.b16 %v4962, %v4961
      %v5080 = vpack.c.b16 %v4964, %v4963
      %v5081 = vpack.c.b16 %v4966, %v4965
      %v5082 = vpack.c.b16 %v4968, %v4967
      %v5083 = vpack.c.b16 %v4970, %v4969
      %v5084 = vpack.c.b16 %v4972, %v4971
      %v5085 = vpack.c.b16 %v4974, %v4973
      %v5086 = vpack.c.b16 %v4976, %v4975
      %v5087 = vpack.c.b16 %v4978, %v4977
      %v5088 = vpack.c.b16 %v4980, %v4979
      %v5089 = vpack.c.b16 %v4982, %v4981
      %v5090 = vpack.c.b16 %v4984, %v4983
      %v5091 = vpack.c.b16 %v4986, %v4985
      %v5092 = vpack.c.b16 %v4988, %v4987
      %v5093 = vpack.c.b16 %v4990, %v4989
      %v5094 = vpack.c.b16 %v4992, %v4991
      %v5095 = vpack.c.b16 %v4994, %v4993
      %v5096 = vpack.c.b16 %v4996, %v4995
      %v5097 = vpack.c.b16 %v4998, %v4997
      %v5098 = vpack.c.b16 %v5000, %v4999
      %v5099 = vpack.c.b16 %v5002, %v5001
      %v5100 = vpack.c.b16 %v5004, %v5003
      %v5101 = vpack.c.b16 %v5006, %v5005
      %v5102 = vpack.c.b16 %v5008, %v5007
      %v5103 = vpack.c.b16 %v5010, %v5009
      %v5104 = vpack.c.b16 %v5012, %v5011
      %v5105 = vpack.c.b16 %v5014, %v5013
      %v5106 = vpack.c.b16 %v5016, %v5015
      %v5107 = vpack.c.b16 %v5018, %v5017
      %v5108 = vpack.c.b16 %v5020, %v5019
      %v5109 = vpack.c.b16 %v5022, %v5021
      %v5110 = vpack.c.b16 %v5024, %v5023
      %v5111 = vpack.c.b16 %v5026, %v5025
      %v5112 = vpack.c.b16 %v5028, %v5027
      %v5113 = vpack.c.b16 %v5030, %v5029
      %v5114 = vpack.c.b16 %v5032, %v5031
      %v5115 = vpack.c.b16 %v5034, %v5033
      %v5116 = vpack.c.b16 %v5036, %v5035
      %v5117 = vpack.c.b16 %v5038, %v5037
      %v5118 = vpack.c.b16 %v5040, %v5039
      %v5119 = vpack.c.b16 %v5042, %v5041
      %v5120 = vpack.c.b16 %v5044, %v5043
      %v5121 = vpack.c.b16 %v5046, %v5045
      %v5122 = vpack.c.b16 %v5048, %v5047
      %v5123 = vpack.c.b16 %v5050, %v5049
      %v5124 = vpack.c.b16 %v5052, %v5051
      %5197 = vmatprep.subr.bf16.mxu0 0
      %5198 = vmatpush1.bf16.msra.mxu0 %v5053
      %5199 = vmatprep.subr.bf16.mxu0 0
      %5200 = vmatpush1.bf16.msra.mxu0 %v5054
      %5201 = vmatprep.subr.bf16.mxu0 0
      %5202 = vmatpush1.bf16.msra.mxu0 %v5055
      %5203 = vmatprep.subr.bf16.mxu0 0
      %5204 = vmatpush1.bf16.msra.mxu0 %v5056
      %5205 = vmatprep.subr.bf16.mxu0 0
      %5206 = vmatpush1.bf16.msra.mxu0 %v5057
      %5207 = vmatprep.subr.bf16.mxu0 0
      %5208 = vmatpush1.bf16.msra.mxu0 %v5058
      %5209 = vmatprep.subr.bf16.mxu0 0
      %5210 = vmatpush1.bf16.msra.mxu0 %v5059
      %5211 = vmatprep.subr.bf16.mxu0 0
      %5212 = vmatpush1.bf16.msra.mxu0 %v5060
      %5213 = vmatprep.subr.bf16.mxu0 0
      %5214 = vmatpush1.bf16.msra.mxu0 %v5061
      %5215 = vmatprep.subr.bf16.mxu0 0
      %5216 = vmatpush1.bf16.msra.mxu0 %v5062
      %5217 = vmatprep.subr.bf16.mxu0 0
      %5218 = vmatpush1.bf16.msra.mxu0 %v5063
      %5219 = vmatprep.subr.bf16.mxu0 0
      %5220 = vmatpush1.bf16.msra.mxu0 %v5064
      %5221 = vmatprep.subr.bf16.mxu0 0
      %5222 = vmatpush1.bf16.msra.mxu0 %v5065
      %5223 = vmatprep.subr.bf16.mxu0 0
      %5224 = vmatpush1.bf16.msra.mxu0 %v5066
      %5225 = vmatprep.subr.bf16.mxu0 0
      %5226 = vmatpush1.bf16.msra.mxu0 %v5067
      %5227 = vmatprep.subr.bf16.mxu0 0
      %5228 = vmatpush1.bf16.msra.mxu0 %v5068
      %5229 = vmatprep.mubr.bf16.mxu0 %v4478
      %5230 = vmatmul.mubr.bf16.gmra.mrb[0].mxu0 %v4462
      %v5231 = vpop.f32.mrb[0].mxu0
      %v5232 = vadd.f32 %v4763, %v5231
      %v5233 = vpop.f32.mrb[0].mxu0
      %v5234 = vpop.f32.mrb[0].mxu0
      %v5235 = vadd.f32 %v4763, %v5234
      %v5236 = vpop.f32.mrb[0].mxu0
      %5237 = vmatprep.mubr.bf16.mxu0 %v4479
      %5238 = vmatmul.mubr.bf16.gmra.mrb[0].mxu0 %v4463
      %v5239 = vpop.f32.mrb[0].mxu0
      %v5240 = vadd.f32 %v4763, %v5239
      %v5241 = vpop.f32.mrb[0].mxu0
      %v5242 = vpop.f32.mrb[0].mxu0
      %v5243 = vadd.f32 %v4763, %v5242
      %v5244 = vpop.f32.mrb[0].mxu0
      %5245 = vmatprep.mubr.bf16.mxu0 %v4480
      %5246 = vmatmul.mubr.bf16.gmra.mrb[0].mxu0 %v4464
      %v5247 = vpop.f32.mrb[0].mxu0
      %v5248 = vadd.f32 %v4763, %v5247
      %v5249 = vpop.f32.mrb[0].mxu0
      %v5250 = vpop.f32.mrb[0].mxu0
      %v5251 = vadd.f32 %v4763, %v5250
      %v5252 = vpop.f32.mrb[0].mxu0
      %5253 = vmatprep.mubr.bf16.mxu0 %v4481
      %5254 = vmatmul.mubr.bf16.gmra.mrb[0].mxu0 %v4465
      %v5255 = vpop.f32.mrb[0].mxu0
      %v5256 = vadd.f32 %v4763, %v5255
      %v5257 = vpop.f32.mrb[0].mxu0
      %v5258 = vpop.f32.mrb[0].mxu0
      %v5259 = vadd.f32 %v4763, %v5258
      %v5260 = vpop.f32.mrb[0].mxu0
      %5261 = vdwg.mxu0
      %5262 = vmatprep.subr.bf16.mxu0 0
      %5263 = vmatpush1.bf16.msra.mxu0 %v5069
      %5264 = vmatprep.subr.bf16.mxu0 0
      %5265 = vmatpush1.bf16.msra.mxu0 %v5070
      %5266 = vmatprep.subr.bf16.mxu0 0
      %5267 = vmatpush1.bf16.msra.mxu0 %v5071
      %5268 = vmatprep.subr.bf16.mxu0 0
      %5269 = vmatpush1.bf16.msra.mxu0 %v5072
      %5270 = vmatprep.subr.bf16.mxu0 0
      %5271 = vmatpush1.bf16.msra.mxu0 %v5073
      %5272 = vmatprep.subr.bf16.mxu0 0
      %5273 = vmatpush1.bf16.msra.mxu0 %v5074
      %5274 = vmatprep.subr.bf16.mxu0 0
      %5275 = vmatpush1.bf16.msra.mxu0 %v5075
      %5276 = vmatprep.subr.bf16.mxu0 0
      %5277 = vmatpush1.bf16.msra.mxu0 %v5076
      %5278 = vmatprep.subr.bf16.mxu0 0
      %5279 = vmatpush1.bf16.msra.mxu0 %v5077
      %5280 = vmatprep.subr.bf16.mxu0 0
      %5281 = vmatpush1.bf16.msra.mxu0 %v5078
      %5282 = vmatprep.subr.bf16.mxu0 0
      %5283 = vmatpush1.bf16.msra.mxu0 %v5079
      %5284 = vmatprep.subr.bf16.mxu0 0
      %5285 = vmatpush1.bf16.msra.mxu0 %v5080
      %5286 = vmatprep.subr.bf16.mxu0 0
      %5287 = vmatpush1.bf16.msra.mxu0 %v5081
      %5288 = vmatprep.subr.bf16.mxu0 0
      %5289 = vmatpush1.bf16.msra.mxu0 %v5082
      %5290 = vmatprep.subr.bf16.mxu0 0
      %5291 = vmatpush1.bf16.msra.mxu0 %v5083
      %5292 = vmatprep.subr.bf16.mxu0 0
      %5293 = vmatpush1.bf16.msra.mxu0 %v5084
      %5294 = vmatprep.mubr.bf16.mxu0 %v4518
      %5295 = vmatmul.mubr.bf16.gmra.mrb[0].mxu0 %v4494
      %v5296 = vpop.f32.mrb[0].mxu0
      %v5297 = vadd.f32 %v5232, %v5296
      %v5298 = vpop.f32.mrb[0].mxu0
      %v5299 = vpop.f32.mrb[0].mxu0
      %v5300 = vadd.f32 %v5235, %v5299
      %v5301 = vpop.f32.mrb[0].mxu0
      %5302 = vmatprep.mubr.bf16.mxu0 %v4519
      %5303 = vmatmul.mubr.bf16.gmra.mrb[0].mxu0 %v4495
      %v5304 = vpop.f32.mrb[0].mxu0
      %v5305 = vadd.f32 %v5240, %v5304
      %v5306 = vpop.f32.mrb[0].mxu0
      %v5307 = vpop.f32.mrb[0].mxu0
      %v5308 = vadd.f32 %v5243, %v5307
      %v5309 = vpop.f32.mrb[0].mxu0
      %5310 = vmatprep.mubr.bf16.mxu0 %v4520
      %5311 = vmatmul.mubr.bf16.gmra.mrb[0].mxu0 %v4496
      %v5312 = vpop.f32.mrb[0].mxu0
      %v5313 = vadd.f32 %v5248, %v5312
      %v5314 = vpop.f32.mrb[0].mxu0
      %v5315 = vpop.f32.mrb[0].mxu0
      %v5316 = vadd.f32 %v5251, %v5315
      %v5317 = vpop.f32.mrb[0].mxu0
      %5318 = vmatprep.mubr.bf16.mxu0 %v4521
      %5319 = vmatmul.mubr.bf16.gmra.mrb[0].mxu0 %v4497
      %v5320 = vpop.f32.mrb[0].mxu0
      %v5321 = vadd.f32 %v5256, %v5320
      %v5322 = vpop.f32.mrb[0].mxu0
      %v5323 = vpop.f32.mrb[0].mxu0
      %v5324 = vadd.f32 %v5259, %v5323
      %v5325 = vpop.f32.mrb[0].mxu0
      %5326 = vdwg.mxu0
      %5327 = vmatprep.subr.bf16.mxu0 0
      %5328 = vmatpush1.bf16.msra.mxu0 %v5085
      %5329 = vmatprep.subr.bf16.mxu0 0
      %5330 = vmatpush1.bf16.msra.mxu0 %v5086
      %5331 = vmatprep.subr.bf16.mxu0 0
      %5332 = vmatpush1.bf16.msra.mxu0 %v5087
      %5333 = vmatprep.subr.bf16.mxu0 0
      %5334 = vmatpush1.bf16.msra.mxu0 %v5088
      %5335 = vmatprep.subr.bf16.mxu0 0
      %5336 = vmatpush1.bf16.msra.mxu0 %v5089
      %5337 = vmatprep.subr.bf16.mxu0 0
      %5338 = vmatpush1.bf16.msra.mxu0 %v5090
      %5339 = vmatprep.subr.bf16.mxu0 0
      %5340 = vmatpush1.bf16.msra.mxu0 %v5091
      %5341 = vmatprep.subr.bf16.mxu0 0
      %5342 = vmatpush1.bf16.msra.mxu0 %v5092
      %5343 = vmatprep.subr.bf16.mxu0 0
      %5344 = vmatpush1.bf16.msra.mxu0 %v5093
      %5345 = vmatprep.subr.bf16.mxu0 0
      %5346 = vmatpush1.bf16.msra.mxu0 %v5094
      %5347 = vmatprep.subr.bf16.mxu0 0
      %5348 = vmatpush1.bf16.msra.mxu0 %v5095
      %5349 = vmatprep.subr.bf16.mxu0 0
      %5350 = vmatpush1.bf16.msra.mxu0 %v5096
      %5351 = vmatprep.subr.bf16.mxu0 0
      %5352 = vmatpush1.bf16.msra.mxu0 %v5097
      %5353 = vmatprep.subr.bf16.mxu0 0
      %5354 = vmatpush1.bf16.msra.mxu0 %v5098
      %5355 = vmatprep.subr.bf16.mxu0 0
      %5356 = vmatpush1.bf16.msra.mxu0 %v5099
      %5357 = vmatprep.subr.bf16.mxu0 0
      %5358 = vmatpush1.bf16.msra.mxu0 %v5100
      %5359 = vmatprep.mubr.bf16.mxu0 %v4550
      %5360 = vmatmul.mubr.bf16.gmra.mrb[0].mxu0 %v4534
      %v5361 = vpop.f32.mrb[0].mxu0
      %v5362 = vadd.f32 %v5297, %v5361
      %v5363 = vpop.f32.mrb[0].mxu0
      %v5364 = vpop.f32.mrb[0].mxu0
      %v5365 = vadd.f32 %v5300, %v5364
      %v5366 = vpop.f32.mrb[0].mxu0
      %5367 = vmatprep.mubr.bf16.mxu0 %v4551
      %5368 = vmatmul.mubr.bf16.gmra.mrb[0].mxu0 %v4535
      %v5369 = vpop.f32.mrb[0].mxu0
      %v5370 = vadd.f32 %v5305, %v5369
      %v5371 = vpop.f32.mrb[0].mxu0
      %v5372 = vpop.f32.mrb[0].mxu0
      %v5373 = vadd.f32 %v5308, %v5372
      %v5374 = vpop.f32.mrb[0].mxu0
      %5375 = vmatprep.mubr.bf16.mxu0 %v4552
      %5376 = vmatmul.mubr.bf16.gmra.mrb[0].mxu0 %v4536
      %v5377 = vpop.f32.mrb[0].mxu0
      %v5378 = vadd.f32 %v5313, %v5377
      %v5379 = vpop.f32.mrb[0].mxu0
      %v5380 = vpop.f32.mrb[0].mxu0
      %v5381 = vadd.f32 %v5316, %v5380
      %v5382 = vpop.f32.mrb[0].mxu0
      %5383 = vmatprep.mubr.bf16.mxu0 %v4553
      %5384 = vmatmul.mubr.bf16.gmra.mrb[0].mxu0 %v4537
      %v5385 = vpop.f32.mrb[0].mxu0
      %v5386 = vadd.f32 %v5321, %v5385
      %v5387 = vpop.f32.mrb[0].mxu0
      %v5388 = vpop.f32.mrb[0].mxu0
      %v5389 = vadd.f32 %v5324, %v5388
      %v5390 = vpop.f32.mrb[0].mxu0
      %5391 = vdwg.mxu0
      %5392 = vmatprep.subr.bf16.mxu0 0
      %5393 = vmatpush1.bf16.msra.mxu0 %v5101
      %5394 = vmatprep.subr.bf16.mxu0 0
      %5395 = vmatpush1.bf16.msra.mxu0 %v5102
      %5396 = vmatprep.subr.bf16.mxu0 0
      %5397 = vmatpush1.bf16.msra.mxu0 %v5103
      %5398 = vmatprep.subr.bf16.mxu0 0
      %5399 = vmatpush1.bf16.msra.mxu0 %v5104
      %5400 = vmatprep.subr.bf16.mxu0 0
      %5401 = vmatpush1.bf16.msra.mxu0 %v5105
      %5402 = vmatprep.subr.bf16.mxu0 0
      %5403 = vmatpush1.bf16.msra.mxu0 %v5106
      %5404 = vmatprep.subr.bf16.mxu0 0
      %5405 = vmatpush1.bf16.msra.mxu0 %v5107
      %5406 = vmatprep.subr.bf16.mxu0 0
      %5407 = vmatpush1.bf16.msra.mxu0 %v5108
      %5408 = vmatprep.subr.bf16.mxu0 0
      %5409 = vmatpush1.bf16.msra.mxu0 %v5109
      %5410 = vmatprep.subr.bf16.mxu0 0
      %5411 = vmatpush1.bf16.msra.mxu0 %v5110
      %5412 = vmatprep.subr.bf16.mxu0 0
      %5413 = vmatpush1.bf16.msra.mxu0 %v5111
      %5414 = vmatprep.subr.bf16.mxu0 0
      %5415 = vmatpush1.bf16.msra.mxu0 %v5112
      %5416 = vmatprep.subr.bf16.mxu0 0
      %5417 = vmatpush1.bf16.msra.mxu0 %v5113
      %5418 = vmatprep.subr.bf16.mxu0 0
      %5419 = vmatpush1.bf16.msra.mxu0 %v5114
      %5420 = vmatprep.subr.bf16.mxu0 0
      %5421 = vmatpush1.bf16.msra.mxu0 %v5115
      %5422 = vmatprep.subr.bf16.mxu0 0
      %5423 = vmatpush1.bf16.msra.mxu0 %v5116
      %5424 = vmatprep.mubr.bf16.mxu0 %v4590
      %5425 = vmatmul.mubr.bf16.gmra.mrb[0].mxu0 %v4574
      %v5426 = vpop.f32.mrb[0].mxu0
      %v5427 = vadd.f32 %v5362, %v5426
      %v5428 = vpop.f32.mrb[0].mxu0
      %v5429 = vpop.f32.mrb[0].mxu0
      %v5430 = vadd.f32 %v5365, %v5429
      %v5431 = vpop.f32.mrb[0].mxu0
      %5432 = vmatprep.mubr.bf16.mxu0 %v4591
      %5433 = vmatmul.mubr.bf16.gmra.mrb[0].mxu0 %v4575
      %v5434 = vpop.f32.mrb[0].mxu0
      %v5435 = vadd.f32 %v5370, %v5434
      %v5436 = vpop.f32.mrb[0].mxu0
      %v5437 = vpop.f32.mrb[0].mxu0
      %v5438 = vadd.f32 %v5373, %v5437
      %v5439 = vpop.f32.mrb[0].mxu0
      %5440 = vmatprep.mubr.bf16.mxu0 %v4592
      %5441 = vmatmul.mubr.bf16.gmra.mrb[0].mxu0 %v4576
      %v5442 = vpop.f32.mrb[0].mxu0
      %v5443 = vadd.f32 %v5378, %v5442
      %v5444 = vpop.f32.mrb[0].mxu0
      %v5445 = vpop.f32.mrb[0].mxu0
      %v5446 = vadd.f32 %v5381, %v5445
      %v5447 = vpop.f32.mrb[0].mxu0
      %5448 = vmatprep.mubr.bf16.mxu0 %v4593
      %5449 = vmatmul.mubr.bf16.gmra.mrb[0].mxu0 %v4577
      %v5450 = vpop.f32.mrb[0].mxu0
      %v5451 = vadd.f32 %v5386, %v5450
      %v5452 = vpop.f32.mrb[0].mxu0
      %v5453 = vpop.f32.mrb[0].mxu0
      %v5454 = vadd.f32 %v5389, %v5453
      %v5455 = vpop.f32.mrb[0].mxu0
      %5456 = vdwg.mxu0
      %5457 = vmatprep.subr.bf16.mxu0 0
      %5458 = vmatpush1.bf16.msra.mxu0 %v5117
      %5459 = vmatprep.subr.bf16.mxu0 0
      %5460 = vmatpush1.bf16.msra.mxu0 %v5118
      %5461 = vmatprep.subr.bf16.mxu0 0
      %5462 = vmatpush1.bf16.msra.mxu0 %v5119
      %5463 = vmatprep.subr.bf16.mxu0 0
      %5464 = vmatpush1.bf16.msra.mxu0 %v5120
      %5465 = vmatprep.subr.bf16.mxu0 0
      %5466 = vmatpush1.bf16.msra.mxu0 %v5121
      %5467 = vmatprep.subr.bf16.mxu0 0
      %5468 = vmatpush1.bf16.msra.mxu0 %v5122
      %5469 = vmatprep.subr.bf16.mxu0 0
      %5470 = vmatpush1.bf16.msra.mxu0 %v5123
      %5471 = vmatprep.subr.bf16.mxu0 0
      %5472 = vmatpush1.bf16.msra.mxu0 %v5124
      %5473 = vmatprep.subr.bf16.mxu0 0
      %5474 = vmatpush1.bf16.msra.mxu0 0
      %5475 = vmatprep.subr.bf16.mxu0 0
      %5476 = vmatpush1.bf16.msra.mxu0 0
      %5477 = vmatprep.subr.bf16.mxu0 0
      %5478 = vmatpush1.bf16.msra.mxu0 0
      %5479 = vmatprep.subr.bf16.mxu0 0
      %5480 = vmatpush1.bf16.msra.mxu0 0
      %5481 = vmatprep.subr.bf16.mxu0 0
      %5482 = vmatpush1.bf16.msra.mxu0 0
      %5483 = vmatprep.subr.bf16.mxu0 0
      %5484 = vmatpush1.bf16.msra.mxu0 0
      %5485 = vmatprep.subr.bf16.mxu0 0
      %5486 = vmatpush1.bf16.msra.mxu0 0
      %5487 = vmatprep.subr.bf16.mxu0 0
      %5488 = vmatpush1.bf16.msra.mxu0 0
      %5489 = vmatprep.mubr.bf16.mxu0 0
      %5490 = vmatmul.mubr.bf16.gmra.mrb[0].mxu0 %v4606
      %v5491 = vpop.f32.mrb[0].mxu0
      %v5492 = vadd.f32 %v5427, %v5491
      %v5493 = vpop.f32.mrb[0].mxu0
      %v5494 = vpop.f32.mrb[0].mxu0
      %v5495 = vadd.f32 %v5430, %v5494
      %v5496 = vpop.f32.mrb[0].mxu0
      %5497 = vmatprep.mubr.bf16.mxu0 0
      %5498 = vmatmul.mubr.bf16.gmra.mrb[0].mxu0 %v4607
      %v5499 = vpop.f32.mrb[0].mxu0
      %v5500 = vadd.f32 %v5435, %v5499
      %v5501 = vpop.f32.mrb[0].mxu0
      %v5502 = vpop.f32.mrb[0].mxu0
      %v5503 = vadd.f32 %v5438, %v5502
      %v5504 = vpop.f32.mrb[0].mxu0
      %5505 = vmatprep.mubr.bf16.mxu0 0
      %5506 = vmatmul.mubr.bf16.gmra.mrb[0].mxu0 %v4608
      %v5507 = vpop.f32.mrb[0].mxu0
      %v5508 = vadd.f32 %v5443, %v5507
      %v5509 = vpop.f32.mrb[0].mxu0
      %v5510 = vpop.f32.mrb[0].mxu0
      %v5511 = vadd.f32 %v5446, %v5510
      %v5512 = vpop.f32.mrb[0].mxu0
      %5513 = vmatprep.mubr.bf16.mxu0 0
      %5514 = vmatmul.mubr.bf16.gmra.mrb[0].mxu0 %v4609
      %v5515 = vpop.f32.mrb[0].mxu0
      %v5516 = vadd.f32 %v5451, %v5515
      %v5517 = vpop.f32.mrb[0].mxu0
      %v5518 = vpop.f32.mrb[0].mxu0
      %v5519 = vadd.f32 %v5454, %v5518
      %v5520 = vpop.f32.mrb[0].mxu0
      %5521 = vdwg.mxu0
      %v5522 = vmax.f32 %v5492, 0.0
      %v5523 = vmax.f32 %v5495, 0.0
      %v5524 = vmax.f32 %v5500, 0.0
      %v5525 = vmax.f32 %v5503, 0.0
      %v5526 = vmax.f32 %v5508, 0.0
      %v5527 = vmax.f32 %v5511, 0.0
      %v5528 = vmax.f32 %v5516, 0.0
      %v5529 = vmax.f32 %v5519, 0.0
      %v5530 = vpack.c.bf16 %v5523, %v5522
      %v5531 = vpack.c.bf16 %v5525, %v5524
      %v5532 = vpack.c.bf16 %v5527, %v5526
      %v5533 = vpack.c.bf16 %v5529, %v5528
      %v5538 = vunpack.c.l.b16 %v5530
      %v5539 = vunpack.c.h.b16 %v5530
      %v5540 = vunpack.c.l.b16 %v5531
      %v5541 = vunpack.c.h.b16 %v5531
      %v5542 = vunpack.c.l.b16 %v5532
      %v5543 = vunpack.c.h.b16 %v5532
      %v5544 = vunpack.c.l.b16 %v5533
      %v5545 = vunpack.c.h.b16 %v5533
      %v5546 = vpack.c.b16 %v5538, %v5538
      %v5547 = vpack.c.b16 %v5539, %v5539
      %v5548 = vpack.c.b16 %v5540, %v5540
      %v5549 = vpack.c.b16 %v5541, %v5541
      %v5550 = vpack.c.b16 %v5542, %v5542
      %v5551 = vpack.c.b16 %v5543, %v5543
      %v5552 = vpack.c.b16 %v5544, %v5544
      %v5553 = vpack.c.b16 %v5545, %v5545
      %v5555 = vshrl.u32 %v5546, 16
      %v5557 = vrot.slane %v5555, 7
      %v5558 = vshll.u32 %v5546, 16
      %v5560 = vor.u32 %v5557, %v5558
      %v5561 = vrot.slane %v5557, 4
      %v5563 = vshrl.u32 %v5547, 16
      %v5565 = vrot.slane %v5563, 7
      %v5566 = vshll.u32 %v5547, 16
      %v5568 = vor.u32 %v5565, %v5566
      %v5569 = vrot.slane %v5565, 4
      %v5571 = vshrl.u32 %v5548, 16
      %v5573 = vrot.slane %v5571, 7
      %v5574 = vshll.u32 %v5548, 16
      %v5576 = vor.u32 %v5573, %v5574
      %v5577 = vrot.slane %v5573, 4
      %v5579 = vshrl.u32 %v5549, 16
      %v5581 = vrot.slane %v5579, 7
      %v5582 = vshll.u32 %v5549, 16
      %v5584 = vor.u32 %v5581, %v5582
      %v5585 = vrot.slane %v5581, 4
      %v5587 = vshrl.u32 %v5550, 16
      %v5589 = vrot.slane %v5587, 7
      %v5590 = vshll.u32 %v5550, 16
      %v5592 = vor.u32 %v5589, %v5590
      %v5593 = vrot.slane %v5589, 4
      %v5595 = vshrl.u32 %v5551, 16
      %v5597 = vrot.slane %v5595, 7
      %v5598 = vshll.u32 %v5551, 16
      %v5600 = vor.u32 %v5597, %v5598
      %v5601 = vrot.slane %v5597, 4
      %v5603 = vshrl.u32 %v5552, 16
      %v5605 = vrot.slane %v5603, 7
      %v5606 = vshll.u32 %v5552, 16
      %v5608 = vor.u32 %v5605, %v5606
      %v5609 = vrot.slane %v5605, 4
      %v5611 = vshrl.u32 %v5553, 16
      %v5613 = vrot.slane %v5611, 7
      %v5614 = vshll.u32 %v5553, 16
      %v5616 = vor.u32 %v5613, %v5614
      %v5617 = vrot.slane %v5613, 4
      %v5634 = vsel %vm1182, %v5560, %v4077
      %5635 = vst [vmem:[%s3841] sm:$0xf] %v5634
      %v5636 = vld [vmem:[%s3841 + $0x4] sm:$0x1]
      %v5637 = vsel %vm928, %v5561, %v5636
      %5638 = vst [vmem:[%s3841 + $0x4] sm:$0x1] %v5637
      %v5639 = vld [vmem:[%s3841 + $0x8] sm:$0xf]
      %v5640 = vsel %vm1182, %v5568, %v5639
      %5641 = vst [vmem:[%s3841 + $0x8] sm:$0xf] %v5640
      %v5642 = vld [vmem:[%s3841 + $0xc] sm:$0x1]
      %v5643 = vsel %vm928, %v5569, %v5642
      %5644 = vst [vmem:[%s3841 + $0xc] sm:$0x1] %v5643
      %v5645 = vld [vmem:[%s3841 + $0x10] sm:$0xf]
      %v5646 = vsel %vm1182, %v5576, %v5645
      %5647 = vst [vmem:[%s3841 + $0x10] sm:$0xf] %v5646
      %v5648 = vld [vmem:[%s3841 + $0x14] sm:$0x1]
      %v5649 = vsel %vm928, %v5577, %v5648
      %5650 = vst [vmem:[%s3841 + $0x14] sm:$0x1] %v5649
      %v5651 = vld [vmem:[%s3841 + $0x18] sm:$0xf]
      %v5652 = vsel %vm1182, %v5584, %v5651
      %5653 = vst [vmem:[%s3841 + $0x18] sm:$0xf] %v5652
      %v5654 = vld [vmem:[%s3841 + $0x1c] sm:$0x1]
      %v5655 = vsel %vm928, %v5585, %v5654
      %5656 = vst [vmem:[%s3841 + $0x1c] sm:$0x1] %v5655
      %v5657 = vld [vmem:[%s3841 + $0x20] sm:$0xf]
      %v5658 = vsel %vm1182, %v5592, %v5657
      %5659 = vst [vmem:[%s3841 + $0x20] sm:$0xf] %v5658
      %v5660 = vld [vmem:[%s3841 + $0x24] sm:$0x1]
      %v5661 = vsel %vm928, %v5593, %v5660
      %5662 = vst [vmem:[%s3841 + $0x24] sm:$0x1] %v5661
      %v5663 = vld [vmem:[%s3841 + $0x28] sm:$0xf]
      %v5664 = vsel %vm1182, %v5600, %v5663
      %5665 = vst [vmem:[%s3841 + $0x28] sm:$0xf] %v5664
      %v5666 = vld [vmem:[%s3841 + $0x2c] sm:$0x1]
      %v5667 = vsel %vm928, %v5601, %v5666
      %5668 = vst [vmem:[%s3841 + $0x2c] sm:$0x1] %v5667
      %v5669 = vld [vmem:[%s3841 + $0x30] sm:$0xf]
      %v5670 = vsel %vm1182, %v5608, %v5669
      %5671 = vst [vmem:[%s3841 + $0x30] sm:$0xf] %v5670
      %v5672 = vld [vmem:[%s3841 + $0x34] sm:$0x1]
      %v5673 = vsel %vm928, %v5609, %v5672
      %5674 = vst [vmem:[%s3841 + $0x34] sm:$0x1] %v5673
      %v5675 = vld [vmem:[%s3841 + $0x38] sm:$0xf]
      %v5676 = vsel %vm1182, %v5616, %v5675
      %5677 = vst [vmem:[%s3841 + $0x38] sm:$0xf] %v5676
      %v5678 = vld [vmem:[%s3841 + $0x3c] sm:$0x1]
      %v5679 = vsel %vm928, %v5617, %v5678
      %5680 = vst [vmem:[%s3841 + $0x3c] sm:$0x1] %v5679
      %v5681 = vld [vmem:[#allocation3] sm:$0xf]
      %v5682 = vld [vmem:[#allocation3 + $0x8] sm:$0xf]
      %v5683 = vld [vmem:[#allocation3 + $0x10] sm:$0xf]
      %v5684 = vld [vmem:[#allocation3 + $0x18] sm:$0xf]
      %v5685 = vld [vmem:[#allocation3 + $0x20] sm:$0xf]
      %v5686 = vld [vmem:[#allocation3 + $0x28] sm:$0xf]
      %v5687 = vld [vmem:[#allocation3 + $0x30] sm:$0xf]
      %v5688 = vld [vmem:[#allocation3 + $0x38] sm:$0xf]
      %v5689 = vld [vmem:[#allocation3 + $0x4] sm:$0x1]
      %v5690 = vld [vmem:[#allocation3 + $0xc] sm:$0x1]
      %v5691 = vld [vmem:[#allocation3 + $0x14] sm:$0x1]
      %v5692 = vld [vmem:[#allocation3 + $0x1c] sm:$0x1]
      %v5693 = vld [vmem:[#allocation3 + $0x24] sm:$0x1]
      %v5694 = vld [vmem:[#allocation3 + $0x2c] sm:$0x1]
      %v5695 = vld [vmem:[#allocation3 + $0x34] sm:$0x1]
      %v5696 = vld [vmem:[#allocation3 + $0x3c] sm:$0x1]
      %v5698 = vshrl.u32 %v5681, 16
      %v5700 = vrot.slane %v5698, 4
      %v5701 = vshll.u32 %v5681, 16
      %v5703 = vrot.slane %v5701, 5
      %v5704 = vor.u32 %v5700, %v5703
      %v5705 = vrot.slane %v5704, 4
      %v5707 = vshll.u32 %v5689, 16
      %v5709 = vrot.slane %v5707, 5
      %v5710 = vsel %vm1409, %v5705, %v5709
      %v5712 = vshrl.u32 %v5682, 16
      %v5714 = vrot.slane %v5712, 4
      %v5715 = vshll.u32 %v5682, 16
      %v5717 = vrot.slane %v5715, 5
      %v5718 = vor.u32 %v5714, %v5717
      %v5719 = vrot.slane %v5718, 4
      %v5721 = vshll.u32 %v5690, 16
      %v5723 = vrot.slane %v5721, 5
      %v5724 = vsel %vm1409, %v5719, %v5723
      %v5726 = vshrl.u32 %v5683, 16
      %v5728 = vrot.slane %v5726, 4
      %v5729 = vshll.u32 %v5683, 16
      %v5731 = vrot.slane %v5729, 5
      %v5732 = vor.u32 %v5728, %v5731
      %v5733 = vrot.slane %v5732, 4
      %v5735 = vshll.u32 %v5691, 16
      %v5737 = vrot.slane %v5735, 5
      %v5738 = vsel %vm1409, %v5733, %v5737
      %v5740 = vshrl.u32 %v5684, 16
      %v5742 = vrot.slane %v5740, 4
      %v5743 = vshll.u32 %v5684, 16
      %v5745 = vrot.slane %v5743, 5
      %v5746 = vor.u32 %v5742, %v5745
      %v5747 = vrot.slane %v5746, 4
      %v5749 = vshll.u32 %v5692, 16
      %v5751 = vrot.slane %v5749, 5
      %v5752 = vsel %vm1409, %v5747, %v5751
      %v5754 = vshrl.u32 %v5685, 16
      %v5756 = vrot.slane %v5754, 4
      %v5757 = vshll.u32 %v5685, 16
      %v5759 = vrot.slane %v5757, 5
      %v5760 = vor.u32 %v5756, %v5759
      %v5761 = vrot.slane %v5760, 4
      %v5763 = vshll.u32 %v5693, 16
      %v5765 = vrot.slane %v5763, 5
      %v5766 = vsel %vm1409, %v5761, %v5765
      %v5768 = vshrl.u32 %v5686, 16
      %v5770 = vrot.slane %v5768, 4
      %v5771 = vshll.u32 %v5686, 16
      %v5773 = vrot.slane %v5771, 5
      %v5774 = vor.u32 %v5770, %v5773
      %v5775 = vrot.slane %v5774, 4
      %v5777 = vshll.u32 %v5694, 16
      %v5779 = vrot.slane %v5777, 5
      %v5780 = vsel %vm1409, %v5775, %v5779
      %v5782 = vshrl.u32 %v5687, 16
      %v5784 = vrot.slane %v5782, 4
      %v5785 = vshll.u32 %v5687, 16
      %v5787 = vrot.slane %v5785, 5
      %v5788 = vor.u32 %v5784, %v5787
      %v5789 = vrot.slane %v5788, 4
      %v5791 = vshll.u32 %v5695, 16
      %v5793 = vrot.slane %v5791, 5
      %v5794 = vsel %vm1409, %v5789, %v5793
      %v5796 = vshrl.u32 %v5688, 16
      %v5798 = vrot.slane %v5796, 4
      %v5799 = vshll.u32 %v5688, 16
      %v5801 = vrot.slane %v5799, 5
      %v5802 = vor.u32 %v5798, %v5801
      %v5803 = vrot.slane %v5802, 4
      %v5805 = vshll.u32 %v5696, 16
      %v5807 = vrot.slane %v5805, 5
      %v5808 = vsel %vm1409, %v5803, %v5807
      %v5809 = vld [vmem:[#allocation3] sm:$0xe]
      %v5810 = vld [vmem:[#allocation3 + $0x8] sm:$0xe]
      %v5811 = vld [vmem:[#allocation3 + $0x10] sm:$0xe]
      %v5812 = vld [vmem:[#allocation3 + $0x18] sm:$0xe]
      %v5813 = vld [vmem:[#allocation3 + $0x20] sm:$0xe]
      %v5814 = vld [vmem:[#allocation3 + $0x28] sm:$0xe]
      %v5815 = vld [vmem:[#allocation3 + $0x30] sm:$0xe]
      %v5816 = vld [vmem:[#allocation3 + $0x38] sm:$0xe]
      %v5833 = vrot.slane %v5809, 5
      %v5834 = vrot.slane %v5833, 4
      %v5835 = vrot.slane %v5689, 5
      %v5836 = vsel %vm4044, %v5834, %v5835
      %v5837 = vrot.slane %v5810, 5
      %v5838 = vrot.slane %v5837, 4
      %v5839 = vrot.slane %v5690, 5
      %v5840 = vsel %vm4044, %v5838, %v5839
      %v5841 = vrot.slane %v5811, 5
      %v5842 = vrot.slane %v5841, 4
      %v5843 = vrot.slane %v5691, 5
      %v5844 = vsel %vm4044, %v5842, %v5843
      %v5845 = vrot.slane %v5812, 5
      %v5846 = vrot.slane %v5845, 4
      %v5847 = vrot.slane %v5692, 5
      %v5848 = vsel %vm4044, %v5846, %v5847
      %v5849 = vrot.slane %v5813, 5
      %v5850 = vrot.slane %v5849, 4
      %v5851 = vrot.slane %v5693, 5
      %v5852 = vsel %vm4044, %v5850, %v5851
      %v5853 = vrot.slane %v5814, 5
      %v5854 = vrot.slane %v5853, 4
      %v5855 = vrot.slane %v5694, 5
      %v5856 = vsel %vm4044, %v5854, %v5855
      %v5857 = vrot.slane %v5815, 5
      %v5858 = vrot.slane %v5857, 4
      %v5859 = vrot.slane %v5695, 5
      %v5860 = vsel %vm4044, %v5858, %v5859
      %v5861 = vrot.slane %v5816, 5
      %v5862 = vrot.slane %v5861, 4
      %v5863 = vrot.slane %v5696, 5
      %v5864 = vsel %vm4044, %v5862, %v5863
      %v5865 = vld [vmem:[%s3841] sm:$0xf]
      %v5866 = vld [vmem:[%s3841 + $0x8] sm:$0xf]
      %v5867 = vld [vmem:[%s3841 + $0x10] sm:$0xf]
      %v5868 = vld [vmem:[%s3841 + $0x18] sm:$0xf]
      %v5869 = vld [vmem:[%s3841 + $0x20] sm:$0xf]
      %v5870 = vld [vmem:[%s3841 + $0x28] sm:$0xf]
      %v5871 = vld [vmem:[%s3841 + $0x30] sm:$0xf]
      %v5872 = vld [vmem:[%s3841 + $0x38] sm:$0xf]
      %v5873 = vld [vmem:[%s3841 + $0x4] sm:$0x1]
      %v5874 = vld [vmem:[%s3841 + $0xc] sm:$0x1]
      %v5875 = vld [vmem:[%s3841 + $0x14] sm:$0x1]
      %v5876 = vld [vmem:[%s3841 + $0x1c] sm:$0x1]
      %v5877 = vld [vmem:[%s3841 + $0x24] sm:$0x1]
      %v5878 = vld [vmem:[%s3841 + $0x2c] sm:$0x1]
      %v5879 = vld [vmem:[%s3841 + $0x34] sm:$0x1]
      %v5880 = vld [vmem:[%s3841 + $0x3c] sm:$0x1]
      %v5882 = vshrl.u32 %v5865, 16
      %v5884 = vrot.slane %v5882, 4
      %v5885 = vshll.u32 %v5865, 16
      %v5887 = vrot.slane %v5885, 5
      %v5888 = vor.u32 %v5884, %v5887
      %v5889 = vrot.slane %v5888, 4
      %v5891 = vshll.u32 %v5873, 16
      %v5893 = vrot.slane %v5891, 5
      %v5894 = vsel %vm1409, %v5889, %v5893
      %v5896 = vshrl.u32 %v5866, 16
      %v5898 = vrot.slane %v5896, 4
      %v5899 = vshll.u32 %v5866, 16
      %v5901 = vrot.slane %v5899, 5
      %v5902 = vor.u32 %v5898, %v5901
      %v5903 = vrot.slane %v5902, 4
      %v5905 = vshll.u32 %v5874, 16
      %v5907 = vrot.slane %v5905, 5
      %v5908 = vsel %vm1409, %v5903, %v5907
      %v5910 = vshrl.u32 %v5867, 16
      %v5912 = vrot.slane %v5910, 4
      %v5913 = vshll.u32 %v5867, 16
      %v5915 = vrot.slane %v5913, 5
      %v5916 = vor.u32 %v5912, %v5915
      %v5917 = vrot.slane %v5916, 4
      %v5919 = vshll.u32 %v5875, 16
      %v5921 = vrot.slane %v5919, 5
      %v5922 = vsel %vm1409, %v5917, %v5921
      %v5924 = vshrl.u32 %v5868, 16
      %v5926 = vrot.slane %v5924, 4
      %v5927 = vshll.u32 %v5868, 16
      %v5929 = vrot.slane %v5927, 5
      %v5930 = vor.u32 %v5926, %v5929
      %v5931 = vrot.slane %v5930, 4
      %v5933 = vshll.u32 %v5876, 16
      %v5935 = vrot.slane %v5933, 5
      %v5936 = vsel %vm1409, %v5931, %v5935
      %v5938 = vshrl.u32 %v5869, 16
      %v5940 = vrot.slane %v5938, 4
      %v5941 = vshll.u32 %v5869, 16
      %v5943 = vrot.slane %v5941, 5
      %v5944 = vor.u32 %v5940, %v5943
      %v5945 = vrot.slane %v5944, 4
      %v5947 = vshll.u32 %v5877, 16
      %v5949 = vrot.slane %v5947, 5
      %v5950 = vsel %vm1409, %v5945, %v5949
      %v5952 = vshrl.u32 %v5870, 16
      %v5954 = vrot.slane %v5952, 4
      %v5955 = vshll.u32 %v5870, 16
      %v5957 = vrot.slane %v5955, 5
      %v5958 = vor.u32 %v5954, %v5957
      %v5959 = vrot.slane %v5958, 4
      %v5961 = vshll.u32 %v5878, 16
      %v5963 = vrot.slane %v5961, 5
      %v5964 = vsel %vm1409, %v5959, %v5963
      %v5966 = vshrl.u32 %v5871, 16
      %v5968 = vrot.slane %v5966, 4
      %v5969 = vshll.u32 %v5871, 16
      %v5971 = vrot.slane %v5969, 5
      %v5972 = vor.u32 %v5968, %v5971
      %v5973 = vrot.slane %v5972, 4
      %v5975 = vshll.u32 %v5879, 16
      %v5977 = vrot.slane %v5975, 5
      %v5978 = vsel %vm1409, %v5973, %v5977
      %v5980 = vshrl.u32 %v5872, 16
      %v5982 = vrot.slane %v5980, 4
      %v5983 = vshll.u32 %v5872, 16
      %v5985 = vrot.slane %v5983, 5
      %v5986 = vor.u32 %v5982, %v5985
      %v5987 = vrot.slane %v5986, 4
      %v5989 = vshll.u32 %v5880, 16
      %v5991 = vrot.slane %v5989, 5
      %v5992 = vsel %vm1409, %v5987, %v5991
      %v5993 = vld [vmem:[%s3841] sm:$0xe]
      %v5994 = vld [vmem:[%s3841 + $0x8] sm:$0xe]
      %v5995 = vld [vmem:[%s3841 + $0x10] sm:$0xe]
      %v5996 = vld [vmem:[%s3841 + $0x18] sm:$0xe]
      %v5997 = vld [vmem:[%s3841 + $0x20] sm:$0xe]
      %v5998 = vld [vmem:[%s3841 + $0x28] sm:$0xe]
      %v5999 = vld [vmem:[%s3841 + $0x30] sm:$0xe]
      %v6000 = vld [vmem:[%s3841 + $0x38] sm:$0xe]
      %v6017 = vrot.slane %v5993, 5
      %v6018 = vrot.slane %v6017, 4
      %v6019 = vrot.slane %v5873, 5
      %v6020 = vsel %vm4044, %v6018, %v6019
      %v6021 = vrot.slane %v5994, 5
      %v6022 = vrot.slane %v6021, 4
      %v6023 = vrot.slane %v5874, 5
      %v6024 = vsel %vm4044, %v6022, %v6023
      %v6025 = vrot.slane %v5995, 5
      %v6026 = vrot.slane %v6025, 4
      %v6027 = vrot.slane %v5875, 5
      %v6028 = vsel %vm4044, %v6026, %v6027
      %v6029 = vrot.slane %v5996, 5
      %v6030 = vrot.slane %v6029, 4
      %v6031 = vrot.slane %v5876, 5
      %v6032 = vsel %vm4044, %v6030, %v6031
      %v6033 = vrot.slane %v5997, 5
      %v6034 = vrot.slane %v6033, 4
      %v6035 = vrot.slane %v5877, 5
      %v6036 = vsel %vm4044, %v6034, %v6035
      %v6037 = vrot.slane %v5998, 5
      %v6038 = vrot.slane %v6037, 4
      %v6039 = vrot.slane %v5878, 5
      %v6040 = vsel %vm4044, %v6038, %v6039
      %v6041 = vrot.slane %v5999, 5
      %v6042 = vrot.slane %v6041, 4
      %v6043 = vrot.slane %v5879, 5
      %v6044 = vsel %vm4044, %v6042, %v6043
      %v6045 = vrot.slane %v6000, 5
      %v6046 = vrot.slane %v6045, 4
      %v6047 = vrot.slane %v5880, 5
      %v6048 = vsel %vm4044, %v6046, %v6047
      %v6049 = vld [vmem:[%s4261] sm:$0xf]
      %v6050 = vld [vmem:[%s4261 + $0x8] sm:$0xf]
      %v6051 = vld [vmem:[%s4261 + $0x10] sm:$0xf]
      %v6052 = vld [vmem:[%s4261 + $0x18] sm:$0xf]
      %v6053 = vld [vmem:[%s4261 + $0x20] sm:$0xf]
      %v6054 = vld [vmem:[%s4261 + $0x28] sm:$0xf]
      %v6055 = vld [vmem:[%s4261 + $0x30] sm:$0xf]
      %v6056 = vld [vmem:[%s4261 + $0x38] sm:$0xf]
      %v6057 = vld [vmem:[%s4261 + $0x4] sm:$0x1]
      %v6058 = vld [vmem:[%s4261 + $0xc] sm:$0x1]
      %v6059 = vld [vmem:[%s4261 + $0x14] sm:$0x1]
      %v6060 = vld [vmem:[%s4261 + $0x1c] sm:$0x1]
      %v6061 = vld [vmem:[%s4261 + $0x24] sm:$0x1]
      %v6062 = vld [vmem:[%s4261 + $0x2c] sm:$0x1]
      %v6063 = vld [vmem:[%s4261 + $0x34] sm:$0x1]
      %v6064 = vld [vmem:[%s4261 + $0x3c] sm:$0x1]
      %v6066 = vshrl.u32 %v6049, 16
      %v6068 = vrot.slane %v6066, 4
      %v6069 = vshll.u32 %v6049, 16
      %v6071 = vrot.slane %v6069, 5
      %v6072 = vor.u32 %v6068, %v6071
      %v6073 = vrot.slane %v6072, 4
      %v6075 = vshll.u32 %v6057, 16
      %v6077 = vrot.slane %v6075, 5
      %v6078 = vsel %vm1409, %v6073, %v6077
      %v6080 = vshrl.u32 %v6050, 16
      %v6082 = vrot.slane %v6080, 4
      %v6083 = vshll.u32 %v6050, 16
      %v6085 = vrot.slane %v6083, 5
      %v6086 = vor.u32 %v6082, %v6085
      %v6087 = vrot.slane %v6086, 4
      %v6089 = vshll.u32 %v6058, 16
      %v6091 = vrot.slane %v6089, 5
      %v6092 = vsel %vm1409, %v6087, %v6091
      %v6094 = vshrl.u32 %v6051, 16
      %v6096 = vrot.slane %v6094, 4
      %v6097 = vshll.u32 %v6051, 16
      %v6099 = vrot.slane %v6097, 5
      %v6100 = vor.u32 %v6096, %v6099
      %v6101 = vrot.slane %v6100, 4
      %v6103 = vshll.u32 %v6059, 16
      %v6105 = vrot.slane %v6103, 5
      %v6106 = vsel %vm1409, %v6101, %v6105
      %v6108 = vshrl.u32 %v6052, 16
      %v6110 = vrot.slane %v6108, 4
      %v6111 = vshll.u32 %v6052, 16
      %v6113 = vrot.slane %v6111, 5
      %v6114 = vor.u32 %v6110, %v6113
      %v6115 = vrot.slane %v6114, 4
      %v6117 = vshll.u32 %v6060, 16
      %v6119 = vrot.slane %v6117, 5
      %v6120 = vsel %vm1409, %v6115, %v6119
      %v6122 = vshrl.u32 %v6053, 16
      %v6124 = vrot.slane %v6122, 4
      %v6125 = vshll.u32 %v6053, 16
      %v6127 = vrot.slane %v6125, 5
      %v6128 = vor.u32 %v6124, %v6127
      %v6129 = vrot.slane %v6128, 4
      %v6131 = vshll.u32 %v6061, 16
      %v6133 = vrot.slane %v6131, 5
      %v6134 = vsel %vm1409, %v6129, %v6133
      %v6136 = vshrl.u32 %v6054, 16
      %v6138 = vrot.slane %v6136, 4
      %v6139 = vshll.u32 %v6054, 16
      %v6141 = vrot.slane %v6139, 5
      %v6142 = vor.u32 %v6138, %v6141
      %v6143 = vrot.slane %v6142, 4
      %v6145 = vshll.u32 %v6062, 16
      %v6147 = vrot.slane %v6145, 5
      %v6148 = vsel %vm1409, %v6143, %v6147
      %v6150 = vshrl.u32 %v6055, 16
      %v6152 = vrot.slane %v6150, 4
      %v6153 = vshll.u32 %v6055, 16
      %v6155 = vrot.slane %v6153, 5
      %v6156 = vor.u32 %v6152, %v6155
      %v6157 = vrot.slane %v6156, 4
      %v6159 = vshll.u32 %v6063, 16
      %v6161 = vrot.slane %v6159, 5
      %v6162 = vsel %vm1409, %v6157, %v6161
      %v6164 = vshrl.u32 %v6056, 16
      %v6166 = vrot.slane %v6164, 4
      %v6167 = vshll.u32 %v6056, 16
      %v6169 = vrot.slane %v6167, 5
      %v6170 = vor.u32 %v6166, %v6169
      %v6171 = vrot.slane %v6170, 4
      %v6173 = vshll.u32 %v6064, 16
      %v6175 = vrot.slane %v6173, 5
      %v6176 = vsel %vm1409, %v6171, %v6175
      %v6177 = vld [vmem:[%s4261] sm:$0xe]
      %v6178 = vld [vmem:[%s4261 + $0x8] sm:$0xe]
      %v6179 = vld [vmem:[%s4261 + $0x10] sm:$0xe]
      %v6180 = vld [vmem:[%s4261 + $0x18] sm:$0xe]
      %v6181 = vld [vmem:[%s4261 + $0x20] sm:$0xe]
      %v6182 = vld [vmem:[%s4261 + $0x28] sm:$0xe]
      %v6183 = vld [vmem:[%s4261 + $0x30] sm:$0xe]
      %v6184 = vld [vmem:[%s4261 + $0x38] sm:$0xe]
      %v6201 = vrot.slane %v6177, 5
      %v6202 = vrot.slane %v6201, 4
      %v6203 = vrot.slane %v6057, 5
      %v6204 = vsel %vm4044, %v6202, %v6203
      %v6205 = vrot.slane %v6178, 5
      %v6206 = vrot.slane %v6205, 4
      %v6207 = vrot.slane %v6058, 5
      %v6208 = vsel %vm4044, %v6206, %v6207
      %v6209 = vrot.slane %v6179, 5
      %v6210 = vrot.slane %v6209, 4
      %v6211 = vrot.slane %v6059, 5
      %v6212 = vsel %vm4044, %v6210, %v6211
      %v6213 = vrot.slane %v6180, 5
      %v6214 = vrot.slane %v6213, 4
      %v6215 = vrot.slane %v6060, 5
      %v6216 = vsel %vm4044, %v6214, %v6215
      %v6217 = vrot.slane %v6181, 5
      %v6218 = vrot.slane %v6217, 4
      %v6219 = vrot.slane %v6061, 5
      %v6220 = vsel %vm4044, %v6218, %v6219
      %v6221 = vrot.slane %v6182, 5
      %v6222 = vrot.slane %v6221, 4
      %v6223 = vrot.slane %v6062, 5
      %v6224 = vsel %vm4044, %v6222, %v6223
      %v6225 = vrot.slane %v6183, 5
      %v6226 = vrot.slane %v6225, 4
      %v6227 = vrot.slane %v6063, 5
      %v6228 = vsel %vm4044, %v6226, %v6227
      %v6229 = vrot.slane %v6184, 5
      %v6230 = vrot.slane %v6229, 4
      %v6231 = vrot.slane %v6064, 5
      %v6232 = vsel %vm4044, %v6230, %v6231
      %v6241 = vunpack.c.l.b16 %v5681
      %v6242 = vunpack.c.l.b16 %v5682
      %v6243 = vunpack.c.l.b16 %v5683
      %v6244 = vunpack.c.l.b16 %v5684
      %v6245 = vunpack.c.l.b16 %v5685
      %v6246 = vunpack.c.l.b16 %v5686
      %v6247 = vunpack.c.l.b16 %v5687
      %v6248 = vunpack.c.l.b16 %v5688
      %v6249 = vpack.c.b16 %v6242, %v6241
      %v6250 = vpack.c.b16 %v6244, %v6243
      %v6251 = vpack.c.b16 %v6246, %v6245
      %v6252 = vpack.c.b16 %v6248, %v6247
      %v6257 = vunpack.c.l.b16 %v5710
      %v6258 = vunpack.c.l.b16 %v5724
      %v6259 = vunpack.c.l.b16 %v5738
      %v6260 = vunpack.c.l.b16 %v5752
      %v6261 = vunpack.c.l.b16 %v5766
      %v6262 = vunpack.c.l.b16 %v5780
      %v6263 = vunpack.c.l.b16 %v5794
      %v6264 = vunpack.c.l.b16 %v5808
      %v6265 = vpack.c.b16 %v6258, %v6257
      %v6266 = vpack.c.b16 %v6260, %v6259
      %v6267 = vpack.c.b16 %v6262, %v6261
      %v6268 = vpack.c.b16 %v6264, %v6263
      %v6273 = vunpack.c.l.b16 %v5836
      %v6274 = vunpack.c.l.b16 %v5840
      %v6275 = vunpack.c.l.b16 %v5844
      %v6276 = vunpack.c.l.b16 %v5848
      %v6277 = vunpack.c.l.b16 %v5852
      %v6278 = vunpack.c.l.b16 %v5856
      %v6279 = vunpack.c.l.b16 %v5860
      %v6280 = vunpack.c.l.b16 %v5864
      %v6281 = vpack.c.b16 %v6274, %v6273
      %v6282 = vpack.c.b16 %v6276, %v6275
      %v6283 = vpack.c.b16 %v6278, %v6277
      %v6284 = vpack.c.b16 %v6280, %v6279
      %v6297 = vunpack.c.l.b16 %v5865
      %v6298 = vunpack.c.l.b16 %v5866
      %v6299 = vunpack.c.l.b16 %v5867
      %v6300 = vunpack.c.l.b16 %v5868
      %v6301 = vunpack.c.l.b16 %v5869
      %v6302 = vunpack.c.l.b16 %v5870
      %v6303 = vunpack.c.l.b16 %v5871
      %v6304 = vunpack.c.l.b16 %v5872
      %v6305 = vpack.c.b16 %v6298, %v6297
      %v6306 = vpack.c.b16 %v6300, %v6299
      %v6307 = vpack.c.b16 %v6302, %v6301
      %v6308 = vpack.c.b16 %v6304, %v6303
      %v6313 = vunpack.c.l.b16 %v5894
      %v6314 = vunpack.c.l.b16 %v5908
      %v6315 = vunpack.c.l.b16 %v5922
      %v6316 = vunpack.c.l.b16 %v5936
      %v6317 = vunpack.c.l.b16 %v5950
      %v6318 = vunpack.c.l.b16 %v5964
      %v6319 = vunpack.c.l.b16 %v5978
      %v6320 = vunpack.c.l.b16 %v5992
      %v6321 = vpack.c.b16 %v6314, %v6313
      %v6322 = vpack.c.b16 %v6316, %v6315
      %v6323 = vpack.c.b16 %v6318, %v6317
      %v6324 = vpack.c.b16 %v6320, %v6319
      %v6329 = vunpack.c.l.b16 %v6020
      %v6330 = vunpack.c.l.b16 %v6024
      %v6331 = vunpack.c.l.b16 %v6028
      %v6332 = vunpack.c.l.b16 %v6032
      %v6333 = vunpack.c.l.b16 %v6036
      %v6334 = vunpack.c.l.b16 %v6040
      %v6335 = vunpack.c.l.b16 %v6044
      %v6336 = vunpack.c.l.b16 %v6048
      %v6337 = vpack.c.b16 %v6330, %v6329
      %v6338 = vpack.c.b16 %v6332, %v6331
      %v6339 = vpack.c.b16 %v6334, %v6333
      %v6340 = vpack.c.b16 %v6336, %v6335
      %v6353 = vunpack.c.l.b16 %v6049
      %v6354 = vunpack.c.l.b16 %v6050
      %v6355 = vunpack.c.l.b16 %v6051
      %v6356 = vunpack.c.l.b16 %v6052
      %v6357 = vunpack.c.l.b16 %v6053
      %v6358 = vunpack.c.l.b16 %v6054
      %v6359 = vunpack.c.l.b16 %v6055
      %v6360 = vunpack.c.l.b16 %v6056
      %v6361 = vpack.c.b16 %v6354, %v6353
      %v6362 = vpack.c.b16 %v6356, %v6355
      %v6363 = vpack.c.b16 %v6358, %v6357
      %v6364 = vpack.c.b16 %v6360, %v6359
      %v6369 = vunpack.c.l.b16 %v6078
      %v6370 = vunpack.c.l.b16 %v6092
      %v6371 = vunpack.c.l.b16 %v6106
      %v6372 = vunpack.c.l.b16 %v6120
      %v6373 = vunpack.c.l.b16 %v6134
      %v6374 = vunpack.c.l.b16 %v6148
      %v6375 = vunpack.c.l.b16 %v6162
      %v6376 = vunpack.c.l.b16 %v6176
      %v6377 = vpack.c.b16 %v6370, %v6369
      %v6378 = vpack.c.b16 %v6372, %v6371
      %v6379 = vpack.c.b16 %v6374, %v6373
      %v6380 = vpack.c.b16 %v6376, %v6375
      %v6385 = vunpack.c.l.b16 %v6204
      %v6386 = vunpack.c.l.b16 %v6208
      %v6387 = vunpack.c.l.b16 %v6212
      %v6388 = vunpack.c.l.b16 %v6216
      %v6389 = vunpack.c.l.b16 %v6220
      %v6390 = vunpack.c.l.b16 %v6224
      %v6391 = vunpack.c.l.b16 %v6228
      %v6392 = vunpack.c.l.b16 %v6232
      %v6393 = vpack.c.b16 %v6386, %v6385
      %v6394 = vpack.c.b16 %v6388, %v6387
      %v6395 = vpack.c.b16 %v6390, %v6389
      %v6396 = vpack.c.b16 %v6392, %v6391
      %v6401 = vld [vmem:[%s7] sm:$0xf]
      %v6402 = vld [vmem:[%s7 + $0x4] sm:$0xf]
      %v6403 = vld [vmem:[%s7 + $0x8] sm:$0xf]
      %v6404 = vld [vmem:[%s7 + $0xc] sm:$0xf]
      %v6405 = vld [vmem:[%s7 + $0x10] sm:$0xf]
      %v6406 = vld [vmem:[%s7 + $0x14] sm:$0xf]
      %v6407 = vld [vmem:[%s7 + $0x18] sm:$0xf]
      %v6408 = vld [vmem:[%s7 + $0x1c] sm:$0xf]
      %v6409 = vld [vmem:[%s7 + $0x20] sm:$0xf]
      %v6410 = vld [vmem:[%s7 + $0x24] sm:$0xf]
      %v6411 = vld [vmem:[%s7 + $0x28] sm:$0xf]
      %v6412 = vld [vmem:[%s7 + $0x2c] sm:$0xf]
      %v6413 = vld [vmem:[%s7 + $0x30] sm:$0xf]
      %v6414 = vld [vmem:[%s7 + $0x34] sm:$0xf]
      %v6415 = vld [vmem:[%s7 + $0x38] sm:$0xf]
      %v6416 = vld [vmem:[%s7 + $0x3c] sm:$0xf]
      %v6417 = vld [vmem:[%s7 + $0x40] sm:$0xf]
      %v6418 = vld [vmem:[%s7 + $0x44] sm:$0xf]
      %v6419 = vld [vmem:[%s7 + $0x48] sm:$0xf]
      %v6420 = vld [vmem:[%s7 + $0x4c] sm:$0xf]
      %v6421 = vld [vmem:[%s7 + $0x50] sm:$0xf]
      %v6422 = vld [vmem:[%s7 + $0x54] sm:$0xf]
      %v6423 = vld [vmem:[%s7 + $0x58] sm:$0xf]
      %v6424 = vld [vmem:[%s7 + $0x5c] sm:$0xf]
      %v6425 = vld [vmem:[%s7 + $0x60] sm:$0xf]
      %v6426 = vld [vmem:[%s7 + $0x64] sm:$0xf]
      %v6427 = vld [vmem:[%s7 + $0x68] sm:$0xf]
      %v6428 = vld [vmem:[%s7 + $0x6c] sm:$0xf]
      %v6429 = vld [vmem:[%s7 + $0x70] sm:$0xf]
      %v6430 = vld [vmem:[%s7 + $0x74] sm:$0xf]
      %v6431 = vld [vmem:[%s7 + $0x78] sm:$0xf]
      %v6432 = vld [vmem:[%s7 + $0x7c] sm:$0xf]
      %v6433 = vld [vmem:[%s7 + $0x80] sm:$0xf]
      %v6434 = vld [vmem:[%s7 + $0x84] sm:$0xf]
      %v6435 = vld [vmem:[%s7 + $0x88] sm:$0xf]
      %v6436 = vld [vmem:[%s7 + $0x8c] sm:$0xf]
      %v6437 = vld [vmem:[%s7 + $0x90] sm:$0xf]
      %v6438 = vld [vmem:[%s7 + $0x94] sm:$0xf]
      %v6439 = vld [vmem:[%s7 + $0x98] sm:$0xf]
      %v6440 = vld [vmem:[%s7 + $0x9c] sm:$0xf]
      %v6441 = vld [vmem:[%s7 + $0xa0] sm:$0xf]
      %v6442 = vld [vmem:[%s7 + $0xa4] sm:$0xf]
      %v6443 = vld [vmem:[%s7 + $0xa8] sm:$0xf]
      %v6444 = vld [vmem:[%s7 + $0xac] sm:$0xf]
      %v6445 = vld [vmem:[%s7 + $0xb0] sm:$0xf]
      %v6446 = vld [vmem:[%s7 + $0xb4] sm:$0xf]
      %v6447 = vld [vmem:[%s7 + $0xb8] sm:$0xf]
      %v6448 = vld [vmem:[%s7 + $0xbc] sm:$0xf]
      %v6449 = vld [vmem:[%s7 + $0xc0] sm:$0xf]
      %v6450 = vld [vmem:[%s7 + $0xc4] sm:$0xf]
      %v6451 = vld [vmem:[%s7 + $0xc8] sm:$0xf]
      %v6452 = vld [vmem:[%s7 + $0xcc] sm:$0xf]
      %v6453 = vld [vmem:[%s7 + $0xd0] sm:$0xf]
      %v6454 = vld [vmem:[%s7 + $0xd4] sm:$0xf]
      %v6455 = vld [vmem:[%s7 + $0xd8] sm:$0xf]
      %v6456 = vld [vmem:[%s7 + $0xdc] sm:$0xf]
      %v6457 = vld [vmem:[%s7 + $0xe0] sm:$0xf]
      %v6458 = vld [vmem:[%s7 + $0xe4] sm:$0xf]
      %v6459 = vld [vmem:[%s7 + $0xe8] sm:$0xf]
      %v6460 = vld [vmem:[%s7 + $0xec] sm:$0xf]
      %v6461 = vld [vmem:[%s7 + $0xf0] sm:$0xf]
      %v6462 = vld [vmem:[%s7 + $0xf4] sm:$0xf]
      %v6463 = vld [vmem:[%s7 + $0xf8] sm:$0xf]
      %v6464 = vld [vmem:[%s7 + $0xfc] sm:$0xf]
      %v6465 = vld [vmem:[%s7 + $0x100] sm:$0xf]
      %v6466 = vld [vmem:[%s7 + $0x104] sm:$0xf]
      %v6467 = vld [vmem:[%s7 + $0x108] sm:$0xf]
      %v6468 = vld [vmem:[%s7 + $0x10c] sm:$0xf]
      %v6469 = vld [vmem:[%s7 + $0x110] sm:$0xf]
      %v6470 = vld [vmem:[%s7 + $0x114] sm:$0xf]
      %v6471 = vld [vmem:[%s7 + $0x118] sm:$0xf]
      %v6472 = vld [vmem:[%s7 + $0x11c] sm:$0xf]
      %v6473 = vld [vmem:[%s7 + $0x120] sm:$0xf]
      %v6474 = vld [vmem:[%s7 + $0x124] sm:$0xf]
      %v6475 = vld [vmem:[%s7 + $0x128] sm:$0xf]
      %v6476 = vld [vmem:[%s7 + $0x12c] sm:$0xf]
      %v6477 = vld [vmem:[%s7 + $0x130] sm:$0xf]
      %v6478 = vld [vmem:[%s7 + $0x134] sm:$0xf]
      %v6479 = vld [vmem:[%s7 + $0x138] sm:$0xf]
      %v6480 = vld [vmem:[%s7 + $0x13c] sm:$0xf]
      %v6481 = vld [vmem:[%s7 + $0x140] sm:$0xf]
      %v6482 = vld [vmem:[%s7 + $0x144] sm:$0xf]
      %v6483 = vld [vmem:[%s7 + $0x148] sm:$0xf]
      %v6484 = vld [vmem:[%s7 + $0x14c] sm:$0xf]
      %v6485 = vld [vmem:[%s7 + $0x150] sm:$0xf]
      %v6486 = vld [vmem:[%s7 + $0x154] sm:$0xf]
      %v6487 = vld [vmem:[%s7 + $0x158] sm:$0xf]
      %v6488 = vld [vmem:[%s7 + $0x15c] sm:$0xf]
      %v6489 = vld [vmem:[%s7 + $0x160] sm:$0xf]
      %v6490 = vld [vmem:[%s7 + $0x164] sm:$0xf]
      %v6491 = vld [vmem:[%s7 + $0x168] sm:$0xf]
      %v6492 = vld [vmem:[%s7 + $0x16c] sm:$0xf]
      %v6493 = vld [vmem:[%s7 + $0x170] sm:$0xf]
      %v6494 = vld [vmem:[%s7 + $0x174] sm:$0xf]
      %v6495 = vld [vmem:[%s7 + $0x178] sm:$0xf]
      %v6496 = vld [vmem:[%s7 + $0x17c] sm:$0xf]
      %v6497 = vld [vmem:[%s7 + $0x180] sm:$0xf]
      %v6498 = vld [vmem:[%s7 + $0x184] sm:$0xf]
      %v6499 = vld [vmem:[%s7 + $0x188] sm:$0xf]
      %v6500 = vld [vmem:[%s7 + $0x18c] sm:$0xf]
      %v6501 = vld [vmem:[%s7 + $0x190] sm:$0xf]
      %v6502 = vld [vmem:[%s7 + $0x194] sm:$0xf]
      %v6503 = vld [vmem:[%s7 + $0x198] sm:$0xf]
      %v6504 = vld [vmem:[%s7 + $0x19c] sm:$0xf]
      %v6505 = vld [vmem:[%s7 + $0x1a0] sm:$0xf]
      %v6506 = vld [vmem:[%s7 + $0x1a4] sm:$0xf]
      %v6507 = vld [vmem:[%s7 + $0x1a8] sm:$0xf]
      %v6508 = vld [vmem:[%s7 + $0x1ac] sm:$0xf]
      %v6509 = vld [vmem:[%s7 + $0x1b0] sm:$0xf]
      %v6510 = vld [vmem:[%s7 + $0x1b4] sm:$0xf]
      %v6511 = vld [vmem:[%s7 + $0x1b8] sm:$0xf]
      %v6512 = vld [vmem:[%s7 + $0x1bc] sm:$0xf]
      %v6513 = vld [vmem:[%s7 + $0x1c0] sm:$0xf]
      %v6514 = vld [vmem:[%s7 + $0x1c4] sm:$0xf]
      %v6515 = vld [vmem:[%s7 + $0x1c8] sm:$0xf]
      %v6516 = vld [vmem:[%s7 + $0x1cc] sm:$0xf]
      %v6517 = vld [vmem:[%s7 + $0x1d0] sm:$0xf]
      %v6518 = vld [vmem:[%s7 + $0x1d4] sm:$0xf]
      %v6519 = vld [vmem:[%s7 + $0x1d8] sm:$0xf]
      %v6520 = vld [vmem:[%s7 + $0x1dc] sm:$0xf]
      %v6521 = vld [vmem:[%s7 + $0x1e0] sm:$0xf]
      %v6522 = vld [vmem:[%s7 + $0x1e4] sm:$0xf]
      %v6523 = vld [vmem:[%s7 + $0x1e8] sm:$0xf]
      %v6524 = vld [vmem:[%s7 + $0x1ec] sm:$0xf]
      %v6525 = vld [vmem:[%s7 + $0x1f0] sm:$0xf]
      %v6526 = vld [vmem:[%s7 + $0x1f4] sm:$0xf]
      %v6527 = vld [vmem:[%s7 + $0x1f8] sm:$0xf]
      %v6528 = vld [vmem:[%s7 + $0x1fc] sm:$0xf]
      %v6529 = vld [vmem:[%s7 + $0x200] sm:$0xf]
      %v6530 = vld [vmem:[%s7 + $0x204] sm:$0xf]
      %v6531 = vld [vmem:[%s7 + $0x208] sm:$0xf]
      %v6532 = vld [vmem:[%s7 + $0x20c] sm:$0xf]
      %v6533 = vld [vmem:[%s7 + $0x210] sm:$0xf]
      %v6534 = vld [vmem:[%s7 + $0x214] sm:$0xf]
      %v6535 = vld [vmem:[%s7 + $0x218] sm:$0xf]
      %v6536 = vld [vmem:[%s7 + $0x21c] sm:$0xf]
      %v6537 = vld [vmem:[%s7 + $0x220] sm:$0xf]
      %v6538 = vld [vmem:[%s7 + $0x224] sm:$0xf]
      %v6539 = vld [vmem:[%s7 + $0x228] sm:$0xf]
      %v6540 = vld [vmem:[%s7 + $0x22c] sm:$0xf]
      %v6541 = vld [vmem:[%s7 + $0x230] sm:$0xf]
      %v6542 = vld [vmem:[%s7 + $0x234] sm:$0xf]
      %v6543 = vld [vmem:[%s7 + $0x238] sm:$0xf]
      %v6544 = vld [vmem:[%s7 + $0x23c] sm:$0xf]
      %v6545 = vld [vmem:[%s8] sm:$0x1]
      %v6547 = vlaneseq
      %v6548 = vshrl.u32 %v6547, 7
      %v6549 = vsub.s32 0, %v6548
      %v6550 = vrot.slane %v6545, %v6549
      %v6696 = vunpack.c.l.b16 %v6401
      %v6697 = vunpack.c.l.b16 %v6402
      %v6698 = vunpack.c.l.b16 %v6403
      %v6699 = vunpack.c.l.b16 %v6404
      %v6700 = vunpack.c.l.b16 %v6405
      %v6701 = vunpack.c.l.b16 %v6406
      %v6702 = vunpack.c.l.b16 %v6407
      %v6703 = vunpack.c.l.b16 %v6408
      %v6704 = vunpack.c.l.b16 %v6409
      %v6705 = vunpack.c.l.b16 %v6410
      %v6706 = vunpack.c.l.b16 %v6411
      %v6707 = vunpack.c.l.b16 %v6412
      %v6708 = vunpack.c.l.b16 %v6413
      %v6709 = vunpack.c.l.b16 %v6414
      %v6710 = vunpack.c.l.b16 %v6415
      %v6711 = vunpack.c.l.b16 %v6416
      %v6712 = vunpack.c.l.b16 %v6417
      %v6713 = vunpack.c.l.b16 %v6418
      %v6714 = vunpack.c.l.b16 %v6419
      %v6715 = vunpack.c.l.b16 %v6420
      %v6716 = vunpack.c.l.b16 %v6421
      %v6717 = vunpack.c.l.b16 %v6422
      %v6718 = vunpack.c.l.b16 %v6423
      %v6719 = vunpack.c.l.b16 %v6424
      %v6720 = vunpack.c.l.b16 %v6425
      %v6721 = vunpack.c.l.b16 %v6426
      %v6722 = vunpack.c.l.b16 %v6427
      %v6723 = vunpack.c.l.b16 %v6428
      %v6724 = vunpack.c.l.b16 %v6429
      %v6725 = vunpack.c.l.b16 %v6430
      %v6726 = vunpack.c.l.b16 %v6431
      %v6727 = vunpack.c.l.b16 %v6432
      %v6728 = vunpack.c.l.b16 %v6433
      %v6729 = vunpack.c.l.b16 %v6434
      %v6730 = vunpack.c.l.b16 %v6435
      %v6731 = vunpack.c.l.b16 %v6436
      %v6732 = vunpack.c.l.b16 %v6437
      %v6733 = vunpack.c.l.b16 %v6438
      %v6734 = vunpack.c.l.b16 %v6439
      %v6735 = vunpack.c.l.b16 %v6440
      %v6736 = vunpack.c.l.b16 %v6441
      %v6737 = vunpack.c.l.b16 %v6442
      %v6738 = vunpack.c.l.b16 %v6443
      %v6739 = vunpack.c.l.b16 %v6444
      %v6740 = vunpack.c.l.b16 %v6445
      %v6741 = vunpack.c.l.b16 %v6446
      %v6742 = vunpack.c.l.b16 %v6447
      %v6743 = vunpack.c.l.b16 %v6448
      %v6744 = vunpack.c.l.b16 %v6449
      %v6745 = vunpack.c.l.b16 %v6450
      %v6746 = vunpack.c.l.b16 %v6451
      %v6747 = vunpack.c.l.b16 %v6452
      %v6748 = vunpack.c.l.b16 %v6453
      %v6749 = vunpack.c.l.b16 %v6454
      %v6750 = vunpack.c.l.b16 %v6455
      %v6751 = vunpack.c.l.b16 %v6456
      %v6752 = vunpack.c.l.b16 %v6457
      %v6753 = vunpack.c.l.b16 %v6458
      %v6754 = vunpack.c.l.b16 %v6459
      %v6755 = vunpack.c.l.b16 %v6460
      %v6756 = vunpack.c.l.b16 %v6461
      %v6757 = vunpack.c.l.b16 %v6462
      %v6758 = vunpack.c.l.b16 %v6463
      %v6759 = vunpack.c.l.b16 %v6464
      %v6760 = vunpack.c.l.b16 %v6465
      %v6761 = vunpack.c.l.b16 %v6466
      %v6762 = vunpack.c.l.b16 %v6467
      %v6763 = vunpack.c.l.b16 %v6468
      %v6764 = vunpack.c.l.b16 %v6469
      %v6765 = vunpack.c.l.b16 %v6470
      %v6766 = vunpack.c.l.b16 %v6471
      %v6767 = vunpack.c.l.b16 %v6472
      %v6768 = vunpack.c.l.b16 %v6473
      %v6769 = vunpack.c.l.b16 %v6474
      %v6770 = vunpack.c.l.b16 %v6475
      %v6771 = vunpack.c.l.b16 %v6476
      %v6772 = vunpack.c.l.b16 %v6477
      %v6773 = vunpack.c.l.b16 %v6478
      %v6774 = vunpack.c.l.b16 %v6479
      %v6775 = vunpack.c.l.b16 %v6480
      %v6776 = vunpack.c.l.b16 %v6481
      %v6777 = vunpack.c.l.b16 %v6482
      %v6778 = vunpack.c.l.b16 %v6483
      %v6779 = vunpack.c.l.b16 %v6484
      %v6780 = vunpack.c.l.b16 %v6485
      %v6781 = vunpack.c.l.b16 %v6486
      %v6782 = vunpack.c.l.b16 %v6487
      %v6783 = vunpack.c.l.b16 %v6488
      %v6784 = vunpack.c.l.b16 %v6489
      %v6785 = vunpack.c.l.b16 %v6490
      %v6786 = vunpack.c.l.b16 %v6491
      %v6787 = vunpack.c.l.b16 %v6492
      %v6788 = vunpack.c.l.b16 %v6493
      %v6789 = vunpack.c.l.b16 %v6494
      %v6790 = vunpack.c.l.b16 %v6495
      %v6791 = vunpack.c.l.b16 %v6496
      %v6792 = vunpack.c.l.b16 %v6497
      %v6793 = vunpack.c.l.b16 %v6498
      %v6794 = vunpack.c.l.b16 %v6499
      %v6795 = vunpack.c.l.b16 %v6500
      %v6796 = vunpack.c.l.b16 %v6501
      %v6797 = vunpack.c.l.b16 %v6502
      %v6798 = vunpack.c.l.b16 %v6503
      %v6799 = vunpack.c.l.b16 %v6504
      %v6800 = vunpack.c.l.b16 %v6505
      %v6801 = vunpack.c.l.b16 %v6506
      %v6802 = vunpack.c.l.b16 %v6507
      %v6803 = vunpack.c.l.b16 %v6508
      %v6804 = vunpack.c.l.b16 %v6509
      %v6805 = vunpack.c.l.b16 %v6510
      %v6806 = vunpack.c.l.b16 %v6511
      %v6807 = vunpack.c.l.b16 %v6512
      %v6808 = vunpack.c.l.b16 %v6513
      %v6809 = vunpack.c.l.b16 %v6514
      %v6810 = vunpack.c.l.b16 %v6515
      %v6811 = vunpack.c.l.b16 %v6516
      %v6812 = vunpack.c.l.b16 %v6517
      %v6813 = vunpack.c.l.b16 %v6518
      %v6814 = vunpack.c.l.b16 %v6519
      %v6815 = vunpack.c.l.b16 %v6520
      %v6816 = vunpack.c.l.b16 %v6521
      %v6817 = vunpack.c.l.b16 %v6522
      %v6818 = vunpack.c.l.b16 %v6523
      %v6819 = vunpack.c.l.b16 %v6524
      %v6820 = vunpack.c.l.b16 %v6525
      %v6821 = vunpack.c.l.b16 %v6526
      %v6822 = vunpack.c.l.b16 %v6527
      %v6823 = vunpack.c.l.b16 %v6528
      %v6824 = vunpack.c.l.b16 %v6529
      %v6825 = vunpack.c.l.b16 %v6530
      %v6826 = vunpack.c.l.b16 %v6531
      %v6827 = vunpack.c.l.b16 %v6532
      %v6828 = vunpack.c.l.b16 %v6533
      %v6829 = vunpack.c.l.b16 %v6534
      %v6830 = vunpack.c.l.b16 %v6535
      %v6831 = vunpack.c.l.b16 %v6536
      %v6832 = vunpack.c.l.b16 %v6537
      %v6833 = vunpack.c.l.b16 %v6538
      %v6834 = vunpack.c.l.b16 %v6539
      %v6835 = vunpack.c.l.b16 %v6540
      %v6836 = vunpack.c.l.b16 %v6541
      %v6837 = vunpack.c.l.b16 %v6542
      %v6838 = vunpack.c.l.b16 %v6543
      %v6839 = vunpack.c.l.b16 %v6544
      %v6840 = vpack.c.b16 %v6697, %v6696
      %v6841 = vpack.c.b16 %v6699, %v6698
      %v6842 = vpack.c.b16 %v6701, %v6700
      %v6843 = vpack.c.b16 %v6703, %v6702
      %v6844 = vpack.c.b16 %v6705, %v6704
      %v6845 = vpack.c.b16 %v6707, %v6706
      %v6846 = vpack.c.b16 %v6709, %v6708
      %v6847 = vpack.c.b16 %v6711, %v6710
      %v6848 = vpack.c.b16 %v6713, %v6712
      %v6849 = vpack.c.b16 %v6715, %v6714
      %v6850 = vpack.c.b16 %v6717, %v6716
      %v6851 = vpack.c.b16 %v6719, %v6718
      %v6852 = vpack.c.b16 %v6721, %v6720
      %v6853 = vpack.c.b16 %v6723, %v6722
      %v6854 = vpack.c.b16 %v6725, %v6724
      %v6855 = vpack.c.b16 %v6727, %v6726
      %v6856 = vpack.c.b16 %v6729, %v6728
      %v6857 = vpack.c.b16 %v6731, %v6730
      %v6858 = vpack.c.b16 %v6733, %v6732
      %v6859 = vpack.c.b16 %v6735, %v6734
      %v6860 = vpack.c.b16 %v6737, %v6736
      %v6861 = vpack.c.b16 %v6739, %v6738
      %v6862 = vpack.c.b16 %v6741, %v6740
      %v6863 = vpack.c.b16 %v6743, %v6742
      %v6864 = vpack.c.b16 %v6745, %v6744
      %v6865 = vpack.c.b16 %v6747, %v6746
      %v6866 = vpack.c.b16 %v6749, %v6748
      %v6867 = vpack.c.b16 %v6751, %v6750
      %v6868 = vpack.c.b16 %v6753, %v6752
      %v6869 = vpack.c.b16 %v6755, %v6754
      %v6870 = vpack.c.b16 %v6757, %v6756
      %v6871 = vpack.c.b16 %v6759, %v6758
      %v6872 = vpack.c.b16 %v6761, %v6760
      %v6873 = vpack.c.b16 %v6763, %v6762
      %v6874 = vpack.c.b16 %v6765, %v6764
      %v6875 = vpack.c.b16 %v6767, %v6766
      %v6876 = vpack.c.b16 %v6769, %v6768
      %v6877 = vpack.c.b16 %v6771, %v6770
      %v6878 = vpack.c.b16 %v6773, %v6772
      %v6879 = vpack.c.b16 %v6775, %v6774
      %v6880 = vpack.c.b16 %v6777, %v6776
      %v6881 = vpack.c.b16 %v6779, %v6778
      %v6882 = vpack.c.b16 %v6781, %v6780
      %v6883 = vpack.c.b16 %v6783, %v6782
      %v6884 = vpack.c.b16 %v6785, %v6784
      %v6885 = vpack.c.b16 %v6787, %v6786
      %v6886 = vpack.c.b16 %v6789, %v6788
      %v6887 = vpack.c.b16 %v6791, %v6790
      %v6888 = vpack.c.b16 %v6793, %v6792
      %v6889 = vpack.c.b16 %v6795, %v6794
      %v6890 = vpack.c.b16 %v6797, %v6796
      %v6891 = vpack.c.b16 %v6799, %v6798
      %v6892 = vpack.c.b16 %v6801, %v6800
      %v6893 = vpack.c.b16 %v6803, %v6802
      %v6894 = vpack.c.b16 %v6805, %v6804
      %v6895 = vpack.c.b16 %v6807, %v6806
      %v6896 = vpack.c.b16 %v6809, %v6808
      %v6897 = vpack.c.b16 %v6811, %v6810
      %v6898 = vpack.c.b16 %v6813, %v6812
      %v6899 = vpack.c.b16 %v6815, %v6814
      %v6900 = vpack.c.b16 %v6817, %v6816
      %v6901 = vpack.c.b16 %v6819, %v6818
      %v6902 = vpack.c.b16 %v6821, %v6820
      %v6903 = vpack.c.b16 %v6823, %v6822
      %v6904 = vpack.c.b16 %v6825, %v6824
      %v6905 = vpack.c.b16 %v6827, %v6826
      %v6906 = vpack.c.b16 %v6829, %v6828
      %v6907 = vpack.c.b16 %v6831, %v6830
      %v6908 = vpack.c.b16 %v6833, %v6832
      %v6909 = vpack.c.b16 %v6835, %v6834
      %v6910 = vpack.c.b16 %v6837, %v6836
      %v6911 = vpack.c.b16 %v6839, %v6838
      %6984 = vmatprep.subr.bf16.mxu0 0
      %6985 = vmatpush1.bf16.msra.mxu0 %v6840
      %6986 = vmatprep.subr.bf16.mxu0 0
      %6987 = vmatpush1.bf16.msra.mxu0 %v6841
      %6988 = vmatprep.subr.bf16.mxu0 0
      %6989 = vmatpush1.bf16.msra.mxu0 %v6842
      %6990 = vmatprep.subr.bf16.mxu0 0
      %6991 = vmatpush1.bf16.msra.mxu0 %v6843
      %6992 = vmatprep.subr.bf16.mxu0 0
      %6993 = vmatpush1.bf16.msra.mxu0 %v6844
      %6994 = vmatprep.subr.bf16.mxu0 0
      %6995 = vmatpush1.bf16.msra.mxu0 %v6845
      %6996 = vmatprep.subr.bf16.mxu0 0
      %6997 = vmatpush1.bf16.msra.mxu0 %v6846
      %6998 = vmatprep.subr.bf16.mxu0 0
      %6999 = vmatpush1.bf16.msra.mxu0 %v6847
      %7000 = vmatprep.subr.bf16.mxu0 0
      %7001 = vmatpush1.bf16.msra.mxu0 %v6848
      %7002 = vmatprep.subr.bf16.mxu0 0
      %7003 = vmatpush1.bf16.msra.mxu0 %v6849
      %7004 = vmatprep.subr.bf16.mxu0 0
      %7005 = vmatpush1.bf16.msra.mxu0 %v6850
      %7006 = vmatprep.subr.bf16.mxu0 0
      %7007 = vmatpush1.bf16.msra.mxu0 %v6851
      %7008 = vmatprep.subr.bf16.mxu0 0
      %7009 = vmatpush1.bf16.msra.mxu0 %v6852
      %7010 = vmatprep.subr.bf16.mxu0 0
      %7011 = vmatpush1.bf16.msra.mxu0 %v6853
      %7012 = vmatprep.subr.bf16.mxu0 0
      %7013 = vmatpush1.bf16.msra.mxu0 %v6854
      %7014 = vmatprep.subr.bf16.mxu0 0
      %7015 = vmatpush1.bf16.msra.mxu0 %v6855
      %7016 = vmatprep.mubr.bf16.mxu0 %v6265
      %7017 = vmatmul.mubr.bf16.gmra.mrb[0].mxu0 %v6249
      %v7018 = vpop.f32.mrb[0].mxu0
      %v7019 = vadd.f32 %v6550, %v7018
      %v7020 = vpop.f32.mrb[0].mxu0
      %v7021 = vpop.f32.mrb[0].mxu0
      %v7022 = vadd.f32 %v6550, %v7021
      %v7023 = vpop.f32.mrb[0].mxu0
      %7024 = vmatprep.mubr.bf16.mxu0 %v6266
      %7025 = vmatmul.mubr.bf16.gmra.mrb[0].mxu0 %v6250
      %v7026 = vpop.f32.mrb[0].mxu0
      %v7027 = vadd.f32 %v6550, %v7026
      %v7028 = vpop.f32.mrb[0].mxu0
      %v7029 = vpop.f32.mrb[0].mxu0
      %v7030 = vadd.f32 %v6550, %v7029
      %v7031 = vpop.f32.mrb[0].mxu0
      %7032 = vmatprep.mubr.bf16.mxu0 %v6267
      %7033 = vmatmul.mubr.bf16.gmra.mrb[0].mxu0 %v6251
      %v7034 = vpop.f32.mrb[0].mxu0
      %v7035 = vadd.f32 %v6550, %v7034
      %v7036 = vpop.f32.mrb[0].mxu0
      %v7037 = vpop.f32.mrb[0].mxu0
      %v7038 = vadd.f32 %v6550, %v7037
      %v7039 = vpop.f32.mrb[0].mxu0
      %7040 = vmatprep.mubr.bf16.mxu0 %v6268
      %7041 = vmatmul.mubr.bf16.gmra.mrb[0].mxu0 %v6252
      %v7042 = vpop.f32.mrb[0].mxu0
      %v7043 = vadd.f32 %v6550, %v7042
      %v7044 = vpop.f32.mrb[0].mxu0
      %v7045 = vpop.f32.mrb[0].mxu0
      %v7046 = vadd.f32 %v6550, %v7045
      %v7047 = vpop.f32.mrb[0].mxu0
      %7048 = vdwg.mxu0
      %7049 = vmatprep.subr.bf16.mxu0 0
      %7050 = vmatpush1.bf16.msra.mxu0 %v6856
      %7051 = vmatprep.subr.bf16.mxu0 0
      %7052 = vmatpush1.bf16.msra.mxu0 %v6857
      %7053 = vmatprep.subr.bf16.mxu0 0
      %7054 = vmatpush1.bf16.msra.mxu0 %v6858
      %7055 = vmatprep.subr.bf16.mxu0 0
      %7056 = vmatpush1.bf16.msra.mxu0 %v6859
      %7057 = vmatprep.subr.bf16.mxu0 0
      %7058 = vmatpush1.bf16.msra.mxu0 %v6860
      %7059 = vmatprep.subr.bf16.mxu0 0
      %7060 = vmatpush1.bf16.msra.mxu0 %v6861
      %7061 = vmatprep.subr.bf16.mxu0 0
      %7062 = vmatpush1.bf16.msra.mxu0 %v6862
      %7063 = vmatprep.subr.bf16.mxu0 0
      %7064 = vmatpush1.bf16.msra.mxu0 %v6863
      %7065 = vmatprep.subr.bf16.mxu0 0
      %7066 = vmatpush1.bf16.msra.mxu0 %v6864
      %7067 = vmatprep.subr.bf16.mxu0 0
      %7068 = vmatpush1.bf16.msra.mxu0 %v6865
      %7069 = vmatprep.subr.bf16.mxu0 0
      %7070 = vmatpush1.bf16.msra.mxu0 %v6866
      %7071 = vmatprep.subr.bf16.mxu0 0
      %7072 = vmatpush1.bf16.msra.mxu0 %v6867
      %7073 = vmatprep.subr.bf16.mxu0 0
      %7074 = vmatpush1.bf16.msra.mxu0 %v6868
      %7075 = vmatprep.subr.bf16.mxu0 0
      %7076 = vmatpush1.bf16.msra.mxu0 %v6869
      %7077 = vmatprep.subr.bf16.mxu0 0
      %7078 = vmatpush1.bf16.msra.mxu0 %v6870
      %7079 = vmatprep.subr.bf16.mxu0 0
      %7080 = vmatpush1.bf16.msra.mxu0 %v6871
      %7081 = vmatprep.mubr.bf16.mxu0 %v6305
      %7082 = vmatmul.mubr.bf16.gmra.mrb[0].mxu0 %v6281
      %v7083 = vpop.f32.mrb[0].mxu0
      %v7084 = vadd.f32 %v7019, %v7083
      %v7085 = vpop.f32.mrb[0].mxu0
      %v7086 = vpop.f32.mrb[0].mxu0
      %v7087 = vadd.f32 %v7022, %v7086
      %v7088 = vpop.f32.mrb[0].mxu0
      %7089 = vmatprep.mubr.bf16.mxu0 %v6306
      %7090 = vmatmul.mubr.bf16.gmra.mrb[0].mxu0 %v6282
      %v7091 = vpop.f32.mrb[0].mxu0
      %v7092 = vadd.f32 %v7027, %v7091
      %v7093 = vpop.f32.mrb[0].mxu0
      %v7094 = vpop.f32.mrb[0].mxu0
      %v7095 = vadd.f32 %v7030, %v7094
      %v7096 = vpop.f32.mrb[0].mxu0
      %7097 = vmatprep.mubr.bf16.mxu0 %v6307
      %7098 = vmatmul.mubr.bf16.gmra.mrb[0].mxu0 %v6283
      %v7099 = vpop.f32.mrb[0].mxu0
      %v7100 = vadd.f32 %v7035, %v7099
      %v7101 = vpop.f32.mrb[0].mxu0
      %v7102 = vpop.f32.mrb[0].mxu0
      %v7103 = vadd.f32 %v7038, %v7102
      %v7104 = vpop.f32.mrb[0].mxu0
      %7105 = vmatprep.mubr.bf16.mxu0 %v6308
      %7106 = vmatmul.mubr.bf16.gmra.mrb[0].mxu0 %v6284
      %v7107 = vpop.f32.mrb[0].mxu0
      %v7108 = vadd.f32 %v7043, %v7107
      %v7109 = vpop.f32.mrb[0].mxu0
      %v7110 = vpop.f32.mrb[0].mxu0
      %v7111 = vadd.f32 %v7046, %v7110
      %v7112 = vpop.f32.mrb[0].mxu0
      %7113 = vdwg.mxu0
      %7114 = vmatprep.subr.bf16.mxu0 0
      %7115 = vmatpush1.bf16.msra.mxu0 %v6872
      %7116 = vmatprep.subr.bf16.mxu0 0
      %7117 = vmatpush1.bf16.msra.mxu0 %v6873
      %7118 = vmatprep.subr.bf16.mxu0 0
      %7119 = vmatpush1.bf16.msra.mxu0 %v6874
      %7120 = vmatprep.subr.bf16.mxu0 0
      %7121 = vmatpush1.bf16.msra.mxu0 %v6875
      %7122 = vmatprep.subr.bf16.mxu0 0
      %7123 = vmatpush1.bf16.msra.mxu0 %v6876
      %7124 = vmatprep.subr.bf16.mxu0 0
      %7125 = vmatpush1.bf16.msra.mxu0 %v6877
      %7126 = vmatprep.subr.bf16.mxu0 0
      %7127 = vmatpush1.bf16.msra.mxu0 %v6878
      %7128 = vmatprep.subr.bf16.mxu0 0
      %7129 = vmatpush1.bf16.msra.mxu0 %v6879
      %7130 = vmatprep.subr.bf16.mxu0 0
      %7131 = vmatpush1.bf16.msra.mxu0 %v6880
      %7132 = vmatprep.subr.bf16.mxu0 0
      %7133 = vmatpush1.bf16.msra.mxu0 %v6881
      %7134 = vmatprep.subr.bf16.mxu0 0
      %7135 = vmatpush1.bf16.msra.mxu0 %v6882
      %7136 = vmatprep.subr.bf16.mxu0 0
      %7137 = vmatpush1.bf16.msra.mxu0 %v6883
      %7138 = vmatprep.subr.bf16.mxu0 0
      %7139 = vmatpush1.bf16.msra.mxu0 %v6884
      %7140 = vmatprep.subr.bf16.mxu0 0
      %7141 = vmatpush1.bf16.msra.mxu0 %v6885
      %7142 = vmatprep.subr.bf16.mxu0 0
      %7143 = vmatpush1.bf16.msra.mxu0 %v6886
      %7144 = vmatprep.subr.bf16.mxu0 0
      %7145 = vmatpush1.bf16.msra.mxu0 %v6887
      %7146 = vmatprep.mubr.bf16.mxu0 %v6337
      %7147 = vmatmul.mubr.bf16.gmra.mrb[0].mxu0 %v6321
      %v7148 = vpop.f32.mrb[0].mxu0
      %v7149 = vadd.f32 %v7084, %v7148
      %v7150 = vpop.f32.mrb[0].mxu0
      %v7151 = vpop.f32.mrb[0].mxu0
      %v7152 = vadd.f32 %v7087, %v7151
      %v7153 = vpop.f32.mrb[0].mxu0
      %7154 = vmatprep.mubr.bf16.mxu0 %v6338
      %7155 = vmatmul.mubr.bf16.gmra.mrb[0].mxu0 %v6322
      %v7156 = vpop.f32.mrb[0].mxu0
      %v7157 = vadd.f32 %v7092, %v7156
      %v7158 = vpop.f32.mrb[0].mxu0
      %v7159 = vpop.f32.mrb[0].mxu0
      %v7160 = vadd.f32 %v7095, %v7159
      %v7161 = vpop.f32.mrb[0].mxu0
      %7162 = vmatprep.mubr.bf16.mxu0 %v6339
      %7163 = vmatmul.mubr.bf16.gmra.mrb[0].mxu0 %v6323
      %v7164 = vpop.f32.mrb[0].mxu0
      %v7165 = vadd.f32 %v7100, %v7164
      %v7166 = vpop.f32.mrb[0].mxu0
      %v7167 = vpop.f32.mrb[0].mxu0
      %v7168 = vadd.f32 %v7103, %v7167
      %v7169 = vpop.f32.mrb[0].mxu0
      %7170 = vmatprep.mubr.bf16.mxu0 %v6340
      %7171 = vmatmul.mubr.bf16.gmra.mrb[0].mxu0 %v6324
      %v7172 = vpop.f32.mrb[0].mxu0
      %v7173 = vadd.f32 %v7108, %v7172
      %v7174 = vpop.f32.mrb[0].mxu0
      %v7175 = vpop.f32.mrb[0].mxu0
      %v7176 = vadd.f32 %v7111, %v7175
      %v7177 = vpop.f32.mrb[0].mxu0
      %7178 = vdwg.mxu0
      %7179 = vmatprep.subr.bf16.mxu0 0
      %7180 = vmatpush1.bf16.msra.mxu0 %v6888
      %7181 = vmatprep.subr.bf16.mxu0 0
      %7182 = vmatpush1.bf16.msra.mxu0 %v6889
      %7183 = vmatprep.subr.bf16.mxu0 0
      %7184 = vmatpush1.bf16.msra.mxu0 %v6890
      %7185 = vmatprep.subr.bf16.mxu0 0
      %7186 = vmatpush1.bf16.msra.mxu0 %v6891
      %7187 = vmatprep.subr.bf16.mxu0 0
      %7188 = vmatpush1.bf16.msra.mxu0 %v6892
      %7189 = vmatprep.subr.bf16.mxu0 0
      %7190 = vmatpush1.bf16.msra.mxu0 %v6893
      %7191 = vmatprep.subr.bf16.mxu0 0
      %7192 = vmatpush1.bf16.msra.mxu0 %v6894
      %7193 = vmatprep.subr.bf16.mxu0 0
      %7194 = vmatpush1.bf16.msra.mxu0 %v6895
      %7195 = vmatprep.subr.bf16.mxu0 0
      %7196 = vmatpush1.bf16.msra.mxu0 %v6896
      %7197 = vmatprep.subr.bf16.mxu0 0
      %7198 = vmatpush1.bf16.msra.mxu0 %v6897
      %7199 = vmatprep.subr.bf16.mxu0 0
      %7200 = vmatpush1.bf16.msra.mxu0 %v6898
      %7201 = vmatprep.subr.bf16.mxu0 0
      %7202 = vmatpush1.bf16.msra.mxu0 %v6899
      %7203 = vmatprep.subr.bf16.mxu0 0
      %7204 = vmatpush1.bf16.msra.mxu0 %v6900
      %7205 = vmatprep.subr.bf16.mxu0 0
      %7206 = vmatpush1.bf16.msra.mxu0 %v6901
      %7207 = vmatprep.subr.bf16.mxu0 0
      %7208 = vmatpush1.bf16.msra.mxu0 %v6902
      %7209 = vmatprep.subr.bf16.mxu0 0
      %7210 = vmatpush1.bf16.msra.mxu0 %v6903
      %7211 = vmatprep.mubr.bf16.mxu0 %v6377
      %7212 = vmatmul.mubr.bf16.gmra.mrb[0].mxu0 %v6361
      %v7213 = vpop.f32.mrb[0].mxu0
      %v7214 = vadd.f32 %v7149, %v7213
      %v7215 = vpop.f32.mrb[0].mxu0
      %v7216 = vpop.f32.mrb[0].mxu0
      %v7217 = vadd.f32 %v7152, %v7216
      %v7218 = vpop.f32.mrb[0].mxu0
      %7219 = vmatprep.mubr.bf16.mxu0 %v6378
      %7220 = vmatmul.mubr.bf16.gmra.mrb[0].mxu0 %v6362
      %v7221 = vpop.f32.mrb[0].mxu0
      %v7222 = vadd.f32 %v7157, %v7221
      %v7223 = vpop.f32.mrb[0].mxu0
      %v7224 = vpop.f32.mrb[0].mxu0
      %v7225 = vadd.f32 %v7160, %v7224
      %v7226 = vpop.f32.mrb[0].mxu0
      %7227 = vmatprep.mubr.bf16.mxu0 %v6379
      %7228 = vmatmul.mubr.bf16.gmra.mrb[0].mxu0 %v6363
      %v7229 = vpop.f32.mrb[0].mxu0
      %v7230 = vadd.f32 %v7165, %v7229
      %v7231 = vpop.f32.mrb[0].mxu0
      %v7232 = vpop.f32.mrb[0].mxu0
      %v7233 = vadd.f32 %v7168, %v7232
      %v7234 = vpop.f32.mrb[0].mxu0
      %7235 = vmatprep.mubr.bf16.mxu0 %v6380
      %7236 = vmatmul.mubr.bf16.gmra.mrb[0].mxu0 %v6364
      %v7237 = vpop.f32.mrb[0].mxu0
      %v7238 = vadd.f32 %v7173, %v7237
      %v7239 = vpop.f32.mrb[0].mxu0
      %v7240 = vpop.f32.mrb[0].mxu0
      %v7241 = vadd.f32 %v7176, %v7240
      %v7242 = vpop.f32.mrb[0].mxu0
      %7243 = vdwg.mxu0
      %7244 = vmatprep.subr.bf16.mxu0 0
      %7245 = vmatpush1.bf16.msra.mxu0 %v6904
      %7246 = vmatprep.subr.bf16.mxu0 0
      %7247 = vmatpush1.bf16.msra.mxu0 %v6905
      %7248 = vmatprep.subr.bf16.mxu0 0
      %7249 = vmatpush1.bf16.msra.mxu0 %v6906
      %7250 = vmatprep.subr.bf16.mxu0 0
      %7251 = vmatpush1.bf16.msra.mxu0 %v6907
      %7252 = vmatprep.subr.bf16.mxu0 0
      %7253 = vmatpush1.bf16.msra.mxu0 %v6908
      %7254 = vmatprep.subr.bf16.mxu0 0
      %7255 = vmatpush1.bf16.msra.mxu0 %v6909
      %7256 = vmatprep.subr.bf16.mxu0 0
      %7257 = vmatpush1.bf16.msra.mxu0 %v6910
      %7258 = vmatprep.subr.bf16.mxu0 0
      %7259 = vmatpush1.bf16.msra.mxu0 %v6911
      %7260 = vmatprep.subr.bf16.mxu0 0
      %7261 = vmatpush1.bf16.msra.mxu0 0
      %7262 = vmatprep.subr.bf16.mxu0 0
      %7263 = vmatpush1.bf16.msra.mxu0 0
      %7264 = vmatprep.subr.bf16.mxu0 0
      %7265 = vmatpush1.bf16.msra.mxu0 0
      %7266 = vmatprep.subr.bf16.mxu0 0
      %7267 = vmatpush1.bf16.msra.mxu0 0
      %7268 = vmatprep.subr.bf16.mxu0 0
      %7269 = vmatpush1.bf16.msra.mxu0 0
      %7270 = vmatprep.subr.bf16.mxu0 0
      %7271 = vmatpush1.bf16.msra.mxu0 0
      %7272 = vmatprep.subr.bf16.mxu0 0
      %7273 = vmatpush1.bf16.msra.mxu0 0
      %7274 = vmatprep.subr.bf16.mxu0 0
      %7275 = vmatpush1.bf16.msra.mxu0 0
      %7276 = vmatprep.mubr.bf16.mxu0 0
      %7277 = vmatmul.mubr.bf16.gmra.mrb[0].mxu0 %v6393
      %v7278 = vpop.f32.mrb[0].mxu0
      %v7279 = vadd.f32 %v7214, %v7278
      %v7280 = vpop.f32.mrb[0].mxu0
      %v7281 = vpop.f32.mrb[0].mxu0
      %v7282 = vadd.f32 %v7217, %v7281
      %v7283 = vpop.f32.mrb[0].mxu0
      %7284 = vmatprep.mubr.bf16.mxu0 0
      %7285 = vmatmul.mubr.bf16.gmra.mrb[0].mxu0 %v6394
      %v7286 = vpop.f32.mrb[0].mxu0
      %v7287 = vadd.f32 %v7222, %v7286
      %v7288 = vpop.f32.mrb[0].mxu0
      %v7289 = vpop.f32.mrb[0].mxu0
      %v7290 = vadd.f32 %v7225, %v7289
      %v7291 = vpop.f32.mrb[0].mxu0
      %7292 = vmatprep.mubr.bf16.mxu0 0
      %7293 = vmatmul.mubr.bf16.gmra.mrb[0].mxu0 %v6395
      %v7294 = vpop.f32.mrb[0].mxu0
      %v7295 = vadd.f32 %v7230, %v7294
      %v7296 = vpop.f32.mrb[0].mxu0
      %v7297 = vpop.f32.mrb[0].mxu0
      %v7298 = vadd.f32 %v7233, %v7297
      %v7299 = vpop.f32.mrb[0].mxu0
      %7300 = vmatprep.mubr.bf16.mxu0 0
      %7301 = vmatmul.mubr.bf16.gmra.mrb[0].mxu0 %v6396
      %v7302 = vpop.f32.mrb[0].mxu0
      %v7303 = vadd.f32 %v7238, %v7302
      %v7304 = vpop.f32.mrb[0].mxu0
      %v7305 = vpop.f32.mrb[0].mxu0
      %v7306 = vadd.f32 %v7241, %v7305
      %v7307 = vpop.f32.mrb[0].mxu0
      %7308 = vdwg.mxu0
      %v7309 = vmax.f32 %v7279, 0.0
      %v7310 = vmax.f32 %v7282, 0.0
      %v7311 = vmax.f32 %v7287, 0.0
      %v7312 = vmax.f32 %v7290, 0.0
      %v7313 = vmax.f32 %v7295, 0.0
      %v7314 = vmax.f32 %v7298, 0.0
      %v7315 = vmax.f32 %v7303, 0.0
      %v7316 = vmax.f32 %v7306, 0.0
      %v7317 = vpack.c.bf16 %v7310, %v7309
      %v7318 = vpack.c.bf16 %v7312, %v7311
      %v7319 = vpack.c.bf16 %v7314, %v7313
      %v7320 = vpack.c.bf16 %v7316, %v7315
      %v7321 = vld [vmem:[%s9] sm:$0xf]
      %v7322 = vld [vmem:[%s9 + $0x4] sm:$0xf]
      %v7323 = vld [vmem:[%s9 + $0x8] sm:$0xf]
      %v7324 = vld [vmem:[%s9 + $0xc] sm:$0xf]
      %v7325 = vld [vmem:[%s9 + $0x10] sm:$0xf]
      %v7326 = vld [vmem:[%s9 + $0x14] sm:$0xf]
      %v7327 = vld [vmem:[%s9 + $0x18] sm:$0xf]
      %v7328 = vld [vmem:[%s9 + $0x1c] sm:$0xf]
      %v7329 = vld [vmem:[%s9 + $0x20] sm:$0xf]
      %v7330 = vld [vmem:[%s9 + $0x24] sm:$0xf]
      %v7331 = vld [vmem:[%s9 + $0x28] sm:$0xf]
      %v7332 = vld [vmem:[%s9 + $0x2c] sm:$0xf]
      %v7333 = vld [vmem:[%s9 + $0x30] sm:$0xf]
      %v7334 = vld [vmem:[%s9 + $0x34] sm:$0xf]
      %v7335 = vld [vmem:[%s9 + $0x38] sm:$0xf]
      %v7336 = vld [vmem:[%s9 + $0x3c] sm:$0xf]
      %v7353 = vunpack.c.l.b16 %v7321
      %v7354 = vunpack.c.l.b16 %v7322
      %v7355 = vunpack.c.l.b16 %v7323
      %v7356 = vunpack.c.l.b16 %v7324
      %v7357 = vunpack.c.l.b16 %v7325
      %v7358 = vunpack.c.l.b16 %v7326
      %v7359 = vunpack.c.l.b16 %v7327
      %v7360 = vunpack.c.l.b16 %v7328
      %v7361 = vunpack.c.l.b16 %v7329
      %v7362 = vunpack.c.l.b16 %v7330
      %v7363 = vunpack.c.l.b16 %v7331
      %v7364 = vunpack.c.l.b16 %v7332
      %v7365 = vunpack.c.l.b16 %v7333
      %v7366 = vunpack.c.l.b16 %v7334
      %v7367 = vunpack.c.l.b16 %v7335
      %v7368 = vunpack.c.l.b16 %v7336
      %v7369 = vpack.c.b16 %v7354, %v7353
      %v7370 = vpack.c.b16 %v7356, %v7355
      %v7371 = vpack.c.b16 %v7358, %v7357
      %v7372 = vpack.c.b16 %v7360, %v7359
      %v7373 = vpack.c.b16 %v7362, %v7361
      %v7374 = vpack.c.b16 %v7364, %v7363
      %v7375 = vpack.c.b16 %v7366, %v7365
      %v7376 = vpack.c.b16 %v7368, %v7367
      %7385 = vmatprep.subr.bf16.mxu0 0
      %7386 = vmatpush1.bf16.msra.mxu0 %v7369
      %7387 = vmatprep.subr.bf16.mxu0 0
      %7388 = vmatpush1.bf16.msra.mxu0 %v7370
      %7389 = vmatprep.subr.bf16.mxu0 0
      %7390 = vmatpush1.bf16.msra.mxu0 %v7371
      %7391 = vmatprep.subr.bf16.mxu0 0
      %7392 = vmatpush1.bf16.msra.mxu0 %v7372
      %7393 = vmatprep.subr.bf16.mxu0 0
      %7394 = vmatpush1.bf16.msra.mxu0 %v7373
      %7395 = vmatprep.subr.bf16.mxu0 0
      %7396 = vmatpush1.bf16.msra.mxu0 %v7374
      %7397 = vmatprep.subr.bf16.mxu0 0
      %7398 = vmatpush1.bf16.msra.mxu0 %v7375
      %7399 = vmatprep.subr.bf16.mxu0 0
      %7400 = vmatpush1.bf16.msra.mxu0 %v7376
      %7401 = vmatprep.subr.bf16.mxu0 0
      %7402 = vmatpush1.bf16.msra.mxu0 0
      %7403 = vmatprep.subr.bf16.mxu0 0
      %7404 = vmatpush1.bf16.msra.mxu0 0
      %7405 = vmatprep.subr.bf16.mxu0 0
      %7406 = vmatpush1.bf16.msra.mxu0 0
      %7407 = vmatprep.subr.bf16.mxu0 0
      %7408 = vmatpush1.bf16.msra.mxu0 0
      %7409 = vmatprep.subr.bf16.mxu0 0
      %7410 = vmatpush1.bf16.msra.mxu0 0
      %7411 = vmatprep.subr.bf16.mxu0 0
      %7412 = vmatpush1.bf16.msra.mxu0 0
      %7413 = vmatprep.subr.bf16.mxu0 0
      %7414 = vmatpush1.bf16.msra.mxu0 0
      %7415 = vmatprep.subr.bf16.mxu0 0
      %7416 = vmatpush1.bf16.msra.mxu0 0
      %7417 = vmatprep.mubr.bf16.mxu0 0
      %7418 = vmatmul.mubr.bf16.gmra.mrb[0].mxu0 %v7317
      %v7419 = vpop.f32.mrb[0].mxu0
      %v7420 = vadd.f32 0.0, %v7419
      %v7421 = vpop.f32.mrb[0].mxu0
      %v7422 = vpop.f32.mrb[0].mxu0
      %v7423 = vadd.f32 0.0, %v7422
      %v7424 = vpop.f32.mrb[0].mxu0
      %7425 = vmatprep.mubr.bf16.mxu0 0
      %7426 = vmatmul.mubr.bf16.gmra.mrb[0].mxu0 %v7318
      %v7427 = vpop.f32.mrb[0].mxu0
      %v7428 = vadd.f32 0.0, %v7427
      %v7429 = vpop.f32.mrb[0].mxu0
      %v7430 = vpop.f32.mrb[0].mxu0
      %v7431 = vadd.f32 0.0, %v7430
      %v7432 = vpop.f32.mrb[0].mxu0
      %7433 = vmatprep.mubr.bf16.mxu0 0
      %7434 = vmatmul.mubr.bf16.gmra.mrb[0].mxu0 %v7319
      %v7435 = vpop.f32.mrb[0].mxu0
      %v7436 = vadd.f32 0.0, %v7435
      %v7437 = vpop.f32.mrb[0].mxu0
      %v7438 = vpop.f32.mrb[0].mxu0
      %v7439 = vadd.f32 0.0, %v7438
      %v7440 = vpop.f32.mrb[0].mxu0
      %7441 = vmatprep.mubr.bf16.mxu0 0
      %7442 = vmatmul.mubr.bf16.gmra.mrb[0].mxu0 %v7320
      %v7443 = vpop.f32.mrb[0].mxu0
      %v7444 = vadd.f32 0.0, %v7443
      %v7445 = vpop.f32.mrb[0].mxu0
      %v7446 = vpop.f32.mrb[0].mxu0
      %v7447 = vadd.f32 0.0, %v7446
      %v7448 = vpop.f32.mrb[0].mxu0
      %7449 = vdwg.mxu0
      %v7450 = vadd.f32 %v5492, %v7420
      %v7451 = vadd.f32 %v5495, %v7423
      %v7452 = vadd.f32 %v5500, %v7428
      %v7453 = vadd.f32 %v5503, %v7431
      %v7454 = vadd.f32 %v5508, %v7436
      %v7455 = vadd.f32 %v5511, %v7439
      %v7456 = vadd.f32 %v5516, %v7444
      %v7457 = vadd.f32 %v5519, %v7447
      %v7458 = vld [vmem:[%s10] sm:$0x1]
      %v7460 = vlaneseq
      %v7461 = vshrl.u32 %v7460, 7
      %v7462 = vsub.s32 0, %v7461
      %v7463 = vrot.slane %v7458, %v7462
      %v7465 = vadd.f32 %v7450, %v7463
      %v7466 = vadd.f32 %v7451, %v7463
      %v7467 = vadd.f32 %v7452, %v7463
      %v7468 = vadd.f32 %v7453, %v7463
      %v7469 = vadd.f32 %v7454, %v7463
      %v7470 = vadd.f32 %v7455, %v7463
      %v7471 = vadd.f32 %v7456, %v7463
      %v7472 = vadd.f32 %v7457, %v7463
      %v7473 = vmax.f32 %v7465, 0.0
      %v7474 = vmax.f32 %v7466, 0.0
      %v7475 = vmax.f32 %v7467, 0.0
      %v7476 = vmax.f32 %v7468, 0.0
      %v7477 = vmax.f32 %v7469, 0.0
      %v7478 = vmax.f32 %v7470, 0.0
      %v7479 = vmax.f32 %v7471, 0.0
      %v7480 = vmax.f32 %v7472, 0.0
      %v7481 = vpack.c.bf16 %v7474, %v7473
      %v7482 = vpack.c.bf16 %v7476, %v7475
      %v7483 = vpack.c.bf16 %v7478, %v7477
      %v7484 = vpack.c.bf16 %v7480, %v7479
      %v7489 = vunpack.c.l.b16 %v7481
      %v7490 = vunpack.c.h.b16 %v7481
      %v7491 = vunpack.c.l.b16 %v7482
      %v7492 = vunpack.c.h.b16 %v7482
      %v7493 = vunpack.c.l.b16 %v7483
      %v7494 = vunpack.c.h.b16 %v7483
      %v7495 = vunpack.c.l.b16 %v7484
      %v7496 = vunpack.c.h.b16 %v7484
      %v7497 = vpack.c.b16 %v7489, %v7489
      %v7498 = vpack.c.b16 %v7490, %v7490
      %v7499 = vpack.c.b16 %v7491, %v7491
      %v7500 = vpack.c.b16 %v7492, %v7492
      %v7501 = vpack.c.b16 %v7493, %v7493
      %v7502 = vpack.c.b16 %v7494, %v7494
      %v7503 = vpack.c.b16 %v7495, %v7495
      %v7504 = vpack.c.b16 %v7496, %v7496
      %v7506 = vshrl.u32 %v7497, 16
      %v7508 = vrot.slane %v7506, 7
      %v7509 = vshll.u32 %v7497, 16
      %v7511 = vor.u32 %v7508, %v7509
      %v7512 = vrot.slane %v7508, 4
      %v7514 = vshrl.u32 %v7498, 16
      %v7516 = vrot.slane %v7514, 7
      %v7517 = vshll.u32 %v7498, 16
      %v7519 = vor.u32 %v7516, %v7517
      %v7520 = vrot.slane %v7516, 4
      %v7522 = vshrl.u32 %v7499, 16
      %v7524 = vrot.slane %v7522, 7
      %v7525 = vshll.u32 %v7499, 16
      %v7527 = vor.u32 %v7524, %v7525
      %v7528 = vrot.slane %v7524, 4
      %v7530 = vshrl.u32 %v7500, 16
      %v7532 = vrot.slane %v7530, 7
      %v7533 = vshll.u32 %v7500, 16
      %v7535 = vor.u32 %v7532, %v7533
      %v7536 = vrot.slane %v7532, 4
      %v7538 = vshrl.u32 %v7501, 16
      %v7540 = vrot.slane %v7538, 7
      %v7541 = vshll.u32 %v7501, 16
      %v7543 = vor.u32 %v7540, %v7541
      %v7544 = vrot.slane %v7540, 4
      %v7546 = vshrl.u32 %v7502, 16
      %v7548 = vrot.slane %v7546, 7
      %v7549 = vshll.u32 %v7502, 16
      %v7551 = vor.u32 %v7548, %v7549
      %v7552 = vrot.slane %v7548, 4
      %v7554 = vshrl.u32 %v7503, 16
      %v7556 = vrot.slane %v7554, 7
      %v7557 = vshll.u32 %v7503, 16
      %v7559 = vor.u32 %v7556, %v7557
      %v7560 = vrot.slane %v7556, 4
      %v7562 = vshrl.u32 %v7504, 16
      %v7564 = vrot.slane %v7562, 7
      %v7565 = vshll.u32 %v7504, 16
      %v7567 = vor.u32 %v7564, %v7565
      %v7568 = vrot.slane %v7564, 4
      %v7585 = vsel %vm1182, %v7511, %v5865
      %7586 = vst [vmem:[%s3841] sm:$0xf] %v7585
      %v7587 = vld [vmem:[%s3841 + $0x4] sm:$0x1]
      %v7588 = vsel %vm928, %v7512, %v7587
      %7589 = vst [vmem:[%s3841 + $0x4] sm:$0x1] %v7588
      %v7590 = vld [vmem:[%s3841 + $0x8] sm:$0xf]
      %v7591 = vsel %vm1182, %v7519, %v7590
      %7592 = vst [vmem:[%s3841 + $0x8] sm:$0xf] %v7591
      %v7593 = vld [vmem:[%s3841 + $0xc] sm:$0x1]
      %v7594 = vsel %vm928, %v7520, %v7593
      %7595 = vst [vmem:[%s3841 + $0xc] sm:$0x1] %v7594
      %v7596 = vld [vmem:[%s3841 + $0x10] sm:$0xf]
      %v7597 = vsel %vm1182, %v7527, %v7596
      %7598 = vst [vmem:[%s3841 + $0x10] sm:$0xf] %v7597
      %v7599 = vld [vmem:[%s3841 + $0x14] sm:$0x1]
      %v7600 = vsel %vm928, %v7528, %v7599
      %7601 = vst [vmem:[%s3841 + $0x14] sm:$0x1] %v7600
      %v7602 = vld [vmem:[%s3841 + $0x18] sm:$0xf]
      %v7603 = vsel %vm1182, %v7535, %v7602
      %7604 = vst [vmem:[%s3841 + $0x18] sm:$0xf] %v7603
      %v7605 = vld [vmem:[%s3841 + $0x1c] sm:$0x1]
      %v7606 = vsel %vm928, %v7536, %v7605
      %7607 = vst [vmem:[%s3841 + $0x1c] sm:$0x1] %v7606
      %v7608 = vld [vmem:[%s3841 + $0x20] sm:$0xf]
      %v7609 = vsel %vm1182, %v7543, %v7608
      %7610 = vst [vmem:[%s3841 + $0x20] sm:$0xf] %v7609
      %v7611 = vld [vmem:[%s3841 + $0x24] sm:$0x1]
      %v7612 = vsel %vm928, %v7544, %v7611
      %7613 = vst [vmem:[%s3841 + $0x24] sm:$0x1] %v7612
      %v7614 = vld [vmem:[%s3841 + $0x28] sm:$0xf]
      %v7615 = vsel %vm1182, %v7551, %v7614
      %7616 = vst [vmem:[%s3841 + $0x28] sm:$0xf] %v7615
      %v7617 = vld [vmem:[%s3841 + $0x2c] sm:$0x1]
      %v7618 = vsel %vm928, %v7552, %v7617
      %7619 = vst [vmem:[%s3841 + $0x2c] sm:$0x1] %v7618
      %v7620 = vld [vmem:[%s3841 + $0x30] sm:$0xf]
      %v7621 = vsel %vm1182, %v7559, %v7620
      %7622 = vst [vmem:[%s3841 + $0x30] sm:$0xf] %v7621
      %v7623 = vld [vmem:[%s3841 + $0x34] sm:$0x1]
      %v7624 = vsel %vm928, %v7560, %v7623
      %7625 = vst [vmem:[%s3841 + $0x34] sm:$0x1] %v7624
      %v7626 = vld [vmem:[%s3841 + $0x38] sm:$0xf]
      %v7627 = vsel %vm1182, %v7567, %v7626
      %7628 = vst [vmem:[%s3841 + $0x38] sm:$0xf] %v7627
      %v7629 = vld [vmem:[%s3841 + $0x3c] sm:$0x1]
      %v7630 = vsel %vm928, %v7568, %v7629
      %7631 = vst [vmem:[%s3841 + $0x3c] sm:$0x1] %v7630
      %v7632 = vld [vmem:[#allocation3] sm:$0xf]
      %v7633 = vld [vmem:[#allocation3 + $0x8] sm:$0xf]
      %v7634 = vld [vmem:[#allocation3 + $0x10] sm:$0xf]
      %v7635 = vld [vmem:[#allocation3 + $0x18] sm:$0xf]
      %v7636 = vld [vmem:[#allocation3 + $0x20] sm:$0xf]
      %v7637 = vld [vmem:[#allocation3 + $0x28] sm:$0xf]
      %v7638 = vld [vmem:[#allocation3 + $0x30] sm:$0xf]
      %v7639 = vld [vmem:[#allocation3 + $0x38] sm:$0xf]
      %v7640 = vld [vmem:[#allocation3 + $0x4] sm:$0x1]
      %v7641 = vld [vmem:[#allocation3 + $0xc] sm:$0x1]
      %v7642 = vld [vmem:[#allocation3 + $0x14] sm:$0x1]
      %v7643 = vld [vmem:[#allocation3 + $0x1c] sm:$0x1]
      %v7644 = vld [vmem:[#allocation3 + $0x24] sm:$0x1]
      %v7645 = vld [vmem:[#allocation3 + $0x2c] sm:$0x1]
      %v7646 = vld [vmem:[#allocation3 + $0x34] sm:$0x1]
      %v7647 = vld [vmem:[#allocation3 + $0x3c] sm:$0x1]
      %v7649 = vshrl.u32 %v7632, 16
      %v7651 = vrot.slane %v7649, 4
      %v7652 = vshll.u32 %v7632, 16
      %v7654 = vrot.slane %v7652, 5
      %v7655 = vor.u32 %v7651, %v7654
      %v7656 = vrot.slane %v7655, 4
      %v7658 = vshll.u32 %v7640, 16
      %v7660 = vrot.slane %v7658, 5
      %v7661 = vsel %vm1409, %v7656, %v7660
      %v7663 = vshrl.u32 %v7633, 16
      %v7665 = vrot.slane %v7663, 4
      %v7666 = vshll.u32 %v7633, 16
      %v7668 = vrot.slane %v7666, 5
      %v7669 = vor.u32 %v7665, %v7668
      %v7670 = vrot.slane %v7669, 4
      %v7672 = vshll.u32 %v7641, 16
      %v7674 = vrot.slane %v7672, 5
      %v7675 = vsel %vm1409, %v7670, %v7674
      %v7677 = vshrl.u32 %v7634, 16
      %v7679 = vrot.slane %v7677, 4
      %v7680 = vshll.u32 %v7634, 16
      %v7682 = vrot.slane %v7680, 5
      %v7683 = vor.u32 %v7679, %v7682
      %v7684 = vrot.slane %v7683, 4
      %v7686 = vshll.u32 %v7642, 16
      %v7688 = vrot.slane %v7686, 5
      %v7689 = vsel %vm1409, %v7684, %v7688
      %v7691 = vshrl.u32 %v7635, 16
      %v7693 = vrot.slane %v7691, 4
      %v7694 = vshll.u32 %v7635, 16
      %v7696 = vrot.slane %v7694, 5
      %v7697 = vor.u32 %v7693, %v7696
      %v7698 = vrot.slane %v7697, 4
      %v7700 = vshll.u32 %v7643, 16
      %v7702 = vrot.slane %v7700, 5
      %v7703 = vsel %vm1409, %v7698, %v7702
      %v7705 = vshrl.u32 %v7636, 16
      %v7707 = vrot.slane %v7705, 4
      %v7708 = vshll.u32 %v7636, 16
      %v7710 = vrot.slane %v7708, 5
      %v7711 = vor.u32 %v7707, %v7710
      %v7712 = vrot.slane %v7711, 4
      %v7714 = vshll.u32 %v7644, 16
      %v7716 = vrot.slane %v7714, 5
      %v7717 = vsel %vm1409, %v7712, %v7716
      %v7719 = vshrl.u32 %v7637, 16
      %v7721 = vrot.slane %v7719, 4
      %v7722 = vshll.u32 %v7637, 16
      %v7724 = vrot.slane %v7722, 5
      %v7725 = vor.u32 %v7721, %v7724
      %v7726 = vrot.slane %v7725, 4
      %v7728 = vshll.u32 %v7645, 16
      %v7730 = vrot.slane %v7728, 5
      %v7731 = vsel %vm1409, %v7726, %v7730
      %v7733 = vshrl.u32 %v7638, 16
      %v7735 = vrot.slane %v7733, 4
      %v7736 = vshll.u32 %v7638, 16
      %v7738 = vrot.slane %v7736, 5
      %v7739 = vor.u32 %v7735, %v7738
      %v7740 = vrot.slane %v7739, 4
      %v7742 = vshll.u32 %v7646, 16
      %v7744 = vrot.slane %v7742, 5
      %v7745 = vsel %vm1409, %v7740, %v7744
      %v7747 = vshrl.u32 %v7639, 16
      %v7749 = vrot.slane %v7747, 4
      %v7750 = vshll.u32 %v7639, 16
      %v7752 = vrot.slane %v7750, 5
      %v7753 = vor.u32 %v7749, %v7752
      %v7754 = vrot.slane %v7753, 4
      %v7756 = vshll.u32 %v7647, 16
      %v7758 = vrot.slane %v7756, 5
      %v7759 = vsel %vm1409, %v7754, %v7758
      %v7760 = vld [vmem:[#allocation3] sm:$0xe]
      %v7761 = vld [vmem:[#allocation3 + $0x8] sm:$0xe]
      %v7762 = vld [vmem:[#allocation3 + $0x10] sm:$0xe]
      %v7763 = vld [vmem:[#allocation3 + $0x18] sm:$0xe]
      %v7764 = vld [vmem:[#allocation3 + $0x20] sm:$0xe]
      %v7765 = vld [vmem:[#allocation3 + $0x28] sm:$0xe]
      %v7766 = vld [vmem:[#allocation3 + $0x30] sm:$0xe]
      %v7767 = vld [vmem:[#allocation3 + $0x38] sm:$0xe]
      %v7784 = vrot.slane %v7760, 5
      %v7785 = vrot.slane %v7784, 4
      %v7786 = vrot.slane %v7640, 5
      %v7787 = vsel %vm4044, %v7785, %v7786
      %v7788 = vrot.slane %v7761, 5
      %v7789 = vrot.slane %v7788, 4
      %v7790 = vrot.slane %v7641, 5
      %v7791 = vsel %vm4044, %v7789, %v7790
      %v7792 = vrot.slane %v7762, 5
      %v7793 = vrot.slane %v7792, 4
      %v7794 = vrot.slane %v7642, 5
      %v7795 = vsel %vm4044, %v7793, %v7794
      %v7796 = vrot.slane %v7763, 5
      %v7797 = vrot.slane %v7796, 4
      %v7798 = vrot.slane %v7643, 5
      %v7799 = vsel %vm4044, %v7797, %v7798
      %v7800 = vrot.slane %v7764, 5
      %v7801 = vrot.slane %v7800, 4
      %v7802 = vrot.slane %v7644, 5
      %v7803 = vsel %vm4044, %v7801, %v7802
      %v7804 = vrot.slane %v7765, 5
      %v7805 = vrot.slane %v7804, 4
      %v7806 = vrot.slane %v7645, 5
      %v7807 = vsel %vm4044, %v7805, %v7806
      %v7808 = vrot.slane %v7766, 5
      %v7809 = vrot.slane %v7808, 4
      %v7810 = vrot.slane %v7646, 5
      %v7811 = vsel %vm4044, %v7809, %v7810
      %v7812 = vrot.slane %v7767, 5
      %v7813 = vrot.slane %v7812, 4
      %v7814 = vrot.slane %v7647, 5
      %v7815 = vsel %vm4044, %v7813, %v7814
      %v7816 = vld [vmem:[%s3841] sm:$0xf]
      %v7817 = vld [vmem:[%s3841 + $0x8] sm:$0xf]
      %v7818 = vld [vmem:[%s3841 + $0x10] sm:$0xf]
      %v7819 = vld [vmem:[%s3841 + $0x18] sm:$0xf]
      %v7820 = vld [vmem:[%s3841 + $0x20] sm:$0xf]
      %v7821 = vld [vmem:[%s3841 + $0x28] sm:$0xf]
      %v7822 = vld [vmem:[%s3841 + $0x30] sm:$0xf]
      %v7823 = vld [vmem:[%s3841 + $0x38] sm:$0xf]
      %v7824 = vld [vmem:[%s3841 + $0x4] sm:$0x1]
      %v7825 = vld [vmem:[%s3841 + $0xc] sm:$0x1]
      %v7826 = vld [vmem:[%s3841 + $0x14] sm:$0x1]
      %v7827 = vld [vmem:[%s3841 + $0x1c] sm:$0x1]
      %v7828 = vld [vmem:[%s3841 + $0x24] sm:$0x1]
      %v7829 = vld [vmem:[%s3841 + $0x2c] sm:$0x1]
      %v7830 = vld [vmem:[%s3841 + $0x34] sm:$0x1]
      %v7831 = vld [vmem:[%s3841 + $0x3c] sm:$0x1]
      %v7833 = vshrl.u32 %v7816, 16
      %v7835 = vrot.slane %v7833, 4
      %v7836 = vshll.u32 %v7816, 16
      %v7838 = vrot.slane %v7836, 5
      %v7839 = vor.u32 %v7835, %v7838
      %v7840 = vrot.slane %v7839, 4
      %v7842 = vshll.u32 %v7824, 16
      %v7844 = vrot.slane %v7842, 5
      %v7845 = vsel %vm1409, %v7840, %v7844
      %v7847 = vshrl.u32 %v7817, 16
      %v7849 = vrot.slane %v7847, 4
      %v7850 = vshll.u32 %v7817, 16
      %v7852 = vrot.slane %v7850, 5
      %v7853 = vor.u32 %v7849, %v7852
      %v7854 = vrot.slane %v7853, 4
      %v7856 = vshll.u32 %v7825, 16
      %v7858 = vrot.slane %v7856, 5
      %v7859 = vsel %vm1409, %v7854, %v7858
      %v7861 = vshrl.u32 %v7818, 16
      %v7863 = vrot.slane %v7861, 4
      %v7864 = vshll.u32 %v7818, 16
      %v7866 = vrot.slane %v7864, 5
      %v7867 = vor.u32 %v7863, %v7866
      %v7868 = vrot.slane %v7867, 4
      %v7870 = vshll.u32 %v7826, 16
      %v7872 = vrot.slane %v7870, 5
      %v7873 = vsel %vm1409, %v7868, %v7872
      %v7875 = vshrl.u32 %v7819, 16
      %v7877 = vrot.slane %v7875, 4
      %v7878 = vshll.u32 %v7819, 16
      %v7880 = vrot.slane %v7878, 5
      %v7881 = vor.u32 %v7877, %v7880
      %v7882 = vrot.slane %v7881, 4
      %v7884 = vshll.u32 %v7827, 16
      %v7886 = vrot.slane %v7884, 5
      %v7887 = vsel %vm1409, %v7882, %v7886
      %v7889 = vshrl.u32 %v7820, 16
      %v7891 = vrot.slane %v7889, 4
      %v7892 = vshll.u32 %v7820, 16
      %v7894 = vrot.slane %v7892, 5
      %v7895 = vor.u32 %v7891, %v7894
      %v7896 = vrot.slane %v7895, 4
      %v7898 = vshll.u32 %v7828, 16
      %v7900 = vrot.slane %v7898, 5
      %v7901 = vsel %vm1409, %v7896, %v7900
      %v7903 = vshrl.u32 %v7821, 16
      %v7905 = vrot.slane %v7903, 4
      %v7906 = vshll.u32 %v7821, 16
      %v7908 = vrot.slane %v7906, 5
      %v7909 = vor.u32 %v7905, %v7908
      %v7910 = vrot.slane %v7909, 4
      %v7912 = vshll.u32 %v7829, 16
      %v7914 = vrot.slane %v7912, 5
      %v7915 = vsel %vm1409, %v7910, %v7914
      %v7917 = vshrl.u32 %v7822, 16
      %v7919 = vrot.slane %v7917, 4
      %v7920 = vshll.u32 %v7822, 16
      %v7922 = vrot.slane %v7920, 5
      %v7923 = vor.u32 %v7919, %v7922
      %v7924 = vrot.slane %v7923, 4
      %v7926 = vshll.u32 %v7830, 16
      %v7928 = vrot.slane %v7926, 5
      %v7929 = vsel %vm1409, %v7924, %v7928
      %v7931 = vshrl.u32 %v7823, 16
      %v7933 = vrot.slane %v7931, 4
      %v7934 = vshll.u32 %v7823, 16
      %v7936 = vrot.slane %v7934, 5
      %v7937 = vor.u32 %v7933, %v7936
      %v7938 = vrot.slane %v7937, 4
      %v7940 = vshll.u32 %v7831, 16
      %v7942 = vrot.slane %v7940, 5
      %v7943 = vsel %vm1409, %v7938, %v7942
      %v7944 = vld [vmem:[%s3841] sm:$0xe]
      %v7945 = vld [vmem:[%s3841 + $0x8] sm:$0xe]
      %v7946 = vld [vmem:[%s3841 + $0x10] sm:$0xe]
      %v7947 = vld [vmem:[%s3841 + $0x18] sm:$0xe]
      %v7948 = vld [vmem:[%s3841 + $0x20] sm:$0xe]
      %v7949 = vld [vmem:[%s3841 + $0x28] sm:$0xe]
      %v7950 = vld [vmem:[%s3841 + $0x30] sm:$0xe]
      %v7951 = vld [vmem:[%s3841 + $0x38] sm:$0xe]
      %v7968 = vrot.slane %v7944, 5
      %v7969 = vrot.slane %v7968, 4
      %v7970 = vrot.slane %v7824, 5
      %v7971 = vsel %vm4044, %v7969, %v7970
      %v7972 = vrot.slane %v7945, 5
      %v7973 = vrot.slane %v7972, 4
      %v7974 = vrot.slane %v7825, 5
      %v7975 = vsel %vm4044, %v7973, %v7974
      %v7976 = vrot.slane %v7946, 5
      %v7977 = vrot.slane %v7976, 4
      %v7978 = vrot.slane %v7826, 5
      %v7979 = vsel %vm4044, %v7977, %v7978
      %v7980 = vrot.slane %v7947, 5
      %v7981 = vrot.slane %v7980, 4
      %v7982 = vrot.slane %v7827, 5
      %v7983 = vsel %vm4044, %v7981, %v7982
      %v7984 = vrot.slane %v7948, 5
      %v7985 = vrot.slane %v7984, 4
      %v7986 = vrot.slane %v7828, 5
      %v7987 = vsel %vm4044, %v7985, %v7986
      %v7988 = vrot.slane %v7949, 5
      %v7989 = vrot.slane %v7988, 4
      %v7990 = vrot.slane %v7829, 5
      %v7991 = vsel %vm4044, %v7989, %v7990
      %v7992 = vrot.slane %v7950, 5
      %v7993 = vrot.slane %v7992, 4
      %v7994 = vrot.slane %v7830, 5
      %v7995 = vsel %vm4044, %v7993, %v7994
      %v7996 = vrot.slane %v7951, 5
      %v7997 = vrot.slane %v7996, 4
      %v7998 = vrot.slane %v7831, 5
      %v7999 = vsel %vm4044, %v7997, %v7998
      %v8000 = vld [vmem:[%s4261] sm:$0xf]
      %v8001 = vld [vmem:[%s4261 + $0x8] sm:$0xf]
      %v8002 = vld [vmem:[%s4261 + $0x10] sm:$0xf]
      %v8003 = vld [vmem:[%s4261 + $0x18] sm:$0xf]
      %v8004 = vld [vmem:[%s4261 + $0x20] sm:$0xf]
      %v8005 = vld [vmem:[%s4261 + $0x28] sm:$0xf]
      %v8006 = vld [vmem:[%s4261 + $0x30] sm:$0xf]
      %v8007 = vld [vmem:[%s4261 + $0x38] sm:$0xf]
      %v8008 = vld [vmem:[%s4261 + $0x4] sm:$0x1]
      %v8009 = vld [vmem:[%s4261 + $0xc] sm:$0x1]
      %v8010 = vld [vmem:[%s4261 + $0x14] sm:$0x1]
      %v8011 = vld [vmem:[%s4261 + $0x1c] sm:$0x1]
      %v8012 = vld [vmem:[%s4261 + $0x24] sm:$0x1]
      %v8013 = vld [vmem:[%s4261 + $0x2c] sm:$0x1]
      %v8014 = vld [vmem:[%s4261 + $0x34] sm:$0x1]
      %v8015 = vld [vmem:[%s4261 + $0x3c] sm:$0x1]
      %v8017 = vshrl.u32 %v8000, 16
      %v8019 = vrot.slane %v8017, 4
      %v8020 = vshll.u32 %v8000, 16
      %v8022 = vrot.slane %v8020, 5
      %v8023 = vor.u32 %v8019, %v8022
      %v8024 = vrot.slane %v8023, 4
      %v8026 = vshll.u32 %v8008, 16
      %v8028 = vrot.slane %v8026, 5
      %v8029 = vsel %vm1409, %v8024, %v8028
      %v8031 = vshrl.u32 %v8001, 16
      %v8033 = vrot.slane %v8031, 4
      %v8034 = vshll.u32 %v8001, 16
      %v8036 = vrot.slane %v8034, 5
      %v8037 = vor.u32 %v8033, %v8036
      %v8038 = vrot.slane %v8037, 4
      %v8040 = vshll.u32 %v8009, 16
      %v8042 = vrot.slane %v8040, 5
      %v8043 = vsel %vm1409, %v8038, %v8042
      %v8045 = vshrl.u32 %v8002, 16
      %v8047 = vrot.slane %v8045, 4
      %v8048 = vshll.u32 %v8002, 16
      %v8050 = vrot.slane %v8048, 5
      %v8051 = vor.u32 %v8047, %v8050
      %v8052 = vrot.slane %v8051, 4
      %v8054 = vshll.u32 %v8010, 16
      %v8056 = vrot.slane %v8054, 5
      %v8057 = vsel %vm1409, %v8052, %v8056
      %v8059 = vshrl.u32 %v8003, 16
      %v8061 = vrot.slane %v8059, 4
      %v8062 = vshll.u32 %v8003, 16
      %v8064 = vrot.slane %v8062, 5
      %v8065 = vor.u32 %v8061, %v8064
      %v8066 = vrot.slane %v8065, 4
      %v8068 = vshll.u32 %v8011, 16
      %v8070 = vrot.slane %v8068, 5
      %v8071 = vsel %vm1409, %v8066, %v8070
      %v8073 = vshrl.u32 %v8004, 16
      %v8075 = vrot.slane %v8073, 4
      %v8076 = vshll.u32 %v8004, 16
      %v8078 = vrot.slane %v8076, 5
      %v8079 = vor.u32 %v8075, %v8078
      %v8080 = vrot.slane %v8079, 4
      %v8082 = vshll.u32 %v8012, 16
      %v8084 = vrot.slane %v8082, 5
      %v8085 = vsel %vm1409, %v8080, %v8084
      %v8087 = vshrl.u32 %v8005, 16
      %v8089 = vrot.slane %v8087, 4
      %v8090 = vshll.u32 %v8005, 16
      %v8092 = vrot.slane %v8090, 5
      %v8093 = vor.u32 %v8089, %v8092
      %v8094 = vrot.slane %v8093, 4
      %v8096 = vshll.u32 %v8013, 16
      %v8098 = vrot.slane %v8096, 5
      %v8099 = vsel %vm1409, %v8094, %v8098
      %v8101 = vshrl.u32 %v8006, 16
      %v8103 = vrot.slane %v8101, 4
      %v8104 = vshll.u32 %v8006, 16
      %v8106 = vrot.slane %v8104, 5
      %v8107 = vor.u32 %v8103, %v8106
      %v8108 = vrot.slane %v8107, 4
      %v8110 = vshll.u32 %v8014, 16
      %v8112 = vrot.slane %v8110, 5
      %v8113 = vsel %vm1409, %v8108, %v8112
      %v8115 = vshrl.u32 %v8007, 16
      %v8117 = vrot.slane %v8115, 4
      %v8118 = vshll.u32 %v8007, 16
      %v8120 = vrot.slane %v8118, 5
      %v8121 = vor.u32 %v8117, %v8120
      %v8122 = vrot.slane %v8121, 4
      %v8124 = vshll.u32 %v8015, 16
      %v8126 = vrot.slane %v8124, 5
      %v8127 = vsel %vm1409, %v8122, %v8126
      %v8128 = vld [vmem:[%s4261] sm:$0xe]
      %v8129 = vld [vmem:[%s4261 + $0x8] sm:$0xe]
      %v8130 = vld [vmem:[%s4261 + $0x10] sm:$0xe]
      %v8131 = vld [vmem:[%s4261 + $0x18] sm:$0xe]
      %v8132 = vld [vmem:[%s4261 + $0x20] sm:$0xe]
      %v8133 = vld [vmem:[%s4261 + $0x28] sm:$0xe]
      %v8134 = vld [vmem:[%s4261 + $0x30] sm:$0xe]
      %v8135 = vld [vmem:[%s4261 + $0x38] sm:$0xe]
      %v8152 = vrot.slane %v8128, 5
      %v8153 = vrot.slane %v8152, 4
      %v8154 = vrot.slane %v8008, 5
      %v8155 = vsel %vm4044, %v8153, %v8154
      %v8156 = vrot.slane %v8129, 5
      %v8157 = vrot.slane %v8156, 4
      %v8158 = vrot.slane %v8009, 5
      %v8159 = vsel %vm4044, %v8157, %v8158
      %v8160 = vrot.slane %v8130, 5
      %v8161 = vrot.slane %v8160, 4
      %v8162 = vrot.slane %v8010, 5
      %v8163 = vsel %vm4044, %v8161, %v8162
      %v8164 = vrot.slane %v8131, 5
      %v8165 = vrot.slane %v8164, 4
      %v8166 = vrot.slane %v8011, 5
      %v8167 = vsel %vm4044, %v8165, %v8166
      %v8168 = vrot.slane %v8132, 5
      %v8169 = vrot.slane %v8168, 4
      %v8170 = vrot.slane %v8012, 5
      %v8171 = vsel %vm4044, %v8169, %v8170
      %v8172 = vrot.slane %v8133, 5
      %v8173 = vrot.slane %v8172, 4
      %v8174 = vrot.slane %v8013, 5
      %v8175 = vsel %vm4044, %v8173, %v8174
      %v8176 = vrot.slane %v8134, 5
      %v8177 = vrot.slane %v8176, 4
      %v8178 = vrot.slane %v8014, 5
      %v8179 = vsel %vm4044, %v8177, %v8178
      %v8180 = vrot.slane %v8135, 5
      %v8181 = vrot.slane %v8180, 4
      %v8182 = vrot.slane %v8015, 5
      %v8183 = vsel %vm4044, %v8181, %v8182
      %v8192 = vunpack.c.l.b16 %v7632
      %v8193 = vunpack.c.l.b16 %v7633
      %v8194 = vunpack.c.l.b16 %v7634
      %v8195 = vunpack.c.l.b16 %v7635
      %v8196 = vunpack.c.l.b16 %v7636
      %v8197 = vunpack.c.l.b16 %v7637
      %v8198 = vunpack.c.l.b16 %v7638
      %v8199 = vunpack.c.l.b16 %v7639
      %v8200 = vpack.c.b16 %v8193, %v8192
      %v8201 = vpack.c.b16 %v8195, %v8194
      %v8202 = vpack.c.b16 %v8197, %v8196
      %v8203 = vpack.c.b16 %v8199, %v8198
      %v8208 = vunpack.c.l.b16 %v7661
      %v8209 = vunpack.c.l.b16 %v7675
      %v8210 = vunpack.c.l.b16 %v7689
      %v8211 = vunpack.c.l.b16 %v7703
      %v8212 = vunpack.c.l.b16 %v7717
      %v8213 = vunpack.c.l.b16 %v7731
      %v8214 = vunpack.c.l.b16 %v7745
      %v8215 = vunpack.c.l.b16 %v7759
      %v8216 = vpack.c.b16 %v8209, %v8208
      %v8217 = vpack.c.b16 %v8211, %v8210
      %v8218 = vpack.c.b16 %v8213, %v8212
      %v8219 = vpack.c.b16 %v8215, %v8214
      %v8224 = vunpack.c.l.b16 %v7787
      %v8225 = vunpack.c.l.b16 %v7791
      %v8226 = vunpack.c.l.b16 %v7795
      %v8227 = vunpack.c.l.b16 %v7799
      %v8228 = vunpack.c.l.b16 %v7803
      %v8229 = vunpack.c.l.b16 %v7807
      %v8230 = vunpack.c.l.b16 %v7811
      %v8231 = vunpack.c.l.b16 %v7815
      %v8232 = vpack.c.b16 %v8225, %v8224
      %v8233 = vpack.c.b16 %v8227, %v8226
      %v8234 = vpack.c.b16 %v8229, %v8228
      %v8235 = vpack.c.b16 %v8231, %v8230
      %v8248 = vunpack.c.l.b16 %v7816
      %v8249 = vunpack.c.l.b16 %v7817
      %v8250 = vunpack.c.l.b16 %v7818
      %v8251 = vunpack.c.l.b16 %v7819
      %v8252 = vunpack.c.l.b16 %v7820
      %v8253 = vunpack.c.l.b16 %v7821
      %v8254 = vunpack.c.l.b16 %v7822
      %v8255 = vunpack.c.l.b16 %v7823
      %v8256 = vpack.c.b16 %v8249, %v8248
      %v8257 = vpack.c.b16 %v8251, %v8250
      %v8258 = vpack.c.b16 %v8253, %v8252
      %v8259 = vpack.c.b16 %v8255, %v8254
      %v8264 = vunpack.c.l.b16 %v7845
      %v8265 = vunpack.c.l.b16 %v7859
      %v8266 = vunpack.c.l.b16 %v7873
      %v8267 = vunpack.c.l.b16 %v7887
      %v8268 = vunpack.c.l.b16 %v7901
      %v8269 = vunpack.c.l.b16 %v7915
      %v8270 = vunpack.c.l.b16 %v7929
      %v8271 = vunpack.c.l.b16 %v7943
      %v8272 = vpack.c.b16 %v8265, %v8264
      %v8273 = vpack.c.b16 %v8267, %v8266
      %v8274 = vpack.c.b16 %v8269, %v8268
      %v8275 = vpack.c.b16 %v8271, %v8270
      %v8280 = vunpack.c.l.b16 %v7971
      %v8281 = vunpack.c.l.b16 %v7975
      %v8282 = vunpack.c.l.b16 %v7979
      %v8283 = vunpack.c.l.b16 %v7983
      %v8284 = vunpack.c.l.b16 %v7987
      %v8285 = vunpack.c.l.b16 %v7991
      %v8286 = vunpack.c.l.b16 %v7995
      %v8287 = vunpack.c.l.b16 %v7999
      %v8288 = vpack.c.b16 %v8281, %v8280
      %v8289 = vpack.c.b16 %v8283, %v8282
      %v8290 = vpack.c.b16 %v8285, %v8284
      %v8291 = vpack.c.b16 %v8287, %v8286
      %v8304 = vunpack.c.l.b16 %v8000
      %v8305 = vunpack.c.l.b16 %v8001
      %v8306 = vunpack.c.l.b16 %v8002
      %v8307 = vunpack.c.l.b16 %v8003
      %v8308 = vunpack.c.l.b16 %v8004
      %v8309 = vunpack.c.l.b16 %v8005
      %v8310 = vunpack.c.l.b16 %v8006
      %v8311 = vunpack.c.l.b16 %v8007
      %v8312 = vpack.c.b16 %v8305, %v8304
      %v8313 = vpack.c.b16 %v8307, %v8306
      %v8314 = vpack.c.b16 %v8309, %v8308
      %v8315 = vpack.c.b16 %v8311, %v8310
      %v8320 = vunpack.c.l.b16 %v8029
      %v8321 = vunpack.c.l.b16 %v8043
      %v8322 = vunpack.c.l.b16 %v8057
      %v8323 = vunpack.c.l.b16 %v8071
      %v8324 = vunpack.c.l.b16 %v8085
      %v8325 = vunpack.c.l.b16 %v8099
      %v8326 = vunpack.c.l.b16 %v8113
      %v8327 = vunpack.c.l.b16 %v8127
      %v8328 = vpack.c.b16 %v8321, %v8320
      %v8329 = vpack.c.b16 %v8323, %v8322
      %v8330 = vpack.c.b16 %v8325, %v8324
      %v8331 = vpack.c.b16 %v8327, %v8326
      %v8336 = vunpack.c.l.b16 %v8155
      %v8337 = vunpack.c.l.b16 %v8159
      %v8338 = vunpack.c.l.b16 %v8163
      %v8339 = vunpack.c.l.b16 %v8167
      %v8340 = vunpack.c.l.b16 %v8171
      %v8341 = vunpack.c.l.b16 %v8175
      %v8342 = vunpack.c.l.b16 %v8179
      %v8343 = vunpack.c.l.b16 %v8183
      %v8344 = vpack.c.b16 %v8337, %v8336
      %v8345 = vpack.c.b16 %v8339, %v8338
      %v8346 = vpack.c.b16 %v8341, %v8340
      %v8347 = vpack.c.b16 %v8343, %v8342
      %v8352 = vld [vmem:[%s11] sm:$0xf]
      %v8353 = vld [vmem:[%s11 + $0x4] sm:$0xf]
      %v8354 = vld [vmem:[%s11 + $0x8] sm:$0xf]
      %v8355 = vld [vmem:[%s11 + $0xc] sm:$0xf]
      %v8356 = vld [vmem:[%s11 + $0x10] sm:$0xf]
      %v8357 = vld [vmem:[%s11 + $0x14] sm:$0xf]
      %v8358 = vld [vmem:[%s11 + $0x18] sm:$0xf]
      %v8359 = vld [vmem:[%s11 + $0x1c] sm:$0xf]
      %v8360 = vld [vmem:[%s11 + $0x20] sm:$0xf]
      %v8361 = vld [vmem:[%s11 + $0x24] sm:$0xf]
      %v8362 = vld [vmem:[%s11 + $0x28] sm:$0xf]
      %v8363 = vld [vmem:[%s11 + $0x2c] sm:$0xf]
      %v8364 = vld [vmem:[%s11 + $0x30] sm:$0xf]
      %v8365 = vld [vmem:[%s11 + $0x34] sm:$0xf]
      %v8366 = vld [vmem:[%s11 + $0x38] sm:$0xf]
      %v8367 = vld [vmem:[%s11 + $0x3c] sm:$0xf]
      %v8368 = vld [vmem:[%s11 + $0x40] sm:$0xf]
      %v8369 = vld [vmem:[%s11 + $0x44] sm:$0xf]
      %v8370 = vld [vmem:[%s11 + $0x48] sm:$0xf]
      %v8371 = vld [vmem:[%s11 + $0x4c] sm:$0xf]
      %v8372 = vld [vmem:[%s11 + $0x50] sm:$0xf]
      %v8373 = vld [vmem:[%s11 + $0x54] sm:$0xf]
      %v8374 = vld [vmem:[%s11 + $0x58] sm:$0xf]
      %v8375 = vld [vmem:[%s11 + $0x5c] sm:$0xf]
      %v8376 = vld [vmem:[%s11 + $0x60] sm:$0xf]
      %v8377 = vld [vmem:[%s11 + $0x64] sm:$0xf]
      %v8378 = vld [vmem:[%s11 + $0x68] sm:$0xf]
      %v8379 = vld [vmem:[%s11 + $0x6c] sm:$0xf]
      %v8380 = vld [vmem:[%s11 + $0x70] sm:$0xf]
      %v8381 = vld [vmem:[%s11 + $0x74] sm:$0xf]
      %v8382 = vld [vmem:[%s11 + $0x78] sm:$0xf]
      %v8383 = vld [vmem:[%s11 + $0x7c] sm:$0xf]
      %v8384 = vld [vmem:[%s11 + $0x80] sm:$0xf]
      %v8385 = vld [vmem:[%s11 + $0x84] sm:$0xf]
      %v8386 = vld [vmem:[%s11 + $0x88] sm:$0xf]
      %v8387 = vld [vmem:[%s11 + $0x8c] sm:$0xf]
      %v8388 = vld [vmem:[%s11 + $0x90] sm:$0xf]
      %v8389 = vld [vmem:[%s11 + $0x94] sm:$0xf]
      %v8390 = vld [vmem:[%s11 + $0x98] sm:$0xf]
      %v8391 = vld [vmem:[%s11 + $0x9c] sm:$0xf]
      %v8392 = vld [vmem:[%s11 + $0xa0] sm:$0xf]
      %v8393 = vld [vmem:[%s11 + $0xa4] sm:$0xf]
      %v8394 = vld [vmem:[%s11 + $0xa8] sm:$0xf]
      %v8395 = vld [vmem:[%s11 + $0xac] sm:$0xf]
      %v8396 = vld [vmem:[%s11 + $0xb0] sm:$0xf]
      %v8397 = vld [vmem:[%s11 + $0xb4] sm:$0xf]
      %v8398 = vld [vmem:[%s11 + $0xb8] sm:$0xf]
      %v8399 = vld [vmem:[%s11 + $0xbc] sm:$0xf]
      %v8400 = vld [vmem:[%s11 + $0xc0] sm:$0xf]
      %v8401 = vld [vmem:[%s11 + $0xc4] sm:$0xf]
      %v8402 = vld [vmem:[%s11 + $0xc8] sm:$0xf]
      %v8403 = vld [vmem:[%s11 + $0xcc] sm:$0xf]
      %v8404 = vld [vmem:[%s11 + $0xd0] sm:$0xf]
      %v8405 = vld [vmem:[%s11 + $0xd4] sm:$0xf]
      %v8406 = vld [vmem:[%s11 + $0xd8] sm:$0xf]
      %v8407 = vld [vmem:[%s11 + $0xdc] sm:$0xf]
      %v8408 = vld [vmem:[%s11 + $0xe0] sm:$0xf]
      %v8409 = vld [vmem:[%s11 + $0xe4] sm:$0xf]
      %v8410 = vld [vmem:[%s11 + $0xe8] sm:$0xf]
      %v8411 = vld [vmem:[%s11 + $0xec] sm:$0xf]
      %v8412 = vld [vmem:[%s11 + $0xf0] sm:$0xf]
      %v8413 = vld [vmem:[%s11 + $0xf4] sm:$0xf]
      %v8414 = vld [vmem:[%s11 + $0xf8] sm:$0xf]
      %v8415 = vld [vmem:[%s11 + $0xfc] sm:$0xf]
      %v8416 = vld [vmem:[%s11 + $0x100] sm:$0xf]
      %v8417 = vld [vmem:[%s11 + $0x104] sm:$0xf]
      %v8418 = vld [vmem:[%s11 + $0x108] sm:$0xf]
      %v8419 = vld [vmem:[%s11 + $0x10c] sm:$0xf]
      %v8420 = vld [vmem:[%s11 + $0x110] sm:$0xf]
      %v8421 = vld [vmem:[%s11 + $0x114] sm:$0xf]
      %v8422 = vld [vmem:[%s11 + $0x118] sm:$0xf]
      %v8423 = vld [vmem:[%s11 + $0x11c] sm:$0xf]
      %v8424 = vld [vmem:[%s11 + $0x120] sm:$0xf]
      %v8425 = vld [vmem:[%s11 + $0x124] sm:$0xf]
      %v8426 = vld [vmem:[%s11 + $0x128] sm:$0xf]
      %v8427 = vld [vmem:[%s11 + $0x12c] sm:$0xf]
      %v8428 = vld [vmem:[%s11 + $0x130] sm:$0xf]
      %v8429 = vld [vmem:[%s11 + $0x134] sm:$0xf]
      %v8430 = vld [vmem:[%s11 + $0x138] sm:$0xf]
      %v8431 = vld [vmem:[%s11 + $0x13c] sm:$0xf]
      %v8432 = vld [vmem:[%s11 + $0x140] sm:$0xf]
      %v8433 = vld [vmem:[%s11 + $0x144] sm:$0xf]
      %v8434 = vld [vmem:[%s11 + $0x148] sm:$0xf]
      %v8435 = vld [vmem:[%s11 + $0x14c] sm:$0xf]
      %v8436 = vld [vmem:[%s11 + $0x150] sm:$0xf]
      %v8437 = vld [vmem:[%s11 + $0x154] sm:$0xf]
      %v8438 = vld [vmem:[%s11 + $0x158] sm:$0xf]
      %v8439 = vld [vmem:[%s11 + $0x15c] sm:$0xf]
      %v8440 = vld [vmem:[%s11 + $0x160] sm:$0xf]
      %v8441 = vld [vmem:[%s11 + $0x164] sm:$0xf]
      %v8442 = vld [vmem:[%s11 + $0x168] sm:$0xf]
      %v8443 = vld [vmem:[%s11 + $0x16c] sm:$0xf]
      %v8444 = vld [vmem:[%s11 + $0x170] sm:$0xf]
      %v8445 = vld [vmem:[%s11 + $0x174] sm:$0xf]
      %v8446 = vld [vmem:[%s11 + $0x178] sm:$0xf]
      %v8447 = vld [vmem:[%s11 + $0x17c] sm:$0xf]
      %v8448 = vld [vmem:[%s11 + $0x180] sm:$0xf]
      %v8449 = vld [vmem:[%s11 + $0x184] sm:$0xf]
      %v8450 = vld [vmem:[%s11 + $0x188] sm:$0xf]
      %v8451 = vld [vmem:[%s11 + $0x18c] sm:$0xf]
      %v8452 = vld [vmem:[%s11 + $0x190] sm:$0xf]
      %v8453 = vld [vmem:[%s11 + $0x194] sm:$0xf]
      %v8454 = vld [vmem:[%s11 + $0x198] sm:$0xf]
      %v8455 = vld [vmem:[%s11 + $0x19c] sm:$0xf]
      %v8456 = vld [vmem:[%s11 + $0x1a0] sm:$0xf]
      %v8457 = vld [vmem:[%s11 + $0x1a4] sm:$0xf]
      %v8458 = vld [vmem:[%s11 + $0x1a8] sm:$0xf]
      %v8459 = vld [vmem:[%s11 + $0x1ac] sm:$0xf]
      %v8460 = vld [vmem:[%s11 + $0x1b0] sm:$0xf]
      %v8461 = vld [vmem:[%s11 + $0x1b4] sm:$0xf]
      %v8462 = vld [vmem:[%s11 + $0x1b8] sm:$0xf]
      %v8463 = vld [vmem:[%s11 + $0x1bc] sm:$0xf]
      %v8464 = vld [vmem:[%s11 + $0x1c0] sm:$0xf]
      %v8465 = vld [vmem:[%s11 + $0x1c4] sm:$0xf]
      %v8466 = vld [vmem:[%s11 + $0x1c8] sm:$0xf]
      %v8467 = vld [vmem:[%s11 + $0x1cc] sm:$0xf]
      %v8468 = vld [vmem:[%s11 + $0x1d0] sm:$0xf]
      %v8469 = vld [vmem:[%s11 + $0x1d4] sm:$0xf]
      %v8470 = vld [vmem:[%s11 + $0x1d8] sm:$0xf]
      %v8471 = vld [vmem:[%s11 + $0x1dc] sm:$0xf]
      %v8472 = vld [vmem:[%s11 + $0x1e0] sm:$0xf]
      %v8473 = vld [vmem:[%s11 + $0x1e4] sm:$0xf]
      %v8474 = vld [vmem:[%s11 + $0x1e8] sm:$0xf]
      %v8475 = vld [vmem:[%s11 + $0x1ec] sm:$0xf]
      %v8476 = vld [vmem:[%s11 + $0x1f0] sm:$0xf]
      %v8477 = vld [vmem:[%s11 + $0x1f4] sm:$0xf]
      %v8478 = vld [vmem:[%s11 + $0x1f8] sm:$0xf]
      %v8479 = vld [vmem:[%s11 + $0x1fc] sm:$0xf]
      %v8480 = vld [vmem:[%s11 + $0x200] sm:$0xf]
      %v8481 = vld [vmem:[%s11 + $0x204] sm:$0xf]
      %v8482 = vld [vmem:[%s11 + $0x208] sm:$0xf]
      %v8483 = vld [vmem:[%s11 + $0x20c] sm:$0xf]
      %v8484 = vld [vmem:[%s11 + $0x210] sm:$0xf]
      %v8485 = vld [vmem:[%s11 + $0x214] sm:$0xf]
      %v8486 = vld [vmem:[%s11 + $0x218] sm:$0xf]
      %v8487 = vld [vmem:[%s11 + $0x21c] sm:$0xf]
      %v8488 = vld [vmem:[%s11 + $0x220] sm:$0xf]
      %v8489 = vld [vmem:[%s11 + $0x224] sm:$0xf]
      %v8490 = vld [vmem:[%s11 + $0x228] sm:$0xf]
      %v8491 = vld [vmem:[%s11 + $0x22c] sm:$0xf]
      %v8492 = vld [vmem:[%s11 + $0x230] sm:$0xf]
      %v8493 = vld [vmem:[%s11 + $0x234] sm:$0xf]
      %v8494 = vld [vmem:[%s11 + $0x238] sm:$0xf]
      %v8495 = vld [vmem:[%s11 + $0x23c] sm:$0xf]
      %v8496 = vld [vmem:[%s12] sm:$0x1]
      %v8498 = vlaneseq
      %v8499 = vshrl.u32 %v8498, 7
      %v8500 = vsub.s32 0, %v8499
      %v8501 = vrot.slane %v8496, %v8500
      %v8647 = vunpack.c.l.b16 %v8352
      %v8648 = vunpack.c.l.b16 %v8353
      %v8649 = vunpack.c.l.b16 %v8354
      %v8650 = vunpack.c.l.b16 %v8355
      %v8651 = vunpack.c.l.b16 %v8356
      %v8652 = vunpack.c.l.b16 %v8357
      %v8653 = vunpack.c.l.b16 %v8358
      %v8654 = vunpack.c.l.b16 %v8359
      %v8655 = vunpack.c.l.b16 %v8360
      %v8656 = vunpack.c.l.b16 %v8361
      %v8657 = vunpack.c.l.b16 %v8362
      %v8658 = vunpack.c.l.b16 %v8363
      %v8659 = vunpack.c.l.b16 %v8364
      %v8660 = vunpack.c.l.b16 %v8365
      %v8661 = vunpack.c.l.b16 %v8366
      %v8662 = vunpack.c.l.b16 %v8367
      %v8663 = vunpack.c.l.b16 %v8368
      %v8664 = vunpack.c.l.b16 %v8369
      %v8665 = vunpack.c.l.b16 %v8370
      %v8666 = vunpack.c.l.b16 %v8371
      %v8667 = vunpack.c.l.b16 %v8372
      %v8668 = vunpack.c.l.b16 %v8373
      %v8669 = vunpack.c.l.b16 %v8374
      %v8670 = vunpack.c.l.b16 %v8375
      %v8671 = vunpack.c.l.b16 %v8376
      %v8672 = vunpack.c.l.b16 %v8377
      %v8673 = vunpack.c.l.b16 %v8378
      %v8674 = vunpack.c.l.b16 %v8379
      %v8675 = vunpack.c.l.b16 %v8380
      %v8676 = vunpack.c.l.b16 %v8381
      %v8677 = vunpack.c.l.b16 %v8382
      %v8678 = vunpack.c.l.b16 %v8383
      %v8679 = vunpack.c.l.b16 %v8384
      %v8680 = vunpack.c.l.b16 %v8385
      %v8681 = vunpack.c.l.b16 %v8386
      %v8682 = vunpack.c.l.b16 %v8387
      %v8683 = vunpack.c.l.b16 %v8388
      %v8684 = vunpack.c.l.b16 %v8389
      %v8685 = vunpack.c.l.b16 %v8390
      %v8686 = vunpack.c.l.b16 %v8391
      %v8687 = vunpack.c.l.b16 %v8392
      %v8688 = vunpack.c.l.b16 %v8393
      %v8689 = vunpack.c.l.b16 %v8394
      %v8690 = vunpack.c.l.b16 %v8395
      %v8691 = vunpack.c.l.b16 %v8396
      %v8692 = vunpack.c.l.b16 %v8397
      %v8693 = vunpack.c.l.b16 %v8398
      %v8694 = vunpack.c.l.b16 %v8399
      %v8695 = vunpack.c.l.b16 %v8400
      %v8696 = vunpack.c.l.b16 %v8401
      %v8697 = vunpack.c.l.b16 %v8402
      %v8698 = vunpack.c.l.b16 %v8403
      %v8699 = vunpack.c.l.b16 %v8404
      %v8700 = vunpack.c.l.b16 %v8405
      %v8701 = vunpack.c.l.b16 %v8406
      %v8702 = vunpack.c.l.b16 %v8407
      %v8703 = vunpack.c.l.b16 %v8408
      %v8704 = vunpack.c.l.b16 %v8409
      %v8705 = vunpack.c.l.b16 %v8410
      %v8706 = vunpack.c.l.b16 %v8411
      %v8707 = vunpack.c.l.b16 %v8412
      %v8708 = vunpack.c.l.b16 %v8413
      %v8709 = vunpack.c.l.b16 %v8414
      %v8710 = vunpack.c.l.b16 %v8415
      %v8711 = vunpack.c.l.b16 %v8416
      %v8712 = vunpack.c.l.b16 %v8417
      %v8713 = vunpack.c.l.b16 %v8418
      %v8714 = vunpack.c.l.b16 %v8419
      %v8715 = vunpack.c.l.b16 %v8420
      %v8716 = vunpack.c.l.b16 %v8421
      %v8717 = vunpack.c.l.b16 %v8422
      %v8718 = vunpack.c.l.b16 %v8423
      %v8719 = vunpack.c.l.b16 %v8424
      %v8720 = vunpack.c.l.b16 %v8425
      %v8721 = vunpack.c.l.b16 %v8426
      %v8722 = vunpack.c.l.b16 %v8427
      %v8723 = vunpack.c.l.b16 %v8428
      %v8724 = vunpack.c.l.b16 %v8429
      %v8725 = vunpack.c.l.b16 %v8430
      %v8726 = vunpack.c.l.b16 %v8431
      %v8727 = vunpack.c.l.b16 %v8432
      %v8728 = vunpack.c.l.b16 %v8433
      %v8729 = vunpack.c.l.b16 %v8434
      %v8730 = vunpack.c.l.b16 %v8435
      %v8731 = vunpack.c.l.b16 %v8436
      %v8732 = vunpack.c.l.b16 %v8437
      %v8733 = vunpack.c.l.b16 %v8438
      %v8734 = vunpack.c.l.b16 %v8439
      %v8735 = vunpack.c.l.b16 %v8440
      %v8736 = vunpack.c.l.b16 %v8441
      %v8737 = vunpack.c.l.b16 %v8442
      %v8738 = vunpack.c.l.b16 %v8443
      %v8739 = vunpack.c.l.b16 %v8444
      %v8740 = vunpack.c.l.b16 %v8445
      %v8741 = vunpack.c.l.b16 %v8446
      %v8742 = vunpack.c.l.b16 %v8447
      %v8743 = vunpack.c.l.b16 %v8448
      %v8744 = vunpack.c.l.b16 %v8449
      %v8745 = vunpack.c.l.b16 %v8450
      %v8746 = vunpack.c.l.b16 %v8451
      %v8747 = vunpack.c.l.b16 %v8452
      %v8748 = vunpack.c.l.b16 %v8453
      %v8749 = vunpack.c.l.b16 %v8454
      %v8750 = vunpack.c.l.b16 %v8455
      %v8751 = vunpack.c.l.b16 %v8456
      %v8752 = vunpack.c.l.b16 %v8457
      %v8753 = vunpack.c.l.b16 %v8458
      %v8754 = vunpack.c.l.b16 %v8459
      %v8755 = vunpack.c.l.b16 %v8460
      %v8756 = vunpack.c.l.b16 %v8461
      %v8757 = vunpack.c.l.b16 %v8462
      %v8758 = vunpack.c.l.b16 %v8463
      %v8759 = vunpack.c.l.b16 %v8464
      %v8760 = vunpack.c.l.b16 %v8465
      %v8761 = vunpack.c.l.b16 %v8466
      %v8762 = vunpack.c.l.b16 %v8467
      %v8763 = vunpack.c.l.b16 %v8468
      %v8764 = vunpack.c.l.b16 %v8469
      %v8765 = vunpack.c.l.b16 %v8470
      %v8766 = vunpack.c.l.b16 %v8471
      %v8767 = vunpack.c.l.b16 %v8472
      %v8768 = vunpack.c.l.b16 %v8473
      %v8769 = vunpack.c.l.b16 %v8474
      %v8770 = vunpack.c.l.b16 %v8475
      %v8771 = vunpack.c.l.b16 %v8476
      %v8772 = vunpack.c.l.b16 %v8477
      %v8773 = vunpack.c.l.b16 %v8478
      %v8774 = vunpack.c.l.b16 %v8479
      %v8775 = vunpack.c.l.b16 %v8480
      %v8776 = vunpack.c.l.b16 %v8481
      %v8777 = vunpack.c.l.b16 %v8482
      %v8778 = vunpack.c.l.b16 %v8483
      %v8779 = vunpack.c.l.b16 %v8484
      %v8780 = vunpack.c.l.b16 %v8485
      %v8781 = vunpack.c.l.b16 %v8486
      %v8782 = vunpack.c.l.b16 %v8487
      %v8783 = vunpack.c.l.b16 %v8488
      %v8784 = vunpack.c.l.b16 %v8489
      %v8785 = vunpack.c.l.b16 %v8490
      %v8786 = vunpack.c.l.b16 %v8491
      %v8787 = vunpack.c.l.b16 %v8492
      %v8788 = vunpack.c.l.b16 %v8493
      %v8789 = vunpack.c.l.b16 %v8494
      %v8790 = vunpack.c.l.b16 %v8495
      %v8791 = vpack.c.b16 %v8648, %v8647
      %v8792 = vpack.c.b16 %v8650, %v8649
      %v8793 = vpack.c.b16 %v8652, %v8651
      %v8794 = vpack.c.b16 %v8654, %v8653
      %v8795 = vpack.c.b16 %v8656, %v8655
      %v8796 = vpack.c.b16 %v8658, %v8657
      %v8797 = vpack.c.b16 %v8660, %v8659
      %v8798 = vpack.c.b16 %v8662, %v8661
      %v8799 = vpack.c.b16 %v8664, %v8663
      %v8800 = vpack.c.b16 %v8666, %v8665
      %v8801 = vpack.c.b16 %v8668, %v8667
      %v8802 = vpack.c.b16 %v8670, %v8669
      %v8803 = vpack.c.b16 %v8672, %v8671
      %v8804 = vpack.c.b16 %v8674, %v8673
      %v8805 = vpack.c.b16 %v8676, %v8675
      %v8806 = vpack.c.b16 %v8678, %v8677
      %v8807 = vpack.c.b16 %v8680, %v8679
      %v8808 = vpack.c.b16 %v8682, %v8681
      %v8809 = vpack.c.b16 %v8684, %v8683
      %v8810 = vpack.c.b16 %v8686, %v8685
      %v8811 = vpack.c.b16 %v8688, %v8687
      %v8812 = vpack.c.b16 %v8690, %v8689
      %v8813 = vpack.c.b16 %v8692, %v8691
      %v8814 = vpack.c.b16 %v8694, %v8693
      %v8815 = vpack.c.b16 %v8696, %v8695
      %v8816 = vpack.c.b16 %v8698, %v8697
      %v8817 = vpack.c.b16 %v8700, %v8699
      %v8818 = vpack.c.b16 %v8702, %v8701
      %v8819 = vpack.c.b16 %v8704, %v8703
      %v8820 = vpack.c.b16 %v8706, %v8705
      %v8821 = vpack.c.b16 %v8708, %v8707
      %v8822 = vpack.c.b16 %v8710, %v8709
      %v8823 = vpack.c.b16 %v8712, %v8711
      %v8824 = vpack.c.b16 %v8714, %v8713
      %v8825 = vpack.c.b16 %v8716, %v8715
      %v8826 = vpack.c.b16 %v8718, %v8717
      %v8827 = vpack.c.b16 %v8720, %v8719
      %v8828 = vpack.c.b16 %v8722, %v8721
      %v8829 = vpack.c.b16 %v8724, %v8723
      %v8830 = vpack.c.b16 %v8726, %v8725
      %v8831 = vpack.c.b16 %v8728, %v8727
      %v8832 = vpack.c.b16 %v8730, %v8729
      %v8833 = vpack.c.b16 %v8732, %v8731
      %v8834 = vpack.c.b16 %v8734, %v8733
      %v8835 = vpack.c.b16 %v8736, %v8735
      %v8836 = vpack.c.b16 %v8738, %v8737
      %v8837 = vpack.c.b16 %v8740, %v8739
      %v8838 = vpack.c.b16 %v8742, %v8741
      %v8839 = vpack.c.b16 %v8744, %v8743
      %v8840 = vpack.c.b16 %v8746, %v8745
      %v8841 = vpack.c.b16 %v8748, %v8747
      %v8842 = vpack.c.b16 %v8750, %v8749
      %v8843 = vpack.c.b16 %v8752, %v8751
      %v8844 = vpack.c.b16 %v8754, %v8753
      %v8845 = vpack.c.b16 %v8756, %v8755
      %v8846 = vpack.c.b16 %v8758, %v8757
      %v8847 = vpack.c.b16 %v8760, %v8759
      %v8848 = vpack.c.b16 %v8762, %v8761
      %v8849 = vpack.c.b16 %v8764, %v8763
      %v8850 = vpack.c.b16 %v8766, %v8765
      %v8851 = vpack.c.b16 %v8768, %v8767
      %v8852 = vpack.c.b16 %v8770, %v8769
      %v8853 = vpack.c.b16 %v8772, %v8771
      %v8854 = vpack.c.b16 %v8774, %v8773
      %v8855 = vpack.c.b16 %v8776, %v8775
      %v8856 = vpack.c.b16 %v8778, %v8777
      %v8857 = vpack.c.b16 %v8780, %v8779
      %v8858 = vpack.c.b16 %v8782, %v8781
      %v8859 = vpack.c.b16 %v8784, %v8783
      %v8860 = vpack.c.b16 %v8786, %v8785
      %v8861 = vpack.c.b16 %v8788, %v8787
      %v8862 = vpack.c.b16 %v8790, %v8789
      %8935 = vmatprep.subr.bf16.mxu0 0
      %8936 = vmatpush1.bf16.msra.mxu0 %v8791
      %8937 = vmatprep.subr.bf16.mxu0 0
      %8938 = vmatpush1.bf16.msra.mxu0 %v8792
      %8939 = vmatprep.subr.bf16.mxu0 0
      %8940 = vmatpush1.bf16.msra.mxu0 %v8793
      %8941 = vmatprep.subr.bf16.mxu0 0
      %8942 = vmatpush1.bf16.msra.mxu0 %v8794
      %8943 = vmatprep.subr.bf16.mxu0 0
      %8944 = vmatpush1.bf16.msra.mxu0 %v8795
      %8945 = vmatprep.subr.bf16.mxu0 0
      %8946 = vmatpush1.bf16.msra.mxu0 %v8796
      %8947 = vmatprep.subr.bf16.mxu0 0
      %8948 = vmatpush1.bf16.msra.mxu0 %v8797
      %8949 = vmatprep.subr.bf16.mxu0 0
      %8950 = vmatpush1.bf16.msra.mxu0 %v8798
      %8951 = vmatprep.subr.bf16.mxu0 0
      %8952 = vmatpush1.bf16.msra.mxu0 %v8799
      %8953 = vmatprep.subr.bf16.mxu0 0
      %8954 = vmatpush1.bf16.msra.mxu0 %v8800
      %8955 = vmatprep.subr.bf16.mxu0 0
      %8956 = vmatpush1.bf16.msra.mxu0 %v8801
      %8957 = vmatprep.subr.bf16.mxu0 0
      %8958 = vmatpush1.bf16.msra.mxu0 %v8802
      %8959 = vmatprep.subr.bf16.mxu0 0
      %8960 = vmatpush1.bf16.msra.mxu0 %v8803
      %8961 = vmatprep.subr.bf16.mxu0 0
      %8962 = vmatpush1.bf16.msra.mxu0 %v8804
      %8963 = vmatprep.subr.bf16.mxu0 0
      %8964 = vmatpush1.bf16.msra.mxu0 %v8805
      %8965 = vmatprep.subr.bf16.mxu0 0
      %8966 = vmatpush1.bf16.msra.mxu0 %v8806
      %8967 = vmatprep.mubr.bf16.mxu0 %v8216
      %8968 = vmatmul.mubr.bf16.gmra.mrb[0].mxu0 %v8200
      %v8969 = vpop.f32.mrb[0].mxu0
      %v8970 = vadd.f32 %v8501, %v8969
      %v8971 = vpop.f32.mrb[0].mxu0
      %v8972 = vpop.f32.mrb[0].mxu0
      %v8973 = vadd.f32 %v8501, %v8972
      %v8974 = vpop.f32.mrb[0].mxu0
      %8975 = vmatprep.mubr.bf16.mxu0 %v8217
      %8976 = vmatmul.mubr.bf16.gmra.mrb[0].mxu0 %v8201
      %v8977 = vpop.f32.mrb[0].mxu0
      %v8978 = vadd.f32 %v8501, %v8977
      %v8979 = vpop.f32.mrb[0].mxu0
      %v8980 = vpop.f32.mrb[0].mxu0
      %v8981 = vadd.f32 %v8501, %v8980
      %v8982 = vpop.f32.mrb[0].mxu0
      %8983 = vmatprep.mubr.bf16.mxu0 %v8218
      %8984 = vmatmul.mubr.bf16.gmra.mrb[0].mxu0 %v8202
      %v8985 = vpop.f32.mrb[0].mxu0
      %v8986 = vadd.f32 %v8501, %v8985
      %v8987 = vpop.f32.mrb[0].mxu0
      %v8988 = vpop.f32.mrb[0].mxu0
      %v8989 = vadd.f32 %v8501, %v8988
      %v8990 = vpop.f32.mrb[0].mxu0
      %8991 = vmatprep.mubr.bf16.mxu0 %v8219
      %8992 = vmatmul.mubr.bf16.gmra.mrb[0].mxu0 %v8203
      %v8993 = vpop.f32.mrb[0].mxu0
      %v8994 = vadd.f32 %v8501, %v8993
      %v8995 = vpop.f32.mrb[0].mxu0
      %v8996 = vpop.f32.mrb[0].mxu0
      %v8997 = vadd.f32 %v8501, %v8996
      %v8998 = vpop.f32.mrb[0].mxu0
      %8999 = vdwg.mxu0
      %9000 = vmatprep.subr.bf16.mxu0 0
      %9001 = vmatpush1.bf16.msra.mxu0 %v8807
      %9002 = vmatprep.subr.bf16.mxu0 0
      %9003 = vmatpush1.bf16.msra.mxu0 %v8808
      %9004 = vmatprep.subr.bf16.mxu0 0
      %9005 = vmatpush1.bf16.msra.mxu0 %v8809
      %9006 = vmatprep.subr.bf16.mxu0 0
      %9007 = vmatpush1.bf16.msra.mxu0 %v8810
      %9008 = vmatprep.subr.bf16.mxu0 0
      %9009 = vmatpush1.bf16.msra.mxu0 %v8811
      %9010 = vmatprep.subr.bf16.mxu0 0
      %9011 = vmatpush1.bf16.msra.mxu0 %v8812
      %9012 = vmatprep.subr.bf16.mxu0 0
      %9013 = vmatpush1.bf16.msra.mxu0 %v8813
      %9014 = vmatprep.subr.bf16.mxu0 0
      %9015 = vmatpush1.bf16.msra.mxu0 %v8814
      %9016 = vmatprep.subr.bf16.mxu0 0
      %9017 = vmatpush1.bf16.msra.mxu0 %v8815
      %9018 = vmatprep.subr.bf16.mxu0 0
      %9019 = vmatpush1.bf16.msra.mxu0 %v8816
      %9020 = vmatprep.subr.bf16.mxu0 0
      %9021 = vmatpush1.bf16.msra.mxu0 %v8817
      %9022 = vmatprep.subr.bf16.mxu0 0
      %9023 = vmatpush1.bf16.msra.mxu0 %v8818
      %9024 = vmatprep.subr.bf16.mxu0 0
      %9025 = vmatpush1.bf16.msra.mxu0 %v8819
      %9026 = vmatprep.subr.bf16.mxu0 0
      %9027 = vmatpush1.bf16.msra.mxu0 %v8820
      %9028 = vmatprep.subr.bf16.mxu0 0
      %9029 = vmatpush1.bf16.msra.mxu0 %v8821
      %9030 = vmatprep.subr.bf16.mxu0 0
      %9031 = vmatpush1.bf16.msra.mxu0 %v8822
      %9032 = vmatprep.mubr.bf16.mxu0 %v8256
      %9033 = vmatmul.mubr.bf16.gmra.mrb[0].mxu0 %v8232
      %v9034 = vpop.f32.mrb[0].mxu0
      %v9035 = vadd.f32 %v8970, %v9034
      %v9036 = vpop.f32.mrb[0].mxu0
      %v9037 = vpop.f32.mrb[0].mxu0
      %v9038 = vadd.f32 %v8973, %v9037
      %v9039 = vpop.f32.mrb[0].mxu0
      %9040 = vmatprep.mubr.bf16.mxu0 %v8257
      %9041 = vmatmul.mubr.bf16.gmra.mrb[0].mxu0 %v8233
      %v9042 = vpop.f32.mrb[0].mxu0
      %v9043 = vadd.f32 %v8978, %v9042
      %v9044 = vpop.f32.mrb[0].mxu0
      %v9045 = vpop.f32.mrb[0].mxu0
      %v9046 = vadd.f32 %v8981, %v9045
      %v9047 = vpop.f32.mrb[0].mxu0
      %9048 = vmatprep.mubr.bf16.mxu0 %v8258
      %9049 = vmatmul.mubr.bf16.gmra.mrb[0].mxu0 %v8234
      %v9050 = vpop.f32.mrb[0].mxu0
      %v9051 = vadd.f32 %v8986, %v9050
      %v9052 = vpop.f32.mrb[0].mxu0
      %v9053 = vpop.f32.mrb[0].mxu0
      %v9054 = vadd.f32 %v8989, %v9053
      %v9055 = vpop.f32.mrb[0].mxu0
      %9056 = vmatprep.mubr.bf16.mxu0 %v8259
      %9057 = vmatmul.mubr.bf16.gmra.mrb[0].mxu0 %v8235
      %v9058 = vpop.f32.mrb[0].mxu0
      %v9059 = vadd.f32 %v8994, %v9058
      %v9060 = vpop.f32.mrb[0].mxu0
      %v9061 = vpop.f32.mrb[0].mxu0
      %v9062 = vadd.f32 %v8997, %v9061
      %v9063 = vpop.f32.mrb[0].mxu0
      %9064 = vdwg.mxu0
      %9065 = vmatprep.subr.bf16.mxu0 0
      %9066 = vmatpush1.bf16.msra.mxu0 %v8823
      %9067 = vmatprep.subr.bf16.mxu0 0
      %9068 = vmatpush1.bf16.msra.mxu0 %v8824
      %9069 = vmatprep.subr.bf16.mxu0 0
      %9070 = vmatpush1.bf16.msra.mxu0 %v8825
      %9071 = vmatprep.subr.bf16.mxu0 0
      %9072 = vmatpush1.bf16.msra.mxu0 %v8826
      %9073 = vmatprep.subr.bf16.mxu0 0
      %9074 = vmatpush1.bf16.msra.mxu0 %v8827
      %9075 = vmatprep.subr.bf16.mxu0 0
      %9076 = vmatpush1.bf16.msra.mxu0 %v8828
      %9077 = vmatprep.subr.bf16.mxu0 0
      %9078 = vmatpush1.bf16.msra.mxu0 %v8829
      %9079 = vmatprep.subr.bf16.mxu0 0
      %9080 = vmatpush1.bf16.msra.mxu0 %v8830
      %9081 = vmatprep.subr.bf16.mxu0 0
      %9082 = vmatpush1.bf16.msra.mxu0 %v8831
      %9083 = vmatprep.subr.bf16.mxu0 0
      %9084 = vmatpush1.bf16.msra.mxu0 %v8832
      %9085 = vmatprep.subr.bf16.mxu0 0
      %9086 = vmatpush1.bf16.msra.mxu0 %v8833
      %9087 = vmatprep.subr.bf16.mxu0 0
      %9088 = vmatpush1.bf16.msra.mxu0 %v8834
      %9089 = vmatprep.subr.bf16.mxu0 0
      %9090 = vmatpush1.bf16.msra.mxu0 %v8835
      %9091 = vmatprep.subr.bf16.mxu0 0
      %9092 = vmatpush1.bf16.msra.mxu0 %v8836
      %9093 = vmatprep.subr.bf16.mxu0 0
      %9094 = vmatpush1.bf16.msra.mxu0 %v8837
      %9095 = vmatprep.subr.bf16.mxu0 0
      %9096 = vmatpush1.bf16.msra.mxu0 %v8838
      %9097 = vmatprep.mubr.bf16.mxu0 %v8288
      %9098 = vmatmul.mubr.bf16.gmra.mrb[0].mxu0 %v8272
      %v9099 = vpop.f32.mrb[0].mxu0
      %v9100 = vadd.f32 %v9035, %v9099
      %v9101 = vpop.f32.mrb[0].mxu0
      %v9102 = vpop.f32.mrb[0].mxu0
      %v9103 = vadd.f32 %v9038, %v9102
      %v9104 = vpop.f32.mrb[0].mxu0
      %9105 = vmatprep.mubr.bf16.mxu0 %v8289
      %9106 = vmatmul.mubr.bf16.gmra.mrb[0].mxu0 %v8273
      %v9107 = vpop.f32.mrb[0].mxu0
      %v9108 = vadd.f32 %v9043, %v9107
      %v9109 = vpop.f32.mrb[0].mxu0
      %v9110 = vpop.f32.mrb[0].mxu0
      %v9111 = vadd.f32 %v9046, %v9110
      %v9112 = vpop.f32.mrb[0].mxu0
      %9113 = vmatprep.mubr.bf16.mxu0 %v8290
      %9114 = vmatmul.mubr.bf16.gmra.mrb[0].mxu0 %v8274
      %v9115 = vpop.f32.mrb[0].mxu0
      %v9116 = vadd.f32 %v9051, %v9115
      %v9117 = vpop.f32.mrb[0].mxu0
      %v9118 = vpop.f32.mrb[0].mxu0
      %v9119 = vadd.f32 %v9054, %v9118
      %v9120 = vpop.f32.mrb[0].mxu0
      %9121 = vmatprep.mubr.bf16.mxu0 %v8291
      %9122 = vmatmul.mubr.bf16.gmra.mrb[0].mxu0 %v8275
      %v9123 = vpop.f32.mrb[0].mxu0
      %v9124 = vadd.f32 %v9059, %v9123
      %v9125 = vpop.f32.mrb[0].mxu0
      %v9126 = vpop.f32.mrb[0].mxu0
      %v9127 = vadd.f32 %v9062, %v9126
      %v9128 = vpop.f32.mrb[0].mxu0
      %9129 = vdwg.mxu0
      %9130 = vmatprep.subr.bf16.mxu0 0
      %9131 = vmatpush1.bf16.msra.mxu0 %v8839
      %9132 = vmatprep.subr.bf16.mxu0 0
      %9133 = vmatpush1.bf16.msra.mxu0 %v8840
      %9134 = vmatprep.subr.bf16.mxu0 0
      %9135 = vmatpush1.bf16.msra.mxu0 %v8841
      %9136 = vmatprep.subr.bf16.mxu0 0
      %9137 = vmatpush1.bf16.msra.mxu0 %v8842
      %9138 = vmatprep.subr.bf16.mxu0 0
      %9139 = vmatpush1.bf16.msra.mxu0 %v8843
      %9140 = vmatprep.subr.bf16.mxu0 0
      %9141 = vmatpush1.bf16.msra.mxu0 %v8844
      %9142 = vmatprep.subr.bf16.mxu0 0
      %9143 = vmatpush1.bf16.msra.mxu0 %v8845
      %9144 = vmatprep.subr.bf16.mxu0 0
      %9145 = vmatpush1.bf16.msra.mxu0 %v8846
      %9146 = vmatprep.subr.bf16.mxu0 0
      %9147 = vmatpush1.bf16.msra.mxu0 %v8847
      %9148 = vmatprep.subr.bf16.mxu0 0
      %9149 = vmatpush1.bf16.msra.mxu0 %v8848
      %9150 = vmatprep.subr.bf16.mxu0 0
      %9151 = vmatpush1.bf16.msra.mxu0 %v8849
      %9152 = vmatprep.subr.bf16.mxu0 0
      %9153 = vmatpush1.bf16.msra.mxu0 %v8850
      %9154 = vmatprep.subr.bf16.mxu0 0
      %9155 = vmatpush1.bf16.msra.mxu0 %v8851
      %9156 = vmatprep.subr.bf16.mxu0 0
      %9157 = vmatpush1.bf16.msra.mxu0 %v8852
      %9158 = vmatprep.subr.bf16.mxu0 0
      %9159 = vmatpush1.bf16.msra.mxu0 %v8853
      %9160 = vmatprep.subr.bf16.mxu0 0
      %9161 = vmatpush1.bf16.msra.mxu0 %v8854
      %9162 = vmatprep.mubr.bf16.mxu0 %v8328
      %9163 = vmatmul.mubr.bf16.gmra.mrb[0].mxu0 %v8312
      %v9164 = vpop.f32.mrb[0].mxu0
      %v9165 = vadd.f32 %v9100, %v9164
      %v9166 = vpop.f32.mrb[0].mxu0
      %v9167 = vpop.f32.mrb[0].mxu0
      %v9168 = vadd.f32 %v9103, %v9167
      %v9169 = vpop.f32.mrb[0].mxu0
      %9170 = vmatprep.mubr.bf16.mxu0 %v8329
      %9171 = vmatmul.mubr.bf16.gmra.mrb[0].mxu0 %v8313
      %v9172 = vpop.f32.mrb[0].mxu0
      %v9173 = vadd.f32 %v9108, %v9172
      %v9174 = vpop.f32.mrb[0].mxu0
      %v9175 = vpop.f32.mrb[0].mxu0
      %v9176 = vadd.f32 %v9111, %v9175
      %v9177 = vpop.f32.mrb[0].mxu0
      %9178 = vmatprep.mubr.bf16.mxu0 %v8330
      %9179 = vmatmul.mubr.bf16.gmra.mrb[0].mxu0 %v8314
      %v9180 = vpop.f32.mrb[0].mxu0
      %v9181 = vadd.f32 %v9116, %v9180
      %v9182 = vpop.f32.mrb[0].mxu0
      %v9183 = vpop.f32.mrb[0].mxu0
      %v9184 = vadd.f32 %v9119, %v9183
      %v9185 = vpop.f32.mrb[0].mxu0
      %9186 = vmatprep.mubr.bf16.mxu0 %v8331
      %9187 = vmatmul.mubr.bf16.gmra.mrb[0].mxu0 %v8315
      %v9188 = vpop.f32.mrb[0].mxu0
      %v9189 = vadd.f32 %v9124, %v9188
      %v9190 = vpop.f32.mrb[0].mxu0
      %v9191 = vpop.f32.mrb[0].mxu0
      %v9192 = vadd.f32 %v9127, %v9191
      %v9193 = vpop.f32.mrb[0].mxu0
      %9194 = vdwg.mxu0
      %9195 = vmatprep.subr.bf16.mxu0 0
      %9196 = vmatpush1.bf16.msra.mxu0 %v8855
      %9197 = vmatprep.subr.bf16.mxu0 0
      %9198 = vmatpush1.bf16.msra.mxu0 %v8856
      %9199 = vmatprep.subr.bf16.mxu0 0
      %9200 = vmatpush1.bf16.msra.mxu0 %v8857
      %9201 = vmatprep.subr.bf16.mxu0 0
      %9202 = vmatpush1.bf16.msra.mxu0 %v8858
      %9203 = vmatprep.subr.bf16.mxu0 0
      %9204 = vmatpush1.bf16.msra.mxu0 %v8859
      %9205 = vmatprep.subr.bf16.mxu0 0
      %9206 = vmatpush1.bf16.msra.mxu0 %v8860
      %9207 = vmatprep.subr.bf16.mxu0 0
      %9208 = vmatpush1.bf16.msra.mxu0 %v8861
      %9209 = vmatprep.subr.bf16.mxu0 0
      %9210 = vmatpush1.bf16.msra.mxu0 %v8862
      %9211 = vmatprep.subr.bf16.mxu0 0
      %9212 = vmatpush1.bf16.msra.mxu0 0
      %9213 = vmatprep.subr.bf16.mxu0 0
      %9214 = vmatpush1.bf16.msra.mxu0 0
      %9215 = vmatprep.subr.bf16.mxu0 0
      %9216 = vmatpush1.bf16.msra.mxu0 0
      %9217 = vmatprep.subr.bf16.mxu0 0
      %9218 = vmatpush1.bf16.msra.mxu0 0
      %9219 = vmatprep.subr.bf16.mxu0 0
      %9220 = vmatpush1.bf16.msra.mxu0 0
      %9221 = vmatprep.subr.bf16.mxu0 0
      %9222 = vmatpush1.bf16.msra.mxu0 0
      %9223 = vmatprep.subr.bf16.mxu0 0
      %9224 = vmatpush1.bf16.msra.mxu0 0
      %9225 = vmatprep.subr.bf16.mxu0 0
      %9226 = vmatpush1.bf16.msra.mxu0 0
      %9227 = vmatprep.mubr.bf16.mxu0 0
      %9228 = vmatmul.mubr.bf16.gmra.mrb[0].mxu0 %v8344
      %v9229 = vpop.f32.mrb[0].mxu0
      %v9230 = vadd.f32 %v9165, %v9229
      %v9231 = vpop.f32.mrb[0].mxu0
      %v9232 = vpop.f32.mrb[0].mxu0
      %v9233 = vadd.f32 %v9168, %v9232
      %v9234 = vpop.f32.mrb[0].mxu0
      %9235 = vmatprep.mubr.bf16.mxu0 0
      %9236 = vmatmul.mubr.bf16.gmra.mrb[0].mxu0 %v8345
      %v9237 = vpop.f32.mrb[0].mxu0
      %v9238 = vadd.f32 %v9173, %v9237
      %v9239 = vpop.f32.mrb[0].mxu0
      %v9240 = vpop.f32.mrb[0].mxu0
      %v9241 = vadd.f32 %v9176, %v9240
      %v9242 = vpop.f32.mrb[0].mxu0
      %9243 = vmatprep.mubr.bf16.mxu0 0
      %9244 = vmatmul.mubr.bf16.gmra.mrb[0].mxu0 %v8346
      %v9245 = vpop.f32.mrb[0].mxu0
      %v9246 = vadd.f32 %v9181, %v9245
      %v9247 = vpop.f32.mrb[0].mxu0
      %v9248 = vpop.f32.mrb[0].mxu0
      %v9249 = vadd.f32 %v9184, %v9248
      %v9250 = vpop.f32.mrb[0].mxu0
      %9251 = vmatprep.mubr.bf16.mxu0 0
      %9252 = vmatmul.mubr.bf16.gmra.mrb[0].mxu0 %v8347
      %v9253 = vpop.f32.mrb[0].mxu0
      %v9254 = vadd.f32 %v9189, %v9253
      %v9255 = vpop.f32.mrb[0].mxu0
      %v9256 = vpop.f32.mrb[0].mxu0
      %v9257 = vadd.f32 %v9192, %v9256
      %v9258 = vpop.f32.mrb[0].mxu0
      %9259 = vdwg.mxu0
      %v9260 = vmax.f32 %v9230, 0.0
      %v9261 = vmax.f32 %v9233, 0.0
      %v9262 = vmax.f32 %v9238, 0.0
      %v9263 = vmax.f32 %v9241, 0.0
      %v9264 = vmax.f32 %v9246, 0.0
      %v9265 = vmax.f32 %v9249, 0.0
      %v9266 = vmax.f32 %v9254, 0.0
      %v9267 = vmax.f32 %v9257, 0.0
      %v9268 = vpack.c.bf16 %v9261, %v9260
      %v9269 = vpack.c.bf16 %v9263, %v9262
      %v9270 = vpack.c.bf16 %v9265, %v9264
      %v9271 = vpack.c.bf16 %v9267, %v9266
      %v9272 = vld [vmem:[%s13] sm:$0xf]
      %v9273 = vld [vmem:[%s13 + $0x4] sm:$0xf]
      %v9274 = vld [vmem:[%s13 + $0x8] sm:$0xf]
      %v9275 = vld [vmem:[%s13 + $0xc] sm:$0xf]
      %v9276 = vld [vmem:[%s13 + $0x10] sm:$0xf]
      %v9277 = vld [vmem:[%s13 + $0x14] sm:$0xf]
      %v9278 = vld [vmem:[%s13 + $0x18] sm:$0xf]
      %v9279 = vld [vmem:[%s13 + $0x1c] sm:$0xf]
      %v9280 = vld [vmem:[%s13 + $0x20] sm:$0xf]
      %v9281 = vld [vmem:[%s13 + $0x24] sm:$0xf]
      %v9282 = vld [vmem:[%s13 + $0x28] sm:$0xf]
      %v9283 = vld [vmem:[%s13 + $0x2c] sm:$0xf]
      %v9284 = vld [vmem:[%s13 + $0x30] sm:$0xf]
      %v9285 = vld [vmem:[%s13 + $0x34] sm:$0xf]
      %v9286 = vld [vmem:[%s13 + $0x38] sm:$0xf]
      %v9287 = vld [vmem:[%s13 + $0x3c] sm:$0xf]
      %v9304 = vunpack.c.l.b16 %v9272
      %v9305 = vunpack.c.l.b16 %v9273
      %v9306 = vunpack.c.l.b16 %v9274
      %v9307 = vunpack.c.l.b16 %v9275
      %v9308 = vunpack.c.l.b16 %v9276
      %v9309 = vunpack.c.l.b16 %v9277
      %v9310 = vunpack.c.l.b16 %v9278
      %v9311 = vunpack.c.l.b16 %v9279
      %v9312 = vunpack.c.l.b16 %v9280
      %v9313 = vunpack.c.l.b16 %v9281
      %v9314 = vunpack.c.l.b16 %v9282
      %v9315 = vunpack.c.l.b16 %v9283
      %v9316 = vunpack.c.l.b16 %v9284
      %v9317 = vunpack.c.l.b16 %v9285
      %v9318 = vunpack.c.l.b16 %v9286
      %v9319 = vunpack.c.l.b16 %v9287
      %v9320 = vpack.c.b16 %v9305, %v9304
      %v9321 = vpack.c.b16 %v9307, %v9306
      %v9322 = vpack.c.b16 %v9309, %v9308
      %v9323 = vpack.c.b16 %v9311, %v9310
      %v9324 = vpack.c.b16 %v9313, %v9312
      %v9325 = vpack.c.b16 %v9315, %v9314
      %v9326 = vpack.c.b16 %v9317, %v9316
      %v9327 = vpack.c.b16 %v9319, %v9318
      %9336 = vmatprep.subr.bf16.mxu0 0
      %9337 = vmatpush1.bf16.msra.mxu0 %v9320
      %9338 = vmatprep.subr.bf16.mxu0 0
      %9339 = vmatpush1.bf16.msra.mxu0 %v9321
      %9340 = vmatprep.subr.bf16.mxu0 0
      %9341 = vmatpush1.bf16.msra.mxu0 %v9322
      %9342 = vmatprep.subr.bf16.mxu0 0
      %9343 = vmatpush1.bf16.msra.mxu0 %v9323
      %9344 = vmatprep.subr.bf16.mxu0 0
      %9345 = vmatpush1.bf16.msra.mxu0 %v9324
      %9346 = vmatprep.subr.bf16.mxu0 0
      %9347 = vmatpush1.bf16.msra.mxu0 %v9325
      %9348 = vmatprep.subr.bf16.mxu0 0
      %9349 = vmatpush1.bf16.msra.mxu0 %v9326
      %9350 = vmatprep.subr.bf16.mxu0 0
      %9351 = vmatpush1.bf16.msra.mxu0 %v9327
      %9352 = vmatprep.subr.bf16.mxu0 0
      %9353 = vmatpush1.bf16.msra.mxu0 0
      %9354 = vmatprep.subr.bf16.mxu0 0
      %9355 = vmatpush1.bf16.msra.mxu0 0
      %9356 = vmatprep.subr.bf16.mxu0 0
      %9357 = vmatpush1.bf16.msra.mxu0 0
      %9358 = vmatprep.subr.bf16.mxu0 0
      %9359 = vmatpush1.bf16.msra.mxu0 0
      %9360 = vmatprep.subr.bf16.mxu0 0
      %9361 = vmatpush1.bf16.msra.mxu0 0
      %9362 = vmatprep.subr.bf16.mxu0 0
      %9363 = vmatpush1.bf16.msra.mxu0 0
      %9364 = vmatprep.subr.bf16.mxu0 0
      %9365 = vmatpush1.bf16.msra.mxu0 0
      %9366 = vmatprep.subr.bf16.mxu0 0
      %9367 = vmatpush1.bf16.msra.mxu0 0
      %9368 = vmatprep.mubr.bf16.mxu0 0
      %9369 = vmatmul.mubr.bf16.gmra.mrb[0].mxu0 %v9268
      %v9370 = vpop.f32.mrb[0].mxu0
      %v9371 = vadd.f32 0.0, %v9370
      %v9372 = vpop.f32.mrb[0].mxu0
      %v9373 = vpop.f32.mrb[0].mxu0
      %v9374 = vadd.f32 0.0, %v9373
      %v9375 = vpop.f32.mrb[0].mxu0
      %9376 = vmatprep.mubr.bf16.mxu0 0
      %9377 = vmatmul.mubr.bf16.gmra.mrb[0].mxu0 %v9269
      %v9378 = vpop.f32.mrb[0].mxu0
      %v9379 = vadd.f32 0.0, %v9378
      %v9380 = vpop.f32.mrb[0].mxu0
      %v9381 = vpop.f32.mrb[0].mxu0
      %v9382 = vadd.f32 0.0, %v9381
      %v9383 = vpop.f32.mrb[0].mxu0
      %9384 = vmatprep.mubr.bf16.mxu0 0
      %9385 = vmatmul.mubr.bf16.gmra.mrb[0].mxu0 %v9270
      %v9386 = vpop.f32.mrb[0].mxu0
      %v9387 = vadd.f32 0.0, %v9386
      %v9388 = vpop.f32.mrb[0].mxu0
      %v9389 = vpop.f32.mrb[0].mxu0
      %v9390 = vadd.f32 0.0, %v9389
      %v9391 = vpop.f32.mrb[0].mxu0
      %9392 = vmatprep.mubr.bf16.mxu0 0
      %9393 = vmatmul.mubr.bf16.gmra.mrb[0].mxu0 %v9271
      %v9394 = vpop.f32.mrb[0].mxu0
      %v9395 = vadd.f32 0.0, %v9394
      %v9396 = vpop.f32.mrb[0].mxu0
      %v9397 = vpop.f32.mrb[0].mxu0
      %v9398 = vadd.f32 0.0, %v9397
      %v9399 = vpop.f32.mrb[0].mxu0
      %9400 = vdwg.mxu0
      %v9401 = vadd.f32 %v7465, %v9371
      %v9402 = vadd.f32 %v7466, %v9374
      %v9403 = vadd.f32 %v7467, %v9379
      %v9404 = vadd.f32 %v7468, %v9382
      %v9405 = vadd.f32 %v7469, %v9387
      %v9406 = vadd.f32 %v7470, %v9390
      %v9407 = vadd.f32 %v7471, %v9395
      %v9408 = vadd.f32 %v7472, %v9398
      %v9409 = vld [vmem:[%s14] sm:$0x1]
      %v9411 = vlaneseq
      %v9412 = vshrl.u32 %v9411, 7
      %v9413 = vsub.s32 0, %v9412
      %v9414 = vrot.slane %v9409, %v9413
      %v9416 = vadd.f32 %v9401, %v9414
      %v9417 = vadd.f32 %v9402, %v9414
      %v9418 = vadd.f32 %v9403, %v9414
      %v9419 = vadd.f32 %v9404, %v9414
      %v9420 = vadd.f32 %v9405, %v9414
      %v9421 = vadd.f32 %v9406, %v9414
      %v9422 = vadd.f32 %v9407, %v9414
      %v9423 = vadd.f32 %v9408, %v9414
      %v9424 = vmax.f32 %v9416, 0.0
      %v9425 = vmax.f32 %v9417, 0.0
      %v9426 = vmax.f32 %v9418, 0.0
      %v9427 = vmax.f32 %v9419, 0.0
      %v9428 = vmax.f32 %v9420, 0.0
      %v9429 = vmax.f32 %v9421, 0.0
      %v9430 = vmax.f32 %v9422, 0.0
      %v9431 = vmax.f32 %v9423, 0.0
      %9432 = vst [vmem:[%s494] sm:$0xff] %v9424
      %9433 = vst [vmem:[%s494 + $0x8] sm:$0xff] %v9425
      %9434 = vst [vmem:[%s494 + $0x10] sm:$0xff] %v9426
      %9435 = vst [vmem:[%s494 + $0x18] sm:$0xff] %v9427
      %9436 = vst [vmem:[%s494 + $0x20] sm:$0xff] %v9428
      %9437 = vst [vmem:[%s494 + $0x28] sm:$0xff] %v9429
      %9438 = vst [vmem:[%s494 + $0x30] sm:$0xff] %v9430
      %9439 = vst [vmem:[%s494 + $0x38] sm:$0xff] %v9431
      %p9440 = scmp.lt.s32.totalorder %s26, 1
      %s9441 = scalar_select %p9440, %s26, 1
      %s9442 = smul.addr %s9441, 8
      %s9443 = smul.addr %s9442, 8
      %s9444 = scalar_lea.vmem %s15, %s9443
      // Predicated region
      $region81: #{encoder_forward.1} parent=79 // pred_check
        %p9445 = pneg %p364
      $region82: #{encoder_forward.1} parent=79 // pred_check_branch
        %9447 = sbr.rel (%p9445) target = $region84
      $region83: #{encoder_forward.1} parent=79 // pred_region
        _
      $region84: #{encoder_forward.1} parent=79 // pred_fallthru
        _
    $region80: #{encoder_forward.1} parent=5 // pred_fallthru
      _
    %p9448 = scmp.le.s32.totalorder 2, %s21
    // Predicated region
    $region85: #{encoder_forward.1} parent=5 // pred_check
      %p9449 = pneg %p9448
    $region86: #{encoder_forward.1} parent=5 // pred_check_branch
      %9451 = sbr.rel (%p9449) target = $region88
    $region87: #{encoder_forward.1} parent=5 // pred_region
      %s9452 = ssub.s32 %s21, 2
      // Predicated region
      $region89: #{encoder_forward.1} parent=87 // pred_check
        %p9453 = pneg %p370
      $region90: #{encoder_forward.1} parent=87 // pred_check_branch
        %9455 = sbr.rel (%p9453) target = $region92
      $region91: #{encoder_forward.1} parent=87 // pred_region
        %p9456 = scmp.lt.s32.totalorder %s27, 1
        %s9457 = scalar_select %p9456, %s27, 1
        %s9458 = smul.addr %s9457, 8
        %s9459 = smul.addr %s9458, 8
        %s9460 = scalar_lea.vmem %s15, %s9459
      $region92: #{encoder_forward.1} parent=87 // pred_fallthru
        _
    $region88: #{encoder_forward.1} parent=5 // pred_fallthru
      _
  $region6: #{encoder_forward.1} parent=0 // loop_footer
    %s25 = sadd.s32 1, %s21
  $region7: #{encoder_forward.1} parent=0 // loop_footer_branch
    %20 = sbr.rel target = $region3
  $region8: #{encoder_forward.1} parent=0 // loop_exit
    _

</llo_original>
